<compile_context>
chip_gen: v7x
topology: tpu7x:2x2x1
jax: 0.10.0
libtpu: 0.0.40
codegen_flags: <defaults>
</compile_context>

<pallas_src>
import functools

import jax
import jax.numpy as jnp
from jax import lax
from jax.experimental import pallas as pl
from jax.experimental.pallas import tpu as pltpu

EMB_SIZE = 128          # emb_size constructor argument of ConvPatchEncoder
BN_EPS = 1e-5

_INV_SQRT2 = 0.7071067811865476


def _gelu_exact(x):
    # PyTorch nn.GELU default (approximate='none'): 0.5*x*(1+erf(x/sqrt(2)))
    return 0.5 * x * (1.0 + lax.erf(x * _INV_SQRT2))


# ----------------------------- fused block kernel ---------------------------

def _fused_encoder_kernel(x_ref, w1_ref, b1_ref, s1_ref, t1_ref,
                          w2_ref, b2_ref, s2_ref, t2_ref, o_ref,
                          slab1_ref, r_ref, a1_ref, slab2_ref, rm_ref,
                          *, H, W, C_IN, C1, C2, POOL_OUT):
    """Per-image: conv1+GELU+maxpool2+BN1, conv2+GELU+adaptive-maxpool+BN2.

    x_ref  : (1, H*W + 2, C_IN) f32  row-flattened NHWC image (+2 pad rows)
    w1_ref : (9*C_IN, C1) bf16       conv1 weights, row = tap*C_IN + cin
    w2_ref : (9*C1, C2)  bf16        conv2 weights, row = tap*C1 + cin
    b*/s*/t*: (1, C)                 bias / folded-BN scale / shift
    o_ref  : (1, POOL_OUT*POOL_OUT, C2) pooled features, row = w_out*5 + h_out
    """
    Ho = H - 2                     # conv1 valid rows
    Hp = Ho // 2                   # pooled rows
    Wq = W // 2                    # pooled width incl. one garbage column
    out_rows1 = Ho * W             # conv1 rows in row-flattened layout
    out_rows2 = (Hp - 2) * Wq      # conv2 rows in row-flattened layout

    # ---------------- conv1: K-folded im2col matmul + bias + GELU -----------
    x16 = x_ref[0].astype(jnp.bfloat16)                     # cast once
    for t in range(9):
        dy, dx = divmod(t, 3)
        shift = dy * W + dx
        slab1_ref[:, t * C_IN:(t + 1) * C_IN] = x16[shift:shift + out_rows1, :]
    y1 = jnp.dot(slab1_ref[...], w1_ref[...], preferred_element_type=jnp.float32)
    y1 = _gelu_exact(y1 + b1_ref[...])                      # (out_rows1, C1)

    # ---------------- MaxPool2d(2) + BN1 (folded affine) --------------------
    y4 = y1.reshape(Hp, 2, W, C1)                           # aligned reshape
    r_ref[...] = jnp.maximum(y4[:, 0], y4[:, 1]).reshape(Hp * W, C1)
    npool = Hp * Wq
    p = jnp.maximum(r_ref[pl.ds(0, npool, 2), :],           # even columns
                    r_ref[pl.ds(1, npool, 2), :])           # odd columns
    a1 = (p * s1_ref[...] + t1_ref[...]).astype(jnp.bfloat16)   # (Hp*Wq, C1)

    # conv2 input scratch: zero the padded tail, then write the activation
    a1_ref[...] = jnp.zeros_like(a1_ref)
    a1_ref[pl.ds(0, npool), :] = a1

    # ---------------- conv2: K-folded im2col matmul + bias + GELU -----------
    for t in range(9):
        dy, dx = divmod(t, 3)
        shift = dy * Wq + dx
        slab2_ref[:, t * C1:(t + 1) * C1] = a1_ref[pl.ds(shift, out_rows2), :]
    y2 = jnp.dot(slab2_ref[...], w2_ref[...], preferred_element_type=jnp.float32)
    y2 = _gelu_exact(y2 + b2_ref[...])                      # (out_rows2, C2)

    # ------------- AdaptiveMaxPool2d(POOL_OUT) + BN2, two-pass --------------
    Hin = Hp - 2                   # valid conv2 rows
    Win = Wq - 3                   # valid conv2 columns
    # pass 1: max over each row window (contiguous slabs of Wq rows)
    for i in range(POOL_OUT):
        h0 = (i * Hin) // POOL_OUT
        h1 = -(-((i + 1) * Hin) // POOL_OUT)
        m = y2[h0 * Wq:(h0 + 1) * Wq, :]
        for k in range(h0 + 1, h1):
            m = jnp.maximum(m, y2[k * Wq:(k + 1) * Wq, :])
        rm_ref[i] = m                                       # (Wq, C2)
    # pass 2: max over each column window + BN2, one dense (POOL_OUT, C2) store
    for j in range(POOL_OUT):
        w0 = (j * Win) // POOL_OUT
        w1 = -(-((j + 1) * Win) // POOL_OUT)
        v = jnp.max(rm_ref[:, w0:w1, :], axis=1)            # (POOL_OUT, C2)
        o_ref[0, j * POOL_OUT:(j + 1) * POOL_OUT, :] = v * s2_ref[...] + t2_ref[...]


def _fused_blocks(x_flat, params, H, W, pool_out=5):
    """x_flat: (N, H*W+2, 3) f32 -> pooled features (N, pool_out^2, 128) f32."""
    N = x_flat.shape[0]
    C_IN, C1, C2 = 3, 64, 128
    Ho, Hp, Wq = H - 2, (H - 2) // 2, W // 2
    out_rows1 = Ho * W
    out_rows2 = (Hp - 2) * Wq
    a_rows = ((2 * Wq + 2 + out_rows2 + 7) // 8) * 8        # conv2 activation rows + pad

    kernel = functools.partial(_fused_encoder_kernel, H=H, W=W, C_IN=C_IN,
                               C1=C1, C2=C2, POOL_OUT=pool_out)
    return pl.pallas_call(
        kernel,
        out_shape=jax.ShapeDtypeStruct((N, pool_out * pool_out, C2), jnp.float32),
        grid=(N,),
        in_specs=[
            pl.BlockSpec((1, H * W + 2, C_IN), lambda n: (n, 0, 0)),
            pl.BlockSpec((9 * C_IN, C1), lambda n: (0, 0)),
            pl.BlockSpec((1, C1), lambda n: (0, 0)),
            pl.BlockSpec((1, C1), lambda n: (0, 0)),
            pl.BlockSpec((1, C1), lambda n: (0, 0)),
            pl.BlockSpec((9 * C1, C2), lambda n: (0, 0)),
            pl.BlockSpec((1, C2), lambda n: (0, 0)),
            pl.BlockSpec((1, C2), lambda n: (0, 0)),
            pl.BlockSpec((1, C2), lambda n: (0, 0)),
        ],
        out_specs=pl.BlockSpec((1, pool_out * pool_out, C2), lambda n: (n, 0, 0)),
        scratch_shapes=[
            pltpu.VMEM((out_rows1, 9 * C_IN), jnp.bfloat16),   # conv1 im2col slab
            pltpu.VMEM((Hp * W, C1), jnp.float32),             # row-pair max buffer
            pltpu.VMEM((a_rows, C1), jnp.bfloat16),            # conv2 input (flat, padded)
            pltpu.VMEM((out_rows2, 9 * C1), jnp.bfloat16),     # conv2 im2col slab
            pltpu.VMEM((pool_out, Wq, C2), jnp.float32),       # adaptive-pool pass-1 buffer
        ],
        compiler_params=pltpu.CompilerParams(dimension_semantics=("parallel",)),
    )(x_flat, params['w1f'], params['b1'], params['s1'], params['t1'],
      params['w2f'], params['b2'], params['s2'], params['t2'])


# ------------------------------ final Linear --------------------------------

def _fc_kernel(x_ref, w_ref, b_ref, o_ref):
    o_ref[...] = jnp.dot(x_ref[...].astype(jnp.bfloat16), w_ref[...],
                         preferred_element_type=jnp.float32) + b_ref[...]


def _fc(feats, fc_wt, fc_b):
    """feats: (N, 3200) f32; fc_wt: (3200, E) bf16 (rows pre-permuted); fc_b: (1, E)."""
    N = feats.shape[0]
    E = fc_wt.shape[1]
    return pl.pallas_call(
        _fc_kernel,
        out_shape=jax.ShapeDtypeStruct((N, E), jnp.float32),
    )(feats, fc_wt, fc_b)


# ------------------------------ parameters ----------------------------------

def _fold_bn(gamma, beta, mean, var, eps=BN_EPS):
    scale = gamma * lax.rsqrt(var + eps)
    shift = beta - mean * scale
    return scale, shift


def init_params(key, emb_size=EMB_SIZE):
    k = jax.random.split(key, 6)
    w1 = jax.random.normal(k[0], (64, 3, 3, 3), jnp.float32) * (2.0 / (3 * 9)) ** 0.5
    b1 = jax.random.normal(k[1], (64,), jnp.float32) * 0.01
    w2 = jax.random.normal(k[2], (128, 64, 3, 3), jnp.float32) * (2.0 / (64 * 9)) ** 0.5
    b2 = jax.random.normal(k[3], (128,), jnp.float32) * 0.01

    # TODO(synk): BatchNorm2d is implemented in inference mode (running stats /
    # affine folded to per-channel scale+shift); training-mode batch statistics
    # are not computed in-kernel.
    s1, t1 = _fold_bn(jnp.ones(64), jnp.zeros(64), jnp.zeros(64), jnp.ones(64))
    s2, t2 = _fold_bn(jnp.ones(128), jnp.zeros(128), jnp.zeros(128), jnp.ones(128))

    fc_w = jax.random.normal(k[4], (emb_size, 3200), jnp.float32) * (1.0 / 3200) ** 0.5
    fc_b = jax.random.normal(k[5], (emb_size,), jnp.float32) * (1.0 / 3200) ** 0.5

    # FC weight rows permuted once so they match the kernel's pooled layout
    # (row = w_out*5 + h_out, lane = channel) versus PyTorch's CHW flatten.
    fc_wt = jnp.transpose(fc_w.reshape(emb_size, 128, 5, 5), (3, 2, 1, 0))
    fc_wt = fc_wt.reshape(3200, emb_size).astype(jnp.bfloat16)

    return {
        # K-folded conv weights, row index = (dy*3 + dx)*Cin + cin, bf16
        'w1f': jnp.transpose(w1, (2, 3, 1, 0)).reshape(27, 64).astype(jnp.bfloat16),
        'b1': b1.reshape(1, 64),
        'w2f': jnp.transpose(w2, (2, 3, 1, 0)).reshape(576, 128).astype(jnp.bfloat16),
        'b2': b2.reshape(1, 128),
        's1': s1.reshape(1, 64), 't1': t1.reshape(1, 64),
        's2': s2.reshape(1, 128), 't2': t2.reshape(1, 128),
        'fc_wt': fc_wt,                 # (3200, E), rows permuted, transposed once
        'fc_b': fc_b.reshape(1, emb_size),
    }


# -------------------------------- forward -----------------------------------

def conv_patch_encoder_forward(params, x_nchw):
    N, _, H, W = x_nchw.shape
    assert H % 2 == 0 and W % 2 == 0 and H >= 8 and W >= 8
    x = jnp.transpose(x_nchw, (0, 2, 3, 1)).astype(jnp.float32)   # NCHW -> NHWC
    x = x.reshape(N, H * W, 3)
    x = jnp.pad(x, ((0, 0), (0, 2), (0, 0)))                      # keep conv1 shifts in-bounds
    pooled = _fused_blocks(x, params, H, W, pool_out=5)           # (N, 25, 128)
    feats = pooled.reshape(N, 3200)                               # free (contiguous) reshape
    return _fc(feats, params['fc_wt'], params['fc_b'])


if __name__ == "__main__":
    key = jax.random.PRNGKey(0)
    pkey, xkey = jax.random.split(key)
    params = init_params(pkey, emb_size=EMB_SIZE)
    # 32x32 input: conv->30, pool->15, conv->13, adaptive pool->5, 128*5*5 = 3200
    x = jax.random.normal(xkey, (2, 3, 32, 32), jnp.float32)      # NCHW
    fwd = jax.jit(conv_patch_encoder_forward)
    out = fwd(params, x)
    jax.block_until_ready(out)
    assert out.shape == (2, EMB_SIZE)
    assert bool(jnp.isfinite(out).all())
    print("KERNEL_OK")
</pallas_src>

<mosaic_0001>
module attributes {stable_mosaic.version = 11 : i64} {
  func.func @_fused_encoder_kernel(%arg0: i32, %arg1: memref<1x1026x3xf32, #tpu.memory_space<vmem>>, %arg2: memref<27x64xbf16, #tpu.memory_space<vmem>>, %arg3: memref<1x64xf32, #tpu.memory_space<vmem>>, %arg4: memref<1x64xf32, #tpu.memory_space<vmem>>, %arg5: memref<1x64xf32, #tpu.memory_space<vmem>>, %arg6: memref<576x128xbf16, #tpu.memory_space<vmem>>, %arg7: memref<1x128xf32, #tpu.memory_space<vmem>>, %arg8: memref<1x128xf32, #tpu.memory_space<vmem>>, %arg9: memref<1x128xf32, #tpu.memory_space<vmem>>, %arg10: memref<1x25x128xf32, #tpu.memory_space<vmem>>, %arg11: memref<960x27xbf16, #tpu.memory_space<vmem>>, %arg12: memref<480x64xf32, #tpu.memory_space<vmem>>, %arg13: memref<248x64xbf16, #tpu.memory_space<vmem>>, %arg14: memref<208x576xbf16, #tpu.memory_space<vmem>>, %arg15: memref<5x16x128xf32, #tpu.memory_space<vmem>>) attributes {dimension_semantics = [#tpu.dimension_semantics<parallel>], iteration_bounds = array<i64: 2>, scalar_prefetch = 0 : i64, scratch_operands = 5 : i64, tpu.core_type = #tpu.core_type<tc>, window_params = [{transform_indices = @transform_0, window_bounds = array<i64: 1, 1026, 3>}, {pipeline_mode = #tpu.pipeline_mode<synchronous>, transform_indices = @transform_1, window_bounds = array<i64: 27, 64>}, {pipeline_mode = #tpu.pipeline_mode<synchronous>, transform_indices = @transform_2, window_bounds = array<i64: 1, 64>}, {pipeline_mode = #tpu.pipeline_mode<synchronous>, transform_indices = @transform_3, window_bounds = array<i64: 1, 64>}, {pipeline_mode = #tpu.pipeline_mode<synchronous>, transform_indices = @transform_4, window_bounds = array<i64: 1, 64>}, {pipeline_mode = #tpu.pipeline_mode<synchronous>, transform_indices = @transform_5, window_bounds = array<i64: 576, 128>}, {pipeline_mode = #tpu.pipeline_mode<synchronous>, transform_indices = @transform_6, window_bounds = array<i64: 1, 128>}, {pipeline_mode = #tpu.pipeline_mode<synchronous>, transform_indices = @transform_7, window_bounds = array<i64: 1, 128>}, {pipeline_mode = #tpu.pipeline_mode<synchronous>, transform_indices = @transform_8, window_bounds = array<i64: 1, 128>}, {transform_indices = @transform_9, window_bounds = array<i64: 1, 25, 128>}]} {
    %c0 = arith.constant 0 : index
    %c0_0 = arith.constant 0 : index
    %c0_1 = arith.constant 0 : index
    %0 = vector.load %arg1[%c0, %c0_0, %c0_1] : memref<1x1026x3xf32, #tpu.memory_space<vmem>>, vector<1x1026x3xf32>
    %1 = vector.shape_cast %0 : vector<1x1026x3xf32> to vector<1026x3xf32>
    %2 = arith.truncf %1 : vector<1026x3xf32> to vector<1026x3xbf16>
    %3 = vector.extract_strided_slice %2 {offsets = [0, 0], sizes = [960, 3], strides = [1, 1]} : vector<1026x3xbf16> to vector<960x3xbf16>
    %c0_2 = arith.constant 0 : index
    %c0_3 = arith.constant 0 : index
    %4 = vector.load %arg11[%c0_2, %c0_3] : memref<960x27xbf16, #tpu.memory_space<vmem>>, vector<960x3xbf16>
    tpu.vector_store %arg11[%c0_2, %c0_3], %3 {strides = array<i32>} : memref<960x27xbf16, #tpu.memory_space<vmem>>, vector<960x3xbf16>,
    %5 = vector.extract_strided_slice %2 {offsets = [1, 0], sizes = [960, 3], strides = [1, 1]} : vector<1026x3xbf16> to vector<960x3xbf16>
    %c0_4 = arith.constant 0 : index
    %c3 = arith.constant 3 : index
    %6 = vector.load %arg11[%c0_4, %c3] : memref<960x27xbf16, #tpu.memory_space<vmem>>, vector<960x3xbf16>
    tpu.vector_store %arg11[%c0_4, %c3], %5 {strides = array<i32>} : memref<960x27xbf16, #tpu.memory_space<vmem>>, vector<960x3xbf16>,
    %7 = vector.extract_strided_slice %2 {offsets = [2, 0], sizes = [960, 3], strides = [1, 1]} : vector<1026x3xbf16> to vector<960x3xbf16>
    %c0_5 = arith.constant 0 : index
    %c6 = arith.constant 6 : index
    %8 = vector.load %arg11[%c0_5, %c6] : memref<960x27xbf16, #tpu.memory_space<vmem>>, vector<960x3xbf16>
    tpu.vector_store %arg11[%c0_5, %c6], %7 {strides = array<i32>} : memref<960x27xbf16, #tpu.memory_space<vmem>>, vector<960x3xbf16>,
    %9 = vector.extract_strided_slice %2 {offsets = [32, 0], sizes = [960, 3], strides = [1, 1]} : vector<1026x3xbf16> to vector<960x3xbf16>
    %c0_6 = arith.constant 0 : index
    %c9 = arith.constant 9 : index
    %10 = vector.load %arg11[%c0_6, %c9] : memref<960x27xbf16, #tpu.memory_space<vmem>>, vector<960x3xbf16>
    tpu.vector_store %arg11[%c0_6, %c9], %9 {strides = array<i32>} : memref<960x27xbf16, #tpu.memory_space<vmem>>, vector<960x3xbf16>,
    %11 = vector.extract_strided_slice %2 {offsets = [33, 0], sizes = [960, 3], strides = [1, 1]} : vector<1026x3xbf16> to vector<960x3xbf16>
    %c0_7 = arith.constant 0 : index
    %c12 = arith.constant 12 : index
    %12 = vector.load %arg11[%c0_7, %c12] : memref<960x27xbf16, #tpu.memory_space<vmem>>, vector<960x3xbf16>
    tpu.vector_store %arg11[%c0_7, %c12], %11 {strides = array<i32>} : memref<960x27xbf16, #tpu.memory_space<vmem>>, vector<960x3xbf16>,
    %13 = vector.extract_strided_slice %2 {offsets = [34, 0], sizes = [960, 3], strides = [1, 1]} : vector<1026x3xbf16> to vector<960x3xbf16>
    %c0_8 = arith.constant 0 : index
    %c15 = arith.constant 15 : index
    %14 = vector.load %arg11[%c0_8, %c15] : memref<960x27xbf16, #tpu.memory_space<vmem>>, vector<960x3xbf16>
    tpu.vector_store %arg11[%c0_8, %c15], %13 {strides = array<i32>} : memref<960x27xbf16, #tpu.memory_space<vmem>>, vector<960x3xbf16>,
    %15 = vector.extract_strided_slice %2 {offsets = [64, 0], sizes = [960, 3], strides = [1, 1]} : vector<1026x3xbf16> to vector<960x3xbf16>
    %c0_9 = arith.constant 0 : index
    %c18 = arith.constant 18 : index
    %16 = vector.load %arg11[%c0_9, %c18] : memref<960x27xbf16, #tpu.memory_space<vmem>>, vector<960x3xbf16>
    tpu.vector_store %arg11[%c0_9, %c18], %15 {strides = array<i32>} : memref<960x27xbf16, #tpu.memory_space<vmem>>, vector<960x3xbf16>,
    %17 = vector.extract_strided_slice %2 {offsets = [65, 0], sizes = [960, 3], strides = [1, 1]} : vector<1026x3xbf16> to vector<960x3xbf16>
    %c0_10 = arith.constant 0 : index
    %c21 = arith.constant 21 : index
    %18 = vector.load %arg11[%c0_10, %c21] : memref<960x27xbf16, #tpu.memory_space<vmem>>, vector<960x3xbf16>
    tpu.vector_store %arg11[%c0_10, %c21], %17 {strides = array<i32>} : memref<960x27xbf16, #tpu.memory_space<vmem>>, vector<960x3xbf16>,
    %19 = vector.extract_strided_slice %2 {offsets = [66, 0], sizes = [960, 3], strides = [1, 1]} : vector<1026x3xbf16> to vector<960x3xbf16>
    %c0_11 = arith.constant 0 : index
    %c24 = arith.constant 24 : index
    %20 = vector.load %arg11[%c0_11, %c24] : memref<960x27xbf16, #tpu.memory_space<vmem>>, vector<960x3xbf16>
    tpu.vector_store %arg11[%c0_11, %c24], %19 {strides = array<i32>} : memref<960x27xbf16, #tpu.memory_space<vmem>>, vector<960x3xbf16>,
    %c0_12 = arith.constant 0 : index
    %c0_13 = arith.constant 0 : index
    %21 = vector.load %arg11[%c0_12, %c0_13] : memref<960x27xbf16, #tpu.memory_space<vmem>>, vector<960x27xbf16>
    %c0_14 = arith.constant 0 : index
    %c0_15 = arith.constant 0 : index
    %22 = vector.load %arg2[%c0_14, %c0_15] : memref<27x64xbf16, #tpu.memory_space<vmem>>, vector<27x64xbf16>
    %cst = arith.constant dense<0.000000e+00> : vector<960x64xf32>
    %23 = tpu.matmul %21, %22, %cst {dimension_numbers = #tpu.dot_dimension_numbers<[1], [0], [0], [1], [0, 0, 1, 1], [], []>} : vector<960x27xbf16>, vector<27x64xbf16>, vector<960x64xf32> -> vector<960x64xf32>
    %c0_16 = arith.constant 0 : index
    %c0_17 = arith.constant 0 : index
    %24 = vector.load %arg3[%c0_16, %c0_17] : memref<1x64xf32, #tpu.memory_space<vmem>>, vector<1x64xf32>
    %25 = vector.broadcast %24 : vector<1x64xf32> to vector<960x64xf32>
    %26 = arith.addf %23, %25 : vector<960x64xf32>
    %cst_18 = arith.constant 5.000000e-01 : f32
    %27 = vector.broadcast %cst_18 : f32 to vector<960x64xf32>
    %28 = arith.mulf %27, %26 : vector<960x64xf32>
    %cst_19 = arith.constant 0.707106769 : f32
    %29 = vector.broadcast %cst_19 : f32 to vector<960x64xf32>
    %30 = arith.mulf %26, %29 : vector<960x64xf32>
    %31 = math.erf %30 : vector<960x64xf32>
    %cst_20 = arith.constant 1.000000e+00 : f32
    %32 = vector.broadcast %cst_20 : f32 to vector<960x64xf32>
    %33 = arith.addf %32, %31 : vector<960x64xf32>
    %34 = arith.mulf %28, %33 : vector<960x64xf32>
    %35 = vector.shape_cast %34 : vector<960x64xf32> to vector<15x2x32x64xf32>
    %36 = vector.extract_strided_slice %35 {offsets = [0, 0, 0, 0], sizes = [15, 1, 32, 64], strides = [1, 1, 1, 1]} : vector<15x2x32x64xf32> to vector<15x1x32x64xf32>
    %37 = vector.shape_cast %36 : vector<15x1x32x64xf32> to vector<15x32x64xf32>
    %38 = vector.extract_strided_slice %35 {offsets = [0, 1, 0, 0], sizes = [15, 1, 32, 64], strides = [1, 1, 1, 1]} : vector<15x2x32x64xf32> to vector<15x1x32x64xf32>
    %39 = vector.shape_cast %38 : vector<15x1x32x64xf32> to vector<15x32x64xf32>
    %40 = arith.maximumf %37, %39 : vector<15x32x64xf32>
    %41 = vector.shape_cast %40 : vector<15x32x64xf32> to vector<480x64xf32>
    %c0_21 = arith.constant 0 : index
    %c0_22 = arith.constant 0 : index
    %42 = vector.load %arg12[%c0_21, %c0_22] : memref<480x64xf32, #tpu.memory_space<vmem>>, vector<480x64xf32>
    tpu.vector_store %arg12[%c0_21, %c0_22], %41 {strides = array<i32>} : memref<480x64xf32, #tpu.memory_space<vmem>>, vector<480x64xf32>,
    %c0_23 = arith.constant 0 : index
    %c0_24 = arith.constant 0 : index
    %43 = tpu.strided_load %arg12[%c0_23, %c0_24] {strides = array<i32: 2, 1>} : memref<480x64xf32, #tpu.memory_space<vmem>>, vector<240x64xf32>
    %c1 = arith.constant 1 : index
    %c0_25 = arith.constant 0 : index
    %44 = tpu.strided_load %arg12[%c1, %c0_25] {strides = array<i32: 2, 1>} : memref<480x64xf32, #tpu.memory_space<vmem>>, vector<240x64xf32>
    %45 = arith.maximumf %43, %44 : vector<240x64xf32>
    %c0_26 = arith.constant 0 : index
    %c0_27 = arith.constant 0 : index
    %46 = vector.load %arg4[%c0_26, %c0_27] : memref<1x64xf32, #tpu.memory_space<vmem>>, vector<1x64xf32>
    %47 = vector.broadcast %46 : vector<1x64xf32> to vector<240x64xf32>
    %48 = arith.mulf %45, %47 : vector<240x64xf32>
    %c0_28 = arith.constant 0 : index
    %c0_29 = arith.constant 0 : index
    %49 = vector.load %arg5[%c0_28, %c0_29] : memref<1x64xf32, #tpu.memory_space<vmem>>, vector<1x64xf32>
    %50 = vector.broadcast %49 : vector<1x64xf32> to vector<240x64xf32>
    %51 = arith.addf %48, %50 : vector<240x64xf32>
    %52 = arith.truncf %51 : vector<240x64xf32> to vector<240x64xbf16>
    %cst_30 = arith.constant 0.000000e+00 : bf16
    %53 = vector.broadcast %cst_30 : bf16 to vector<248x64xbf16>
    %c0_31 = arith.constant 0 : index
    %c0_32 = arith.constant 0 : index
    %54 = vector.load %arg13[%c0_31, %c0_32] : memref<248x64xbf16, #tpu.memory_space<vmem>>, vector<248x64xbf16>
    tpu.vector_store %arg13[%c0_31, %c0_32], %53 {strides = array<i32>} : memref<248x64xbf16, #tpu.memory_space<vmem>>, vector<248x64xbf16>,
    %c0_33 = arith.constant 0 : index
    %c0_34 = arith.constant 0 : index
    %55 = vector.load %arg13[%c0_33, %c0_34] : memref<248x64xbf16, #tpu.memory_space<vmem>>, vector<240x64xbf16>
    tpu.vector_store %arg13[%c0_33, %c0_34], %52 {strides = array<i32>} : memref<248x64xbf16, #tpu.memory_space<vmem>>, vector<240x64xbf16>,
    %c0_35 = arith.constant 0 : index
    %c0_36 = arith.constant 0 : index
    %56 = vector.load %arg13[%c0_35, %c0_36] : memref<248x64xbf16, #tpu.memory_space<vmem>>, vector<208x64xbf16>
    %c0_37 = arith.constant 0 : index
    %c0_38 = arith.constant 0 : index
    %57 = vector.load %arg14[%c0_37, %c0_38] : memref<208x576xbf16, #tpu.memory_space<vmem>>, vector<208x64xbf16>
    tpu.vector_store %arg14[%c0_37, %c0_38], %56 {strides = array<i32>} : memref<208x576xbf16, #tpu.memory_space<vmem>>, vector<208x64xbf16>,
    %c1_39 = arith.constant 1 : index
    %c0_40 = arith.constant 0 : index
    %58 = vector.load %arg13[%c1_39, %c0_40] : memref<248x64xbf16, #tpu.memory_space<vmem>>, vector<208x64xbf16>
    %c0_41 = arith.constant 0 : index
    %c64 = arith.constant 64 : index
    %59 = vector.load %arg14[%c0_41, %c64] : memref<208x576xbf16, #tpu.memory_space<vmem>>, vector<208x64xbf16>
    tpu.vector_store %arg14[%c0_41, %c64], %58 {strides = array<i32>} : memref<208x576xbf16, #tpu.memory_space<vmem>>, vector<208x64xbf16>,
    %c2 = arith.constant 2 : index
    %c0_42 = arith.constant 0 : index
    %60 = vector.load %arg13[%c2, %c0_42] : memref<248x64xbf16, #tpu.memory_space<vmem>>, vector<208x64xbf16>
    %c0_43 = arith.constant 0 : index
    %c128 = arith.constant 128 : index
    %61 = vector.load %arg14[%c0_43, %c128] : memref<208x576xbf16, #tpu.memory_space<vmem>>, vector<208x64xbf16>
    tpu.vector_store %arg14[%c0_43, %c128], %60 {strides = array<i32>} : memref<208x576xbf16, #tpu.memory_space<vmem>>, vector<208x64xbf16>,
    %c16 = arith.constant 16 : index
    %c0_44 = arith.constant 0 : index
    %62 = vector.load %arg13[%c16, %c0_44] : memref<248x64xbf16, #tpu.memory_space<vmem>>, vector<208x64xbf16>
    %c0_45 = arith.constant 0 : index
    %c192 = arith.constant 192 : index
    %63 = vector.load %arg14[%c0_45, %c192] : memref<208x576xbf16, #tpu.memory_space<vmem>>, vector<208x64xbf16>
    tpu.vector_store %arg14[%c0_45, %c192], %62 {strides = array<i32>} : memref<208x576xbf16, #tpu.memory_space<vmem>>, vector<208x64xbf16>,
    %c17 = arith.constant 17 : index
    %c0_46 = arith.constant 0 : index
    %64 = vector.load %arg13[%c17, %c0_46] : memref<248x64xbf16, #tpu.memory_space<vmem>>, vector<208x64xbf16>
    %c0_47 = arith.constant 0 : index
    %c256 = arith.constant 256 : index
    %65 = vector.load %arg14[%c0_47, %c256] : memref<208x576xbf16, #tpu.memory_space<vmem>>, vector<208x64xbf16>
    tpu.vector_store %arg14[%c0_47, %c256], %64 {strides = array<i32>} : memref<208x576xbf16, #tpu.memory_space<vmem>>, vector<208x64xbf16>,
    %c18_48 = arith.constant 18 : index
    %c0_49 = arith.constant 0 : index
    %66 = vector.load %arg13[%c18_48, %c0_49] : memref<248x64xbf16, #tpu.memory_space<vmem>>, vector<208x64xbf16>
    %c0_50 = arith.constant 0 : index
    %c320 = arith.constant 320 : index
    %67 = vector.load %arg14[%c0_50, %c320] : memref<208x576xbf16, #tpu.memory_space<vmem>>, vector<208x64xbf16>
    tpu.vector_store %arg14[%c0_50, %c320], %66 {strides = array<i32>} : memref<208x576xbf16, #tpu.memory_space<vmem>>, vector<208x64xbf16>,
    %c32 = arith.constant 32 : index
    %c0_51 = arith.constant 0 : index
    %68 = vector.load %arg13[%c32, %c0_51] : memref<248x64xbf16, #tpu.memory_space<vmem>>, vector<208x64xbf16>
    %c0_52 = arith.constant 0 : index
    %c384 = arith.constant 384 : index
    %69 = vector.load %arg14[%c0_52, %c384] : memref<208x576xbf16, #tpu.memory_space<vmem>>, vector<208x64xbf16>
    tpu.vector_store %arg14[%c0_52, %c384], %68 {strides = array<i32>} : memref<208x576xbf16, #tpu.memory_space<vmem>>, vector<208x64xbf16>,
    %c33 = arith.constant 33 : index
    %c0_53 = arith.constant 0 : index
    %70 = vector.load %arg13[%c33, %c0_53] : memref<248x64xbf16, #tpu.memory_space<vmem>>, vector<208x64xbf16>
    %c0_54 = arith.constant 0 : index
    %c448 = arith.constant 448 : index
    %71 = vector.load %arg14[%c0_54, %c448] : memref<208x576xbf16, #tpu.memory_space<vmem>>, vector<208x64xbf16>
    tpu.vector_store %arg14[%c0_54, %c448], %70 {strides = array<i32>} : memref<208x576xbf16, #tpu.memory_space<vmem>>, vector<208x64xbf16>,
    %c34 = arith.constant 34 : index
    %c0_55 = arith.constant 0 : index
    %72 = vector.load %arg13[%c34, %c0_55] : memref<248x64xbf16, #tpu.memory_space<vmem>>, vector<208x64xbf16>
    %c0_56 = arith.constant 0 : index
    %c512 = arith.constant 512 : index
    %73 = vector.load %arg14[%c0_56, %c512] : memref<208x576xbf16, #tpu.memory_space<vmem>>, vector<208x64xbf16>
    tpu.vector_store %arg14[%c0_56, %c512], %72 {strides = array<i32>} : memref<208x576xbf16, #tpu.memory_space<vmem>>, vector<208x64xbf16>,
    %c0_57 = arith.constant 0 : index
    %c0_58 = arith.constant 0 : index
    %74 = vector.load %arg14[%c0_57, %c0_58] : memref<208x576xbf16, #tpu.memory_space<vmem>>, vector<208x576xbf16>
    %c0_59 = arith.constant 0 : index
    %c0_60 = arith.constant 0 : index
    %75 = vector.load %arg6[%c0_59, %c0_60] : memref<576x128xbf16, #tpu.memory_space<vmem>>, vector<576x128xbf16>
    %cst_61 = arith.constant dense<0.000000e+00> : vector<208x128xf32>
    %76 = tpu.matmul %74, %75, %cst_61 {dimension_numbers = #tpu.dot_dimension_numbers<[1], [0], [0], [1], [0, 0, 1, 1], [], []>} : vector<208x576xbf16>, vector<576x128xbf16>, vector<208x128xf32> -> vector<208x128xf32>
    %c0_62 = arith.constant 0 : index
    %c0_63 = arith.constant 0 : index
    %77 = vector.load %arg7[%c0_62, %c0_63] : memref<1x128xf32, #tpu.memory_space<vmem>>, vector<1x128xf32>
    %78 = vector.broadcast %77 : vector<1x128xf32> to vector<208x128xf32>
    %79 = arith.addf %76, %78 : vector<208x128xf32>
    %cst_64 = arith.constant 5.000000e-01 : f32
    %80 = vector.broadcast %cst_64 : f32 to vector<208x128xf32>
    %81 = arith.mulf %80, %79 : vector<208x128xf32>
    %cst_65 = arith.constant 0.707106769 : f32
    %82 = vector.broadcast %cst_65 : f32 to vector<208x128xf32>
    %83 = arith.mulf %79, %82 : vector<208x128xf32>
    %84 = math.erf %83 : vector<208x128xf32>
    %cst_66 = arith.constant 1.000000e+00 : f32
    %85 = vector.broadcast %cst_66 : f32 to vector<208x128xf32>
    %86 = arith.addf %85, %84 : vector<208x128xf32>
    %87 = arith.mulf %81, %86 : vector<208x128xf32>
    %88 = vector.extract_strided_slice %87 {offsets = [0, 0], sizes = [16, 128], strides = [1, 1]} : vector<208x128xf32> to vector<16x128xf32>
    %89 = vector.extract_strided_slice %87 {offsets = [16, 0], sizes = [16, 128], strides = [1, 1]} : vector<208x128xf32> to vector<16x128xf32>
    %90 = arith.maximumf %88, %89 : vector<16x128xf32>
    %91 = vector.extract_strided_slice %87 {offsets = [32, 0], sizes = [16, 128], strides = [1, 1]} : vector<208x128xf32> to vector<16x128xf32>
    %92 = arith.maximumf %90, %91 : vector<16x128xf32>
    %c0_67 = arith.constant 0 : index
    %c0_68 = arith.constant 0 : index
    %c0_69 = arith.constant 0 : index
    %93 = vector.load %arg15[%c0_67, %c0_68, %c0_69] : memref<5x16x128xf32, #tpu.memory_space<vmem>>, vector<1x16x128xf32>
    %94 = vector.shape_cast %93 : vector<1x16x128xf32> to vector<16x128xf32>
    %95 = vector.shape_cast %92 : vector<16x128xf32> to vector<1x16x128xf32>
    tpu.vector_store %arg15[%c0_67, %c0_68, %c0_69], %95 {strides = array<i32>} : memref<5x16x128xf32, #tpu.memory_space<vmem>>, vector<1x16x128xf32>,
    %96 = vector.extract_strided_slice %87 {offsets = [32, 0], sizes = [16, 128], strides = [1, 1]} : vector<208x128xf32> to vector<16x128xf32>
    %97 = vector.extract_strided_slice %87 {offsets = [48, 0], sizes = [16, 128], strides = [1, 1]} : vector<208x128xf32> to vector<16x128xf32>
    %98 = arith.maximumf %96, %97 : vector<16x128xf32>
    %99 = vector.extract_strided_slice %87 {offsets = [64, 0], sizes = [16, 128], strides = [1, 1]} : vector<208x128xf32> to vector<16x128xf32>
    %100 = arith.maximumf %98, %99 : vector<16x128xf32>
    %101 = vector.extract_strided_slice %87 {offsets = [80, 0], sizes = [16, 128], strides = [1, 1]} : vector<208x128xf32> to vector<16x128xf32>
    %102 = arith.maximumf %100, %101 : vector<16x128xf32>
    %c1_70 = arith.constant 1 : index
    %c0_71 = arith.constant 0 : index
    %c0_72 = arith.constant 0 : index
    %103 = vector.load %arg15[%c1_70, %c0_71, %c0_72] : memref<5x16x128xf32, #tpu.memory_space<vmem>>, vector<1x16x128xf32>
    %104 = vector.shape_cast %103 : vector<1x16x128xf32> to vector<16x128xf32>
    %105 = vector.shape_cast %102 : vector<16x128xf32> to vector<1x16x128xf32>
    tpu.vector_store %arg15[%c1_70, %c0_71, %c0_72], %105 {strides = array<i32>} : memref<5x16x128xf32, #tpu.memory_space<vmem>>, vector<1x16x128xf32>,
    %106 = vector.extract_strided_slice %87 {offsets = [80, 0], sizes = [16, 128], strides = [1, 1]} : vector<208x128xf32> to vector<16x128xf32>
    %107 = vector.extract_strided_slice %87 {offsets = [96, 0], sizes = [16, 128], strides = [1, 1]} : vector<208x128xf32> to vector<16x128xf32>
    %108 = arith.maximumf %106, %107 : vector<16x128xf32>
    %109 = vector.extract_strided_slice %87 {offsets = [112, 0], sizes = [16, 128], strides = [1, 1]} : vector<208x128xf32> to vector<16x128xf32>
    %110 = arith.maximumf %108, %109 : vector<16x128xf32>
    %c2_73 = arith.constant 2 : index
    %c0_74 = arith.constant 0 : index
    %c0_75 = arith.constant 0 : index
    %111 = vector.load %arg15[%c2_73, %c0_74, %c0_75] : memref<5x16x128xf32, #tpu.memory_space<vmem>>, vector<1x16x128xf32>
    %112 = vector.shape_cast %111 : vector<1x16x128xf32> to vector<16x128xf32>
    %113 = vector.shape_cast %110 : vector<16x128xf32> to vector<1x16x128xf32>
    tpu.vector_store %arg15[%c2_73, %c0_74, %c0_75], %113 {strides = array<i32>} : memref<5x16x128xf32, #tpu.memory_space<vmem>>, vector<1x16x128xf32>,
    %114 = vector.extract_strided_slice %87 {offsets = [112, 0], sizes = [16, 128], strides = [1, 1]} : vector<208x128xf32> to vector<16x128xf32>
    %115 = vector.extract_strided_slice %87 {offsets = [128, 0], sizes = [16, 128], strides = [1, 1]} : vector<208x128xf32> to vector<16x128xf32>
    %116 = arith.maximumf %114, %115 : vector<16x128xf32>
    %117 = vector.extract_strided_slice %87 {offsets = [144, 0], sizes = [16, 128], strides = [1, 1]} : vector<208x128xf32> to vector<16x128xf32>
    %118 = arith.maximumf %116, %117 : vector<16x128xf32>
    %119 = vector.extract_strided_slice %87 {offsets = [160, 0], sizes = [16, 128], strides = [1, 1]} : vector<208x128xf32> to vector<16x128xf32>
    %120 = arith.maximumf %118, %119 : vector<16x128xf32>
    %c3_76 = arith.constant 3 : index
    %c0_77 = arith.constant 0 : index
    %c0_78 = arith.constant 0 : index
    %121 = vector.load %arg15[%c3_76, %c0_77, %c0_78] : memref<5x16x128xf32, #tpu.memory_space<vmem>>, vector<1x16x128xf32>
    %122 = vector.shape_cast %121 : vector<1x16x128xf32> to vector<16x128xf32>
    %123 = vector.shape_cast %120 : vector<16x128xf32> to vector<1x16x128xf32>
    tpu.vector_store %arg15[%c3_76, %c0_77, %c0_78], %123 {strides = array<i32>} : memref<5x16x128xf32, #tpu.memory_space<vmem>>, vector<1x16x128xf32>,
    %124 = vector.extract_strided_slice %87 {offsets = [160, 0], sizes = [16, 128], strides = [1, 1]} : vector<208x128xf32> to vector<16x128xf32>
    %125 = vector.extract_strided_slice %87 {offsets = [176, 0], sizes = [16, 128], strides = [1, 1]} : vector<208x128xf32> to vector<16x128xf32>
    %126 = arith.maximumf %124, %125 : vector<16x128xf32>
    %127 = vector.extract_strided_slice %87 {offsets = [192, 0], sizes = [16, 128], strides = [1, 1]} : vector<208x128xf32> to vector<16x128xf32>
    %128 = arith.maximumf %126, %127 : vector<16x128xf32>
    %c4 = arith.constant 4 : index
    %c0_79 = arith.constant 0 : index
    %c0_80 = arith.constant 0 : index
    %129 = vector.load %arg15[%c4, %c0_79, %c0_80] : memref<5x16x128xf32, #tpu.memory_space<vmem>>, vector<1x16x128xf32>
    %130 = vector.shape_cast %129 : vector<1x16x128xf32> to vector<16x128xf32>
    %131 = vector.shape_cast %128 : vector<16x128xf32> to vector<1x16x128xf32>
    tpu.vector_store %arg15[%c4, %c0_79, %c0_80], %131 {strides = array<i32>} : memref<5x16x128xf32, #tpu.memory_space<vmem>>, vector<1x16x128xf32>,
    %c0_81 = arith.constant 0 : index
    %c0_82 = arith.constant 0 : index
    %c0_83 = arith.constant 0 : index
    %132 = vector.load %arg15[%c0_81, %c0_82, %c0_83] : memref<5x16x128xf32, #tpu.memory_space<vmem>>, vector<5x3x128xf32>
    %cst_84 = arith.constant dense<0xFF800000> : vector<5x128xf32>
    %133 = vector.multi_reduction <maximumf>, %132, %cst_84 [1] : vector<5x3x128xf32> to vector<5x128xf32>
    %c0_85 = arith.constant 0 : index
    %c0_86 = arith.constant 0 : index
    %134 = vector.load %arg8[%c0_85, %c0_86] : memref<1x128xf32, #tpu.memory_space<vmem>>, vector<1x128xf32>
    %135 = vector.broadcast %134 : vector<1x128xf32> to vector<5x128xf32>
    %136 = arith.mulf %133, %135 : vector<5x128xf32>
    %c0_87 = arith.constant 0 : index
    %c0_88 = arith.constant 0 : index
    %137 = vector.load %arg9[%c0_87, %c0_88] : memref<1x128xf32, #tpu.memory_space<vmem>>, vector<1x128xf32>
    %138 = vector.broadcast %137 : vector<1x128xf32> to vector<5x128xf32>
    %139 = arith.addf %136, %138 : vector<5x128xf32>
    %c0_89 = arith.constant 0 : index
    %c0_90 = arith.constant 0 : index
    %c0_91 = arith.constant 0 : index
    %140 = vector.load %arg10[%c0_89, %c0_90, %c0_91] : memref<1x25x128xf32, #tpu.memory_space<vmem>>, vector<1x5x128xf32>
    %141 = vector.shape_cast %140 : vector<1x5x128xf32> to vector<5x128xf32>
    %142 = vector.shape_cast %139 : vector<5x128xf32> to vector<1x5x128xf32>
    tpu.vector_store %arg10[%c0_89, %c0_90, %c0_91], %142 {strides = array<i32>} : memref<1x25x128xf32, #tpu.memory_space<vmem>>, vector<1x5x128xf32>,
    %c0_92 = arith.constant 0 : index
    %c2_93 = arith.constant 2 : index
    %c0_94 = arith.constant 0 : index
    %143 = vector.load %arg15[%c0_92, %c2_93, %c0_94] : memref<5x16x128xf32, #tpu.memory_space<vmem>>, vector<5x4x128xf32>
    %cst_95 = arith.constant dense<0xFF800000> : vector<5x128xf32>
    %144 = vector.multi_reduction <maximumf>, %143, %cst_95 [1] : vector<5x4x128xf32> to vector<5x128xf32>
    %c0_96 = arith.constant 0 : index
    %c0_97 = arith.constant 0 : index
    %145 = vector.load %arg8[%c0_96, %c0_97] : memref<1x128xf32, #tpu.memory_space<vmem>>, vector<1x128xf32>
    %146 = vector.broadcast %145 : vector<1x128xf32> to vector<5x128xf32>
    %147 = arith.mulf %144, %146 : vector<5x128xf32>
    %c0_98 = arith.constant 0 : index
    %c0_99 = arith.constant 0 : index
    %148 = vector.load %arg9[%c0_98, %c0_99] : memref<1x128xf32, #tpu.memory_space<vmem>>, vector<1x128xf32>
    %149 = vector.broadcast %148 : vector<1x128xf32> to vector<5x128xf32>
    %150 = arith.addf %147, %149 : vector<5x128xf32>
    %c0_100 = arith.constant 0 : index
    %c5 = arith.constant 5 : index
    %c0_101 = arith.constant 0 : index
    %151 = vector.load %arg10[%c0_100, %c5, %c0_101] : memref<1x25x128xf32, #tpu.memory_space<vmem>>, vector<1x5x128xf32>
    %152 = vector.shape_cast %151 : vector<1x5x128xf32> to vector<5x128xf32>
    %153 = vector.shape_cast %150 : vector<5x128xf32> to vector<1x5x128xf32>
    tpu.vector_store %arg10[%c0_100, %c5, %c0_101], %153 {strides = array<i32>} : memref<1x25x128xf32, #tpu.memory_space<vmem>>, vector<1x5x128xf32>,
    %c0_102 = arith.constant 0 : index
    %c5_103 = arith.constant 5 : index
    %c0_104 = arith.constant 0 : index
    %154 = vector.load %arg15[%c0_102, %c5_103, %c0_104] : memref<5x16x128xf32, #tpu.memory_space<vmem>>, vector<5x3x128xf32>
    %cst_105 = arith.constant dense<0xFF800000> : vector<5x128xf32>
    %155 = vector.multi_reduction <maximumf>, %154, %cst_105 [1] : vector<5x3x128xf32> to vector<5x128xf32>
    %c0_106 = arith.constant 0 : index
    %c0_107 = arith.constant 0 : index
    %156 = vector.load %arg8[%c0_106, %c0_107] : memref<1x128xf32, #tpu.memory_space<vmem>>, vector<1x128xf32>
    %157 = vector.broadcast %156 : vector<1x128xf32> to vector<5x128xf32>
    %158 = arith.mulf %155, %157 : vector<5x128xf32>
    %c0_108 = arith.constant 0 : index
    %c0_109 = arith.constant 0 : index
    %159 = vector.load %arg9[%c0_108, %c0_109] : memref<1x128xf32, #tpu.memory_space<vmem>>, vector<1x128xf32>
    %160 = vector.broadcast %159 : vector<1x128xf32> to vector<5x128xf32>
    %161 = arith.addf %158, %160 : vector<5x128xf32>
    %c0_110 = arith.constant 0 : index
    %c10 = arith.constant 10 : index
    %c0_111 = arith.constant 0 : index
    %162 = vector.load %arg10[%c0_110, %c10, %c0_111] : memref<1x25x128xf32, #tpu.memory_space<vmem>>, vector<1x5x128xf32>
    %163 = vector.shape_cast %162 : vector<1x5x128xf32> to vector<5x128xf32>
    %164 = vector.shape_cast %161 : vector<5x128xf32> to vector<1x5x128xf32>
    tpu.vector_store %arg10[%c0_110, %c10, %c0_111], %164 {strides = array<i32>} : memref<1x25x128xf32, #tpu.memory_space<vmem>>, vector<1x5x128xf32>,
    %c0_112 = arith.constant 0 : index
    %c7 = arith.constant 7 : index
    %c0_113 = arith.constant 0 : index
    %165 = vector.load %arg15[%c0_112, %c7, %c0_113] : memref<5x16x128xf32, #tpu.memory_space<vmem>>, vector<5x4x128xf32>
    %cst_114 = arith.constant dense<0xFF800000> : vector<5x128xf32>
    %166 = vector.multi_reduction <maximumf>, %165, %cst_114 [1] : vector<5x4x128xf32> to vector<5x128xf32>
    %c0_115 = arith.constant 0 : index
    %c0_116 = arith.constant 0 : index
    %167 = vector.load %arg8[%c0_115, %c0_116] : memref<1x128xf32, #tpu.memory_space<vmem>>, vector<1x128xf32>
    %168 = vector.broadcast %167 : vector<1x128xf32> to vector<5x128xf32>
    %169 = arith.mulf %166, %168 : vector<5x128xf32>
    %c0_117 = arith.constant 0 : index
    %c0_118 = arith.constant 0 : index
    %170 = vector.load %arg9[%c0_117, %c0_118] : memref<1x128xf32, #tpu.memory_space<vmem>>, vector<1x128xf32>
    %171 = vector.broadcast %170 : vector<1x128xf32> to vector<5x128xf32>
    %172 = arith.addf %169, %171 : vector<5x128xf32>
    %c0_119 = arith.constant 0 : index
    %c15_120 = arith.constant 15 : index
    %c0_121 = arith.constant 0 : index
    %173 = vector.load %arg10[%c0_119, %c15_120, %c0_121] : memref<1x25x128xf32, #tpu.memory_space<vmem>>, vector<1x5x128xf32>
    %174 = vector.shape_cast %173 : vector<1x5x128xf32> to vector<5x128xf32>
    %175 = vector.shape_cast %172 : vector<5x128xf32> to vector<1x5x128xf32>
    tpu.vector_store %arg10[%c0_119, %c15_120, %c0_121], %175 {strides = array<i32>} : memref<1x25x128xf32, #tpu.memory_space<vmem>>, vector<1x5x128xf32>,
    %c0_122 = arith.constant 0 : index
    %c10_123 = arith.constant 10 : index
    %c0_124 = arith.constant 0 : index
    %176 = vector.load %arg15[%c0_122, %c10_123, %c0_124] : memref<5x16x128xf32, #tpu.memory_space<vmem>>, vector<5x3x128xf32>
    %cst_125 = arith.constant dense<0xFF800000> : vector<5x128xf32>
    %177 = vector.multi_reduction <maximumf>, %176, %cst_125 [1] : vector<5x3x128xf32> to vector<5x128xf32>
    %c0_126 = arith.constant 0 : index
    %c0_127 = arith.constant 0 : index
    %178 = vector.load %arg8[%c0_126, %c0_127] : memref<1x128xf32, #tpu.memory_space<vmem>>, vector<1x128xf32>
    %179 = vector.broadcast %178 : vector<1x128xf32> to vector<5x128xf32>
    %180 = arith.mulf %177, %179 : vector<5x128xf32>
    %c0_128 = arith.constant 0 : index
    %c0_129 = arith.constant 0 : index
    %181 = vector.load %arg9[%c0_128, %c0_129] : memref<1x128xf32, #tpu.memory_space<vmem>>, vector<1x128xf32>
    %182 = vector.broadcast %181 : vector<1x128xf32> to vector<5x128xf32>
    %183 = arith.addf %180, %182 : vector<5x128xf32>
    %c0_130 = arith.constant 0 : index
    %c20 = arith.constant 20 : index
    %c0_131 = arith.constant 0 : index
    %184 = vector.load %arg10[%c0_130, %c20, %c0_131] : memref<1x25x128xf32, #tpu.memory_space<vmem>>, vector<1x5x128xf32>
    %185 = vector.shape_cast %184 : vector<1x5x128xf32> to vector<5x128xf32>
    %186 = vector.shape_cast %183 : vector<5x128xf32> to vector<1x5x128xf32>
    tpu.vector_store %arg10[%c0_130, %c20, %c0_131], %186 {strides = array<i32>} : memref<1x25x128xf32, #tpu.memory_space<vmem>>, vector<1x5x128xf32>,
    return
  }
  func.func @transform_0(%arg0: i32) -> (i32, i32, i32) {
    %c0_i32 = arith.constant 0 : i32
    %c0_i32_0 = arith.constant 0 : i32
    %c0_i32_1 = arith.constant 0 : i32
    return %arg0, %c0_i32, %c0_i32_0 : i32, i32, i32
  }
  func.func @transform_1(%arg0: i32) -> (i32, i32) {
    %c0_i32 = arith.constant 0 : i32
    %c0_i32_0 = arith.constant 0 : i32
    %c0_i32_1 = arith.constant 0 : i32
    return %c0_i32, %c0_i32_0 : i32, i32
  }
  func.func @transform_2(%arg0: i32) -> (i32, i32) {
    %c0_i32 = arith.constant 0 : i32
    %c0_i32_0 = arith.constant 0 : i32
    %c0_i32_1 = arith.constant 0 : i32
    return %c0_i32, %c0_i32_0 : i32, i32
  }
  func.func @transform_3(%arg0: i32) -> (i32, i32) {
    %c0_i32 = arith.constant 0 : i32
    %c0_i32_0 = arith.constant 0 : i32
    %c0_i32_1 = arith.constant 0 : i32
    return %c0_i32, %c0_i32_0 : i32, i32
  }
  func.func @transform_4(%arg0: i32) -> (i32, i32) {
    %c0_i32 = arith.constant 0 : i32
    %c0_i32_0 = arith.constant 0 : i32
    %c0_i32_1 = arith.constant 0 : i32
    return %c0_i32, %c0_i32_0 : i32, i32
  }
  func.func @transform_5(%arg0: i32) -> (i32, i32) {
    %c0_i32 = arith.constant 0 : i32
    %c0_i32_0 = arith.constant 0 : i32
    %c0_i32_1 = arith.constant 0 : i32
    return %c0_i32, %c0_i32_0 : i32, i32
  }
  func.func @transform_6(%arg0: i32) -> (i32, i32) {
    %c0_i32 = arith.constant 0 : i32
    %c0_i32_0 = arith.constant 0 : i32
    %c0_i32_1 = arith.constant 0 : i32
    return %c0_i32, %c0_i32_0 : i32, i32
  }
  func.func @transform_7(%arg0: i32) -> (i32, i32) {
    %c0_i32 = arith.constant 0 : i32
    %c0_i32_0 = arith.constant 0 : i32
    %c0_i32_1 = arith.constant 0 : i32
    return %c0_i32, %c0_i32_0 : i32, i32
  }
  func.func @transform_8(%arg0: i32) -> (i32, i32) {
    %c0_i32 = arith.constant 0 : i32
    %c0_i32_0 = arith.constant 0 : i32
    %c0_i32_1 = arith.constant 0 : i32
    return %c0_i32, %c0_i32_0 : i32, i32
  }
  func.func @transform_9(%arg0: i32) -> (i32, i32, i32) {
    %c0_i32 = arith.constant 0 : i32
    %c0_i32_0 = arith.constant 0 : i32
    %c0_i32_1 = arith.constant 0 : i32
    return %arg0, %c0_i32, %c0_i32_0 : i32, i32, i32
  }
}

module attributes {stable_mosaic.version = 11 : i64} {
  func.func @_fc_kernel(%arg0: memref<2x3200xf32, #tpu.memory_space<vmem>>, %arg1: memref<3200x128xbf16, #tpu.memory_space<vmem>>, %arg2: memref<1x128xf32, #tpu.memory_space<vmem>>, %arg3: memref<2x128xf32, #tpu.memory_space<vmem>>) attributes {dimension_semantics = [], scalar_prefetch = 0 : i64, scratch_operands = 0 : i64, tpu.core_type = #tpu.core_type<tc>} {
    %c0 = arith.constant 0 : index
    %c0_0 = arith.constant 0 : index
    %0 = vector.load %arg0[%c0, %c0_0] : memref<2x3200xf32, #tpu.memory_space<vmem>>, vector<2x3200xf32>
    %1 = arith.truncf %0 : vector<2x3200xf32> to vector<2x3200xbf16>
    %c0_1 = arith.constant 0 : index
    %c0_2 = arith.constant 0 : index
    %2 = vector.load %arg1[%c0_1, %c0_2] : memref<3200x128xbf16, #tpu.memory_space<vmem>>, vector<3200x128xbf16>
    %cst = arith.constant dense<0.000000e+00> : vector<2x128xf32>
    %3 = tpu.matmul %1, %2, %cst {dimension_numbers = #tpu.dot_dimension_numbers<[1], [0], [0], [1], [0, 0, 1, 1], [], []>} : vector<2x3200xbf16>, vector<3200x128xbf16>, vector<2x128xf32> -> vector<2x128xf32>
    %c0_3 = arith.constant 0 : index
    %c0_4 = arith.constant 0 : index
    %4 = vector.load %arg2[%c0_3, %c0_4] : memref<1x128xf32, #tpu.memory_space<vmem>>, vector<1x128xf32>
    %5 = vector.broadcast %4 : vector<1x128xf32> to vector<2x128xf32>
    %6 = arith.addf %3, %5 : vector<2x128xf32>
    %c0_5 = arith.constant 0 : index
    %c0_6 = arith.constant 0 : index
    %7 = vector.load %arg3[%c0_5, %c0_6] : memref<2x128xf32, #tpu.memory_space<vmem>>, vector<2x128xf32>
    tpu.vector_store %arg3[%c0_5, %c0_6], %6 {strides = array<i32>} : memref<2x128xf32, #tpu.memory_space<vmem>>, vector<2x128xf32>,
    return
  }
}

</mosaic_0001>

<llo_original>
// kernel: conv_patch_encoder_forward.3
$region0: #{conv_patch_encoder_forward.3}
  #allocation0 [shape = 'u32[]', space=smem, size = 0x4, offset = 0x4, fixed_abs, tag = 'smem constant byte address 0x4 - core index']
  #allocation1 [shape = 'u32[144,128]{1,0:T(1,128)}', space=vmem, size = 0x12000, scoped, tag = 'internal scratch']
  %s0 = inlined_call_operand.vmem [shape: f32[2,3200], index: 0, kind: input, shape index: {}]
  %s1 = inlined_call_operand.vmem [shape: bf16[3200,128], index: 1, kind: input, shape index: {}]
  %s2 = inlined_call_operand.vmem [shape: f32[1,128], index: 2, kind: input, shape index: {}]
  %s3 = inlined_call_operand.hbm [shape: f32[2,128], index: 3, kind: output, shape index: {}]
  %s4 = sld [smem:[#allocation0]]
  $region22: #{conv_patch_encoder_forward.3} parent=0
    _
  %s6 = ssub.s32 1, %s4
  %s7 = scalar_select 0, %s6, %s4
  $region1: #{conv_patch_encoder_forward.3} parent=0
    #allocation2 [shape = 'u8[1024]{0}', space=vmem, size = 0x400, scoped, tag = 'output window, operand 0, single buffered']
    #allocation3 [shape = 's32[1]{0}', space=sflag, size = 0x4, scoped, tag = 'scoped memory for conv_patch_encoder_forward.3']
    %8 = vsyncpa [#allocation3], 0
    // Predicated region
    $region2: #{conv_patch_encoder_forward.3} parent=1 // pred_check
      _
    $region3: #{conv_patch_encoder_forward.3} parent=1 // pred_check_branch
      %10 = sbr.rel (0) target = $region5
    $region4: #{conv_patch_encoder_forward.3} parent=1 // pred_region
      _
    $region5: #{conv_patch_encoder_forward.3} parent=1 // pred_fallthru
      _
    // Predicated region
    $region6: #{conv_patch_encoder_forward.3} parent=1 // pred_check
      _
    $region7: #{conv_patch_encoder_forward.3} parent=1 // pred_check_branch
      %12 = sbr.rel (0) target = $region9
    $region8: #{conv_patch_encoder_forward.3} parent=1 // pred_region
      _
    $region9: #{conv_patch_encoder_forward.3} parent=1 // pred_fallthru
      _
    // Predicated region
    $region10: #{conv_patch_encoder_forward.3} parent=1 // pred_check
      _
    $region11: #{conv_patch_encoder_forward.3} parent=1 // pred_check_branch
      %14 = sbr.rel (0) target = $region13
    $region12: #{conv_patch_encoder_forward.3} parent=1 // pred_region
      _
    $region13: #{conv_patch_encoder_forward.3} parent=1 // pred_fallthru
      _
    %v16 = vld [vmem:[%s0] sm:$0xff]
    %v17 = vld [vmem:[%s0 + $0x8] sm:$0xff]
    %v18 = vld [vmem:[%s0 + $0x10] sm:$0xff]
    %v19 = vld [vmem:[%s0 + $0x18] sm:$0xff]
    %v20 = vld [vmem:[%s0 + $0x20] sm:$0xff]
    %v21 = vld [vmem:[%s0 + $0x28] sm:$0xff]
    %v22 = vld [vmem:[%s0 + $0x30] sm:$0x3]
    %v30 = vcombine.high %v16, %v16
    %v32 = vunpack.c.l.s4 1983009808
    %v33 = vunpack.c.0.s8 %v32
    %v34 = vlaneseq
    %v35 = vshrl.u32 %v34, 7
    %v36 = vsub.s32 %v33, %v35
    %v37 = vrot.slane %v16, %v36
    %v39 = vunpack.c.l.s4 1983009808
    %v40 = vunpack.c.0.s8 %v39
    %v41 = vlaneseq
    %v42 = vshrl.u32 %v41, 7
    %v43 = vsub.s32 %v40, %v42
    %v44 = vrot.slane %v30, %v43
    %v45 = vcombine.high %v37, %v37
    %v46 = vcombine.high %v44, %v44
    %v47 = vcombine.high %v17, %v17
    %v49 = vunpack.c.l.s4 1983009808
    %v50 = vunpack.c.0.s8 %v49
    %v51 = vlaneseq
    %v52 = vshrl.u32 %v51, 7
    %v53 = vsub.s32 %v50, %v52
    %v54 = vrot.slane %v17, %v53
    %v56 = vunpack.c.l.s4 1983009808
    %v57 = vunpack.c.0.s8 %v56
    %v58 = vlaneseq
    %v59 = vshrl.u32 %v58, 7
    %v60 = vsub.s32 %v57, %v59
    %v61 = vrot.slane %v47, %v60
    %v62 = vcombine.high %v54, %v54
    %v63 = vcombine.high %v61, %v61
    %v64 = vcombine.high %v18, %v18
    %v66 = vunpack.c.l.s4 1983009808
    %v67 = vunpack.c.0.s8 %v66
    %v68 = vlaneseq
    %v69 = vshrl.u32 %v68, 7
    %v70 = vsub.s32 %v67, %v69
    %v71 = vrot.slane %v18, %v70
    %v73 = vunpack.c.l.s4 1983009808
    %v74 = vunpack.c.0.s8 %v73
    %v75 = vlaneseq
    %v76 = vshrl.u32 %v75, 7
    %v77 = vsub.s32 %v74, %v76
    %v78 = vrot.slane %v64, %v77
    %v79 = vcombine.high %v71, %v71
    %v80 = vcombine.high %v78, %v78
    %v81 = vcombine.high %v19, %v19
    %v83 = vunpack.c.l.s4 1983009808
    %v84 = vunpack.c.0.s8 %v83
    %v85 = vlaneseq
    %v86 = vshrl.u32 %v85, 7
    %v87 = vsub.s32 %v84, %v86
    %v88 = vrot.slane %v19, %v87
    %v90 = vunpack.c.l.s4 1983009808
    %v91 = vunpack.c.0.s8 %v90
    %v92 = vlaneseq
    %v93 = vshrl.u32 %v92, 7
    %v94 = vsub.s32 %v91, %v93
    %v95 = vrot.slane %v81, %v94
    %v96 = vcombine.high %v88, %v88
    %v97 = vcombine.high %v95, %v95
    %v98 = vcombine.high %v20, %v20
    %v100 = vunpack.c.l.s4 1983009808
    %v101 = vunpack.c.0.s8 %v100
    %v102 = vlaneseq
    %v103 = vshrl.u32 %v102, 7
    %v104 = vsub.s32 %v101, %v103
    %v105 = vrot.slane %v20, %v104
    %v107 = vunpack.c.l.s4 1983009808
    %v108 = vunpack.c.0.s8 %v107
    %v109 = vlaneseq
    %v110 = vshrl.u32 %v109, 7
    %v111 = vsub.s32 %v108, %v110
    %v112 = vrot.slane %v98, %v111
    %v113 = vcombine.high %v105, %v105
    %v114 = vcombine.high %v112, %v112
    %v115 = vcombine.high %v21, %v21
    %v117 = vunpack.c.l.s4 1983009808
    %v118 = vunpack.c.0.s8 %v117
    %v119 = vlaneseq
    %v120 = vshrl.u32 %v119, 7
    %v121 = vsub.s32 %v118, %v120
    %v122 = vrot.slane %v21, %v121
    %v124 = vunpack.c.l.s4 1983009808
    %v125 = vunpack.c.0.s8 %v124
    %v126 = vlaneseq
    %v127 = vshrl.u32 %v126, 7
    %v128 = vsub.s32 %v125, %v127
    %v129 = vrot.slane %v115, %v128
    %v130 = vcombine.high %v122, %v122
    %v131 = vcombine.high %v129, %v129
    %v133 = vunpack.c.l.s4 1983009808
    %v134 = vunpack.c.0.s8 %v133
    %v135 = vlaneseq
    %v136 = vshrl.u32 %v135, 7
    %v137 = vsub.s32 %v134, %v136
    %v138 = vrot.slane %v22, %v137
    %v164 = vpack.c.bf16 %v37, %v37
    %v165 = vpack.c.bf16 %v45, %v45
    %v166 = vpack.c.bf16 %v44, %v44
    %v167 = vpack.c.bf16 %v46, %v46
    %v168 = vpack.c.bf16 %v54, %v54
    %v169 = vpack.c.bf16 %v62, %v62
    %v170 = vpack.c.bf16 %v61, %v61
    %v171 = vpack.c.bf16 %v63, %v63
    %v172 = vpack.c.bf16 %v71, %v71
    %v173 = vpack.c.bf16 %v79, %v79
    %v174 = vpack.c.bf16 %v78, %v78
    %v175 = vpack.c.bf16 %v80, %v80
    %v176 = vpack.c.bf16 %v88, %v88
    %v177 = vpack.c.bf16 %v96, %v96
    %v178 = vpack.c.bf16 %v95, %v95
    %v179 = vpack.c.bf16 %v97, %v97
    %v180 = vpack.c.bf16 %v105, %v105
    %v181 = vpack.c.bf16 %v113, %v113
    %v182 = vpack.c.bf16 %v112, %v112
    %v183 = vpack.c.bf16 %v114, %v114
    %v184 = vpack.c.bf16 %v122, %v122
    %v185 = vpack.c.bf16 %v130, %v130
    %v186 = vpack.c.bf16 %v129, %v129
    %v187 = vpack.c.bf16 %v131, %v131
    %v188 = vpack.c.bf16 %v138, %v138
    %v189 = vld [vmem:[%s1] sm:$0xf]
    %v190 = vld [vmem:[%s1 + $0x4] sm:$0xf]
    %v191 = vld [vmem:[%s1 + $0x8] sm:$0xf]
    %v192 = vld [vmem:[%s1 + $0xc] sm:$0xf]
    %v193 = vld [vmem:[%s1 + $0x10] sm:$0xf]
    %v194 = vld [vmem:[%s1 + $0x14] sm:$0xf]
    %v195 = vld [vmem:[%s1 + $0x18] sm:$0xf]
    %v196 = vld [vmem:[%s1 + $0x1c] sm:$0xf]
    %v197 = vld [vmem:[%s1 + $0x20] sm:$0xf]
    %v198 = vld [vmem:[%s1 + $0x24] sm:$0xf]
    %v199 = vld [vmem:[%s1 + $0x28] sm:$0xf]
    %v200 = vld [vmem:[%s1 + $0x2c] sm:$0xf]
    %v201 = vld [vmem:[%s1 + $0x30] sm:$0xf]
    %v202 = vld [vmem:[%s1 + $0x34] sm:$0xf]
    %v203 = vld [vmem:[%s1 + $0x38] sm:$0xf]
    %v204 = vld [vmem:[%s1 + $0x3c] sm:$0xf]
    %v205 = vld [vmem:[%s1 + $0x40] sm:$0xf]
    %v206 = vld [vmem:[%s1 + $0x44] sm:$0xf]
    %v207 = vld [vmem:[%s1 + $0x48] sm:$0xf]
    %v208 = vld [vmem:[%s1 + $0x4c] sm:$0xf]
    %v209 = vld [vmem:[%s1 + $0x50] sm:$0xf]
    %v210 = vld [vmem:[%s1 + $0x54] sm:$0xf]
    %v211 = vld [vmem:[%s1 + $0x58] sm:$0xf]
    %v212 = vld [vmem:[%s1 + $0x5c] sm:$0xf]
    %v213 = vld [vmem:[%s1 + $0x60] sm:$0xf]
    %v214 = vld [vmem:[%s1 + $0x64] sm:$0xf]
    %v215 = vld [vmem:[%s1 + $0x68] sm:$0xf]
    %v216 = vld [vmem:[%s1 + $0x6c] sm:$0xf]
    %v217 = vld [vmem:[%s1 + $0x70] sm:$0xf]
    %v218 = vld [vmem:[%s1 + $0x74] sm:$0xf]
    %v219 = vld [vmem:[%s1 + $0x78] sm:$0xf]
    %v220 = vld [vmem:[%s1 + $0x7c] sm:$0xf]
    %v221 = vld [vmem:[%s1 + $0x80] sm:$0xf]
    %v222 = vld [vmem:[%s1 + $0x84] sm:$0xf]
    %v223 = vld [vmem:[%s1 + $0x88] sm:$0xf]
    %v224 = vld [vmem:[%s1 + $0x8c] sm:$0xf]
    %v225 = vld [vmem:[%s1 + $0x90] sm:$0xf]
    %v226 = vld [vmem:[%s1 + $0x94] sm:$0xf]
    %v227 = vld [vmem:[%s1 + $0x98] sm:$0xf]
    %v228 = vld [vmem:[%s1 + $0x9c] sm:$0xf]
    %v229 = vld [vmem:[%s1 + $0xa0] sm:$0xf]
    %v230 = vld [vmem:[%s1 + $0xa4] sm:$0xf]
    %v231 = vld [vmem:[%s1 + $0xa8] sm:$0xf]
    %v232 = vld [vmem:[%s1 + $0xac] sm:$0xf]
    %v233 = vld [vmem:[%s1 + $0xb0] sm:$0xf]
    %v234 = vld [vmem:[%s1 + $0xb4] sm:$0xf]
    %v235 = vld [vmem:[%s1 + $0xb8] sm:$0xf]
    %v236 = vld [vmem:[%s1 + $0xbc] sm:$0xf]
    %v237 = vld [vmem:[%s1 + $0xc0] sm:$0xf]
    %v238 = vld [vmem:[%s1 + $0xc4] sm:$0xf]
    %v239 = vld [vmem:[%s1 + $0xc8] sm:$0xf]
    %v240 = vld [vmem:[%s1 + $0xcc] sm:$0xf]
    %v241 = vld [vmem:[%s1 + $0xd0] sm:$0xf]
    %v242 = vld [vmem:[%s1 + $0xd4] sm:$0xf]
    %v243 = vld [vmem:[%s1 + $0xd8] sm:$0xf]
    %v244 = vld [vmem:[%s1 + $0xdc] sm:$0xf]
    %v245 = vld [vmem:[%s1 + $0xe0] sm:$0xf]
    %v246 = vld [vmem:[%s1 + $0xe4] sm:$0xf]
    %v247 = vld [vmem:[%s1 + $0xe8] sm:$0xf]
    %v248 = vld [vmem:[%s1 + $0xec] sm:$0xf]
    %v249 = vld [vmem:[%s1 + $0xf0] sm:$0xf]
    %v250 = vld [vmem:[%s1 + $0xf4] sm:$0xf]
    %v251 = vld [vmem:[%s1 + $0xf8] sm:$0xf]
    %v252 = vld [vmem:[%s1 + $0xfc] sm:$0xf]
    %v253 = vld [vmem:[%s1 + $0x100] sm:$0xf]
    %v254 = vld [vmem:[%s1 + $0x104] sm:$0xf]
    %v255 = vld [vmem:[%s1 + $0x108] sm:$0xf]
    %v256 = vld [vmem:[%s1 + $0x10c] sm:$0xf]
    %v257 = vld [vmem:[%s1 + $0x110] sm:$0xf]
    %v258 = vld [vmem:[%s1 + $0x114] sm:$0xf]
    %v259 = vld [vmem:[%s1 + $0x118] sm:$0xf]
    %v260 = vld [vmem:[%s1 + $0x11c] sm:$0xf]
    %v261 = vld [vmem:[%s1 + $0x120] sm:$0xf]
    %v262 = vld [vmem:[%s1 + $0x124] sm:$0xf]
    %v263 = vld [vmem:[%s1 + $0x128] sm:$0xf]
    %v264 = vld [vmem:[%s1 + $0x12c] sm:$0xf]
    %v265 = vld [vmem:[%s1 + $0x130] sm:$0xf]
    %v266 = vld [vmem:[%s1 + $0x134] sm:$0xf]
    %v267 = vld [vmem:[%s1 + $0x138] sm:$0xf]
    %v268 = vld [vmem:[%s1 + $0x13c] sm:$0xf]
    %v269 = vld [vmem:[%s1 + $0x140] sm:$0xf]
    %v270 = vld [vmem:[%s1 + $0x144] sm:$0xf]
    %v271 = vld [vmem:[%s1 + $0x148] sm:$0xf]
    %v272 = vld [vmem:[%s1 + $0x14c] sm:$0xf]
    %v273 = vld [vmem:[%s1 + $0x150] sm:$0xf]
    %v274 = vld [vmem:[%s1 + $0x154] sm:$0xf]
    %v275 = vld [vmem:[%s1 + $0x158] sm:$0xf]
    %v276 = vld [vmem:[%s1 + $0x15c] sm:$0xf]
    %v277 = vld [vmem:[%s1 + $0x160] sm:$0xf]
    %v278 = vld [vmem:[%s1 + $0x164] sm:$0xf]
    %v279 = vld [vmem:[%s1 + $0x168] sm:$0xf]
    %v280 = vld [vmem:[%s1 + $0x16c] sm:$0xf]
    %v281 = vld [vmem:[%s1 + $0x170] sm:$0xf]
    %v282 = vld [vmem:[%s1 + $0x174] sm:$0xf]
    %v283 = vld [vmem:[%s1 + $0x178] sm:$0xf]
    %v284 = vld [vmem:[%s1 + $0x17c] sm:$0xf]
    %v285 = vld [vmem:[%s1 + $0x180] sm:$0xf]
    %v286 = vld [vmem:[%s1 + $0x184] sm:$0xf]
    %v287 = vld [vmem:[%s1 + $0x188] sm:$0xf]
    %v288 = vld [vmem:[%s1 + $0x18c] sm:$0xf]
    %v289 = vld [vmem:[%s1 + $0x190] sm:$0xf]
    %v290 = vld [vmem:[%s1 + $0x194] sm:$0xf]
    %v291 = vld [vmem:[%s1 + $0x198] sm:$0xf]
    %v292 = vld [vmem:[%s1 + $0x19c] sm:$0xf]
    %v293 = vld [vmem:[%s1 + $0x1a0] sm:$0xf]
    %v294 = vld [vmem:[%s1 + $0x1a4] sm:$0xf]
    %v295 = vld [vmem:[%s1 + $0x1a8] sm:$0xf]
    %v296 = vld [vmem:[%s1 + $0x1ac] sm:$0xf]
    %v297 = vld [vmem:[%s1 + $0x1b0] sm:$0xf]
    %v298 = vld [vmem:[%s1 + $0x1b4] sm:$0xf]
    %v299 = vld [vmem:[%s1 + $0x1b8] sm:$0xf]
    %v300 = vld [vmem:[%s1 + $0x1bc] sm:$0xf]
    %v301 = vld [vmem:[%s1 + $0x1c0] sm:$0xf]
    %v302 = vld [vmem:[%s1 + $0x1c4] sm:$0xf]
    %v303 = vld [vmem:[%s1 + $0x1c8] sm:$0xf]
    %v304 = vld [vmem:[%s1 + $0x1cc] sm:$0xf]
    %v305 = vld [vmem:[%s1 + $0x1d0] sm:$0xf]
    %v306 = vld [vmem:[%s1 + $0x1d4] sm:$0xf]
    %v307 = vld [vmem:[%s1 + $0x1d8] sm:$0xf]
    %v308 = vld [vmem:[%s1 + $0x1dc] sm:$0xf]
    %v309 = vld [vmem:[%s1 + $0x1e0] sm:$0xf]
    %v310 = vld [vmem:[%s1 + $0x1e4] sm:$0xf]
    %v311 = vld [vmem:[%s1 + $0x1e8] sm:$0xf]
    %v312 = vld [vmem:[%s1 + $0x1ec] sm:$0xf]
    %v313 = vld [vmem:[%s1 + $0x1f0] sm:$0xf]
    %v314 = vld [vmem:[%s1 + $0x1f4] sm:$0xf]
    %v315 = vld [vmem:[%s1 + $0x1f8] sm:$0xf]
    %v316 = vld [vmem:[%s1 + $0x1fc] sm:$0xf]
    %v317 = vld [vmem:[%s1 + $0x200] sm:$0xf]
    %v318 = vld [vmem:[%s1 + $0x204] sm:$0xf]
    %v319 = vld [vmem:[%s1 + $0x208] sm:$0xf]
    %v320 = vld [vmem:[%s1 + $0x20c] sm:$0xf]
    %v321 = vld [vmem:[%s1 + $0x210] sm:$0xf]
    %v322 = vld [vmem:[%s1 + $0x214] sm:$0xf]
    %v323 = vld [vmem:[%s1 + $0x218] sm:$0xf]
    %v324 = vld [vmem:[%s1 + $0x21c] sm:$0xf]
    %v325 = vld [vmem:[%s1 + $0x220] sm:$0xf]
    %v326 = vld [vmem:[%s1 + $0x224] sm:$0xf]
    %v327 = vld [vmem:[%s1 + $0x228] sm:$0xf]
    %v328 = vld [vmem:[%s1 + $0x22c] sm:$0xf]
    %v329 = vld [vmem:[%s1 + $0x230] sm:$0xf]
    %v330 = vld [vmem:[%s1 + $0x234] sm:$0xf]
    %v331 = vld [vmem:[%s1 + $0x238] sm:$0xf]
    %v332 = vld [vmem:[%s1 + $0x23c] sm:$0xf]
    %v333 = vld [vmem:[%s1 + $0x240] sm:$0xf]
    %v334 = vld [vmem:[%s1 + $0x244] sm:$0xf]
    %v335 = vld [vmem:[%s1 + $0x248] sm:$0xf]
    %v336 = vld [vmem:[%s1 + $0x24c] sm:$0xf]
    %v337 = vld [vmem:[%s1 + $0x250] sm:$0xf]
    %v338 = vld [vmem:[%s1 + $0x254] sm:$0xf]
    %v339 = vld [vmem:[%s1 + $0x258] sm:$0xf]
    %v340 = vld [vmem:[%s1 + $0x25c] sm:$0xf]
    %v341 = vld [vmem:[%s1 + $0x260] sm:$0xf]
    %v342 = vld [vmem:[%s1 + $0x264] sm:$0xf]
    %v343 = vld [vmem:[%s1 + $0x268] sm:$0xf]
    %v344 = vld [vmem:[%s1 + $0x26c] sm:$0xf]
    %v345 = vld [vmem:[%s1 + $0x270] sm:$0xf]
    %v346 = vld [vmem:[%s1 + $0x274] sm:$0xf]
    %v347 = vld [vmem:[%s1 + $0x278] sm:$0xf]
    %v348 = vld [vmem:[%s1 + $0x27c] sm:$0xf]
    %v349 = vld [vmem:[%s1 + $0x280] sm:$0xf]
    %v350 = vld [vmem:[%s1 + $0x284] sm:$0xf]
    %v351 = vld [vmem:[%s1 + $0x288] sm:$0xf]
    %v352 = vld [vmem:[%s1 + $0x28c] sm:$0xf]
    %v353 = vld [vmem:[%s1 + $0x290] sm:$0xf]
    %v354 = vld [vmem:[%s1 + $0x294] sm:$0xf]
    %v355 = vld [vmem:[%s1 + $0x298] sm:$0xf]
    %v356 = vld [vmem:[%s1 + $0x29c] sm:$0xf]
    %v357 = vld [vmem:[%s1 + $0x2a0] sm:$0xf]
    %v358 = vld [vmem:[%s1 + $0x2a4] sm:$0xf]
    %v359 = vld [vmem:[%s1 + $0x2a8] sm:$0xf]
    %v360 = vld [vmem:[%s1 + $0x2ac] sm:$0xf]
    %v361 = vld [vmem:[%s1 + $0x2b0] sm:$0xf]
    %v362 = vld [vmem:[%s1 + $0x2b4] sm:$0xf]
    %v363 = vld [vmem:[%s1 + $0x2b8] sm:$0xf]
    %v364 = vld [vmem:[%s1 + $0x2bc] sm:$0xf]
    %v365 = vld [vmem:[%s1 + $0x2c0] sm:$0xf]
    %v366 = vld [vmem:[%s1 + $0x2c4] sm:$0xf]
    %v367 = vld [vmem:[%s1 + $0x2c8] sm:$0xf]
    %v368 = vld [vmem:[%s1 + $0x2cc] sm:$0xf]
    %v369 = vld [vmem:[%s1 + $0x2d0] sm:$0xf]
    %v370 = vld [vmem:[%s1 + $0x2d4] sm:$0xf]
    %v371 = vld [vmem:[%s1 + $0x2d8] sm:$0xf]
    %v372 = vld [vmem:[%s1 + $0x2dc] sm:$0xf]
    %v373 = vld [vmem:[%s1 + $0x2e0] sm:$0xf]
    %v374 = vld [vmem:[%s1 + $0x2e4] sm:$0xf]
    %v375 = vld [vmem:[%s1 + $0x2e8] sm:$0xf]
    %v376 = vld [vmem:[%s1 + $0x2ec] sm:$0xf]
    %v377 = vld [vmem:[%s1 + $0x2f0] sm:$0xf]
    %v378 = vld [vmem:[%s1 + $0x2f4] sm:$0xf]
    %v379 = vld [vmem:[%s1 + $0x2f8] sm:$0xf]
    %v380 = vld [vmem:[%s1 + $0x2fc] sm:$0xf]
    %v381 = vld [vmem:[%s1 + $0x300] sm:$0xf]
    %v382 = vld [vmem:[%s1 + $0x304] sm:$0xf]
    %v383 = vld [vmem:[%s1 + $0x308] sm:$0xf]
    %v384 = vld [vmem:[%s1 + $0x30c] sm:$0xf]
    %v385 = vld [vmem:[%s1 + $0x310] sm:$0xf]
    %v386 = vld [vmem:[%s1 + $0x314] sm:$0xf]
    %v387 = vld [vmem:[%s1 + $0x318] sm:$0xf]
    %v388 = vld [vmem:[%s1 + $0x31c] sm:$0xf]
    %v389 = vld [vmem:[%s1 + $0x320] sm:$0xf]
    %v390 = vld [vmem:[%s1 + $0x324] sm:$0xf]
    %v391 = vld [vmem:[%s1 + $0x328] sm:$0xf]
    %v392 = vld [vmem:[%s1 + $0x32c] sm:$0xf]
    %v393 = vld [vmem:[%s1 + $0x330] sm:$0xf]
    %v394 = vld [vmem:[%s1 + $0x334] sm:$0xf]
    %v395 = vld [vmem:[%s1 + $0x338] sm:$0xf]
    %v396 = vld [vmem:[%s1 + $0x33c] sm:$0xf]
    %v397 = vld [vmem:[%s1 + $0x340] sm:$0xf]
    %v398 = vld [vmem:[%s1 + $0x344] sm:$0xf]
    %v399 = vld [vmem:[%s1 + $0x348] sm:$0xf]
    %v400 = vld [vmem:[%s1 + $0x34c] sm:$0xf]
    %v401 = vld [vmem:[%s1 + $0x350] sm:$0xf]
    %v402 = vld [vmem:[%s1 + $0x354] sm:$0xf]
    %v403 = vld [vmem:[%s1 + $0x358] sm:$0xf]
    %v404 = vld [vmem:[%s1 + $0x35c] sm:$0xf]
    %v405 = vld [vmem:[%s1 + $0x360] sm:$0xf]
    %v406 = vld [vmem:[%s1 + $0x364] sm:$0xf]
    %v407 = vld [vmem:[%s1 + $0x368] sm:$0xf]
    %v408 = vld [vmem:[%s1 + $0x36c] sm:$0xf]
    %v409 = vld [vmem:[%s1 + $0x370] sm:$0xf]
    %v410 = vld [vmem:[%s1 + $0x374] sm:$0xf]
    %v411 = vld [vmem:[%s1 + $0x378] sm:$0xf]
    %v412 = vld [vmem:[%s1 + $0x37c] sm:$0xf]
    %v413 = vld [vmem:[%s1 + $0x380] sm:$0xf]
    %v414 = vld [vmem:[%s1 + $0x384] sm:$0xf]
    %v415 = vld [vmem:[%s1 + $0x388] sm:$0xf]
    %v416 = vld [vmem:[%s1 + $0x38c] sm:$0xf]
    %v417 = vld [vmem:[%s1 + $0x390] sm:$0xf]
    %v418 = vld [vmem:[%s1 + $0x394] sm:$0xf]
    %v419 = vld [vmem:[%s1 + $0x398] sm:$0xf]
    %v420 = vld [vmem:[%s1 + $0x39c] sm:$0xf]
    %v421 = vld [vmem:[%s1 + $0x3a0] sm:$0xf]
    %v422 = vld [vmem:[%s1 + $0x3a4] sm:$0xf]
    %v423 = vld [vmem:[%s1 + $0x3a8] sm:$0xf]
    %v424 = vld [vmem:[%s1 + $0x3ac] sm:$0xf]
    %v425 = vld [vmem:[%s1 + $0x3b0] sm:$0xf]
    %v426 = vld [vmem:[%s1 + $0x3b4] sm:$0xf]
    %v427 = vld [vmem:[%s1 + $0x3b8] sm:$0xf]
    %v428 = vld [vmem:[%s1 + $0x3bc] sm:$0xf]
    %v429 = vld [vmem:[%s1 + $0x3c0] sm:$0xf]
    %v430 = vld [vmem:[%s1 + $0x3c4] sm:$0xf]
    %v431 = vld [vmem:[%s1 + $0x3c8] sm:$0xf]
    %v432 = vld [vmem:[%s1 + $0x3cc] sm:$0xf]
    %v433 = vld [vmem:[%s1 + $0x3d0] sm:$0xf]
    %v434 = vld [vmem:[%s1 + $0x3d4] sm:$0xf]
    %v435 = vld [vmem:[%s1 + $0x3d8] sm:$0xf]
    %v436 = vld [vmem:[%s1 + $0x3dc] sm:$0xf]
    %v437 = vld [vmem:[%s1 + $0x3e0] sm:$0xf]
    %v438 = vld [vmem:[%s1 + $0x3e4] sm:$0xf]
    %v439 = vld [vmem:[%s1 + $0x3e8] sm:$0xf]
    %v440 = vld [vmem:[%s1 + $0x3ec] sm:$0xf]
    %v441 = vld [vmem:[%s1 + $0x3f0] sm:$0xf]
    %v442 = vld [vmem:[%s1 + $0x3f4] sm:$0xf]
    %v443 = vld [vmem:[%s1 + $0x3f8] sm:$0xf]
    %v444 = vld [vmem:[%s1 + $0x3fc] sm:$0xf]
    %v445 = vld [vmem:[%s1 + $0x400] sm:$0xf]
    %v446 = vld [vmem:[%s1 + $0x404] sm:$0xf]
    %v447 = vld [vmem:[%s1 + $0x408] sm:$0xf]
    %v448 = vld [vmem:[%s1 + $0x40c] sm:$0xf]
    %v449 = vld [vmem:[%s1 + $0x410] sm:$0xf]
    %v450 = vld [vmem:[%s1 + $0x414] sm:$0xf]
    %v451 = vld [vmem:[%s1 + $0x418] sm:$0xf]
    %v452 = vld [vmem:[%s1 + $0x41c] sm:$0xf]
    %v453 = vld [vmem:[%s1 + $0x420] sm:$0xf]
    %v454 = vld [vmem:[%s1 + $0x424] sm:$0xf]
    %v455 = vld [vmem:[%s1 + $0x428] sm:$0xf]
    %v456 = vld [vmem:[%s1 + $0x42c] sm:$0xf]
    %v457 = vld [vmem:[%s1 + $0x430] sm:$0xf]
    %v458 = vld [vmem:[%s1 + $0x434] sm:$0xf]
    %v459 = vld [vmem:[%s1 + $0x438] sm:$0xf]
    %v460 = vld [vmem:[%s1 + $0x43c] sm:$0xf]
    %v461 = vld [vmem:[%s1 + $0x440] sm:$0xf]
    %v462 = vld [vmem:[%s1 + $0x444] sm:$0xf]
    %v463 = vld [vmem:[%s1 + $0x448] sm:$0xf]
    %v464 = vld [vmem:[%s1 + $0x44c] sm:$0xf]
    %v465 = vld [vmem:[%s1 + $0x450] sm:$0xf]
    %v466 = vld [vmem:[%s1 + $0x454] sm:$0xf]
    %v467 = vld [vmem:[%s1 + $0x458] sm:$0xf]
    %v468 = vld [vmem:[%s1 + $0x45c] sm:$0xf]
    %v469 = vld [vmem:[%s1 + $0x460] sm:$0xf]
    %v470 = vld [vmem:[%s1 + $0x464] sm:$0xf]
    %v471 = vld [vmem:[%s1 + $0x468] sm:$0xf]
    %v472 = vld [vmem:[%s1 + $0x46c] sm:$0xf]
    %v473 = vld [vmem:[%s1 + $0x470] sm:$0xf]
    %v474 = vld [vmem:[%s1 + $0x474] sm:$0xf]
    %v475 = vld [vmem:[%s1 + $0x478] sm:$0xf]
    %v476 = vld [vmem:[%s1 + $0x47c] sm:$0xf]
    %v477 = vld [vmem:[%s1 + $0x480] sm:$0xf]
    %v478 = vld [vmem:[%s1 + $0x484] sm:$0xf]
    %v479 = vld [vmem:[%s1 + $0x488] sm:$0xf]
    %v480 = vld [vmem:[%s1 + $0x48c] sm:$0xf]
    %v481 = vld [vmem:[%s1 + $0x490] sm:$0xf]
    %v482 = vld [vmem:[%s1 + $0x494] sm:$0xf]
    %v483 = vld [vmem:[%s1 + $0x498] sm:$0xf]
    %v484 = vld [vmem:[%s1 + $0x49c] sm:$0xf]
    %v485 = vld [vmem:[%s1 + $0x4a0] sm:$0xf]
    %v486 = vld [vmem:[%s1 + $0x4a4] sm:$0xf]
    %v487 = vld [vmem:[%s1 + $0x4a8] sm:$0xf]
    %v488 = vld [vmem:[%s1 + $0x4ac] sm:$0xf]
    %v489 = vld [vmem:[%s1 + $0x4b0] sm:$0xf]
    %v490 = vld [vmem:[%s1 + $0x4b4] sm:$0xf]
    %v491 = vld [vmem:[%s1 + $0x4b8] sm:$0xf]
    %v492 = vld [vmem:[%s1 + $0x4bc] sm:$0xf]
    %v493 = vld [vmem:[%s1 + $0x4c0] sm:$0xf]
    %v494 = vld [vmem:[%s1 + $0x4c4] sm:$0xf]
    %v495 = vld [vmem:[%s1 + $0x4c8] sm:$0xf]
    %v496 = vld [vmem:[%s1 + $0x4cc] sm:$0xf]
    %v497 = vld [vmem:[%s1 + $0x4d0] sm:$0xf]
    %v498 = vld [vmem:[%s1 + $0x4d4] sm:$0xf]
    %v499 = vld [vmem:[%s1 + $0x4d8] sm:$0xf]
    %v500 = vld [vmem:[%s1 + $0x4dc] sm:$0xf]
    %v501 = vld [vmem:[%s1 + $0x4e0] sm:$0xf]
    %v502 = vld [vmem:[%s1 + $0x4e4] sm:$0xf]
    %v503 = vld [vmem:[%s1 + $0x4e8] sm:$0xf]
    %v504 = vld [vmem:[%s1 + $0x4ec] sm:$0xf]
    %v505 = vld [vmem:[%s1 + $0x4f0] sm:$0xf]
    %v506 = vld [vmem:[%s1 + $0x4f4] sm:$0xf]
    %v507 = vld [vmem:[%s1 + $0x4f8] sm:$0xf]
    %v508 = vld [vmem:[%s1 + $0x4fc] sm:$0xf]
    %v509 = vld [vmem:[%s1 + $0x500] sm:$0xf]
    %v510 = vld [vmem:[%s1 + $0x504] sm:$0xf]
    %v511 = vld [vmem:[%s1 + $0x508] sm:$0xf]
    %v512 = vld [vmem:[%s1 + $0x50c] sm:$0xf]
    %v513 = vld [vmem:[%s1 + $0x510] sm:$0xf]
    %v514 = vld [vmem:[%s1 + $0x514] sm:$0xf]
    %v515 = vld [vmem:[%s1 + $0x518] sm:$0xf]
    %v516 = vld [vmem:[%s1 + $0x51c] sm:$0xf]
    %v517 = vld [vmem:[%s1 + $0x520] sm:$0xf]
    %v518 = vld [vmem:[%s1 + $0x524] sm:$0xf]
    %v519 = vld [vmem:[%s1 + $0x528] sm:$0xf]
    %v520 = vld [vmem:[%s1 + $0x52c] sm:$0xf]
    %v521 = vld [vmem:[%s1 + $0x530] sm:$0xf]
    %v522 = vld [vmem:[%s1 + $0x534] sm:$0xf]
    %v523 = vld [vmem:[%s1 + $0x538] sm:$0xf]
    %v524 = vld [vmem:[%s1 + $0x53c] sm:$0xf]
    %v525 = vld [vmem:[%s1 + $0x540] sm:$0xf]
    %v526 = vld [vmem:[%s1 + $0x544] sm:$0xf]
    %v527 = vld [vmem:[%s1 + $0x548] sm:$0xf]
    %v528 = vld [vmem:[%s1 + $0x54c] sm:$0xf]
    %v529 = vld [vmem:[%s1 + $0x550] sm:$0xf]
    %v530 = vld [vmem:[%s1 + $0x554] sm:$0xf]
    %v531 = vld [vmem:[%s1 + $0x558] sm:$0xf]
    %v532 = vld [vmem:[%s1 + $0x55c] sm:$0xf]
    %v533 = vld [vmem:[%s1 + $0x560] sm:$0xf]
    %v534 = vld [vmem:[%s1 + $0x564] sm:$0xf]
    %v535 = vld [vmem:[%s1 + $0x568] sm:$0xf]
    %v536 = vld [vmem:[%s1 + $0x56c] sm:$0xf]
    %v537 = vld [vmem:[%s1 + $0x570] sm:$0xf]
    %v538 = vld [vmem:[%s1 + $0x574] sm:$0xf]
    %v539 = vld [vmem:[%s1 + $0x578] sm:$0xf]
    %v540 = vld [vmem:[%s1 + $0x57c] sm:$0xf]
    %v541 = vld [vmem:[%s1 + $0x580] sm:$0xf]
    %v542 = vld [vmem:[%s1 + $0x584] sm:$0xf]
    %v543 = vld [vmem:[%s1 + $0x588] sm:$0xf]
    %v544 = vld [vmem:[%s1 + $0x58c] sm:$0xf]
    %v545 = vld [vmem:[%s1 + $0x590] sm:$0xf]
    %v546 = vld [vmem:[%s1 + $0x594] sm:$0xf]
    %v547 = vld [vmem:[%s1 + $0x598] sm:$0xf]
    %v548 = vld [vmem:[%s1 + $0x59c] sm:$0xf]
    %v549 = vld [vmem:[%s1 + $0x5a0] sm:$0xf]
    %v550 = vld [vmem:[%s1 + $0x5a4] sm:$0xf]
    %v551 = vld [vmem:[%s1 + $0x5a8] sm:$0xf]
    %v552 = vld [vmem:[%s1 + $0x5ac] sm:$0xf]
    %v553 = vld [vmem:[%s1 + $0x5b0] sm:$0xf]
    %v554 = vld [vmem:[%s1 + $0x5b4] sm:$0xf]
    %v555 = vld [vmem:[%s1 + $0x5b8] sm:$0xf]
    %v556 = vld [vmem:[%s1 + $0x5bc] sm:$0xf]
    %v557 = vld [vmem:[%s1 + $0x5c0] sm:$0xf]
    %v558 = vld [vmem:[%s1 + $0x5c4] sm:$0xf]
    %v559 = vld [vmem:[%s1 + $0x5c8] sm:$0xf]
    %v560 = vld [vmem:[%s1 + $0x5cc] sm:$0xf]
    %v561 = vld [vmem:[%s1 + $0x5d0] sm:$0xf]
    %v562 = vld [vmem:[%s1 + $0x5d4] sm:$0xf]
    %v563 = vld [vmem:[%s1 + $0x5d8] sm:$0xf]
    %v564 = vld [vmem:[%s1 + $0x5dc] sm:$0xf]
    %v565 = vld [vmem:[%s1 + $0x5e0] sm:$0xf]
    %v566 = vld [vmem:[%s1 + $0x5e4] sm:$0xf]
    %v567 = vld [vmem:[%s1 + $0x5e8] sm:$0xf]
    %v568 = vld [vmem:[%s1 + $0x5ec] sm:$0xf]
    %v569 = vld [vmem:[%s1 + $0x5f0] sm:$0xf]
    %v570 = vld [vmem:[%s1 + $0x5f4] sm:$0xf]
    %v571 = vld [vmem:[%s1 + $0x5f8] sm:$0xf]
    %v572 = vld [vmem:[%s1 + $0x5fc] sm:$0xf]
    %v573 = vld [vmem:[%s1 + $0x600] sm:$0xf]
    %v574 = vld [vmem:[%s1 + $0x604] sm:$0xf]
    %v575 = vld [vmem:[%s1 + $0x608] sm:$0xf]
    %v576 = vld [vmem:[%s1 + $0x60c] sm:$0xf]
    %v577 = vld [vmem:[%s1 + $0x610] sm:$0xf]
    %v578 = vld [vmem:[%s1 + $0x614] sm:$0xf]
    %v579 = vld [vmem:[%s1 + $0x618] sm:$0xf]
    %v580 = vld [vmem:[%s1 + $0x61c] sm:$0xf]
    %v581 = vld [vmem:[%s1 + $0x620] sm:$0xf]
    %v582 = vld [vmem:[%s1 + $0x624] sm:$0xf]
    %v583 = vld [vmem:[%s1 + $0x628] sm:$0xf]
    %v584 = vld [vmem:[%s1 + $0x62c] sm:$0xf]
    %v585 = vld [vmem:[%s1 + $0x630] sm:$0xf]
    %v586 = vld [vmem:[%s1 + $0x634] sm:$0xf]
    %v587 = vld [vmem:[%s1 + $0x638] sm:$0xf]
    %v588 = vld [vmem:[%s1 + $0x63c] sm:$0xf]
    %v589 = vld [vmem:[%s2] sm:$0x1]
    %v591 = vlaneseq
    %v592 = vshrl.u32 %v591, 7
    %v593 = vsub.s32 0, %v592
    %v594 = vrot.slane %v589, %v593
    %v996 = vunpack.c.l.b16 %v189
    %v997 = vunpack.c.l.b16 %v190
    %v998 = vunpack.c.l.b16 %v191
    %v999 = vunpack.c.l.b16 %v192
    %v1000 = vunpack.c.l.b16 %v193
    %v1001 = vunpack.c.l.b16 %v194
    %v1002 = vunpack.c.l.b16 %v195
    %v1003 = vunpack.c.l.b16 %v196
    %v1004 = vunpack.c.l.b16 %v197
    %v1005 = vunpack.c.l.b16 %v198
    %v1006 = vunpack.c.l.b16 %v199
    %v1007 = vunpack.c.l.b16 %v200
    %v1008 = vunpack.c.l.b16 %v201
    %v1009 = vunpack.c.l.b16 %v202
    %v1010 = vunpack.c.l.b16 %v203
    %v1011 = vunpack.c.l.b16 %v204
    %v1012 = vunpack.c.l.b16 %v205
    %v1013 = vunpack.c.l.b16 %v206
    %v1014 = vunpack.c.l.b16 %v207
    %v1015 = vunpack.c.l.b16 %v208
    %v1016 = vunpack.c.l.b16 %v209
    %v1017 = vunpack.c.l.b16 %v210
    %v1018 = vunpack.c.l.b16 %v211
    %v1019 = vunpack.c.l.b16 %v212
    %v1020 = vunpack.c.l.b16 %v213
    %v1021 = vunpack.c.l.b16 %v214
    %v1022 = vunpack.c.l.b16 %v215
    %v1023 = vunpack.c.l.b16 %v216
    %v1024 = vunpack.c.l.b16 %v217
    %v1025 = vunpack.c.l.b16 %v218
    %v1026 = vunpack.c.l.b16 %v219
    %v1027 = vunpack.c.l.b16 %v220
    %v1028 = vunpack.c.l.b16 %v221
    %v1029 = vunpack.c.l.b16 %v222
    %v1030 = vunpack.c.l.b16 %v223
    %v1031 = vunpack.c.l.b16 %v224
    %v1032 = vunpack.c.l.b16 %v225
    %v1033 = vunpack.c.l.b16 %v226
    %v1034 = vunpack.c.l.b16 %v227
    %v1035 = vunpack.c.l.b16 %v228
    %v1036 = vunpack.c.l.b16 %v229
    %v1037 = vunpack.c.l.b16 %v230
    %v1038 = vunpack.c.l.b16 %v231
    %v1039 = vunpack.c.l.b16 %v232
    %v1040 = vunpack.c.l.b16 %v233
    %v1041 = vunpack.c.l.b16 %v234
    %v1042 = vunpack.c.l.b16 %v235
    %v1043 = vunpack.c.l.b16 %v236
    %v1044 = vunpack.c.l.b16 %v237
    %v1045 = vunpack.c.l.b16 %v238
    %v1046 = vunpack.c.l.b16 %v239
    %v1047 = vunpack.c.l.b16 %v240
    %v1048 = vunpack.c.l.b16 %v241
    %v1049 = vunpack.c.l.b16 %v242
    %v1050 = vunpack.c.l.b16 %v243
    %v1051 = vunpack.c.l.b16 %v244
    %v1052 = vunpack.c.l.b16 %v245
    %v1053 = vunpack.c.l.b16 %v246
    %v1054 = vunpack.c.l.b16 %v247
    %v1055 = vunpack.c.l.b16 %v248
    %v1056 = vunpack.c.l.b16 %v249
    %v1057 = vunpack.c.l.b16 %v250
    %v1058 = vunpack.c.l.b16 %v251
    %v1059 = vunpack.c.l.b16 %v252
    %v1060 = vunpack.c.l.b16 %v253
    %v1061 = vunpack.c.l.b16 %v254
    %v1062 = vunpack.c.l.b16 %v255
    %v1063 = vunpack.c.l.b16 %v256
    %v1064 = vunpack.c.l.b16 %v257
    %v1065 = vunpack.c.l.b16 %v258
    %v1066 = vunpack.c.l.b16 %v259
    %v1067 = vunpack.c.l.b16 %v260
    %v1068 = vunpack.c.l.b16 %v261
    %v1069 = vunpack.c.l.b16 %v262
    %v1070 = vunpack.c.l.b16 %v263
    %v1071 = vunpack.c.l.b16 %v264
    %v1072 = vunpack.c.l.b16 %v265
    %v1073 = vunpack.c.l.b16 %v266
    %v1074 = vunpack.c.l.b16 %v267
    %v1075 = vunpack.c.l.b16 %v268
    %v1076 = vunpack.c.l.b16 %v269
    %v1077 = vunpack.c.l.b16 %v270
    %v1078 = vunpack.c.l.b16 %v271
    %v1079 = vunpack.c.l.b16 %v272
    %v1080 = vunpack.c.l.b16 %v273
    %v1081 = vunpack.c.l.b16 %v274
    %v1082 = vunpack.c.l.b16 %v275
    %v1083 = vunpack.c.l.b16 %v276
    %v1084 = vunpack.c.l.b16 %v277
    %v1085 = vunpack.c.l.b16 %v278
    %v1086 = vunpack.c.l.b16 %v279
    %v1087 = vunpack.c.l.b16 %v280
    %v1088 = vunpack.c.l.b16 %v281
    %v1089 = vunpack.c.l.b16 %v282
    %v1090 = vunpack.c.l.b16 %v283
    %v1091 = vunpack.c.l.b16 %v284
    %v1092 = vunpack.c.l.b16 %v285
    %v1093 = vunpack.c.l.b16 %v286
    %v1094 = vunpack.c.l.b16 %v287
    %v1095 = vunpack.c.l.b16 %v288
    %v1096 = vunpack.c.l.b16 %v289
    %v1097 = vunpack.c.l.b16 %v290
    %v1098 = vunpack.c.l.b16 %v291
    %v1099 = vunpack.c.l.b16 %v292
    %v1100 = vunpack.c.l.b16 %v293
    %v1101 = vunpack.c.l.b16 %v294
    %v1102 = vunpack.c.l.b16 %v295
    %v1103 = vunpack.c.l.b16 %v296
    %v1104 = vunpack.c.l.b16 %v297
    %v1105 = vunpack.c.l.b16 %v298
    %v1106 = vunpack.c.l.b16 %v299
    %v1107 = vunpack.c.l.b16 %v300
    %v1108 = vunpack.c.l.b16 %v301
    %v1109 = vunpack.c.l.b16 %v302
    %v1110 = vunpack.c.l.b16 %v303
    %v1111 = vunpack.c.l.b16 %v304
    %v1112 = vunpack.c.l.b16 %v305
    %v1113 = vunpack.c.l.b16 %v306
    %v1114 = vunpack.c.l.b16 %v307
    %v1115 = vunpack.c.l.b16 %v308
    %v1116 = vunpack.c.l.b16 %v309
    %v1117 = vunpack.c.l.b16 %v310
    %v1118 = vunpack.c.l.b16 %v311
    %v1119 = vunpack.c.l.b16 %v312
    %v1120 = vunpack.c.l.b16 %v313
    %v1121 = vunpack.c.l.b16 %v314
    %v1122 = vunpack.c.l.b16 %v315
    %v1123 = vunpack.c.l.b16 %v316
    %v1124 = vunpack.c.l.b16 %v317
    %v1125 = vunpack.c.l.b16 %v318
    %v1126 = vunpack.c.l.b16 %v319
    %v1127 = vunpack.c.l.b16 %v320
    %v1128 = vunpack.c.l.b16 %v321
    %v1129 = vunpack.c.l.b16 %v322
    %v1130 = vunpack.c.l.b16 %v323
    %v1131 = vunpack.c.l.b16 %v324
    %v1132 = vunpack.c.l.b16 %v325
    %v1133 = vunpack.c.l.b16 %v326
    %v1134 = vunpack.c.l.b16 %v327
    %v1135 = vunpack.c.l.b16 %v328
    %v1136 = vunpack.c.l.b16 %v329
    %v1137 = vunpack.c.l.b16 %v330
    %v1138 = vunpack.c.l.b16 %v331
    %v1139 = vunpack.c.l.b16 %v332
    %v1140 = vunpack.c.l.b16 %v333
    %v1141 = vunpack.c.l.b16 %v334
    %v1142 = vunpack.c.l.b16 %v335
    %v1143 = vunpack.c.l.b16 %v336
    %v1144 = vunpack.c.l.b16 %v337
    %v1145 = vunpack.c.l.b16 %v338
    %v1146 = vunpack.c.l.b16 %v339
    %v1147 = vunpack.c.l.b16 %v340
    %v1148 = vunpack.c.l.b16 %v341
    %v1149 = vunpack.c.l.b16 %v342
    %v1150 = vunpack.c.l.b16 %v343
    %v1151 = vunpack.c.l.b16 %v344
    %v1152 = vunpack.c.l.b16 %v345
    %v1153 = vunpack.c.l.b16 %v346
    %v1154 = vunpack.c.l.b16 %v347
    %v1155 = vunpack.c.l.b16 %v348
    %v1156 = vunpack.c.l.b16 %v349
    %v1157 = vunpack.c.l.b16 %v350
    %v1158 = vunpack.c.l.b16 %v351
    %v1159 = vunpack.c.l.b16 %v352
    %v1160 = vunpack.c.l.b16 %v353
    %v1161 = vunpack.c.l.b16 %v354
    %v1162 = vunpack.c.l.b16 %v355
    %v1163 = vunpack.c.l.b16 %v356
    %v1164 = vunpack.c.l.b16 %v357
    %v1165 = vunpack.c.l.b16 %v358
    %v1166 = vunpack.c.l.b16 %v359
    %v1167 = vunpack.c.l.b16 %v360
    %v1168 = vunpack.c.l.b16 %v361
    %v1169 = vunpack.c.l.b16 %v362
    %v1170 = vunpack.c.l.b16 %v363
    %v1171 = vunpack.c.l.b16 %v364
    %v1172 = vunpack.c.l.b16 %v365
    %v1173 = vunpack.c.l.b16 %v366
    %v1174 = vunpack.c.l.b16 %v367
    %v1175 = vunpack.c.l.b16 %v368
    %v1176 = vunpack.c.l.b16 %v369
    %v1177 = vunpack.c.l.b16 %v370
    %v1178 = vunpack.c.l.b16 %v371
    %v1179 = vunpack.c.l.b16 %v372
    %v1180 = vunpack.c.l.b16 %v373
    %v1181 = vunpack.c.l.b16 %v374
    %v1182 = vunpack.c.l.b16 %v375
    %v1183 = vunpack.c.l.b16 %v376
    %v1184 = vunpack.c.l.b16 %v377
    %v1185 = vunpack.c.l.b16 %v378
    %v1186 = vunpack.c.l.b16 %v379
    %v1187 = vunpack.c.l.b16 %v380
    %v1188 = vunpack.c.l.b16 %v381
    %v1189 = vunpack.c.l.b16 %v382
    %v1190 = vunpack.c.l.b16 %v383
    %v1191 = vunpack.c.l.b16 %v384
    %v1192 = vunpack.c.l.b16 %v385
    %v1193 = vunpack.c.l.b16 %v386
    %v1194 = vunpack.c.l.b16 %v387
    %v1195 = vunpack.c.l.b16 %v388
    %v1196 = vunpack.c.l.b16 %v389
    %v1197 = vunpack.c.l.b16 %v390
    %v1198 = vunpack.c.l.b16 %v391
    %v1199 = vunpack.c.l.b16 %v392
    %v1200 = vunpack.c.l.b16 %v393
    %v1201 = vunpack.c.l.b16 %v394
    %v1202 = vunpack.c.l.b16 %v395
    %v1203 = vunpack.c.l.b16 %v396
    %v1204 = vunpack.c.l.b16 %v397
    %v1205 = vunpack.c.l.b16 %v398
    %v1206 = vunpack.c.l.b16 %v399
    %v1207 = vunpack.c.l.b16 %v400
    %v1208 = vunpack.c.l.b16 %v401
    %v1209 = vunpack.c.l.b16 %v402
    %v1210 = vunpack.c.l.b16 %v403
    %v1211 = vunpack.c.l.b16 %v404
    %v1212 = vunpack.c.l.b16 %v405
    %v1213 = vunpack.c.l.b16 %v406
    %v1214 = vunpack.c.l.b16 %v407
    %v1215 = vunpack.c.l.b16 %v408
    %v1216 = vunpack.c.l.b16 %v409
    %v1217 = vunpack.c.l.b16 %v410
    %v1218 = vunpack.c.l.b16 %v411
    %v1219 = vunpack.c.l.b16 %v412
    %v1220 = vunpack.c.l.b16 %v413
    %v1221 = vunpack.c.l.b16 %v414
    %v1222 = vunpack.c.l.b16 %v415
    %v1223 = vunpack.c.l.b16 %v416
    %v1224 = vunpack.c.l.b16 %v417
    %v1225 = vunpack.c.l.b16 %v418
    %v1226 = vunpack.c.l.b16 %v419
    %v1227 = vunpack.c.l.b16 %v420
    %v1228 = vunpack.c.l.b16 %v421
    %v1229 = vunpack.c.l.b16 %v422
    %v1230 = vunpack.c.l.b16 %v423
    %v1231 = vunpack.c.l.b16 %v424
    %v1232 = vunpack.c.l.b16 %v425
    %v1233 = vunpack.c.l.b16 %v426
    %v1234 = vunpack.c.l.b16 %v427
    %v1235 = vunpack.c.l.b16 %v428
    %v1236 = vunpack.c.l.b16 %v429
    %v1237 = vunpack.c.l.b16 %v430
    %v1238 = vunpack.c.l.b16 %v431
    %v1239 = vunpack.c.l.b16 %v432
    %v1240 = vunpack.c.l.b16 %v433
    %v1241 = vunpack.c.l.b16 %v434
    %v1242 = vunpack.c.l.b16 %v435
    %v1243 = vunpack.c.l.b16 %v436
    %v1244 = vunpack.c.l.b16 %v437
    %v1245 = vunpack.c.l.b16 %v438
    %v1246 = vunpack.c.l.b16 %v439
    %v1247 = vunpack.c.l.b16 %v440
    %v1248 = vunpack.c.l.b16 %v441
    %v1249 = vunpack.c.l.b16 %v442
    %v1250 = vunpack.c.l.b16 %v443
    %v1251 = vunpack.c.l.b16 %v444
    %v1252 = vunpack.c.l.b16 %v445
    %v1253 = vunpack.c.l.b16 %v446
    %v1254 = vunpack.c.l.b16 %v447
    %v1255 = vunpack.c.l.b16 %v448
    %v1256 = vunpack.c.l.b16 %v449
    %v1257 = vunpack.c.l.b16 %v450
    %v1258 = vunpack.c.l.b16 %v451
    %v1259 = vunpack.c.l.b16 %v452
    %v1260 = vunpack.c.l.b16 %v453
    %v1261 = vunpack.c.l.b16 %v454
    %v1262 = vunpack.c.l.b16 %v455
    %v1263 = vunpack.c.l.b16 %v456
    %v1264 = vunpack.c.l.b16 %v457
    %v1265 = vunpack.c.l.b16 %v458
    %v1266 = vunpack.c.l.b16 %v459
    %v1267 = vunpack.c.l.b16 %v460
    %v1268 = vunpack.c.l.b16 %v461
    %v1269 = vunpack.c.l.b16 %v462
    %v1270 = vunpack.c.l.b16 %v463
    %v1271 = vunpack.c.l.b16 %v464
    %v1272 = vunpack.c.l.b16 %v465
    %v1273 = vunpack.c.l.b16 %v466
    %v1274 = vunpack.c.l.b16 %v467
    %v1275 = vunpack.c.l.b16 %v468
    %v1276 = vunpack.c.l.b16 %v469
    %v1277 = vunpack.c.l.b16 %v470
    %v1278 = vunpack.c.l.b16 %v471
    %v1279 = vunpack.c.l.b16 %v472
    %v1280 = vunpack.c.l.b16 %v473
    %v1281 = vunpack.c.l.b16 %v474
    %v1282 = vunpack.c.l.b16 %v475
    %v1283 = vunpack.c.l.b16 %v476
    %v1284 = vunpack.c.l.b16 %v477
    %v1285 = vunpack.c.l.b16 %v478
    %v1286 = vunpack.c.l.b16 %v479
    %v1287 = vunpack.c.l.b16 %v480
    %v1288 = vunpack.c.l.b16 %v481
    %v1289 = vunpack.c.l.b16 %v482
    %v1290 = vunpack.c.l.b16 %v483
    %v1291 = vunpack.c.l.b16 %v484
    %v1292 = vunpack.c.l.b16 %v485
    %v1293 = vunpack.c.l.b16 %v486
    %v1294 = vunpack.c.l.b16 %v487
    %v1295 = vunpack.c.l.b16 %v488
    %v1296 = vunpack.c.l.b16 %v489
    %v1297 = vunpack.c.l.b16 %v490
    %v1298 = vunpack.c.l.b16 %v491
    %v1299 = vunpack.c.l.b16 %v492
    %v1300 = vunpack.c.l.b16 %v493
    %v1301 = vunpack.c.l.b16 %v494
    %v1302 = vunpack.c.l.b16 %v495
    %v1303 = vunpack.c.l.b16 %v496
    %v1304 = vunpack.c.l.b16 %v497
    %v1305 = vunpack.c.l.b16 %v498
    %v1306 = vunpack.c.l.b16 %v499
    %v1307 = vunpack.c.l.b16 %v500
    %v1308 = vunpack.c.l.b16 %v501
    %v1309 = vunpack.c.l.b16 %v502
    %v1310 = vunpack.c.l.b16 %v503
    %v1311 = vunpack.c.l.b16 %v504
    %v1312 = vunpack.c.l.b16 %v505
    %v1313 = vunpack.c.l.b16 %v506
    %v1314 = vunpack.c.l.b16 %v507
    %v1315 = vunpack.c.l.b16 %v508
    %v1316 = vunpack.c.l.b16 %v509
    %v1317 = vunpack.c.l.b16 %v510
    %v1318 = vunpack.c.l.b16 %v511
    %v1319 = vunpack.c.l.b16 %v512
    %v1320 = vunpack.c.l.b16 %v513
    %v1321 = vunpack.c.l.b16 %v514
    %v1322 = vunpack.c.l.b16 %v515
    %v1323 = vunpack.c.l.b16 %v516
    %v1324 = vunpack.c.l.b16 %v517
    %v1325 = vunpack.c.l.b16 %v518
    %v1326 = vunpack.c.l.b16 %v519
    %v1327 = vunpack.c.l.b16 %v520
    %v1328 = vunpack.c.l.b16 %v521
    %v1329 = vunpack.c.l.b16 %v522
    %v1330 = vunpack.c.l.b16 %v523
    %v1331 = vunpack.c.l.b16 %v524
    %v1332 = vunpack.c.l.b16 %v525
    %v1333 = vunpack.c.l.b16 %v526
    %v1334 = vunpack.c.l.b16 %v527
    %v1335 = vunpack.c.l.b16 %v528
    %v1336 = vunpack.c.l.b16 %v529
    %v1337 = vunpack.c.l.b16 %v530
    %v1338 = vunpack.c.l.b16 %v531
    %v1339 = vunpack.c.l.b16 %v532
    %v1340 = vunpack.c.l.b16 %v533
    %v1341 = vunpack.c.l.b16 %v534
    %v1342 = vunpack.c.l.b16 %v535
    %v1343 = vunpack.c.l.b16 %v536
    %v1344 = vunpack.c.l.b16 %v537
    %v1345 = vunpack.c.l.b16 %v538
    %v1346 = vunpack.c.l.b16 %v539
    %v1347 = vunpack.c.l.b16 %v540
    %v1348 = vunpack.c.l.b16 %v541
    %v1349 = vunpack.c.l.b16 %v542
    %v1350 = vunpack.c.l.b16 %v543
    %v1351 = vunpack.c.l.b16 %v544
    %v1352 = vunpack.c.l.b16 %v545
    %v1353 = vunpack.c.l.b16 %v546
    %v1354 = vunpack.c.l.b16 %v547
    %v1355 = vunpack.c.l.b16 %v548
    %v1356 = vunpack.c.l.b16 %v549
    %v1357 = vunpack.c.l.b16 %v550
    %v1358 = vunpack.c.l.b16 %v551
    %v1359 = vunpack.c.l.b16 %v552
    %v1360 = vunpack.c.l.b16 %v553
    %v1361 = vunpack.c.l.b16 %v554
    %v1362 = vunpack.c.l.b16 %v555
    %v1363 = vunpack.c.l.b16 %v556
    %v1364 = vunpack.c.l.b16 %v557
    %v1365 = vunpack.c.l.b16 %v558
    %v1366 = vunpack.c.l.b16 %v559
    %v1367 = vunpack.c.l.b16 %v560
    %v1368 = vunpack.c.l.b16 %v561
    %v1369 = vunpack.c.l.b16 %v562
    %v1370 = vunpack.c.l.b16 %v563
    %v1371 = vunpack.c.l.b16 %v564
    %v1372 = vunpack.c.l.b16 %v565
    %v1373 = vunpack.c.l.b16 %v566
    %v1374 = vunpack.c.l.b16 %v567
    %v1375 = vunpack.c.l.b16 %v568
    %v1376 = vunpack.c.l.b16 %v569
    %v1377 = vunpack.c.l.b16 %v570
    %v1378 = vunpack.c.l.b16 %v571
    %v1379 = vunpack.c.l.b16 %v572
    %v1380 = vunpack.c.l.b16 %v573
    %v1381 = vunpack.c.l.b16 %v574
    %v1382 = vunpack.c.l.b16 %v575
    %v1383 = vunpack.c.l.b16 %v576
    %v1384 = vunpack.c.l.b16 %v577
    %v1385 = vunpack.c.l.b16 %v578
    %v1386 = vunpack.c.l.b16 %v579
    %v1387 = vunpack.c.l.b16 %v580
    %v1388 = vunpack.c.l.b16 %v581
    %v1389 = vunpack.c.l.b16 %v582
    %v1390 = vunpack.c.l.b16 %v583
    %v1391 = vunpack.c.l.b16 %v584
    %v1392 = vunpack.c.l.b16 %v585
    %v1393 = vunpack.c.l.b16 %v586
    %v1394 = vunpack.c.l.b16 %v587
    %v1395 = vunpack.c.l.b16 %v588
    %v1396 = vpack.c.b16 %v997, %v996
    %v1397 = vpack.c.b16 %v999, %v998
    %v1398 = vpack.c.b16 %v1001, %v1000
    %v1399 = vpack.c.b16 %v1003, %v1002
    %v1400 = vpack.c.b16 %v1005, %v1004
    %v1401 = vpack.c.b16 %v1007, %v1006
    %v1402 = vpack.c.b16 %v1009, %v1008
    %v1403 = vpack.c.b16 %v1011, %v1010
    %v1404 = vpack.c.b16 %v1013, %v1012
    %v1405 = vpack.c.b16 %v1015, %v1014
    %v1406 = vpack.c.b16 %v1017, %v1016
    %v1407 = vpack.c.b16 %v1019, %v1018
    %v1408 = vpack.c.b16 %v1021, %v1020
    %v1409 = vpack.c.b16 %v1023, %v1022
    %v1410 = vpack.c.b16 %v1025, %v1024
    %v1411 = vpack.c.b16 %v1027, %v1026
    %v1412 = vpack.c.b16 %v1029, %v1028
    %v1413 = vpack.c.b16 %v1031, %v1030
    %v1414 = vpack.c.b16 %v1033, %v1032
    %v1415 = vpack.c.b16 %v1035, %v1034
    %v1416 = vpack.c.b16 %v1037, %v1036
    %v1417 = vpack.c.b16 %v1039, %v1038
    %v1418 = vpack.c.b16 %v1041, %v1040
    %v1419 = vpack.c.b16 %v1043, %v1042
    %v1420 = vpack.c.b16 %v1045, %v1044
    %v1421 = vpack.c.b16 %v1047, %v1046
    %v1422 = vpack.c.b16 %v1049, %v1048
    %v1423 = vpack.c.b16 %v1051, %v1050
    %v1424 = vpack.c.b16 %v1053, %v1052
    %v1425 = vpack.c.b16 %v1055, %v1054
    %v1426 = vpack.c.b16 %v1057, %v1056
    %v1427 = vpack.c.b16 %v1059, %v1058
    %v1428 = vpack.c.b16 %v1061, %v1060
    %v1429 = vpack.c.b16 %v1063, %v1062
    %v1430 = vpack.c.b16 %v1065, %v1064
    %v1431 = vpack.c.b16 %v1067, %v1066
    %v1432 = vpack.c.b16 %v1069, %v1068
    %v1433 = vpack.c.b16 %v1071, %v1070
    %v1434 = vpack.c.b16 %v1073, %v1072
    %v1435 = vpack.c.b16 %v1075, %v1074
    %v1436 = vpack.c.b16 %v1077, %v1076
    %v1437 = vpack.c.b16 %v1079, %v1078
    %v1438 = vpack.c.b16 %v1081, %v1080
    %v1439 = vpack.c.b16 %v1083, %v1082
    %v1440 = vpack.c.b16 %v1085, %v1084
    %v1441 = vpack.c.b16 %v1087, %v1086
    %v1442 = vpack.c.b16 %v1089, %v1088
    %v1443 = vpack.c.b16 %v1091, %v1090
    %v1444 = vpack.c.b16 %v1093, %v1092
    %v1445 = vpack.c.b16 %v1095, %v1094
    %v1446 = vpack.c.b16 %v1097, %v1096
    %v1447 = vpack.c.b16 %v1099, %v1098
    %v1448 = vpack.c.b16 %v1101, %v1100
    %v1449 = vpack.c.b16 %v1103, %v1102
    %v1450 = vpack.c.b16 %v1105, %v1104
    %v1451 = vpack.c.b16 %v1107, %v1106
    %v1452 = vpack.c.b16 %v1109, %v1108
    %v1453 = vpack.c.b16 %v1111, %v1110
    %v1454 = vpack.c.b16 %v1113, %v1112
    %v1455 = vpack.c.b16 %v1115, %v1114
    %v1456 = vpack.c.b16 %v1117, %v1116
    %v1457 = vpack.c.b16 %v1119, %v1118
    %v1458 = vpack.c.b16 %v1121, %v1120
    %v1459 = vpack.c.b16 %v1123, %v1122
    %v1460 = vpack.c.b16 %v1125, %v1124
    %v1461 = vpack.c.b16 %v1127, %v1126
    %v1462 = vpack.c.b16 %v1129, %v1128
    %v1463 = vpack.c.b16 %v1131, %v1130
    %v1464 = vpack.c.b16 %v1133, %v1132
    %v1465 = vpack.c.b16 %v1135, %v1134
    %v1466 = vpack.c.b16 %v1137, %v1136
    %v1467 = vpack.c.b16 %v1139, %v1138
    %v1468 = vpack.c.b16 %v1141, %v1140
    %v1469 = vpack.c.b16 %v1143, %v1142
    %v1470 = vpack.c.b16 %v1145, %v1144
    %v1471 = vpack.c.b16 %v1147, %v1146
    %v1472 = vpack.c.b16 %v1149, %v1148
    %v1473 = vpack.c.b16 %v1151, %v1150
    %v1474 = vpack.c.b16 %v1153, %v1152
    %v1475 = vpack.c.b16 %v1155, %v1154
    %v1476 = vpack.c.b16 %v1157, %v1156
    %v1477 = vpack.c.b16 %v1159, %v1158
    %v1478 = vpack.c.b16 %v1161, %v1160
    %v1479 = vpack.c.b16 %v1163, %v1162
    %v1480 = vpack.c.b16 %v1165, %v1164
    %v1481 = vpack.c.b16 %v1167, %v1166
    %v1482 = vpack.c.b16 %v1169, %v1168
    %v1483 = vpack.c.b16 %v1171, %v1170
    %v1484 = vpack.c.b16 %v1173, %v1172
    %v1485 = vpack.c.b16 %v1175, %v1174
    %v1486 = vpack.c.b16 %v1177, %v1176
    %v1487 = vpack.c.b16 %v1179, %v1178
    %v1488 = vpack.c.b16 %v1181, %v1180
    %v1489 = vpack.c.b16 %v1183, %v1182
    %v1490 = vpack.c.b16 %v1185, %v1184
    %v1491 = vpack.c.b16 %v1187, %v1186
    %v1492 = vpack.c.b16 %v1189, %v1188
    %v1493 = vpack.c.b16 %v1191, %v1190
    %v1494 = vpack.c.b16 %v1193, %v1192
    %v1495 = vpack.c.b16 %v1195, %v1194
    %v1496 = vpack.c.b16 %v1197, %v1196
    %v1497 = vpack.c.b16 %v1199, %v1198
    %v1498 = vpack.c.b16 %v1201, %v1200
    %v1499 = vpack.c.b16 %v1203, %v1202
    %v1500 = vpack.c.b16 %v1205, %v1204
    %v1501 = vpack.c.b16 %v1207, %v1206
    %v1502 = vpack.c.b16 %v1209, %v1208
    %v1503 = vpack.c.b16 %v1211, %v1210
    %v1504 = vpack.c.b16 %v1213, %v1212
    %v1505 = vpack.c.b16 %v1215, %v1214
    %v1506 = vpack.c.b16 %v1217, %v1216
    %v1507 = vpack.c.b16 %v1219, %v1218
    %v1508 = vpack.c.b16 %v1221, %v1220
    %v1509 = vpack.c.b16 %v1223, %v1222
    %v1510 = vpack.c.b16 %v1225, %v1224
    %v1511 = vpack.c.b16 %v1227, %v1226
    %v1512 = vpack.c.b16 %v1229, %v1228
    %v1513 = vpack.c.b16 %v1231, %v1230
    %v1514 = vpack.c.b16 %v1233, %v1232
    %v1515 = vpack.c.b16 %v1235, %v1234
    %v1516 = vpack.c.b16 %v1237, %v1236
    %v1517 = vpack.c.b16 %v1239, %v1238
    %v1518 = vpack.c.b16 %v1241, %v1240
    %v1519 = vpack.c.b16 %v1243, %v1242
    %v1520 = vpack.c.b16 %v1245, %v1244
    %v1521 = vpack.c.b16 %v1247, %v1246
    %v1522 = vpack.c.b16 %v1249, %v1248
    %v1523 = vpack.c.b16 %v1251, %v1250
    %v1524 = vpack.c.b16 %v1253, %v1252
    %v1525 = vpack.c.b16 %v1255, %v1254
    %v1526 = vpack.c.b16 %v1257, %v1256
    %v1527 = vpack.c.b16 %v1259, %v1258
    %v1528 = vpack.c.b16 %v1261, %v1260
    %v1529 = vpack.c.b16 %v1263, %v1262
    %v1530 = vpack.c.b16 %v1265, %v1264
    %v1531 = vpack.c.b16 %v1267, %v1266
    %v1532 = vpack.c.b16 %v1269, %v1268
    %v1533 = vpack.c.b16 %v1271, %v1270
    %v1534 = vpack.c.b16 %v1273, %v1272
    %v1535 = vpack.c.b16 %v1275, %v1274
    %v1536 = vpack.c.b16 %v1277, %v1276
    %v1537 = vpack.c.b16 %v1279, %v1278
    %v1538 = vpack.c.b16 %v1281, %v1280
    %v1539 = vpack.c.b16 %v1283, %v1282
    %v1540 = vpack.c.b16 %v1285, %v1284
    %v1541 = vpack.c.b16 %v1287, %v1286
    %v1542 = vpack.c.b16 %v1289, %v1288
    %v1543 = vpack.c.b16 %v1291, %v1290
    %v1544 = vpack.c.b16 %v1293, %v1292
    %v1545 = vpack.c.b16 %v1295, %v1294
    %v1546 = vpack.c.b16 %v1297, %v1296
    %v1547 = vpack.c.b16 %v1299, %v1298
    %v1548 = vpack.c.b16 %v1301, %v1300
    %v1549 = vpack.c.b16 %v1303, %v1302
    %v1550 = vpack.c.b16 %v1305, %v1304
    %v1551 = vpack.c.b16 %v1307, %v1306
    %v1552 = vpack.c.b16 %v1309, %v1308
    %v1553 = vpack.c.b16 %v1311, %v1310
    %v1554 = vpack.c.b16 %v1313, %v1312
    %v1555 = vpack.c.b16 %v1315, %v1314
    %v1556 = vpack.c.b16 %v1317, %v1316
    %v1557 = vpack.c.b16 %v1319, %v1318
    %v1558 = vpack.c.b16 %v1321, %v1320
    %v1559 = vpack.c.b16 %v1323, %v1322
    %v1560 = vpack.c.b16 %v1325, %v1324
    %v1561 = vpack.c.b16 %v1327, %v1326
    %v1562 = vpack.c.b16 %v1329, %v1328
    %v1563 = vpack.c.b16 %v1331, %v1330
    %v1564 = vpack.c.b16 %v1333, %v1332
    %v1565 = vpack.c.b16 %v1335, %v1334
    %v1566 = vpack.c.b16 %v1337, %v1336
    %v1567 = vpack.c.b16 %v1339, %v1338
    %v1568 = vpack.c.b16 %v1341, %v1340
    %v1569 = vpack.c.b16 %v1343, %v1342
    %v1570 = vpack.c.b16 %v1345, %v1344
    %v1571 = vpack.c.b16 %v1347, %v1346
    %v1572 = vpack.c.b16 %v1349, %v1348
    %v1573 = vpack.c.b16 %v1351, %v1350
    %v1574 = vpack.c.b16 %v1353, %v1352
    %v1575 = vpack.c.b16 %v1355, %v1354
    %v1576 = vpack.c.b16 %v1357, %v1356
    %v1577 = vpack.c.b16 %v1359, %v1358
    %v1578 = vpack.c.b16 %v1361, %v1360
    %v1579 = vpack.c.b16 %v1363, %v1362
    %v1580 = vpack.c.b16 %v1365, %v1364
    %v1581 = vpack.c.b16 %v1367, %v1366
    %v1582 = vpack.c.b16 %v1369, %v1368
    %v1583 = vpack.c.b16 %v1371, %v1370
    %v1584 = vpack.c.b16 %v1373, %v1372
    %v1585 = vpack.c.b16 %v1375, %v1374
    %v1586 = vpack.c.b16 %v1377, %v1376
    %v1587 = vpack.c.b16 %v1379, %v1378
    %v1588 = vpack.c.b16 %v1381, %v1380
    %v1589 = vpack.c.b16 %v1383, %v1382
    %v1590 = vpack.c.b16 %v1385, %v1384
    %v1591 = vpack.c.b16 %v1387, %v1386
    %v1592 = vpack.c.b16 %v1389, %v1388
    %v1593 = vpack.c.b16 %v1391, %v1390
    %v1594 = vpack.c.b16 %v1393, %v1392
    %v1595 = vpack.c.b16 %v1395, %v1394
    %1796 = vmatprep.subr.bf16.mxu0 0
    %1797 = vmatpush1.bf16.msra.mxu0 %v1396
    %1798 = vmatprep.subr.bf16.mxu0 0
    %1799 = vmatpush1.bf16.msra.mxu0 %v1397
    %1800 = vmatprep.subr.bf16.mxu0 0
    %1801 = vmatpush1.bf16.msra.mxu0 %v1398
    %1802 = vmatprep.subr.bf16.mxu0 0
    %1803 = vmatpush1.bf16.msra.mxu0 %v1399
    %1804 = vmatprep.subr.bf16.mxu0 0
    %1805 = vmatpush1.bf16.msra.mxu0 %v1400
    %1806 = vmatprep.subr.bf16.mxu0 0
    %1807 = vmatpush1.bf16.msra.mxu0 %v1401
    %1808 = vmatprep.subr.bf16.mxu0 0
    %1809 = vmatpush1.bf16.msra.mxu0 %v1402
    %1810 = vmatprep.subr.bf16.mxu0 0
    %1811 = vmatpush1.bf16.msra.mxu0 %v1403
    %1812 = vmatprep.subr.bf16.mxu0 0
    %1813 = vmatpush1.bf16.msra.mxu0 %v1404
    %1814 = vmatprep.subr.bf16.mxu0 0
    %1815 = vmatpush1.bf16.msra.mxu0 %v1405
    %1816 = vmatprep.subr.bf16.mxu0 0
    %1817 = vmatpush1.bf16.msra.mxu0 %v1406
    %1818 = vmatprep.subr.bf16.mxu0 0
    %1819 = vmatpush1.bf16.msra.mxu0 %v1407
    %1820 = vmatprep.subr.bf16.mxu0 0
    %1821 = vmatpush1.bf16.msra.mxu0 %v1408
    %1822 = vmatprep.subr.bf16.mxu0 0
    %1823 = vmatpush1.bf16.msra.mxu0 %v1409
    %1824 = vmatprep.subr.bf16.mxu0 0
    %1825 = vmatpush1.bf16.msra.mxu0 %v1410
    %1826 = vmatprep.subr.bf16.mxu0 0
    %1827 = vmatpush1.bf16.msra.mxu0 %v1411
    %1828 = vmatprep.mubr.bf16.mxu0 %v165
    %1829 = vmatmul.mubr.bf16.gmra.mrb[0].mxu0 %v164
    %v1830 = vpop.f32.mrb[0].mxu0
    %v1831 = vadd.f32 %v594, %v1830
    %v1832 = vpop.f32.mrb[0].mxu0
    %v1833 = vpop.f32.mrb[0].mxu0
    %v1834 = vpop.f32.mrb[0].mxu0
    %1835 = vdwg.mxu0
    %1836 = vmatprep.subr.bf16.mxu0 0
    %1837 = vmatpush1.bf16.msra.mxu0 %v1412
    %1838 = vmatprep.subr.bf16.mxu0 0
    %1839 = vmatpush1.bf16.msra.mxu0 %v1413
    %1840 = vmatprep.subr.bf16.mxu0 0
    %1841 = vmatpush1.bf16.msra.mxu0 %v1414
    %1842 = vmatprep.subr.bf16.mxu0 0
    %1843 = vmatpush1.bf16.msra.mxu0 %v1415
    %1844 = vmatprep.subr.bf16.mxu0 0
    %1845 = vmatpush1.bf16.msra.mxu0 %v1416
    %1846 = vmatprep.subr.bf16.mxu0 0
    %1847 = vmatpush1.bf16.msra.mxu0 %v1417
    %1848 = vmatprep.subr.bf16.mxu0 0
    %1849 = vmatpush1.bf16.msra.mxu0 %v1418
    %1850 = vmatprep.subr.bf16.mxu0 0
    %1851 = vmatpush1.bf16.msra.mxu0 %v1419
    %1852 = vmatprep.subr.bf16.mxu0 0
    %1853 = vmatpush1.bf16.msra.mxu0 %v1420
    %1854 = vmatprep.subr.bf16.mxu0 0
    %1855 = vmatpush1.bf16.msra.mxu0 %v1421
    %1856 = vmatprep.subr.bf16.mxu0 0
    %1857 = vmatpush1.bf16.msra.mxu0 %v1422
    %1858 = vmatprep.subr.bf16.mxu0 0
    %1859 = vmatpush1.bf16.msra.mxu0 %v1423
    %1860 = vmatprep.subr.bf16.mxu0 0
    %1861 = vmatpush1.bf16.msra.mxu0 %v1424
    %1862 = vmatprep.subr.bf16.mxu0 0
    %1863 = vmatpush1.bf16.msra.mxu0 %v1425
    %1864 = vmatprep.subr.bf16.mxu0 0
    %1865 = vmatpush1.bf16.msra.mxu0 %v1426
    %1866 = vmatprep.subr.bf16.mxu0 0
    %1867 = vmatpush1.bf16.msra.mxu0 %v1427
    %1868 = vmatprep.mubr.bf16.mxu0 %v167
    %1869 = vmatmul.mubr.bf16.gmra.mrb[0].mxu0 %v166
    %v1870 = vpop.f32.mrb[0].mxu0
    %v1871 = vadd.f32 %v1831, %v1870
    %v1872 = vpop.f32.mrb[0].mxu0
    %v1873 = vpop.f32.mrb[0].mxu0
    %v1874 = vpop.f32.mrb[0].mxu0
    %1875 = vdwg.mxu0
    %1876 = vmatprep.subr.bf16.mxu0 0
    %1877 = vmatpush1.bf16.msra.mxu0 %v1428
    %1878 = vmatprep.subr.bf16.mxu0 0
    %1879 = vmatpush1.bf16.msra.mxu0 %v1429
    %1880 = vmatprep.subr.bf16.mxu0 0
    %1881 = vmatpush1.bf16.msra.mxu0 %v1430
    %1882 = vmatprep.subr.bf16.mxu0 0
    %1883 = vmatpush1.bf16.msra.mxu0 %v1431
    %1884 = vmatprep.subr.bf16.mxu0 0
    %1885 = vmatpush1.bf16.msra.mxu0 %v1432
    %1886 = vmatprep.subr.bf16.mxu0 0
    %1887 = vmatpush1.bf16.msra.mxu0 %v1433
    %1888 = vmatprep.subr.bf16.mxu0 0
    %1889 = vmatpush1.bf16.msra.mxu0 %v1434
    %1890 = vmatprep.subr.bf16.mxu0 0
    %1891 = vmatpush1.bf16.msra.mxu0 %v1435
    %1892 = vmatprep.subr.bf16.mxu0 0
    %1893 = vmatpush1.bf16.msra.mxu0 %v1436
    %1894 = vmatprep.subr.bf16.mxu0 0
    %1895 = vmatpush1.bf16.msra.mxu0 %v1437
    %1896 = vmatprep.subr.bf16.mxu0 0
    %1897 = vmatpush1.bf16.msra.mxu0 %v1438
    %1898 = vmatprep.subr.bf16.mxu0 0
    %1899 = vmatpush1.bf16.msra.mxu0 %v1439
    %1900 = vmatprep.subr.bf16.mxu0 0
    %1901 = vmatpush1.bf16.msra.mxu0 %v1440
    %1902 = vmatprep.subr.bf16.mxu0 0
    %1903 = vmatpush1.bf16.msra.mxu0 %v1441
    %1904 = vmatprep.subr.bf16.mxu0 0
    %1905 = vmatpush1.bf16.msra.mxu0 %v1442
    %1906 = vmatprep.subr.bf16.mxu0 0
    %1907 = vmatpush1.bf16.msra.mxu0 %v1443
    %1908 = vmatprep.mubr.bf16.mxu0 %v169
    %1909 = vmatmul.mubr.bf16.gmra.mrb[0].mxu0 %v168
    %v1910 = vpop.f32.mrb[0].mxu0
    %v1911 = vadd.f32 %v1871, %v1910
    %v1912 = vpop.f32.mrb[0].mxu0
    %v1913 = vpop.f32.mrb[0].mxu0
    %v1914 = vpop.f32.mrb[0].mxu0
    %1915 = vdwg.mxu0
    %1916 = vmatprep.subr.bf16.mxu0 0
    %1917 = vmatpush1.bf16.msra.mxu0 %v1444
    %1918 = vmatprep.subr.bf16.mxu0 0
    %1919 = vmatpush1.bf16.msra.mxu0 %v1445
    %1920 = vmatprep.subr.bf16.mxu0 0
    %1921 = vmatpush1.bf16.msra.mxu0 %v1446
    %1922 = vmatprep.subr.bf16.mxu0 0
    %1923 = vmatpush1.bf16.msra.mxu0 %v1447
    %1924 = vmatprep.subr.bf16.mxu0 0
    %1925 = vmatpush1.bf16.msra.mxu0 %v1448
    %1926 = vmatprep.subr.bf16.mxu0 0
    %1927 = vmatpush1.bf16.msra.mxu0 %v1449
    %1928 = vmatprep.subr.bf16.mxu0 0
    %1929 = vmatpush1.bf16.msra.mxu0 %v1450
    %1930 = vmatprep.subr.bf16.mxu0 0
    %1931 = vmatpush1.bf16.msra.mxu0 %v1451
    %1932 = vmatprep.subr.bf16.mxu0 0
    %1933 = vmatpush1.bf16.msra.mxu0 %v1452
    %1934 = vmatprep.subr.bf16.mxu0 0
    %1935 = vmatpush1.bf16.msra.mxu0 %v1453
    %1936 = vmatprep.subr.bf16.mxu0 0
    %1937 = vmatpush1.bf16.msra.mxu0 %v1454
    %1938 = vmatprep.subr.bf16.mxu0 0
    %1939 = vmatpush1.bf16.msra.mxu0 %v1455
    %1940 = vmatprep.subr.bf16.mxu0 0
    %1941 = vmatpush1.bf16.msra.mxu0 %v1456
    %1942 = vmatprep.subr.bf16.mxu0 0
    %1943 = vmatpush1.bf16.msra.mxu0 %v1457
    %1944 = vmatprep.subr.bf16.mxu0 0
    %1945 = vmatpush1.bf16.msra.mxu0 %v1458
    %1946 = vmatprep.subr.bf16.mxu0 0
    %1947 = vmatpush1.bf16.msra.mxu0 %v1459
    %1948 = vmatprep.mubr.bf16.mxu0 %v171
    %1949 = vmatmul.mubr.bf16.gmra.mrb[0].mxu0 %v170
    %v1950 = vpop.f32.mrb[0].mxu0
    %v1951 = vadd.f32 %v1911, %v1950
    %v1952 = vpop.f32.mrb[0].mxu0
    %v1953 = vpop.f32.mrb[0].mxu0
    %v1954 = vpop.f32.mrb[0].mxu0
    %1955 = vdwg.mxu0
    %1956 = vmatprep.subr.bf16.mxu0 0
    %1957 = vmatpush1.bf16.msra.mxu0 %v1460
    %1958 = vmatprep.subr.bf16.mxu0 0
    %1959 = vmatpush1.bf16.msra.mxu0 %v1461
    %1960 = vmatprep.subr.bf16.mxu0 0
    %1961 = vmatpush1.bf16.msra.mxu0 %v1462
    %1962 = vmatprep.subr.bf16.mxu0 0
    %1963 = vmatpush1.bf16.msra.mxu0 %v1463
    %1964 = vmatprep.subr.bf16.mxu0 0
    %1965 = vmatpush1.bf16.msra.mxu0 %v1464
    %1966 = vmatprep.subr.bf16.mxu0 0
    %1967 = vmatpush1.bf16.msra.mxu0 %v1465
    %1968 = vmatprep.subr.bf16.mxu0 0
    %1969 = vmatpush1.bf16.msra.mxu0 %v1466
    %1970 = vmatprep.subr.bf16.mxu0 0
    %1971 = vmatpush1.bf16.msra.mxu0 %v1467
    %1972 = vmatprep.subr.bf16.mxu0 0
    %1973 = vmatpush1.bf16.msra.mxu0 %v1468
    %1974 = vmatprep.subr.bf16.mxu0 0
    %1975 = vmatpush1.bf16.msra.mxu0 %v1469
    %1976 = vmatprep.subr.bf16.mxu0 0
    %1977 = vmatpush1.bf16.msra.mxu0 %v1470
    %1978 = vmatprep.subr.bf16.mxu0 0
    %1979 = vmatpush1.bf16.msra.mxu0 %v1471
    %1980 = vmatprep.subr.bf16.mxu0 0
    %1981 = vmatpush1.bf16.msra.mxu0 %v1472
    %1982 = vmatprep.subr.bf16.mxu0 0
    %1983 = vmatpush1.bf16.msra.mxu0 %v1473
    %1984 = vmatprep.subr.bf16.mxu0 0
    %1985 = vmatpush1.bf16.msra.mxu0 %v1474
    %1986 = vmatprep.subr.bf16.mxu0 0
    %1987 = vmatpush1.bf16.msra.mxu0 %v1475
    %1988 = vmatprep.mubr.bf16.mxu0 %v173
    %1989 = vmatmul.mubr.bf16.gmra.mrb[0].mxu0 %v172
    %v1990 = vpop.f32.mrb[0].mxu0
    %v1991 = vadd.f32 %v1951, %v1990
    %v1992 = vpop.f32.mrb[0].mxu0
    %v1993 = vpop.f32.mrb[0].mxu0
    %v1994 = vpop.f32.mrb[0].mxu0
    %1995 = vdwg.mxu0
    %1996 = vmatprep.subr.bf16.mxu0 0
    %1997 = vmatpush1.bf16.msra.mxu0 %v1476
    %1998 = vmatprep.subr.bf16.mxu0 0
    %1999 = vmatpush1.bf16.msra.mxu0 %v1477
    %2000 = vmatprep.subr.bf16.mxu0 0
    %2001 = vmatpush1.bf16.msra.mxu0 %v1478
    %2002 = vmatprep.subr.bf16.mxu0 0
    %2003 = vmatpush1.bf16.msra.mxu0 %v1479
    %2004 = vmatprep.subr.bf16.mxu0 0
    %2005 = vmatpush1.bf16.msra.mxu0 %v1480
    %2006 = vmatprep.subr.bf16.mxu0 0
    %2007 = vmatpush1.bf16.msra.mxu0 %v1481
    %2008 = vmatprep.subr.bf16.mxu0 0
    %2009 = vmatpush1.bf16.msra.mxu0 %v1482
    %2010 = vmatprep.subr.bf16.mxu0 0
    %2011 = vmatpush1.bf16.msra.mxu0 %v1483
    %2012 = vmatprep.subr.bf16.mxu0 0
    %2013 = vmatpush1.bf16.msra.mxu0 %v1484
    %2014 = vmatprep.subr.bf16.mxu0 0
    %2015 = vmatpush1.bf16.msra.mxu0 %v1485
    %2016 = vmatprep.subr.bf16.mxu0 0
    %2017 = vmatpush1.bf16.msra.mxu0 %v1486
    %2018 = vmatprep.subr.bf16.mxu0 0
    %2019 = vmatpush1.bf16.msra.mxu0 %v1487
    %2020 = vmatprep.subr.bf16.mxu0 0
    %2021 = vmatpush1.bf16.msra.mxu0 %v1488
    %2022 = vmatprep.subr.bf16.mxu0 0
    %2023 = vmatpush1.bf16.msra.mxu0 %v1489
    %2024 = vmatprep.subr.bf16.mxu0 0
    %2025 = vmatpush1.bf16.msra.mxu0 %v1490
    %2026 = vmatprep.subr.bf16.mxu0 0
    %2027 = vmatpush1.bf16.msra.mxu0 %v1491
    %2028 = vmatprep.mubr.bf16.mxu0 %v175
    %2029 = vmatmul.mubr.bf16.gmra.mrb[0].mxu0 %v174
    %v2030 = vpop.f32.mrb[0].mxu0
    %v2031 = vadd.f32 %v1991, %v2030
    %v2032 = vpop.f32.mrb[0].mxu0
    %v2033 = vpop.f32.mrb[0].mxu0
    %v2034 = vpop.f32.mrb[0].mxu0
    %2035 = vdwg.mxu0
    %2036 = vmatprep.subr.bf16.mxu0 0
    %2037 = vmatpush1.bf16.msra.mxu0 %v1492
    %2038 = vmatprep.subr.bf16.mxu0 0
    %2039 = vmatpush1.bf16.msra.mxu0 %v1493
    %2040 = vmatprep.subr.bf16.mxu0 0
    %2041 = vmatpush1.bf16.msra.mxu0 %v1494
    %2042 = vmatprep.subr.bf16.mxu0 0
    %2043 = vmatpush1.bf16.msra.mxu0 %v1495
    %2044 = vmatprep.subr.bf16.mxu0 0
    %2045 = vmatpush1.bf16.msra.mxu0 %v1496
    %2046 = vmatprep.subr.bf16.mxu0 0
    %2047 = vmatpush1.bf16.msra.mxu0 %v1497
    %2048 = vmatprep.subr.bf16.mxu0 0
    %2049 = vmatpush1.bf16.msra.mxu0 %v1498
    %2050 = vmatprep.subr.bf16.mxu0 0
    %2051 = vmatpush1.bf16.msra.mxu0 %v1499
    %2052 = vmatprep.subr.bf16.mxu0 0
    %2053 = vmatpush1.bf16.msra.mxu0 %v1500
    %2054 = vmatprep.subr.bf16.mxu0 0
    %2055 = vmatpush1.bf16.msra.mxu0 %v1501
    %2056 = vmatprep.subr.bf16.mxu0 0
    %2057 = vmatpush1.bf16.msra.mxu0 %v1502
    %2058 = vmatprep.subr.bf16.mxu0 0
    %2059 = vmatpush1.bf16.msra.mxu0 %v1503
    %2060 = vmatprep.subr.bf16.mxu0 0
    %2061 = vmatpush1.bf16.msra.mxu0 %v1504
    %2062 = vmatprep.subr.bf16.mxu0 0
    %2063 = vmatpush1.bf16.msra.mxu0 %v1505
    %2064 = vmatprep.subr.bf16.mxu0 0
    %2065 = vmatpush1.bf16.msra.mxu0 %v1506
    %2066 = vmatprep.subr.bf16.mxu0 0
    %2067 = vmatpush1.bf16.msra.mxu0 %v1507
    %2068 = vmatprep.mubr.bf16.mxu0 %v177
    %2069 = vmatmul.mubr.bf16.gmra.mrb[0].mxu0 %v176
    %v2070 = vpop.f32.mrb[0].mxu0
    %v2071 = vadd.f32 %v2031, %v2070
    %v2072 = vpop.f32.mrb[0].mxu0
    %v2073 = vpop.f32.mrb[0].mxu0
    %v2074 = vpop.f32.mrb[0].mxu0
    %2075 = vdwg.mxu0
    %2076 = vmatprep.subr.bf16.mxu0 0
    %2077 = vmatpush1.bf16.msra.mxu0 %v1508
    %2078 = vmatprep.subr.bf16.mxu0 0
    %2079 = vmatpush1.bf16.msra.mxu0 %v1509
    %2080 = vmatprep.subr.bf16.mxu0 0
    %2081 = vmatpush1.bf16.msra.mxu0 %v1510
    %2082 = vmatprep.subr.bf16.mxu0 0
    %2083 = vmatpush1.bf16.msra.mxu0 %v1511
    %2084 = vmatprep.subr.bf16.mxu0 0
    %2085 = vmatpush1.bf16.msra.mxu0 %v1512
    %2086 = vmatprep.subr.bf16.mxu0 0
    %2087 = vmatpush1.bf16.msra.mxu0 %v1513
    %2088 = vmatprep.subr.bf16.mxu0 0
    %2089 = vmatpush1.bf16.msra.mxu0 %v1514
    %2090 = vmatprep.subr.bf16.mxu0 0
    %2091 = vmatpush1.bf16.msra.mxu0 %v1515
    %2092 = vmatprep.subr.bf16.mxu0 0
    %2093 = vmatpush1.bf16.msra.mxu0 %v1516
    %2094 = vmatprep.subr.bf16.mxu0 0
    %2095 = vmatpush1.bf16.msra.mxu0 %v1517
    %2096 = vmatprep.subr.bf16.mxu0 0
    %2097 = vmatpush1.bf16.msra.mxu0 %v1518
    %2098 = vmatprep.subr.bf16.mxu0 0
    %2099 = vmatpush1.bf16.msra.mxu0 %v1519
    %2100 = vmatprep.subr.bf16.mxu0 0
    %2101 = vmatpush1.bf16.msra.mxu0 %v1520
    %2102 = vmatprep.subr.bf16.mxu0 0
    %2103 = vmatpush1.bf16.msra.mxu0 %v1521
    %2104 = vmatprep.subr.bf16.mxu0 0
    %2105 = vmatpush1.bf16.msra.mxu0 %v1522
    %2106 = vmatprep.subr.bf16.mxu0 0
    %2107 = vmatpush1.bf16.msra.mxu0 %v1523
    %2108 = vmatprep.mubr.bf16.mxu0 %v179
    %2109 = vmatmul.mubr.bf16.gmra.mrb[0].mxu0 %v178
    %v2110 = vpop.f32.mrb[0].mxu0
    %v2111 = vadd.f32 %v2071, %v2110
    %v2112 = vpop.f32.mrb[0].mxu0
    %v2113 = vpop.f32.mrb[0].mxu0
    %v2114 = vpop.f32.mrb[0].mxu0
    %2115 = vdwg.mxu0
    %2116 = vmatprep.subr.bf16.mxu0 0
    %2117 = vmatpush1.bf16.msra.mxu0 %v1524
    %2118 = vmatprep.subr.bf16.mxu0 0
    %2119 = vmatpush1.bf16.msra.mxu0 %v1525
    %2120 = vmatprep.subr.bf16.mxu0 0
    %2121 = vmatpush1.bf16.msra.mxu0 %v1526
    %2122 = vmatprep.subr.bf16.mxu0 0
    %2123 = vmatpush1.bf16.msra.mxu0 %v1527
    %2124 = vmatprep.subr.bf16.mxu0 0
    %2125 = vmatpush1.bf16.msra.mxu0 %v1528
    %2126 = vmatprep.subr.bf16.mxu0 0
    %2127 = vmatpush1.bf16.msra.mxu0 %v1529
    %2128 = vmatprep.subr.bf16.mxu0 0
    %2129 = vmatpush1.bf16.msra.mxu0 %v1530
    %2130 = vmatprep.subr.bf16.mxu0 0
    %2131 = vmatpush1.bf16.msra.mxu0 %v1531
    %2132 = vmatprep.subr.bf16.mxu0 0
    %2133 = vmatpush1.bf16.msra.mxu0 %v1532
    %2134 = vmatprep.subr.bf16.mxu0 0
    %2135 = vmatpush1.bf16.msra.mxu0 %v1533
    %2136 = vmatprep.subr.bf16.mxu0 0
    %2137 = vmatpush1.bf16.msra.mxu0 %v1534
    %2138 = vmatprep.subr.bf16.mxu0 0
    %2139 = vmatpush1.bf16.msra.mxu0 %v1535
    %2140 = vmatprep.subr.bf16.mxu0 0
    %2141 = vmatpush1.bf16.msra.mxu0 %v1536
    %2142 = vmatprep.subr.bf16.mxu0 0
    %2143 = vmatpush1.bf16.msra.mxu0 %v1537
    %2144 = vmatprep.subr.bf16.mxu0 0
    %2145 = vmatpush1.bf16.msra.mxu0 %v1538
    %2146 = vmatprep.subr.bf16.mxu0 0
    %2147 = vmatpush1.bf16.msra.mxu0 %v1539
    %2148 = vmatprep.mubr.bf16.mxu0 %v181
    %2149 = vmatmul.mubr.bf16.gmra.mrb[0].mxu0 %v180
    %v2150 = vpop.f32.mrb[0].mxu0
    %v2151 = vadd.f32 %v2111, %v2150
    %v2152 = vpop.f32.mrb[0].mxu0
    %v2153 = vpop.f32.mrb[0].mxu0
    %v2154 = vpop.f32.mrb[0].mxu0
    %2155 = vdwg.mxu0
    %2156 = vmatprep.subr.bf16.mxu0 0
    %2157 = vmatpush1.bf16.msra.mxu0 %v1540
    %2158 = vmatprep.subr.bf16.mxu0 0
    %2159 = vmatpush1.bf16.msra.mxu0 %v1541
    %2160 = vmatprep.subr.bf16.mxu0 0
    %2161 = vmatpush1.bf16.msra.mxu0 %v1542
    %2162 = vmatprep.subr.bf16.mxu0 0
    %2163 = vmatpush1.bf16.msra.mxu0 %v1543
    %2164 = vmatprep.subr.bf16.mxu0 0
    %2165 = vmatpush1.bf16.msra.mxu0 %v1544
    %2166 = vmatprep.subr.bf16.mxu0 0
    %2167 = vmatpush1.bf16.msra.mxu0 %v1545
    %2168 = vmatprep.subr.bf16.mxu0 0
    %2169 = vmatpush1.bf16.msra.mxu0 %v1546
    %2170 = vmatprep.subr.bf16.mxu0 0
    %2171 = vmatpush1.bf16.msra.mxu0 %v1547
    %2172 = vmatprep.subr.bf16.mxu0 0
    %2173 = vmatpush1.bf16.msra.mxu0 %v1548
    %2174 = vmatprep.subr.bf16.mxu0 0
    %2175 = vmatpush1.bf16.msra.mxu0 %v1549
    %2176 = vmatprep.subr.bf16.mxu0 0
    %2177 = vmatpush1.bf16.msra.mxu0 %v1550
    %2178 = vmatprep.subr.bf16.mxu0 0
    %2179 = vmatpush1.bf16.msra.mxu0 %v1551
    %2180 = vmatprep.subr.bf16.mxu0 0
    %2181 = vmatpush1.bf16.msra.mxu0 %v1552
    %2182 = vmatprep.subr.bf16.mxu0 0
    %2183 = vmatpush1.bf16.msra.mxu0 %v1553
    %2184 = vmatprep.subr.bf16.mxu0 0
    %2185 = vmatpush1.bf16.msra.mxu0 %v1554
    %2186 = vmatprep.subr.bf16.mxu0 0
    %2187 = vmatpush1.bf16.msra.mxu0 %v1555
    %2188 = vmatprep.mubr.bf16.mxu0 %v183
    %2189 = vmatmul.mubr.bf16.gmra.mrb[0].mxu0 %v182
    %v2190 = vpop.f32.mrb[0].mxu0
    %v2191 = vadd.f32 %v2151, %v2190
    %v2192 = vpop.f32.mrb[0].mxu0
    %v2193 = vpop.f32.mrb[0].mxu0
    %v2194 = vpop.f32.mrb[0].mxu0
    %2195 = vdwg.mxu0
    %2196 = vmatprep.subr.bf16.mxu0 0
    %2197 = vmatpush1.bf16.msra.mxu0 %v1556
    %2198 = vmatprep.subr.bf16.mxu0 0
    %2199 = vmatpush1.bf16.msra.mxu0 %v1557
    %2200 = vmatprep.subr.bf16.mxu0 0
    %2201 = vmatpush1.bf16.msra.mxu0 %v1558
    %2202 = vmatprep.subr.bf16.mxu0 0
    %2203 = vmatpush1.bf16.msra.mxu0 %v1559
    %2204 = vmatprep.subr.bf16.mxu0 0
    %2205 = vmatpush1.bf16.msra.mxu0 %v1560
    %2206 = vmatprep.subr.bf16.mxu0 0
    %2207 = vmatpush1.bf16.msra.mxu0 %v1561
    %2208 = vmatprep.subr.bf16.mxu0 0
    %2209 = vmatpush1.bf16.msra.mxu0 %v1562
    %2210 = vmatprep.subr.bf16.mxu0 0
    %2211 = vmatpush1.bf16.msra.mxu0 %v1563
    %2212 = vmatprep.subr.bf16.mxu0 0
    %2213 = vmatpush1.bf16.msra.mxu0 %v1564
    %2214 = vmatprep.subr.bf16.mxu0 0
    %2215 = vmatpush1.bf16.msra.mxu0 %v1565
    %2216 = vmatprep.subr.bf16.mxu0 0
    %2217 = vmatpush1.bf16.msra.mxu0 %v1566
    %2218 = vmatprep.subr.bf16.mxu0 0
    %2219 = vmatpush1.bf16.msra.mxu0 %v1567
    %2220 = vmatprep.subr.bf16.mxu0 0
    %2221 = vmatpush1.bf16.msra.mxu0 %v1568
    %2222 = vmatprep.subr.bf16.mxu0 0
    %2223 = vmatpush1.bf16.msra.mxu0 %v1569
    %2224 = vmatprep.subr.bf16.mxu0 0
    %2225 = vmatpush1.bf16.msra.mxu0 %v1570
    %2226 = vmatprep.subr.bf16.mxu0 0
    %2227 = vmatpush1.bf16.msra.mxu0 %v1571
    %2228 = vmatprep.mubr.bf16.mxu0 %v185
    %2229 = vmatmul.mubr.bf16.gmra.mrb[0].mxu0 %v184
    %v2230 = vpop.f32.mrb[0].mxu0
    %v2231 = vadd.f32 %v2191, %v2230
    %v2232 = vpop.f32.mrb[0].mxu0
    %v2233 = vpop.f32.mrb[0].mxu0
    %v2234 = vpop.f32.mrb[0].mxu0
    %2235 = vdwg.mxu0
    %2236 = vmatprep.subr.bf16.mxu0 0
    %2237 = vmatpush1.bf16.msra.mxu0 %v1572
    %2238 = vmatprep.subr.bf16.mxu0 0
    %2239 = vmatpush1.bf16.msra.mxu0 %v1573
    %2240 = vmatprep.subr.bf16.mxu0 0
    %2241 = vmatpush1.bf16.msra.mxu0 %v1574
    %2242 = vmatprep.subr.bf16.mxu0 0
    %2243 = vmatpush1.bf16.msra.mxu0 %v1575
    %2244 = vmatprep.subr.bf16.mxu0 0
    %2245 = vmatpush1.bf16.msra.mxu0 %v1576
    %2246 = vmatprep.subr.bf16.mxu0 0
    %2247 = vmatpush1.bf16.msra.mxu0 %v1577
    %2248 = vmatprep.subr.bf16.mxu0 0
    %2249 = vmatpush1.bf16.msra.mxu0 %v1578
    %2250 = vmatprep.subr.bf16.mxu0 0
    %2251 = vmatpush1.bf16.msra.mxu0 %v1579
    %2252 = vmatprep.subr.bf16.mxu0 0
    %2253 = vmatpush1.bf16.msra.mxu0 %v1580
    %2254 = vmatprep.subr.bf16.mxu0 0
    %2255 = vmatpush1.bf16.msra.mxu0 %v1581
    %2256 = vmatprep.subr.bf16.mxu0 0
    %2257 = vmatpush1.bf16.msra.mxu0 %v1582
    %2258 = vmatprep.subr.bf16.mxu0 0
    %2259 = vmatpush1.bf16.msra.mxu0 %v1583
    %2260 = vmatprep.subr.bf16.mxu0 0
    %2261 = vmatpush1.bf16.msra.mxu0 %v1584
    %2262 = vmatprep.subr.bf16.mxu0 0
    %2263 = vmatpush1.bf16.msra.mxu0 %v1585
    %2264 = vmatprep.subr.bf16.mxu0 0
    %2265 = vmatpush1.bf16.msra.mxu0 %v1586
    %2266 = vmatprep.subr.bf16.mxu0 0
    %2267 = vmatpush1.bf16.msra.mxu0 %v1587
    %2268 = vmatprep.mubr.bf16.mxu0 %v187
    %2269 = vmatmul.mubr.bf16.gmra.mrb[0].mxu0 %v186
    %v2270 = vpop.f32.mrb[0].mxu0
    %v2271 = vadd.f32 %v2231, %v2270
    %v2272 = vpop.f32.mrb[0].mxu0
    %v2273 = vpop.f32.mrb[0].mxu0
    %v2274 = vpop.f32.mrb[0].mxu0
    %2275 = vdwg.mxu0
    %2276 = vmatprep.subr.bf16.mxu0 0
    %2277 = vmatpush1.bf16.msra.mxu0 %v1588
    %2278 = vmatprep.subr.bf16.mxu0 0
    %2279 = vmatpush1.bf16.msra.mxu0 %v1589
    %2280 = vmatprep.subr.bf16.mxu0 0
    %2281 = vmatpush1.bf16.msra.mxu0 %v1590
    %2282 = vmatprep.subr.bf16.mxu0 0
    %2283 = vmatpush1.bf16.msra.mxu0 %v1591
    %2284 = vmatprep.subr.bf16.mxu0 0
    %2285 = vmatpush1.bf16.msra.mxu0 %v1592
    %2286 = vmatprep.subr.bf16.mxu0 0
    %2287 = vmatpush1.bf16.msra.mxu0 %v1593
    %2288 = vmatprep.subr.bf16.mxu0 0
    %2289 = vmatpush1.bf16.msra.mxu0 %v1594
    %2290 = vmatprep.subr.bf16.mxu0 0
    %2291 = vmatpush1.bf16.msra.mxu0 %v1595
    %2292 = vmatprep.subr.bf16.mxu0 0
    %2293 = vmatpush1.bf16.msra.mxu0 0
    %2294 = vmatprep.subr.bf16.mxu0 0
    %2295 = vmatpush1.bf16.msra.mxu0 0
    %2296 = vmatprep.subr.bf16.mxu0 0
    %2297 = vmatpush1.bf16.msra.mxu0 0
    %2298 = vmatprep.subr.bf16.mxu0 0
    %2299 = vmatpush1.bf16.msra.mxu0 0
    %2300 = vmatprep.subr.bf16.mxu0 0
    %2301 = vmatpush1.bf16.msra.mxu0 0
    %2302 = vmatprep.subr.bf16.mxu0 0
    %2303 = vmatpush1.bf16.msra.mxu0 0
    %2304 = vmatprep.subr.bf16.mxu0 0
    %2305 = vmatpush1.bf16.msra.mxu0 0
    %2306 = vmatprep.subr.bf16.mxu0 0
    %2307 = vmatpush1.bf16.msra.mxu0 0
    %2308 = vmatprep.mubr.bf16.mxu0 0
    %2309 = vmatmul.mubr.bf16.gmra.mrb[0].mxu0 %v188
    %v2310 = vpop.f32.mrb[0].mxu0
    %v2311 = vadd.f32 %v2271, %v2310
    %v2312 = vpop.f32.mrb[0].mxu0
    %v2313 = vpop.f32.mrb[0].mxu0
    %v2314 = vpop.f32.mrb[0].mxu0
    %2315 = vdwg.mxu0
    %2316 = vst [vmem:[#allocation2] sm:$0x3] %v2311
    // Predicated region
    $region14: #{conv_patch_encoder_forward.3} parent=1 // pred_check
      _
    $region15: #{conv_patch_encoder_forward.3} parent=1 // pred_check_branch
      %2318 = sbr.rel (0) target = $region17
    $region16: #{conv_patch_encoder_forward.3} parent=1 // pred_region
      %s2320 = ssub.s32 32, 32
      %2321 = vsyncadd [#allocation3], %s2320
      %s2323 = sshll.u32 [#allocation2], 4
      %s2324 = int_to_ptr.vmem [resolvable:$true] %s2323
      %2326 = dma.vmem_to_hbm [thread:$0]  %s2324, 32, %s3, [#allocation3]
    $region17: #{conv_patch_encoder_forward.3} parent=1 // pred_fallthru
      _
    // Predicated region
    $region18: #{conv_patch_encoder_forward.3} parent=1 // pred_check
      _
    $region19: #{conv_patch_encoder_forward.3} parent=1 // pred_check_branch
      %2328 = sbr.rel (0) target = $region21
    $region20: #{conv_patch_encoder_forward.3} parent=1 // pred_region
      %2329 = dma.done [#allocation3], 32
    $region21: #{conv_patch_encoder_forward.3} parent=1 // pred_fallthru
      _
    %2330 = vsyncpa [#allocation3], 1

// kernel: conv_patch_encoder_forward.2
$region0: #{conv_patch_encoder_forward.2}
  #allocation0 [shape = 'u32[]', space=smem, size = 0x4, offset = 0x4, fixed_abs, tag = 'smem constant byte address 0x4 - core index']
  #allocation1 [shape = 'u32[144,128]{1,0:T(1,128)}', space=vmem, size = 0x12000, scoped, tag = 'internal scratch']
  #allocation2 [shape = 'bf16[960,27]{1,0:T(16,128)(2,1)}', space=vmem, size = 0x3c000, scoped, tag = 'scratch operand']
  #allocation3 [shape = 'f32[480,64]{1,0:T(8,128)}', space=vmem, size = 0x3c000, scoped, tag = 'scratch operand']
  #allocation4 [shape = 'bf16[248,64]{1,0:T(8,128)(2,1)}', space=vmem, size = 0xf800, scoped, tag = 'scratch operand']
  #allocation5 [shape = 'bf16[208,576]{1,0:T(16,128)(2,1)}', space=vmem, size = 0x41000, scoped, tag = 'scratch operand']
  #allocation6 [shape = 'f32[5,16,128]{2,1,0:T(8,128)}', space=vmem, size = 0xa000, scoped, tag = 'scratch operand']
  %s0 = inlined_call_operand.vmem [shape: f32[2,1026,3], index: 0, kind: input, shape index: {}]
  %s1 = inlined_call_operand.vmem [shape: bf16[27,64], index: 1, kind: input, shape index: {}]
  %s2 = inlined_call_operand.vmem [shape: f32[1,64], index: 2, kind: input, shape index: {}]
  %s3 = inlined_call_operand.vmem [shape: f32[1,64], index: 3, kind: input, shape index: {}]
  %s4 = inlined_call_operand.vmem [shape: f32[1,64], index: 4, kind: input, shape index: {}]
  %s5 = inlined_call_operand.vmem [shape: bf16[576,128], index: 5, kind: input, shape index: {}]
  %s6 = inlined_call_operand.vmem [shape: f32[1,128], index: 6, kind: input, shape index: {}]
  %s7 = inlined_call_operand.vmem [shape: f32[1,128], index: 7, kind: input, shape index: {}]
  %s8 = inlined_call_operand.vmem [shape: f32[1,128], index: 8, kind: input, shape index: {}]
  %s9 = inlined_call_operand.vmem [shape: f32[2,25,128], index: 9, kind: output, shape index: {}]
  %s10 = sld [smem:[#allocation0]]
  $region69: #{conv_patch_encoder_forward.2} parent=0
    _
  %s12 = ssub.s32 1, %s10
  %s13 = scalar_select 0, %s12, %s10
  loop: start=0, step=1, limit=4
  $region2: #{conv_patch_encoder_forward.2} parent=0 // loop_pre_header
    _
  $region3: #{conv_patch_encoder_forward.2} parent=0 // loop_header
    %s15 = sphi 0, %s19
    %p16 = scmp.ge.s32.totalorder %s15, 4
    %s25 = sphi 0, %s27
    %s28 = sphi 0, %s25
    %s29 = sphi 0, %s28
    %s45 = sphi 0, %s29
    %s49 = sphi 0, %s49
    %s51 = sphi 0, %s49
    %s52 = sphi 0, %s51
    %s66 = sphi 0, %s52
    %s70 = sphi 0, %s70
    %s72 = sphi 0, %s70
    %s73 = sphi 0, %s72
    %s87 = sphi 0, %s73
    %s91 = sphi 0, %s91
    %s93 = sphi 0, %s91
    %s94 = sphi 0, %s93
    %s108 = sphi 0, %s94
    %s112 = sphi 0, %s112
    %s114 = sphi 0, %s112
    %s115 = sphi 0, %s114
    %s129 = sphi 0, %s115
    %s133 = sphi 0, %s133
    %s135 = sphi 0, %s133
    %s136 = sphi 0, %s135
    %s150 = sphi 0, %s136
    %s154 = sphi 0, %s154
    %s156 = sphi 0, %s154
    %s157 = sphi 0, %s156
    %s171 = sphi 0, %s157
    %s175 = sphi 0, %s175
    %s177 = sphi 0, %s175
    %s178 = sphi 0, %s177
    %s192 = sphi 0, %s178
    %s196 = sphi 0, %s196
    %s198 = sphi 0, %s196
    %s199 = sphi 0, %s198
    %s213 = sphi 0, %s199
    %s219 = sphi 0, %s221
    %s222 = sphi 0, %s219
    %s223 = sphi 0, %s222
    %s239 = sphi 0, %s223
  $region4: #{conv_patch_encoder_forward.2} parent=0 // loop_header_branch
    %18 = sbr.rel (%p16) target = $region8
  $region5: #{conv_patch_encoder_forward.2} parent=0 // loop_body
    %s20 = ssub.s32 %s15, 1
    %s21 = ssub.s32 %s15, 2
    %s22 = sadd.s32 %s15, 1
    %s23 = ssub.s32 %s15, %s22
    %p24 = scmp.eq.s32.totalorder %s23, 0
    %s26 = sadd.s32 %s25, 1
    %s27 = scalar_select %p24, %s25, %s26
    %p30 = pneg %p24
    %p31 = scmp.eq.s32.totalorder %s15, 1
    %p32 = por %p30, %p31
    %p33 = scmp.ne.s32.totalorder %s25, %s28
    %p34 = scmp.eq.s32.totalorder %s15, 0
    %p35 = por %p33, %p34
    %p36 = scmp.ne.s32.totalorder %s25, %s28
    %p37 = scmp.eq.s32.totalorder %s20, 1
    %p38 = por %p36, %p37
    %p39 = scmp.ne.s32.totalorder %s28, %s29
    %p40 = scmp.eq.s32.totalorder %s20, 0
    %p41 = por %p39, %p40
    %p42 = scmp.ne.s32.totalorder %s28, %s29
    %p43 = scmp.eq.s32.totalorder %s21, 1
    %p44 = por %p42, %p43
    %p46 = scmp.ne.s32.totalorder %s29, %s45
    %p47 = scmp.eq.s32.totalorder %s21, 0
    %p48 = por %p46, %p47
    %s50 = sadd.s32 %s49, 1
    %p53 = scmp.eq.s32.totalorder %s15, 1
    %p54 = scmp.ne.s32.totalorder %s49, %s51
    %p55 = scmp.eq.s32.totalorder %s15, 0
    %p56 = por %p54, %p55
    %p57 = scmp.ne.s32.totalorder %s49, %s51
    %p58 = scmp.eq.s32.totalorder %s20, 1
    %p59 = por %p57, %p58
    %p60 = scmp.ne.s32.totalorder %s51, %s52
    %p61 = scmp.eq.s32.totalorder %s20, 0
    %p62 = por %p60, %p61
    %p63 = scmp.ne.s32.totalorder %s51, %s52
    %p64 = scmp.eq.s32.totalorder %s21, 1
    %p65 = por %p63, %p64
    %p67 = scmp.ne.s32.totalorder %s52, %s66
    %p68 = scmp.eq.s32.totalorder %s21, 0
    %p69 = por %p67, %p68
    %s71 = sadd.s32 %s70, 1
    %p74 = scmp.eq.s32.totalorder %s15, 1
    %p75 = scmp.ne.s32.totalorder %s70, %s72
    %p76 = scmp.eq.s32.totalorder %s15, 0
    %p77 = por %p75, %p76
    %p78 = scmp.ne.s32.totalorder %s70, %s72
    %p79 = scmp.eq.s32.totalorder %s20, 1
    %p80 = por %p78, %p79
    %p81 = scmp.ne.s32.totalorder %s72, %s73
    %p82 = scmp.eq.s32.totalorder %s20, 0
    %p83 = por %p81, %p82
    %p84 = scmp.ne.s32.totalorder %s72, %s73
    %p85 = scmp.eq.s32.totalorder %s21, 1
    %p86 = por %p84, %p85
    %p88 = scmp.ne.s32.totalorder %s73, %s87
    %p89 = scmp.eq.s32.totalorder %s21, 0
    %p90 = por %p88, %p89
    %s92 = sadd.s32 %s91, 1
    %p95 = scmp.eq.s32.totalorder %s15, 1
    %p96 = scmp.ne.s32.totalorder %s91, %s93
    %p97 = scmp.eq.s32.totalorder %s15, 0
    %p98 = por %p96, %p97
    %p99 = scmp.ne.s32.totalorder %s91, %s93
    %p100 = scmp.eq.s32.totalorder %s20, 1
    %p101 = por %p99, %p100
    %p102 = scmp.ne.s32.totalorder %s93, %s94
    %p103 = scmp.eq.s32.totalorder %s20, 0
    %p104 = por %p102, %p103
    %p105 = scmp.ne.s32.totalorder %s93, %s94
    %p106 = scmp.eq.s32.totalorder %s21, 1
    %p107 = por %p105, %p106
    %p109 = scmp.ne.s32.totalorder %s94, %s108
    %p110 = scmp.eq.s32.totalorder %s21, 0
    %p111 = por %p109, %p110
    %s113 = sadd.s32 %s112, 1
    %p116 = scmp.eq.s32.totalorder %s15, 1
    %p117 = scmp.ne.s32.totalorder %s112, %s114
    %p118 = scmp.eq.s32.totalorder %s15, 0
    %p119 = por %p117, %p118
    %p120 = scmp.ne.s32.totalorder %s112, %s114
    %p121 = scmp.eq.s32.totalorder %s20, 1
    %p122 = por %p120, %p121
    %p123 = scmp.ne.s32.totalorder %s114, %s115
    %p124 = scmp.eq.s32.totalorder %s20, 0
    %p125 = por %p123, %p124
    %p126 = scmp.ne.s32.totalorder %s114, %s115
    %p127 = scmp.eq.s32.totalorder %s21, 1
    %p128 = por %p126, %p127
    %p130 = scmp.ne.s32.totalorder %s115, %s129
    %p131 = scmp.eq.s32.totalorder %s21, 0
    %p132 = por %p130, %p131
    %s134 = sadd.s32 %s133, 1
    %p137 = scmp.eq.s32.totalorder %s15, 1
    %p138 = scmp.ne.s32.totalorder %s133, %s135
    %p139 = scmp.eq.s32.totalorder %s15, 0
    %p140 = por %p138, %p139
    %p141 = scmp.ne.s32.totalorder %s133, %s135
    %p142 = scmp.eq.s32.totalorder %s20, 1
    %p143 = por %p141, %p142
    %p144 = scmp.ne.s32.totalorder %s135, %s136
    %p145 = scmp.eq.s32.totalorder %s20, 0
    %p146 = por %p144, %p145
    %p147 = scmp.ne.s32.totalorder %s135, %s136
    %p148 = scmp.eq.s32.totalorder %s21, 1
    %p149 = por %p147, %p148
    %p151 = scmp.ne.s32.totalorder %s136, %s150
    %p152 = scmp.eq.s32.totalorder %s21, 0
    %p153 = por %p151, %p152
    %s155 = sadd.s32 %s154, 1
    %p158 = scmp.eq.s32.totalorder %s15, 1
    %p159 = scmp.ne.s32.totalorder %s154, %s156
    %p160 = scmp.eq.s32.totalorder %s15, 0
    %p161 = por %p159, %p160
    %p162 = scmp.ne.s32.totalorder %s154, %s156
    %p163 = scmp.eq.s32.totalorder %s20, 1
    %p164 = por %p162, %p163
    %p165 = scmp.ne.s32.totalorder %s156, %s157
    %p166 = scmp.eq.s32.totalorder %s20, 0
    %p167 = por %p165, %p166
    %p168 = scmp.ne.s32.totalorder %s156, %s157
    %p169 = scmp.eq.s32.totalorder %s21, 1
    %p170 = por %p168, %p169
    %p172 = scmp.ne.s32.totalorder %s157, %s171
    %p173 = scmp.eq.s32.totalorder %s21, 0
    %p174 = por %p172, %p173
    %s176 = sadd.s32 %s175, 1
    %p179 = scmp.eq.s32.totalorder %s15, 1
    %p180 = scmp.ne.s32.totalorder %s175, %s177
    %p181 = scmp.eq.s32.totalorder %s15, 0
    %p182 = por %p180, %p181
    %p183 = scmp.ne.s32.totalorder %s175, %s177
    %p184 = scmp.eq.s32.totalorder %s20, 1
    %p185 = por %p183, %p184
    %p186 = scmp.ne.s32.totalorder %s177, %s178
    %p187 = scmp.eq.s32.totalorder %s20, 0
    %p188 = por %p186, %p187
    %p189 = scmp.ne.s32.totalorder %s177, %s178
    %p190 = scmp.eq.s32.totalorder %s21, 1
    %p191 = por %p189, %p190
    %p193 = scmp.ne.s32.totalorder %s178, %s192
    %p194 = scmp.eq.s32.totalorder %s21, 0
    %p195 = por %p193, %p194
    %s197 = sadd.s32 %s196, 1
    %p200 = scmp.eq.s32.totalorder %s15, 1
    %p201 = scmp.ne.s32.totalorder %s196, %s198
    %p202 = scmp.eq.s32.totalorder %s15, 0
    %p203 = por %p201, %p202
    %p204 = scmp.ne.s32.totalorder %s196, %s198
    %p205 = scmp.eq.s32.totalorder %s20, 1
    %p206 = por %p204, %p205
    %p207 = scmp.ne.s32.totalorder %s198, %s199
    %p208 = scmp.eq.s32.totalorder %s20, 0
    %p209 = por %p207, %p208
    %p210 = scmp.ne.s32.totalorder %s198, %s199
    %p211 = scmp.eq.s32.totalorder %s21, 1
    %p212 = por %p210, %p211
    %p214 = scmp.ne.s32.totalorder %s199, %s213
    %p215 = scmp.eq.s32.totalorder %s21, 0
    %p216 = por %p214, %p215
    %s217 = ssub.s32 %s15, %s22
    %p218 = scmp.eq.s32.totalorder %s217, 0
    %s220 = sadd.s32 %s219, 1
    %s221 = scalar_select %p218, %s219, %s220
    %p224 = pneg %p218
    %p225 = scmp.eq.s32.totalorder %s15, 1
    %p226 = por %p224, %p225
    %p227 = scmp.ne.s32.totalorder %s219, %s222
    %p228 = scmp.eq.s32.totalorder %s15, 0
    %p229 = por %p227, %p228
    %p230 = scmp.ne.s32.totalorder %s219, %s222
    %p231 = scmp.eq.s32.totalorder %s20, 1
    %p232 = por %p230, %p231
    %p233 = scmp.ne.s32.totalorder %s222, %s223
    %p234 = scmp.eq.s32.totalorder %s20, 0
    %p235 = por %p233, %p234
    %p236 = scmp.ne.s32.totalorder %s222, %s223
    %p237 = scmp.eq.s32.totalorder %s21, 1
    %p238 = por %p236, %p237
    %p240 = scmp.ne.s32.totalorder %s223, %s239
    %p241 = scmp.eq.s32.totalorder %s21, 0
    %p242 = por %p240, %p241
    %p243 = scmp.le.s32.totalorder 1, %s15
    %p244 = scmp.lt.s32.totalorder %s15, 3
    %p245 = pnand %p243, %p244
    %p246 = pneg %p245
    // Predicated region
    $region9: #{conv_patch_encoder_forward.2} parent=5 // pred_check
      _
    $region10: #{conv_patch_encoder_forward.2} parent=5 // pred_check_branch
      %248 = sbr.rel (%p245) target = $region12
    $region11: #{conv_patch_encoder_forward.2} parent=5 // pred_region
      %s249 = ssub.s32 %s15, 1
      // Predicated region
      $region13: #{conv_patch_encoder_forward.2} parent=11 // pred_check
        %p250 = pneg %p62
      $region14: #{conv_patch_encoder_forward.2} parent=11 // pred_check_branch
        %252 = sbr.rel (%p250) target = $region16
      $region15: #{conv_patch_encoder_forward.2} parent=11 // pred_region
        _
      $region16: #{conv_patch_encoder_forward.2} parent=11 // pred_fallthru
        _
      // Predicated region
      $region17: #{conv_patch_encoder_forward.2} parent=11 // pred_check
        %p253 = pneg %p83
      $region18: #{conv_patch_encoder_forward.2} parent=11 // pred_check_branch
        %255 = sbr.rel (%p253) target = $region20
      $region19: #{conv_patch_encoder_forward.2} parent=11 // pred_region
        _
      $region20: #{conv_patch_encoder_forward.2} parent=11 // pred_fallthru
        _
      // Predicated region
      $region21: #{conv_patch_encoder_forward.2} parent=11 // pred_check
        %p256 = pneg %p104
      $region22: #{conv_patch_encoder_forward.2} parent=11 // pred_check_branch
        %258 = sbr.rel (%p256) target = $region24
      $region23: #{conv_patch_encoder_forward.2} parent=11 // pred_region
        _
      $region24: #{conv_patch_encoder_forward.2} parent=11 // pred_fallthru
        _
      // Predicated region
      $region25: #{conv_patch_encoder_forward.2} parent=11 // pred_check
        %p259 = pneg %p125
      $region26: #{conv_patch_encoder_forward.2} parent=11 // pred_check_branch
        %261 = sbr.rel (%p259) target = $region28
      $region27: #{conv_patch_encoder_forward.2} parent=11 // pred_region
        _
      $region28: #{conv_patch_encoder_forward.2} parent=11 // pred_fallthru
        _
      // Predicated region
      $region29: #{conv_patch_encoder_forward.2} parent=11 // pred_check
        %p262 = pneg %p146
      $region30: #{conv_patch_encoder_forward.2} parent=11 // pred_check_branch
        %264 = sbr.rel (%p262) target = $region32
      $region31: #{conv_patch_encoder_forward.2} parent=11 // pred_region
        _
      $region32: #{conv_patch_encoder_forward.2} parent=11 // pred_fallthru
        _
      // Predicated region
      $region33: #{conv_patch_encoder_forward.2} parent=11 // pred_check
        %p265 = pneg %p167
      $region34: #{conv_patch_encoder_forward.2} parent=11 // pred_check_branch
        %267 = sbr.rel (%p265) target = $region36
      $region35: #{conv_patch_encoder_forward.2} parent=11 // pred_region
        _
      $region36: #{conv_patch_encoder_forward.2} parent=11 // pred_fallthru
        _
      // Predicated region
      $region37: #{conv_patch_encoder_forward.2} parent=11 // pred_check
        %p268 = pneg %p188
      $region38: #{conv_patch_encoder_forward.2} parent=11 // pred_check_branch
        %270 = sbr.rel (%p268) target = $region40
      $region39: #{conv_patch_encoder_forward.2} parent=11 // pred_region
        _
      $region40: #{conv_patch_encoder_forward.2} parent=11 // pred_fallthru
        _
      // Predicated region
      $region41: #{conv_patch_encoder_forward.2} parent=11 // pred_check
        %p271 = pneg %p209
      $region42: #{conv_patch_encoder_forward.2} parent=11 // pred_check_branch
        %273 = sbr.rel (%p271) target = $region44
      $region43: #{conv_patch_encoder_forward.2} parent=11 // pred_region
        _
      $region44: #{conv_patch_encoder_forward.2} parent=11 // pred_fallthru
        _
    $region12: #{conv_patch_encoder_forward.2} parent=5 // pred_fallthru
      _
    %p274 = scmp.lt.s32.totalorder %s15, 2
    // Predicated region
    $region45: #{conv_patch_encoder_forward.2} parent=5 // pred_check
      %p275 = pneg %p274
    $region46: #{conv_patch_encoder_forward.2} parent=5 // pred_check_branch
      %277 = sbr.rel (%p275) target = $region48
    $region47: #{conv_patch_encoder_forward.2} parent=5 // pred_region
      // Predicated region
      $region49: #{conv_patch_encoder_forward.2} parent=47 // pred_check
        %p278 = pneg %p35
      $region50: #{conv_patch_encoder_forward.2} parent=47 // pred_check_branch
        %280 = sbr.rel (%p278) target = $region52
      $region51: #{conv_patch_encoder_forward.2} parent=47 // pred_region
        %p281 = scmp.lt.s32.totalorder %s15, 1
        %s282 = scalar_select %p281, %s15, 1
        %s283 = smul.addr %s282, 129
        %s284 = smul.addr %s283, 8
        %s285 = scalar_lea.vmem %s0, %s284
      $region52: #{conv_patch_encoder_forward.2} parent=47 // pred_fallthru
        _
    $region48: #{conv_patch_encoder_forward.2} parent=5 // pred_fallthru
      _
    %p286 = scmp.le.s32.totalorder 1, %s15
    %p287 = scmp.lt.s32.totalorder %s15, 3
    %p288 = pnand %p286, %p287
    %p289 = pneg %p288
    // Predicated region
    $region53: #{conv_patch_encoder_forward.2} parent=5 // pred_check
      _
    $region54: #{conv_patch_encoder_forward.2} parent=5 // pred_check_branch
      %291 = sbr.rel (%p288) target = $region56
    $region55: #{conv_patch_encoder_forward.2} parent=5 // pred_region
      %s292 = ssub.s32 %s15, 1
      %p293 = scmp.lt.s32.totalorder %s20, 1
      %s294 = scalar_select %p293, %s20, 1
      %s295 = smul.addr %s294, 129
      %s296 = smul.addr %s295, 8
      %s297 = scalar_lea.vmem %s0, %s296
      %p298 = pneg %p41
      %p299 = pneg %p38
      %p300 = pneg %p62
      %p301 = pneg %p59
      %p302 = pneg %p83
      %p303 = pneg %p80
      %p304 = pneg %p104
      %p305 = pneg %p101
      %p306 = pneg %p125
      %p307 = pneg %p122
      %p308 = pneg %p146
      %p309 = pneg %p143
      %p310 = pneg %p167
      %p311 = pneg %p164
      %p312 = pneg %p188
      %p313 = pneg %p185
      %p314 = pneg %p209
      %p315 = pneg %p206
      %p316 = pneg %p235
      %p317 = pneg %p232
      %p318 = scmp.lt.s32.totalorder %s20, 1
      %s319 = scalar_select %p318, %s20, 1
      %s320 = smul.addr %s319, 4
      %s321 = smul.addr %s320, 8
      %s322 = scalar_lea.vmem %s9, %s321
      %p323 = scmp.lt.s32.totalorder %s20, 1
      %s324 = scalar_select %p323, %s20, 1
      %s325 = smul.addr %s324, 129
      %s326 = smul.addr %s325, 8
      %s327 = scalar_lea.vmem %s0, %s326
      %p328 = scmp.lt.s32.totalorder %s20, 1
      %s329 = scalar_select %p328, %s20, 1
      %s330 = smul.addr %s329, 4
      %s331 = smul.addr %s330, 8
      %s332 = scalar_lea.vmem %s9, %s331
      %v334 = vld [vmem:[%s327] sm:$0xff]
      %v335 = vld [vmem:[%s327 + $0x8] sm:$0xff]
      %v336 = vld [vmem:[%s327 + $0x10] sm:$0xff]
      %v337 = vld [vmem:[%s327 + $0x18] sm:$0xff]
      %v338 = vld [vmem:[%s327 + $0x20] sm:$0xff]
      %v339 = vld [vmem:[%s327 + $0x28] sm:$0xff]
      %v340 = vld [vmem:[%s327 + $0x30] sm:$0xff]
      %v341 = vld [vmem:[%s327 + $0x38] sm:$0xff]
      %v342 = vld [vmem:[%s327 + $0x40] sm:$0xff]
      %v343 = vld [vmem:[%s327 + $0x48] sm:$0xff]
      %v344 = vld [vmem:[%s327 + $0x50] sm:$0xff]
      %v345 = vld [vmem:[%s327 + $0x58] sm:$0xff]
      %v346 = vld [vmem:[%s327 + $0x60] sm:$0xff]
      %v347 = vld [vmem:[%s327 + $0x68] sm:$0xff]
      %v348 = vld [vmem:[%s327 + $0x70] sm:$0xff]
      %v349 = vld [vmem:[%s327 + $0x78] sm:$0xff]
      %v350 = vld [vmem:[%s327 + $0x80] sm:$0xff]
      %v351 = vld [vmem:[%s327 + $0x88] sm:$0xff]
      %v352 = vld [vmem:[%s327 + $0x90] sm:$0xff]
      %v353 = vld [vmem:[%s327 + $0x98] sm:$0xff]
      %v354 = vld [vmem:[%s327 + $0xa0] sm:$0xff]
      %v355 = vld [vmem:[%s327 + $0xa8] sm:$0xff]
      %v356 = vld [vmem:[%s327 + $0xb0] sm:$0xff]
      %v357 = vld [vmem:[%s327 + $0xb8] sm:$0xff]
      %v358 = vld [vmem:[%s327 + $0xc0] sm:$0xff]
      %v359 = vld [vmem:[%s327 + $0xc8] sm:$0xff]
      %v360 = vld [vmem:[%s327 + $0xd0] sm:$0xff]
      %v361 = vld [vmem:[%s327 + $0xd8] sm:$0xff]
      %v362 = vld [vmem:[%s327 + $0xe0] sm:$0xff]
      %v363 = vld [vmem:[%s327 + $0xe8] sm:$0xff]
      %v364 = vld [vmem:[%s327 + $0xf0] sm:$0xff]
      %v365 = vld [vmem:[%s327 + $0xf8] sm:$0xff]
      %v366 = vld [vmem:[%s327 + $0x100] sm:$0xff]
      %v367 = vld [vmem:[%s327 + $0x108] sm:$0xff]
      %v368 = vld [vmem:[%s327 + $0x110] sm:$0xff]
      %v369 = vld [vmem:[%s327 + $0x118] sm:$0xff]
      %v370 = vld [vmem:[%s327 + $0x120] sm:$0xff]
      %v371 = vld [vmem:[%s327 + $0x128] sm:$0xff]
      %v372 = vld [vmem:[%s327 + $0x130] sm:$0xff]
      %v373 = vld [vmem:[%s327 + $0x138] sm:$0xff]
      %v374 = vld [vmem:[%s327 + $0x140] sm:$0xff]
      %v375 = vld [vmem:[%s327 + $0x148] sm:$0xff]
      %v376 = vld [vmem:[%s327 + $0x150] sm:$0xff]
      %v377 = vld [vmem:[%s327 + $0x158] sm:$0xff]
      %v378 = vld [vmem:[%s327 + $0x160] sm:$0xff]
      %v379 = vld [vmem:[%s327 + $0x168] sm:$0xff]
      %v380 = vld [vmem:[%s327 + $0x170] sm:$0xff]
      %v381 = vld [vmem:[%s327 + $0x178] sm:$0xff]
      %v382 = vld [vmem:[%s327 + $0x180] sm:$0xff]
      %v383 = vld [vmem:[%s327 + $0x188] sm:$0xff]
      %v384 = vld [vmem:[%s327 + $0x190] sm:$0xff]
      %v385 = vld [vmem:[%s327 + $0x198] sm:$0xff]
      %v386 = vld [vmem:[%s327 + $0x1a0] sm:$0xff]
      %v387 = vld [vmem:[%s327 + $0x1a8] sm:$0xff]
      %v388 = vld [vmem:[%s327 + $0x1b0] sm:$0xff]
      %v389 = vld [vmem:[%s327 + $0x1b8] sm:$0xff]
      %v390 = vld [vmem:[%s327 + $0x1c0] sm:$0xff]
      %v391 = vld [vmem:[%s327 + $0x1c8] sm:$0xff]
      %v392 = vld [vmem:[%s327 + $0x1d0] sm:$0xff]
      %v393 = vld [vmem:[%s327 + $0x1d8] sm:$0xff]
      %v394 = vld [vmem:[%s327 + $0x1e0] sm:$0xff]
      %v395 = vld [vmem:[%s327 + $0x1e8] sm:$0xff]
      %v396 = vld [vmem:[%s327 + $0x1f0] sm:$0xff]
      %v397 = vld [vmem:[%s327 + $0x1f8] sm:$0xff]
      %v398 = vld [vmem:[%s327 + $0x200] sm:$0xff]
      %v399 = vld [vmem:[%s327 + $0x208] sm:$0xff]
      %v400 = vld [vmem:[%s327 + $0x210] sm:$0xff]
      %v401 = vld [vmem:[%s327 + $0x218] sm:$0xff]
      %v402 = vld [vmem:[%s327 + $0x220] sm:$0xff]
      %v403 = vld [vmem:[%s327 + $0x228] sm:$0xff]
      %v404 = vld [vmem:[%s327 + $0x230] sm:$0xff]
      %v405 = vld [vmem:[%s327 + $0x238] sm:$0xff]
      %v406 = vld [vmem:[%s327 + $0x240] sm:$0xff]
      %v407 = vld [vmem:[%s327 + $0x248] sm:$0xff]
      %v408 = vld [vmem:[%s327 + $0x250] sm:$0xff]
      %v409 = vld [vmem:[%s327 + $0x258] sm:$0xff]
      %v410 = vld [vmem:[%s327 + $0x260] sm:$0xff]
      %v411 = vld [vmem:[%s327 + $0x268] sm:$0xff]
      %v412 = vld [vmem:[%s327 + $0x270] sm:$0xff]
      %v413 = vld [vmem:[%s327 + $0x278] sm:$0xff]
      %v414 = vld [vmem:[%s327 + $0x280] sm:$0xff]
      %v415 = vld [vmem:[%s327 + $0x288] sm:$0xff]
      %v416 = vld [vmem:[%s327 + $0x290] sm:$0xff]
      %v417 = vld [vmem:[%s327 + $0x298] sm:$0xff]
      %v418 = vld [vmem:[%s327 + $0x2a0] sm:$0xff]
      %v419 = vld [vmem:[%s327 + $0x2a8] sm:$0xff]
      %v420 = vld [vmem:[%s327 + $0x2b0] sm:$0xff]
      %v421 = vld [vmem:[%s327 + $0x2b8] sm:$0xff]
      %v422 = vld [vmem:[%s327 + $0x2c0] sm:$0xff]
      %v423 = vld [vmem:[%s327 + $0x2c8] sm:$0xff]
      %v424 = vld [vmem:[%s327 + $0x2d0] sm:$0xff]
      %v425 = vld [vmem:[%s327 + $0x2d8] sm:$0xff]
      %v426 = vld [vmem:[%s327 + $0x2e0] sm:$0xff]
      %v427 = vld [vmem:[%s327 + $0x2e8] sm:$0xff]
      %v428 = vld [vmem:[%s327 + $0x2f0] sm:$0xff]
      %v429 = vld [vmem:[%s327 + $0x2f8] sm:$0xff]
      %v430 = vld [vmem:[%s327 + $0x300] sm:$0xff]
      %v431 = vld [vmem:[%s327 + $0x308] sm:$0xff]
      %v432 = vld [vmem:[%s327 + $0x310] sm:$0xff]
      %v433 = vld [vmem:[%s327 + $0x318] sm:$0xff]
      %v434 = vld [vmem:[%s327 + $0x320] sm:$0xff]
      %v435 = vld [vmem:[%s327 + $0x328] sm:$0xff]
      %v436 = vld [vmem:[%s327 + $0x330] sm:$0xff]
      %v437 = vld [vmem:[%s327 + $0x338] sm:$0xff]
      %v438 = vld [vmem:[%s327 + $0x340] sm:$0xff]
      %v439 = vld [vmem:[%s327 + $0x348] sm:$0xff]
      %v440 = vld [vmem:[%s327 + $0x350] sm:$0xff]
      %v441 = vld [vmem:[%s327 + $0x358] sm:$0xff]
      %v442 = vld [vmem:[%s327 + $0x360] sm:$0xff]
      %v443 = vld [vmem:[%s327 + $0x368] sm:$0xff]
      %v444 = vld [vmem:[%s327 + $0x370] sm:$0xff]
      %v445 = vld [vmem:[%s327 + $0x378] sm:$0xff]
      %v446 = vld [vmem:[%s327 + $0x380] sm:$0xff]
      %v447 = vld [vmem:[%s327 + $0x388] sm:$0xff]
      %v448 = vld [vmem:[%s327 + $0x390] sm:$0xff]
      %v449 = vld [vmem:[%s327 + $0x398] sm:$0xff]
      %v450 = vld [vmem:[%s327 + $0x3a0] sm:$0xff]
      %v451 = vld [vmem:[%s327 + $0x3a8] sm:$0xff]
      %v452 = vld [vmem:[%s327 + $0x3b0] sm:$0xff]
      %v453 = vld [vmem:[%s327 + $0x3b8] sm:$0xff]
      %v454 = vld [vmem:[%s327 + $0x3c0] sm:$0xff]
      %v455 = vld [vmem:[%s327 + $0x3c8] sm:$0xff]
      %v456 = vld [vmem:[%s327 + $0x3d0] sm:$0xff]
      %v457 = vld [vmem:[%s327 + $0x3d8] sm:$0xff]
      %v458 = vld [vmem:[%s327 + $0x3e0] sm:$0xff]
      %v459 = vld [vmem:[%s327 + $0x3e8] sm:$0xff]
      %v460 = vld [vmem:[%s327 + $0x3f0] sm:$0xff]
      %v461 = vld [vmem:[%s327 + $0x3f8] sm:$0xff]
      %v462 = vld [vmem:[%s327 + $0x400] sm:$0x3]
      %v463 = vpack.c.bf16 %v335, %v334
      %v464 = vpack.c.bf16 %v337, %v336
      %v465 = vpack.c.bf16 %v339, %v338
      %v466 = vpack.c.bf16 %v341, %v340
      %v467 = vpack.c.bf16 %v343, %v342
      %v468 = vpack.c.bf16 %v345, %v344
      %v469 = vpack.c.bf16 %v347, %v346
      %v470 = vpack.c.bf16 %v349, %v348
      %v471 = vpack.c.bf16 %v351, %v350
      %v472 = vpack.c.bf16 %v353, %v352
      %v473 = vpack.c.bf16 %v355, %v354
      %v474 = vpack.c.bf16 %v357, %v356
      %v475 = vpack.c.bf16 %v359, %v358
      %v476 = vpack.c.bf16 %v361, %v360
      %v477 = vpack.c.bf16 %v363, %v362
      %v478 = vpack.c.bf16 %v365, %v364
      %v479 = vpack.c.bf16 %v367, %v366
      %v480 = vpack.c.bf16 %v369, %v368
      %v481 = vpack.c.bf16 %v371, %v370
      %v482 = vpack.c.bf16 %v373, %v372
      %v483 = vpack.c.bf16 %v375, %v374
      %v484 = vpack.c.bf16 %v377, %v376
      %v485 = vpack.c.bf16 %v379, %v378
      %v486 = vpack.c.bf16 %v381, %v380
      %v487 = vpack.c.bf16 %v383, %v382
      %v488 = vpack.c.bf16 %v385, %v384
      %v489 = vpack.c.bf16 %v387, %v386
      %v490 = vpack.c.bf16 %v389, %v388
      %v491 = vpack.c.bf16 %v391, %v390
      %v492 = vpack.c.bf16 %v393, %v392
      %v493 = vpack.c.bf16 %v395, %v394
      %v494 = vpack.c.bf16 %v397, %v396
      %v495 = vpack.c.bf16 %v399, %v398
      %v496 = vpack.c.bf16 %v401, %v400
      %v497 = vpack.c.bf16 %v403, %v402
      %v498 = vpack.c.bf16 %v405, %v404
      %v499 = vpack.c.bf16 %v407, %v406
      %v500 = vpack.c.bf16 %v409, %v408
      %v501 = vpack.c.bf16 %v411, %v410
      %v502 = vpack.c.bf16 %v413, %v412
      %v503 = vpack.c.bf16 %v415, %v414
      %v504 = vpack.c.bf16 %v417, %v416
      %v505 = vpack.c.bf16 %v419, %v418
      %v506 = vpack.c.bf16 %v421, %v420
      %v507 = vpack.c.bf16 %v423, %v422
      %v508 = vpack.c.bf16 %v425, %v424
      %v509 = vpack.c.bf16 %v427, %v426
      %v510 = vpack.c.bf16 %v429, %v428
      %v511 = vpack.c.bf16 %v431, %v430
      %v512 = vpack.c.bf16 %v433, %v432
      %v513 = vpack.c.bf16 %v435, %v434
      %v514 = vpack.c.bf16 %v437, %v436
      %v515 = vpack.c.bf16 %v439, %v438
      %v516 = vpack.c.bf16 %v441, %v440
      %v517 = vpack.c.bf16 %v443, %v442
      %v518 = vpack.c.bf16 %v445, %v444
      %v519 = vpack.c.bf16 %v447, %v446
      %v520 = vpack.c.bf16 %v449, %v448
      %v521 = vpack.c.bf16 %v451, %v450
      %v522 = vpack.c.bf16 %v453, %v452
      %v523 = vpack.c.bf16 %v455, %v454
      %v524 = vpack.c.bf16 %v457, %v456
      %v525 = vpack.c.bf16 %v459, %v458
      %v526 = vpack.c.bf16 %v461, %v460
      %v527 = vpack.c.bf16 %v462, %v462
      %vm528 = vcmask 23552
      %529 = vst.msk [vmem:[#allocation2] sm:$0xff] %vm528, %v463
      %530 = vst.msk [vmem:[#allocation2 + $0x8] sm:$0xff] %vm528, %v464
      %531 = vst.msk [vmem:[#allocation2 + $0x10] sm:$0xff] %vm528, %v465
      %532 = vst.msk [vmem:[#allocation2 + $0x18] sm:$0xff] %vm528, %v466
      %533 = vst.msk [vmem:[#allocation2 + $0x20] sm:$0xff] %vm528, %v467
      %534 = vst.msk [vmem:[#allocation2 + $0x28] sm:$0xff] %vm528, %v468
      %535 = vst.msk [vmem:[#allocation2 + $0x30] sm:$0xff] %vm528, %v469
      %536 = vst.msk [vmem:[#allocation2 + $0x38] sm:$0xff] %vm528, %v470
      %537 = vst.msk [vmem:[#allocation2 + $0x40] sm:$0xff] %vm528, %v471
      %538 = vst.msk [vmem:[#allocation2 + $0x48] sm:$0xff] %vm528, %v472
      %539 = vst.msk [vmem:[#allocation2 + $0x50] sm:$0xff] %vm528, %v473
      %540 = vst.msk [vmem:[#allocation2 + $0x58] sm:$0xff] %vm528, %v474
      %541 = vst.msk [vmem:[#allocation2 + $0x60] sm:$0xff] %vm528, %v475
      %542 = vst.msk [vmem:[#allocation2 + $0x68] sm:$0xff] %vm528, %v476
      %543 = vst.msk [vmem:[#allocation2 + $0x70] sm:$0xff] %vm528, %v477
      %544 = vst.msk [vmem:[#allocation2 + $0x78] sm:$0xff] %vm528, %v478
      %545 = vst.msk [vmem:[#allocation2 + $0x80] sm:$0xff] %vm528, %v479
      %546 = vst.msk [vmem:[#allocation2 + $0x88] sm:$0xff] %vm528, %v480
      %547 = vst.msk [vmem:[#allocation2 + $0x90] sm:$0xff] %vm528, %v481
      %548 = vst.msk [vmem:[#allocation2 + $0x98] sm:$0xff] %vm528, %v482
      %549 = vst.msk [vmem:[#allocation2 + $0xa0] sm:$0xff] %vm528, %v483
      %550 = vst.msk [vmem:[#allocation2 + $0xa8] sm:$0xff] %vm528, %v484
      %551 = vst.msk [vmem:[#allocation2 + $0xb0] sm:$0xff] %vm528, %v485
      %552 = vst.msk [vmem:[#allocation2 + $0xb8] sm:$0xff] %vm528, %v486
      %553 = vst.msk [vmem:[#allocation2 + $0xc0] sm:$0xff] %vm528, %v487
      %554 = vst.msk [vmem:[#allocation2 + $0xc8] sm:$0xff] %vm528, %v488
      %555 = vst.msk [vmem:[#allocation2 + $0xd0] sm:$0xff] %vm528, %v489
      %556 = vst.msk [vmem:[#allocation2 + $0xd8] sm:$0xff] %vm528, %v490
      %557 = vst.msk [vmem:[#allocation2 + $0xe0] sm:$0xff] %vm528, %v491
      %558 = vst.msk [vmem:[#allocation2 + $0xe8] sm:$0xff] %vm528, %v492
      %559 = vst.msk [vmem:[#allocation2 + $0xf0] sm:$0xff] %vm528, %v493
      %560 = vst.msk [vmem:[#allocation2 + $0xf8] sm:$0xff] %vm528, %v494
      %561 = vst.msk [vmem:[#allocation2 + $0x100] sm:$0xff] %vm528, %v495
      %562 = vst.msk [vmem:[#allocation2 + $0x108] sm:$0xff] %vm528, %v496
      %563 = vst.msk [vmem:[#allocation2 + $0x110] sm:$0xff] %vm528, %v497
      %564 = vst.msk [vmem:[#allocation2 + $0x118] sm:$0xff] %vm528, %v498
      %565 = vst.msk [vmem:[#allocation2 + $0x120] sm:$0xff] %vm528, %v499
      %566 = vst.msk [vmem:[#allocation2 + $0x128] sm:$0xff] %vm528, %v500
      %567 = vst.msk [vmem:[#allocation2 + $0x130] sm:$0xff] %vm528, %v501
      %568 = vst.msk [vmem:[#allocation2 + $0x138] sm:$0xff] %vm528, %v502
      %569 = vst.msk [vmem:[#allocation2 + $0x140] sm:$0xff] %vm528, %v503
      %570 = vst.msk [vmem:[#allocation2 + $0x148] sm:$0xff] %vm528, %v504
      %571 = vst.msk [vmem:[#allocation2 + $0x150] sm:$0xff] %vm528, %v505
      %572 = vst.msk [vmem:[#allocation2 + $0x158] sm:$0xff] %vm528, %v506
      %573 = vst.msk [vmem:[#allocation2 + $0x160] sm:$0xff] %vm528, %v507
      %574 = vst.msk [vmem:[#allocation2 + $0x168] sm:$0xff] %vm528, %v508
      %575 = vst.msk [vmem:[#allocation2 + $0x170] sm:$0xff] %vm528, %v509
      %576 = vst.msk [vmem:[#allocation2 + $0x178] sm:$0xff] %vm528, %v510
      %577 = vst.msk [vmem:[#allocation2 + $0x180] sm:$0xff] %vm528, %v511
      %578 = vst.msk [vmem:[#allocation2 + $0x188] sm:$0xff] %vm528, %v512
      %579 = vst.msk [vmem:[#allocation2 + $0x190] sm:$0xff] %vm528, %v513
      %580 = vst.msk [vmem:[#allocation2 + $0x198] sm:$0xff] %vm528, %v514
      %581 = vst.msk [vmem:[#allocation2 + $0x1a0] sm:$0xff] %vm528, %v515
      %582 = vst.msk [vmem:[#allocation2 + $0x1a8] sm:$0xff] %vm528, %v516
      %583 = vst.msk [vmem:[#allocation2 + $0x1b0] sm:$0xff] %vm528, %v517
      %584 = vst.msk [vmem:[#allocation2 + $0x1b8] sm:$0xff] %vm528, %v518
      %585 = vst.msk [vmem:[#allocation2 + $0x1c0] sm:$0xff] %vm528, %v519
      %586 = vst.msk [vmem:[#allocation2 + $0x1c8] sm:$0xff] %vm528, %v520
      %587 = vst.msk [vmem:[#allocation2 + $0x1d0] sm:$0xff] %vm528, %v521
      %588 = vst.msk [vmem:[#allocation2 + $0x1d8] sm:$0xff] %vm528, %v522
      %vm589 = vsmask.f32 7424
      %v591 = vshrl.u32 %v463, 16
      %v593 = vshll.u32 %v463, 16
      %v595 = vrot.slane %v593, 1
      %v596 = vor.u32 %v591, %v595
      %v598 = vshll.u32 %v464, 16
      %v600 = vrot.slane %v598, 1
      %v601 = vsel %vm589, %v596, %v600
      %v602 = vshrl.u32 %v464, 16
      %v604 = vor.u32 %v602, %v600
      %v606 = vshll.u32 %v465, 16
      %v608 = vrot.slane %v606, 1
      %v609 = vsel %vm589, %v604, %v608
      %v610 = vshrl.u32 %v465, 16
      %v612 = vor.u32 %v610, %v608
      %v614 = vshll.u32 %v466, 16
      %v616 = vrot.slane %v614, 1
      %v617 = vsel %vm589, %v612, %v616
      %v618 = vshrl.u32 %v466, 16
      %v620 = vor.u32 %v618, %v616
      %v622 = vshll.u32 %v467, 16
      %v624 = vrot.slane %v622, 1
      %v625 = vsel %vm589, %v620, %v624
      %v626 = vshrl.u32 %v467, 16
      %v628 = vor.u32 %v626, %v624
      %v630 = vshll.u32 %v468, 16
      %v632 = vrot.slane %v630, 1
      %v633 = vsel %vm589, %v628, %v632
      %v634 = vshrl.u32 %v468, 16
      %v636 = vor.u32 %v634, %v632
      %v638 = vshll.u32 %v469, 16
      %v640 = vrot.slane %v638, 1
      %v641 = vsel %vm589, %v636, %v640
      %v642 = vshrl.u32 %v469, 16
      %v644 = vor.u32 %v642, %v640
      %v646 = vshll.u32 %v470, 16
      %v648 = vrot.slane %v646, 1
      %v649 = vsel %vm589, %v644, %v648
      %v650 = vshrl.u32 %v470, 16
      %v652 = vor.u32 %v650, %v648
      %v654 = vshll.u32 %v471, 16
      %v656 = vrot.slane %v654, 1
      %v657 = vsel %vm589, %v652, %v656
      %v658 = vshrl.u32 %v471, 16
      %v660 = vor.u32 %v658, %v656
      %v662 = vshll.u32 %v472, 16
      %v664 = vrot.slane %v662, 1
      %v665 = vsel %vm589, %v660, %v664
      %v666 = vshrl.u32 %v472, 16
      %v668 = vor.u32 %v666, %v664
      %v670 = vshll.u32 %v473, 16
      %v672 = vrot.slane %v670, 1
      %v673 = vsel %vm589, %v668, %v672
      %v674 = vshrl.u32 %v473, 16
      %v676 = vor.u32 %v674, %v672
      %v678 = vshll.u32 %v474, 16
      %v680 = vrot.slane %v678, 1
      %v681 = vsel %vm589, %v676, %v680
      %v682 = vshrl.u32 %v474, 16
      %v684 = vor.u32 %v682, %v680
      %v686 = vshll.u32 %v475, 16
      %v688 = vrot.slane %v686, 1
      %v689 = vsel %vm589, %v684, %v688
      %v690 = vshrl.u32 %v475, 16
      %v692 = vor.u32 %v690, %v688
      %v694 = vshll.u32 %v476, 16
      %v696 = vrot.slane %v694, 1
      %v697 = vsel %vm589, %v692, %v696
      %v698 = vshrl.u32 %v476, 16
      %v700 = vor.u32 %v698, %v696
      %v702 = vshll.u32 %v477, 16
      %v704 = vrot.slane %v702, 1
      %v705 = vsel %vm589, %v700, %v704
      %v706 = vshrl.u32 %v477, 16
      %v708 = vor.u32 %v706, %v704
      %v710 = vshll.u32 %v478, 16
      %v712 = vrot.slane %v710, 1
      %v713 = vsel %vm589, %v708, %v712
      %v714 = vshrl.u32 %v478, 16
      %v716 = vor.u32 %v714, %v712
      %v718 = vshll.u32 %v479, 16
      %v720 = vrot.slane %v718, 1
      %v721 = vsel %vm589, %v716, %v720
      %v722 = vshrl.u32 %v479, 16
      %v724 = vor.u32 %v722, %v720
      %v726 = vshll.u32 %v480, 16
      %v728 = vrot.slane %v726, 1
      %v729 = vsel %vm589, %v724, %v728
      %v730 = vshrl.u32 %v480, 16
      %v732 = vor.u32 %v730, %v728
      %v734 = vshll.u32 %v481, 16
      %v736 = vrot.slane %v734, 1
      %v737 = vsel %vm589, %v732, %v736
      %v738 = vshrl.u32 %v481, 16
      %v740 = vor.u32 %v738, %v736
      %v742 = vshll.u32 %v482, 16
      %v744 = vrot.slane %v742, 1
      %v745 = vsel %vm589, %v740, %v744
      %v746 = vshrl.u32 %v482, 16
      %v748 = vor.u32 %v746, %v744
      %v750 = vshll.u32 %v483, 16
      %v752 = vrot.slane %v750, 1
      %v753 = vsel %vm589, %v748, %v752
      %v754 = vshrl.u32 %v483, 16
      %v756 = vor.u32 %v754, %v752
      %v758 = vshll.u32 %v484, 16
      %v760 = vrot.slane %v758, 1
      %v761 = vsel %vm589, %v756, %v760
      %v762 = vshrl.u32 %v484, 16
      %v764 = vor.u32 %v762, %v760
      %v766 = vshll.u32 %v485, 16
      %v768 = vrot.slane %v766, 1
      %v769 = vsel %vm589, %v764, %v768
      %v770 = vshrl.u32 %v485, 16
      %v772 = vor.u32 %v770, %v768
      %v774 = vshll.u32 %v486, 16
      %v776 = vrot.slane %v774, 1
      %v777 = vsel %vm589, %v772, %v776
      %v778 = vshrl.u32 %v486, 16
      %v780 = vor.u32 %v778, %v776
      %v782 = vshll.u32 %v487, 16
      %v784 = vrot.slane %v782, 1
      %v785 = vsel %vm589, %v780, %v784
      %v786 = vshrl.u32 %v487, 16
      %v788 = vor.u32 %v786, %v784
      %v790 = vshll.u32 %v488, 16
      %v792 = vrot.slane %v790, 1
      %v793 = vsel %vm589, %v788, %v792
      %v794 = vshrl.u32 %v488, 16
      %v796 = vor.u32 %v794, %v792
      %v798 = vshll.u32 %v489, 16
      %v800 = vrot.slane %v798, 1
      %v801 = vsel %vm589, %v796, %v800
      %v802 = vshrl.u32 %v489, 16
      %v804 = vor.u32 %v802, %v800
      %v806 = vshll.u32 %v490, 16
      %v808 = vrot.slane %v806, 1
      %v809 = vsel %vm589, %v804, %v808
      %v810 = vshrl.u32 %v490, 16
      %v812 = vor.u32 %v810, %v808
      %v814 = vshll.u32 %v491, 16
      %v816 = vrot.slane %v814, 1
      %v817 = vsel %vm589, %v812, %v816
      %v818 = vshrl.u32 %v491, 16
      %v820 = vor.u32 %v818, %v816
      %v822 = vshll.u32 %v492, 16
      %v824 = vrot.slane %v822, 1
      %v825 = vsel %vm589, %v820, %v824
      %v826 = vshrl.u32 %v492, 16
      %v828 = vor.u32 %v826, %v824
      %v830 = vshll.u32 %v493, 16
      %v832 = vrot.slane %v830, 1
      %v833 = vsel %vm589, %v828, %v832
      %v834 = vshrl.u32 %v493, 16
      %v836 = vor.u32 %v834, %v832
      %v838 = vshll.u32 %v494, 16
      %v840 = vrot.slane %v838, 1
      %v841 = vsel %vm589, %v836, %v840
      %v842 = vshrl.u32 %v494, 16
      %v844 = vor.u32 %v842, %v840
      %v846 = vshll.u32 %v495, 16
      %v848 = vrot.slane %v846, 1
      %v849 = vsel %vm589, %v844, %v848
      %v850 = vshrl.u32 %v495, 16
      %v852 = vor.u32 %v850, %v848
      %v854 = vshll.u32 %v496, 16
      %v856 = vrot.slane %v854, 1
      %v857 = vsel %vm589, %v852, %v856
      %v858 = vshrl.u32 %v496, 16
      %v860 = vor.u32 %v858, %v856
      %v862 = vshll.u32 %v497, 16
      %v864 = vrot.slane %v862, 1
      %v865 = vsel %vm589, %v860, %v864
      %v866 = vshrl.u32 %v497, 16
      %v868 = vor.u32 %v866, %v864
      %v870 = vshll.u32 %v498, 16
      %v872 = vrot.slane %v870, 1
      %v873 = vsel %vm589, %v868, %v872
      %v874 = vshrl.u32 %v498, 16
      %v876 = vor.u32 %v874, %v872
      %v878 = vshll.u32 %v499, 16
      %v880 = vrot.slane %v878, 1
      %v881 = vsel %vm589, %v876, %v880
      %v882 = vshrl.u32 %v499, 16
      %v884 = vor.u32 %v882, %v880
      %v886 = vshll.u32 %v500, 16
      %v888 = vrot.slane %v886, 1
      %v889 = vsel %vm589, %v884, %v888
      %v890 = vshrl.u32 %v500, 16
      %v892 = vor.u32 %v890, %v888
      %v894 = vshll.u32 %v501, 16
      %v896 = vrot.slane %v894, 1
      %v897 = vsel %vm589, %v892, %v896
      %v898 = vshrl.u32 %v501, 16
      %v900 = vor.u32 %v898, %v896
      %v902 = vshll.u32 %v502, 16
      %v904 = vrot.slane %v902, 1
      %v905 = vsel %vm589, %v900, %v904
      %v906 = vshrl.u32 %v502, 16
      %v908 = vor.u32 %v906, %v904
      %v910 = vshll.u32 %v503, 16
      %v912 = vrot.slane %v910, 1
      %v913 = vsel %vm589, %v908, %v912
      %v914 = vshrl.u32 %v503, 16
      %v916 = vor.u32 %v914, %v912
      %v918 = vshll.u32 %v504, 16
      %v920 = vrot.slane %v918, 1
      %v921 = vsel %vm589, %v916, %v920
      %v922 = vshrl.u32 %v504, 16
      %v924 = vor.u32 %v922, %v920
      %v926 = vshll.u32 %v505, 16
      %v928 = vrot.slane %v926, 1
      %v929 = vsel %vm589, %v924, %v928
      %v930 = vshrl.u32 %v505, 16
      %v932 = vor.u32 %v930, %v928
      %v934 = vshll.u32 %v506, 16
      %v936 = vrot.slane %v934, 1
      %v937 = vsel %vm589, %v932, %v936
      %v938 = vshrl.u32 %v506, 16
      %v940 = vor.u32 %v938, %v936
      %v942 = vshll.u32 %v507, 16
      %v944 = vrot.slane %v942, 1
      %v945 = vsel %vm589, %v940, %v944
      %v946 = vshrl.u32 %v507, 16
      %v948 = vor.u32 %v946, %v944
      %v950 = vshll.u32 %v508, 16
      %v952 = vrot.slane %v950, 1
      %v953 = vsel %vm589, %v948, %v952
      %v954 = vshrl.u32 %v508, 16
      %v956 = vor.u32 %v954, %v952
      %v958 = vshll.u32 %v509, 16
      %v960 = vrot.slane %v958, 1
      %v961 = vsel %vm589, %v956, %v960
      %v962 = vshrl.u32 %v509, 16
      %v964 = vor.u32 %v962, %v960
      %v966 = vshll.u32 %v510, 16
      %v968 = vrot.slane %v966, 1
      %v969 = vsel %vm589, %v964, %v968
      %v970 = vshrl.u32 %v510, 16
      %v972 = vor.u32 %v970, %v968
      %v974 = vshll.u32 %v511, 16
      %v976 = vrot.slane %v974, 1
      %v977 = vsel %vm589, %v972, %v976
      %v978 = vshrl.u32 %v511, 16
      %v980 = vor.u32 %v978, %v976
      %v982 = vshll.u32 %v512, 16
      %v984 = vrot.slane %v982, 1
      %v985 = vsel %vm589, %v980, %v984
      %v986 = vshrl.u32 %v512, 16
      %v988 = vor.u32 %v986, %v984
      %v990 = vshll.u32 %v513, 16
      %v992 = vrot.slane %v990, 1
      %v993 = vsel %vm589, %v988, %v992
      %v994 = vshrl.u32 %v513, 16
      %v996 = vor.u32 %v994, %v992
      %v998 = vshll.u32 %v514, 16
      %v1000 = vrot.slane %v998, 1
      %v1001 = vsel %vm589, %v996, %v1000
      %v1002 = vshrl.u32 %v514, 16
      %v1004 = vor.u32 %v1002, %v1000
      %v1006 = vshll.u32 %v515, 16
      %v1008 = vrot.slane %v1006, 1
      %v1009 = vsel %vm589, %v1004, %v1008
      %v1010 = vshrl.u32 %v515, 16
      %v1012 = vor.u32 %v1010, %v1008
      %v1014 = vshll.u32 %v516, 16
      %v1016 = vrot.slane %v1014, 1
      %v1017 = vsel %vm589, %v1012, %v1016
      %v1018 = vshrl.u32 %v516, 16
      %v1020 = vor.u32 %v1018, %v1016
      %v1022 = vshll.u32 %v517, 16
      %v1024 = vrot.slane %v1022, 1
      %v1025 = vsel %vm589, %v1020, %v1024
      %v1026 = vshrl.u32 %v517, 16
      %v1028 = vor.u32 %v1026, %v1024
      %v1030 = vshll.u32 %v518, 16
      %v1032 = vrot.slane %v1030, 1
      %v1033 = vsel %vm589, %v1028, %v1032
      %v1034 = vshrl.u32 %v518, 16
      %v1036 = vor.u32 %v1034, %v1032
      %v1038 = vshll.u32 %v519, 16
      %v1040 = vrot.slane %v1038, 1
      %v1041 = vsel %vm589, %v1036, %v1040
      %v1042 = vshrl.u32 %v519, 16
      %v1044 = vor.u32 %v1042, %v1040
      %v1046 = vshll.u32 %v520, 16
      %v1048 = vrot.slane %v1046, 1
      %v1049 = vsel %vm589, %v1044, %v1048
      %v1050 = vshrl.u32 %v520, 16
      %v1052 = vor.u32 %v1050, %v1048
      %v1054 = vshll.u32 %v521, 16
      %v1056 = vrot.slane %v1054, 1
      %v1057 = vsel %vm589, %v1052, %v1056
      %v1058 = vshrl.u32 %v521, 16
      %v1060 = vor.u32 %v1058, %v1056
      %v1062 = vshll.u32 %v522, 16
      %v1064 = vrot.slane %v1062, 1
      %v1065 = vsel %vm589, %v1060, %v1064
      %v1066 = vshrl.u32 %v522, 16
      %v1068 = vor.u32 %v1066, %v1064
      %v1070 = vshll.u32 %v523, 16
      %v1072 = vrot.slane %v1070, 1
      %v1073 = vsel %vm589, %v1068, %v1072
      %1074 = vrot.lane.b32.xlu0 %v601, 3
      %v1075 = vpop.permute.xlu0 %1074
      %1076 = vrot.lane.b32.xlu0 %v609, 3
      %v1077 = vpop.permute.xlu0 %1076
      %1078 = vrot.lane.b32.xlu0 %v617, 3
      %v1079 = vpop.permute.xlu0 %1078
      %1080 = vrot.lane.b32.xlu0 %v625, 3
      %v1081 = vpop.permute.xlu0 %1080
      %1082 = vrot.lane.b32.xlu0 %v633, 3
      %v1083 = vpop.permute.xlu0 %1082
      %1084 = vrot.lane.b32.xlu0 %v641, 3
      %v1085 = vpop.permute.xlu0 %1084
      %1086 = vrot.lane.b32.xlu0 %v649, 3
      %v1087 = vpop.permute.xlu0 %1086
      %1088 = vrot.lane.b32.xlu0 %v657, 3
      %v1089 = vpop.permute.xlu0 %1088
      %1090 = vrot.lane.b32.xlu0 %v665, 3
      %v1091 = vpop.permute.xlu0 %1090
      %1092 = vrot.lane.b32.xlu0 %v673, 3
      %v1093 = vpop.permute.xlu0 %1092
      %1094 = vrot.lane.b32.xlu0 %v681, 3
      %v1095 = vpop.permute.xlu0 %1094
      %1096 = vrot.lane.b32.xlu0 %v689, 3
      %v1097 = vpop.permute.xlu0 %1096
      %1098 = vrot.lane.b32.xlu0 %v697, 3
      %v1099 = vpop.permute.xlu0 %1098
      %1100 = vrot.lane.b32.xlu0 %v705, 3
      %v1101 = vpop.permute.xlu0 %1100
      %1102 = vrot.lane.b32.xlu0 %v713, 3
      %v1103 = vpop.permute.xlu0 %1102
      %1104 = vrot.lane.b32.xlu0 %v721, 3
      %v1105 = vpop.permute.xlu0 %1104
      %1106 = vrot.lane.b32.xlu0 %v729, 3
      %v1107 = vpop.permute.xlu0 %1106
      %1108 = vrot.lane.b32.xlu0 %v737, 3
      %v1109 = vpop.permute.xlu0 %1108
      %1110 = vrot.lane.b32.xlu0 %v745, 3
      %v1111 = vpop.permute.xlu0 %1110
      %1112 = vrot.lane.b32.xlu0 %v753, 3
      %v1113 = vpop.permute.xlu0 %1112
      %1114 = vrot.lane.b32.xlu0 %v761, 3
      %v1115 = vpop.permute.xlu0 %1114
      %1116 = vrot.lane.b32.xlu0 %v769, 3
      %v1117 = vpop.permute.xlu0 %1116
      %1118 = vrot.lane.b32.xlu0 %v777, 3
      %v1119 = vpop.permute.xlu0 %1118
      %1120 = vrot.lane.b32.xlu0 %v785, 3
      %v1121 = vpop.permute.xlu0 %1120
      %1122 = vrot.lane.b32.xlu0 %v793, 3
      %v1123 = vpop.permute.xlu0 %1122
      %1124 = vrot.lane.b32.xlu0 %v801, 3
      %v1125 = vpop.permute.xlu0 %1124
      %1126 = vrot.lane.b32.xlu0 %v809, 3
      %v1127 = vpop.permute.xlu0 %1126
      %1128 = vrot.lane.b32.xlu0 %v817, 3
      %v1129 = vpop.permute.xlu0 %1128
      %1130 = vrot.lane.b32.xlu0 %v825, 3
      %v1131 = vpop.permute.xlu0 %1130
      %1132 = vrot.lane.b32.xlu0 %v833, 3
      %v1133 = vpop.permute.xlu0 %1132
      %1134 = vrot.lane.b32.xlu0 %v841, 3
      %v1135 = vpop.permute.xlu0 %1134
      %1136 = vrot.lane.b32.xlu0 %v849, 3
      %v1137 = vpop.permute.xlu0 %1136
      %1138 = vrot.lane.b32.xlu0 %v857, 3
      %v1139 = vpop.permute.xlu0 %1138
      %1140 = vrot.lane.b32.xlu0 %v865, 3
      %v1141 = vpop.permute.xlu0 %1140
      %1142 = vrot.lane.b32.xlu0 %v873, 3
      %v1143 = vpop.permute.xlu0 %1142
      %1144 = vrot.lane.b32.xlu0 %v881, 3
      %v1145 = vpop.permute.xlu0 %1144
      %1146 = vrot.lane.b32.xlu0 %v889, 3
      %v1147 = vpop.permute.xlu0 %1146
      %1148 = vrot.lane.b32.xlu0 %v897, 3
      %v1149 = vpop.permute.xlu0 %1148
      %1150 = vrot.lane.b32.xlu0 %v905, 3
      %v1151 = vpop.permute.xlu0 %1150
      %1152 = vrot.lane.b32.xlu0 %v913, 3
      %v1153 = vpop.permute.xlu0 %1152
      %1154 = vrot.lane.b32.xlu0 %v921, 3
      %v1155 = vpop.permute.xlu0 %1154
      %1156 = vrot.lane.b32.xlu0 %v929, 3
      %v1157 = vpop.permute.xlu0 %1156
      %1158 = vrot.lane.b32.xlu0 %v937, 3
      %v1159 = vpop.permute.xlu0 %1158
      %1160 = vrot.lane.b32.xlu0 %v945, 3
      %v1161 = vpop.permute.xlu0 %1160
      %1162 = vrot.lane.b32.xlu0 %v953, 3
      %v1163 = vpop.permute.xlu0 %1162
      %1164 = vrot.lane.b32.xlu0 %v961, 3
      %v1165 = vpop.permute.xlu0 %1164
      %1166 = vrot.lane.b32.xlu0 %v969, 3
      %v1167 = vpop.permute.xlu0 %1166
      %1168 = vrot.lane.b32.xlu0 %v977, 3
      %v1169 = vpop.permute.xlu0 %1168
      %1170 = vrot.lane.b32.xlu0 %v985, 3
      %v1171 = vpop.permute.xlu0 %1170
      %1172 = vrot.lane.b32.xlu0 %v993, 3
      %v1173 = vpop.permute.xlu0 %1172
      %1174 = vrot.lane.b32.xlu0 %v1001, 3
      %v1175 = vpop.permute.xlu0 %1174
      %1176 = vrot.lane.b32.xlu0 %v1009, 3
      %v1177 = vpop.permute.xlu0 %1176
      %1178 = vrot.lane.b32.xlu0 %v1017, 3
      %v1179 = vpop.permute.xlu0 %1178
      %1180 = vrot.lane.b32.xlu0 %v1025, 3
      %v1181 = vpop.permute.xlu0 %1180
      %1182 = vrot.lane.b32.xlu0 %v1033, 3
      %v1183 = vpop.permute.xlu0 %1182
      %1184 = vrot.lane.b32.xlu0 %v1041, 3
      %v1185 = vpop.permute.xlu0 %1184
      %1186 = vrot.lane.b32.xlu0 %v1049, 3
      %v1187 = vpop.permute.xlu0 %1186
      %1188 = vrot.lane.b32.xlu0 %v1057, 3
      %v1189 = vpop.permute.xlu0 %1188
      %1190 = vrot.lane.b32.xlu0 %v1065, 3
      %v1191 = vpop.permute.xlu0 %1190
      %1192 = vrot.lane.b32.xlu0 %v1073, 3
      %v1193 = vpop.permute.xlu0 %1192
      %vm1254 = vcmask 48152
      %1255 = vst.msk [vmem:[#allocation2] sm:$0xff] %vm1254, %v1075
      %1256 = vst.msk [vmem:[#allocation2 + $0x8] sm:$0xff] %vm1254, %v1077
      %1257 = vst.msk [vmem:[#allocation2 + $0x10] sm:$0xff] %vm1254, %v1079
      %1258 = vst.msk [vmem:[#allocation2 + $0x18] sm:$0xff] %vm1254, %v1081
      %1259 = vst.msk [vmem:[#allocation2 + $0x20] sm:$0xff] %vm1254, %v1083
      %1260 = vst.msk [vmem:[#allocation2 + $0x28] sm:$0xff] %vm1254, %v1085
      %1261 = vst.msk [vmem:[#allocation2 + $0x30] sm:$0xff] %vm1254, %v1087
      %1262 = vst.msk [vmem:[#allocation2 + $0x38] sm:$0xff] %vm1254, %v1089
      %1263 = vst.msk [vmem:[#allocation2 + $0x40] sm:$0xff] %vm1254, %v1091
      %1264 = vst.msk [vmem:[#allocation2 + $0x48] sm:$0xff] %vm1254, %v1093
      %1265 = vst.msk [vmem:[#allocation2 + $0x50] sm:$0xff] %vm1254, %v1095
      %1266 = vst.msk [vmem:[#allocation2 + $0x58] sm:$0xff] %vm1254, %v1097
      %1267 = vst.msk [vmem:[#allocation2 + $0x60] sm:$0xff] %vm1254, %v1099
      %1268 = vst.msk [vmem:[#allocation2 + $0x68] sm:$0xff] %vm1254, %v1101
      %1269 = vst.msk [vmem:[#allocation2 + $0x70] sm:$0xff] %vm1254, %v1103
      %1270 = vst.msk [vmem:[#allocation2 + $0x78] sm:$0xff] %vm1254, %v1105
      %1271 = vst.msk [vmem:[#allocation2 + $0x80] sm:$0xff] %vm1254, %v1107
      %1272 = vst.msk [vmem:[#allocation2 + $0x88] sm:$0xff] %vm1254, %v1109
      %1273 = vst.msk [vmem:[#allocation2 + $0x90] sm:$0xff] %vm1254, %v1111
      %1274 = vst.msk [vmem:[#allocation2 + $0x98] sm:$0xff] %vm1254, %v1113
      %1275 = vst.msk [vmem:[#allocation2 + $0xa0] sm:$0xff] %vm1254, %v1115
      %1276 = vst.msk [vmem:[#allocation2 + $0xa8] sm:$0xff] %vm1254, %v1117
      %1277 = vst.msk [vmem:[#allocation2 + $0xb0] sm:$0xff] %vm1254, %v1119
      %1278 = vst.msk [vmem:[#allocation2 + $0xb8] sm:$0xff] %vm1254, %v1121
      %1279 = vst.msk [vmem:[#allocation2 + $0xc0] sm:$0xff] %vm1254, %v1123
      %1280 = vst.msk [vmem:[#allocation2 + $0xc8] sm:$0xff] %vm1254, %v1125
      %1281 = vst.msk [vmem:[#allocation2 + $0xd0] sm:$0xff] %vm1254, %v1127
      %1282 = vst.msk [vmem:[#allocation2 + $0xd8] sm:$0xff] %vm1254, %v1129
      %1283 = vst.msk [vmem:[#allocation2 + $0xe0] sm:$0xff] %vm1254, %v1131
      %1284 = vst.msk [vmem:[#allocation2 + $0xe8] sm:$0xff] %vm1254, %v1133
      %1285 = vst.msk [vmem:[#allocation2 + $0xf0] sm:$0xff] %vm1254, %v1135
      %1286 = vst.msk [vmem:[#allocation2 + $0xf8] sm:$0xff] %vm1254, %v1137
      %1287 = vst.msk [vmem:[#allocation2 + $0x100] sm:$0xff] %vm1254, %v1139
      %1288 = vst.msk [vmem:[#allocation2 + $0x108] sm:$0xff] %vm1254, %v1141
      %1289 = vst.msk [vmem:[#allocation2 + $0x110] sm:$0xff] %vm1254, %v1143
      %1290 = vst.msk [vmem:[#allocation2 + $0x118] sm:$0xff] %vm1254, %v1145
      %1291 = vst.msk [vmem:[#allocation2 + $0x120] sm:$0xff] %vm1254, %v1147
      %1292 = vst.msk [vmem:[#allocation2 + $0x128] sm:$0xff] %vm1254, %v1149
      %1293 = vst.msk [vmem:[#allocation2 + $0x130] sm:$0xff] %vm1254, %v1151
      %1294 = vst.msk [vmem:[#allocation2 + $0x138] sm:$0xff] %vm1254, %v1153
      %1295 = vst.msk [vmem:[#allocation2 + $0x140] sm:$0xff] %vm1254, %v1155
      %1296 = vst.msk [vmem:[#allocation2 + $0x148] sm:$0xff] %vm1254, %v1157
      %1297 = vst.msk [vmem:[#allocation2 + $0x150] sm:$0xff] %vm1254, %v1159
      %1298 = vst.msk [vmem:[#allocation2 + $0x158] sm:$0xff] %vm1254, %v1161
      %1299 = vst.msk [vmem:[#allocation2 + $0x160] sm:$0xff] %vm1254, %v1163
      %1300 = vst.msk [vmem:[#allocation2 + $0x168] sm:$0xff] %vm1254, %v1165
      %1301 = vst.msk [vmem:[#allocation2 + $0x170] sm:$0xff] %vm1254, %v1167
      %1302 = vst.msk [vmem:[#allocation2 + $0x178] sm:$0xff] %vm1254, %v1169
      %1303 = vst.msk [vmem:[#allocation2 + $0x180] sm:$0xff] %vm1254, %v1171
      %1304 = vst.msk [vmem:[#allocation2 + $0x188] sm:$0xff] %vm1254, %v1173
      %1305 = vst.msk [vmem:[#allocation2 + $0x190] sm:$0xff] %vm1254, %v1175
      %1306 = vst.msk [vmem:[#allocation2 + $0x198] sm:$0xff] %vm1254, %v1177
      %1307 = vst.msk [vmem:[#allocation2 + $0x1a0] sm:$0xff] %vm1254, %v1179
      %1308 = vst.msk [vmem:[#allocation2 + $0x1a8] sm:$0xff] %vm1254, %v1181
      %1309 = vst.msk [vmem:[#allocation2 + $0x1b0] sm:$0xff] %vm1254, %v1183
      %1310 = vst.msk [vmem:[#allocation2 + $0x1b8] sm:$0xff] %vm1254, %v1185
      %1311 = vst.msk [vmem:[#allocation2 + $0x1c0] sm:$0xff] %vm1254, %v1187
      %1312 = vst.msk [vmem:[#allocation2 + $0x1c8] sm:$0xff] %vm1254, %v1189
      %1313 = vst.msk [vmem:[#allocation2 + $0x1d0] sm:$0xff] %vm1254, %v1191
      %1314 = vst.msk [vmem:[#allocation2 + $0x1d8] sm:$0xff] %vm1254, %v1193
      %vm1376 = vcmask 1046528
      %v1377 = vrot.slane %v463, 1
      %v1378 = vrot.slane %v464, 1
      %v1379 = vsel %vm1376, %v1377, %v1378
      %v1380 = vrot.slane %v465, 1
      %v1381 = vsel %vm1376, %v1378, %v1380
      %v1382 = vrot.slane %v466, 1
      %v1383 = vsel %vm1376, %v1380, %v1382
      %v1384 = vrot.slane %v467, 1
      %v1385 = vsel %vm1376, %v1382, %v1384
      %v1386 = vrot.slane %v468, 1
      %v1387 = vsel %vm1376, %v1384, %v1386
      %v1388 = vrot.slane %v469, 1
      %v1389 = vsel %vm1376, %v1386, %v1388
      %v1390 = vrot.slane %v470, 1
      %v1391 = vsel %vm1376, %v1388, %v1390
      %v1392 = vrot.slane %v471, 1
      %v1393 = vsel %vm1376, %v1390, %v1392
      %v1394 = vrot.slane %v472, 1
      %v1395 = vsel %vm1376, %v1392, %v1394
      %v1396 = vrot.slane %v473, 1
      %v1397 = vsel %vm1376, %v1394, %v1396
      %v1398 = vrot.slane %v474, 1
      %v1399 = vsel %vm1376, %v1396, %v1398
      %v1400 = vrot.slane %v475, 1
      %v1401 = vsel %vm1376, %v1398, %v1400
      %v1402 = vrot.slane %v476, 1
      %v1403 = vsel %vm1376, %v1400, %v1402
      %v1404 = vrot.slane %v477, 1
      %v1405 = vsel %vm1376, %v1402, %v1404
      %v1406 = vrot.slane %v478, 1
      %v1407 = vsel %vm1376, %v1404, %v1406
      %v1408 = vrot.slane %v479, 1
      %v1409 = vsel %vm1376, %v1406, %v1408
      %v1410 = vrot.slane %v480, 1
      %v1411 = vsel %vm1376, %v1408, %v1410
      %v1412 = vrot.slane %v481, 1
      %v1413 = vsel %vm1376, %v1410, %v1412
      %v1414 = vrot.slane %v482, 1
      %v1415 = vsel %vm1376, %v1412, %v1414
      %v1416 = vrot.slane %v483, 1
      %v1417 = vsel %vm1376, %v1414, %v1416
      %v1418 = vrot.slane %v484, 1
      %v1419 = vsel %vm1376, %v1416, %v1418
      %v1420 = vrot.slane %v485, 1
      %v1421 = vsel %vm1376, %v1418, %v1420
      %v1422 = vrot.slane %v486, 1
      %v1423 = vsel %vm1376, %v1420, %v1422
      %v1424 = vrot.slane %v487, 1
      %v1425 = vsel %vm1376, %v1422, %v1424
      %v1426 = vrot.slane %v488, 1
      %v1427 = vsel %vm1376, %v1424, %v1426
      %v1428 = vrot.slane %v489, 1
      %v1429 = vsel %vm1376, %v1426, %v1428
      %v1430 = vrot.slane %v490, 1
      %v1431 = vsel %vm1376, %v1428, %v1430
      %v1432 = vrot.slane %v491, 1
      %v1433 = vsel %vm1376, %v1430, %v1432
      %v1434 = vrot.slane %v492, 1
      %v1435 = vsel %vm1376, %v1432, %v1434
      %v1436 = vrot.slane %v493, 1
      %v1437 = vsel %vm1376, %v1434, %v1436
      %v1438 = vrot.slane %v494, 1
      %v1439 = vsel %vm1376, %v1436, %v1438
      %v1440 = vrot.slane %v495, 1
      %v1441 = vsel %vm1376, %v1438, %v1440
      %v1442 = vrot.slane %v496, 1
      %v1443 = vsel %vm1376, %v1440, %v1442
      %v1444 = vrot.slane %v497, 1
      %v1445 = vsel %vm1376, %v1442, %v1444
      %v1446 = vrot.slane %v498, 1
      %v1447 = vsel %vm1376, %v1444, %v1446
      %v1448 = vrot.slane %v499, 1
      %v1449 = vsel %vm1376, %v1446, %v1448
      %v1450 = vrot.slane %v500, 1
      %v1451 = vsel %vm1376, %v1448, %v1450
      %v1452 = vrot.slane %v501, 1
      %v1453 = vsel %vm1376, %v1450, %v1452
      %v1454 = vrot.slane %v502, 1
      %v1455 = vsel %vm1376, %v1452, %v1454
      %v1456 = vrot.slane %v503, 1
      %v1457 = vsel %vm1376, %v1454, %v1456
      %v1458 = vrot.slane %v504, 1
      %v1459 = vsel %vm1376, %v1456, %v1458
      %v1460 = vrot.slane %v505, 1
      %v1461 = vsel %vm1376, %v1458, %v1460
      %v1462 = vrot.slane %v506, 1
      %v1463 = vsel %vm1376, %v1460, %v1462
      %v1464 = vrot.slane %v507, 1
      %v1465 = vsel %vm1376, %v1462, %v1464
      %v1466 = vrot.slane %v508, 1
      %v1467 = vsel %vm1376, %v1464, %v1466
      %v1468 = vrot.slane %v509, 1
      %v1469 = vsel %vm1376, %v1466, %v1468
      %v1470 = vrot.slane %v510, 1
      %v1471 = vsel %vm1376, %v1468, %v1470
      %v1472 = vrot.slane %v511, 1
      %v1473 = vsel %vm1376, %v1470, %v1472
      %v1474 = vrot.slane %v512, 1
      %v1475 = vsel %vm1376, %v1472, %v1474
      %v1476 = vrot.slane %v513, 1
      %v1477 = vsel %vm1376, %v1474, %v1476
      %v1478 = vrot.slane %v514, 1
      %v1479 = vsel %vm1376, %v1476, %v1478
      %v1480 = vrot.slane %v515, 1
      %v1481 = vsel %vm1376, %v1478, %v1480
      %v1482 = vrot.slane %v516, 1
      %v1483 = vsel %vm1376, %v1480, %v1482
      %v1484 = vrot.slane %v517, 1
      %v1485 = vsel %vm1376, %v1482, %v1484
      %v1486 = vrot.slane %v518, 1
      %v1487 = vsel %vm1376, %v1484, %v1486
      %v1488 = vrot.slane %v519, 1
      %v1489 = vsel %vm1376, %v1486, %v1488
      %v1490 = vrot.slane %v520, 1
      %v1491 = vsel %vm1376, %v1488, %v1490
      %v1492 = vrot.slane %v521, 1
      %v1493 = vsel %vm1376, %v1490, %v1492
      %v1494 = vrot.slane %v522, 1
      %v1495 = vsel %vm1376, %v1492, %v1494
      %v1496 = vrot.slane %v523, 1
      %v1497 = vsel %vm1376, %v1494, %v1496
      %1498 = vrot.lane.b32.xlu0 %v1379, 6
      %v1499 = vpop.permute.xlu0 %1498
      %1500 = vrot.lane.b32.xlu0 %v1381, 6
      %v1501 = vpop.permute.xlu0 %1500
      %1502 = vrot.lane.b32.xlu0 %v1383, 6
      %v1503 = vpop.permute.xlu0 %1502
      %1504 = vrot.lane.b32.xlu0 %v1385, 6
      %v1505 = vpop.permute.xlu0 %1504
      %1506 = vrot.lane.b32.xlu0 %v1387, 6
      %v1507 = vpop.permute.xlu0 %1506
      %1508 = vrot.lane.b32.xlu0 %v1389, 6
      %v1509 = vpop.permute.xlu0 %1508
      %1510 = vrot.lane.b32.xlu0 %v1391, 6
      %v1511 = vpop.permute.xlu0 %1510
      %1512 = vrot.lane.b32.xlu0 %v1393, 6
      %v1513 = vpop.permute.xlu0 %1512
      %1514 = vrot.lane.b32.xlu0 %v1395, 6
      %v1515 = vpop.permute.xlu0 %1514
      %1516 = vrot.lane.b32.xlu0 %v1397, 6
      %v1517 = vpop.permute.xlu0 %1516
      %1518 = vrot.lane.b32.xlu0 %v1399, 6
      %v1519 = vpop.permute.xlu0 %1518
      %1520 = vrot.lane.b32.xlu0 %v1401, 6
      %v1521 = vpop.permute.xlu0 %1520
      %1522 = vrot.lane.b32.xlu0 %v1403, 6
      %v1523 = vpop.permute.xlu0 %1522
      %1524 = vrot.lane.b32.xlu0 %v1405, 6
      %v1525 = vpop.permute.xlu0 %1524
      %1526 = vrot.lane.b32.xlu0 %v1407, 6
      %v1527 = vpop.permute.xlu0 %1526
      %1528 = vrot.lane.b32.xlu0 %v1409, 6
      %v1529 = vpop.permute.xlu0 %1528
      %1530 = vrot.lane.b32.xlu0 %v1411, 6
      %v1531 = vpop.permute.xlu0 %1530
      %1532 = vrot.lane.b32.xlu0 %v1413, 6
      %v1533 = vpop.permute.xlu0 %1532
      %1534 = vrot.lane.b32.xlu0 %v1415, 6
      %v1535 = vpop.permute.xlu0 %1534
      %1536 = vrot.lane.b32.xlu0 %v1417, 6
      %v1537 = vpop.permute.xlu0 %1536
      %1538 = vrot.lane.b32.xlu0 %v1419, 6
      %v1539 = vpop.permute.xlu0 %1538
      %1540 = vrot.lane.b32.xlu0 %v1421, 6
      %v1541 = vpop.permute.xlu0 %1540
      %1542 = vrot.lane.b32.xlu0 %v1423, 6
      %v1543 = vpop.permute.xlu0 %1542
      %1544 = vrot.lane.b32.xlu0 %v1425, 6
      %v1545 = vpop.permute.xlu0 %1544
      %1546 = vrot.lane.b32.xlu0 %v1427, 6
      %v1547 = vpop.permute.xlu0 %1546
      %1548 = vrot.lane.b32.xlu0 %v1429, 6
      %v1549 = vpop.permute.xlu0 %1548
      %1550 = vrot.lane.b32.xlu0 %v1431, 6
      %v1551 = vpop.permute.xlu0 %1550
      %1552 = vrot.lane.b32.xlu0 %v1433, 6
      %v1553 = vpop.permute.xlu0 %1552
      %1554 = vrot.lane.b32.xlu0 %v1435, 6
      %v1555 = vpop.permute.xlu0 %1554
      %1556 = vrot.lane.b32.xlu0 %v1437, 6
      %v1557 = vpop.permute.xlu0 %1556
      %1558 = vrot.lane.b32.xlu0 %v1439, 6
      %v1559 = vpop.permute.xlu0 %1558
      %1560 = vrot.lane.b32.xlu0 %v1441, 6
      %v1561 = vpop.permute.xlu0 %1560
      %1562 = vrot.lane.b32.xlu0 %v1443, 6
      %v1563 = vpop.permute.xlu0 %1562
      %1564 = vrot.lane.b32.xlu0 %v1445, 6
      %v1565 = vpop.permute.xlu0 %1564
      %1566 = vrot.lane.b32.xlu0 %v1447, 6
      %v1567 = vpop.permute.xlu0 %1566
      %1568 = vrot.lane.b32.xlu0 %v1449, 6
      %v1569 = vpop.permute.xlu0 %1568
      %1570 = vrot.lane.b32.xlu0 %v1451, 6
      %v1571 = vpop.permute.xlu0 %1570
      %1572 = vrot.lane.b32.xlu0 %v1453, 6
      %v1573 = vpop.permute.xlu0 %1572
      %1574 = vrot.lane.b32.xlu0 %v1455, 6
      %v1575 = vpop.permute.xlu0 %1574
      %1576 = vrot.lane.b32.xlu0 %v1457, 6
      %v1577 = vpop.permute.xlu0 %1576
      %1578 = vrot.lane.b32.xlu0 %v1459, 6
      %v1579 = vpop.permute.xlu0 %1578
      %1580 = vrot.lane.b32.xlu0 %v1461, 6
      %v1581 = vpop.permute.xlu0 %1580
      %1582 = vrot.lane.b32.xlu0 %v1463, 6
      %v1583 = vpop.permute.xlu0 %1582
      %1584 = vrot.lane.b32.xlu0 %v1465, 6
      %v1585 = vpop.permute.xlu0 %1584
      %1586 = vrot.lane.b32.xlu0 %v1467, 6
      %v1587 = vpop.permute.xlu0 %1586
      %1588 = vrot.lane.b32.xlu0 %v1469, 6
      %v1589 = vpop.permute.xlu0 %1588
      %1590 = vrot.lane.b32.xlu0 %v1471, 6
      %v1591 = vpop.permute.xlu0 %1590
      %1592 = vrot.lane.b32.xlu0 %v1473, 6
      %v1593 = vpop.permute.xlu0 %1592
      %1594 = vrot.lane.b32.xlu0 %v1475, 6
      %v1595 = vpop.permute.xlu0 %1594
      %1596 = vrot.lane.b32.xlu0 %v1477, 6
      %v1597 = vpop.permute.xlu0 %1596
      %1598 = vrot.lane.b32.xlu0 %v1479, 6
      %v1599 = vpop.permute.xlu0 %1598
      %1600 = vrot.lane.b32.xlu0 %v1481, 6
      %v1601 = vpop.permute.xlu0 %1600
      %1602 = vrot.lane.b32.xlu0 %v1483, 6
      %v1603 = vpop.permute.xlu0 %1602
      %1604 = vrot.lane.b32.xlu0 %v1485, 6
      %v1605 = vpop.permute.xlu0 %1604
      %1606 = vrot.lane.b32.xlu0 %v1487, 6
      %v1607 = vpop.permute.xlu0 %1606
      %1608 = vrot.lane.b32.xlu0 %v1489, 6
      %v1609 = vpop.permute.xlu0 %1608
      %1610 = vrot.lane.b32.xlu0 %v1491, 6
      %v1611 = vpop.permute.xlu0 %1610
      %1612 = vrot.lane.b32.xlu0 %v1493, 6
      %v1613 = vpop.permute.xlu0 %1612
      %1614 = vrot.lane.b32.xlu0 %v1495, 6
      %v1615 = vpop.permute.xlu0 %1614
      %1616 = vrot.lane.b32.xlu0 %v1497, 6
      %v1617 = vpop.permute.xlu0 %1616
      %vm1678 = vcmask 72752
      %1679 = vst.msk [vmem:[#allocation2] sm:$0xff] %vm1678, %v1499
      %1680 = vst.msk [vmem:[#allocation2 + $0x8] sm:$0xff] %vm1678, %v1501
      %1681 = vst.msk [vmem:[#allocation2 + $0x10] sm:$0xff] %vm1678, %v1503
      %1682 = vst.msk [vmem:[#allocation2 + $0x18] sm:$0xff] %vm1678, %v1505
      %1683 = vst.msk [vmem:[#allocation2 + $0x20] sm:$0xff] %vm1678, %v1507
      %1684 = vst.msk [vmem:[#allocation2 + $0x28] sm:$0xff] %vm1678, %v1509
      %1685 = vst.msk [vmem:[#allocation2 + $0x30] sm:$0xff] %vm1678, %v1511
      %1686 = vst.msk [vmem:[#allocation2 + $0x38] sm:$0xff] %vm1678, %v1513
      %1687 = vst.msk [vmem:[#allocation2 + $0x40] sm:$0xff] %vm1678, %v1515
      %1688 = vst.msk [vmem:[#allocation2 + $0x48] sm:$0xff] %vm1678, %v1517
      %1689 = vst.msk [vmem:[#allocation2 + $0x50] sm:$0xff] %vm1678, %v1519
      %1690 = vst.msk [vmem:[#allocation2 + $0x58] sm:$0xff] %vm1678, %v1521
      %1691 = vst.msk [vmem:[#allocation2 + $0x60] sm:$0xff] %vm1678, %v1523
      %1692 = vst.msk [vmem:[#allocation2 + $0x68] sm:$0xff] %vm1678, %v1525
      %1693 = vst.msk [vmem:[#allocation2 + $0x70] sm:$0xff] %vm1678, %v1527
      %1694 = vst.msk [vmem:[#allocation2 + $0x78] sm:$0xff] %vm1678, %v1529
      %1695 = vst.msk [vmem:[#allocation2 + $0x80] sm:$0xff] %vm1678, %v1531
      %1696 = vst.msk [vmem:[#allocation2 + $0x88] sm:$0xff] %vm1678, %v1533
      %1697 = vst.msk [vmem:[#allocation2 + $0x90] sm:$0xff] %vm1678, %v1535
      %1698 = vst.msk [vmem:[#allocation2 + $0x98] sm:$0xff] %vm1678, %v1537
      %1699 = vst.msk [vmem:[#allocation2 + $0xa0] sm:$0xff] %vm1678, %v1539
      %1700 = vst.msk [vmem:[#allocation2 + $0xa8] sm:$0xff] %vm1678, %v1541
      %1701 = vst.msk [vmem:[#allocation2 + $0xb0] sm:$0xff] %vm1678, %v1543
      %1702 = vst.msk [vmem:[#allocation2 + $0xb8] sm:$0xff] %vm1678, %v1545
      %1703 = vst.msk [vmem:[#allocation2 + $0xc0] sm:$0xff] %vm1678, %v1547
      %1704 = vst.msk [vmem:[#allocation2 + $0xc8] sm:$0xff] %vm1678, %v1549
      %1705 = vst.msk [vmem:[#allocation2 + $0xd0] sm:$0xff] %vm1678, %v1551
      %1706 = vst.msk [vmem:[#allocation2 + $0xd8] sm:$0xff] %vm1678, %v1553
      %1707 = vst.msk [vmem:[#allocation2 + $0xe0] sm:$0xff] %vm1678, %v1555
      %1708 = vst.msk [vmem:[#allocation2 + $0xe8] sm:$0xff] %vm1678, %v1557
      %1709 = vst.msk [vmem:[#allocation2 + $0xf0] sm:$0xff] %vm1678, %v1559
      %1710 = vst.msk [vmem:[#allocation2 + $0xf8] sm:$0xff] %vm1678, %v1561
      %1711 = vst.msk [vmem:[#allocation2 + $0x100] sm:$0xff] %vm1678, %v1563
      %1712 = vst.msk [vmem:[#allocation2 + $0x108] sm:$0xff] %vm1678, %v1565
      %1713 = vst.msk [vmem:[#allocation2 + $0x110] sm:$0xff] %vm1678, %v1567
      %1714 = vst.msk [vmem:[#allocation2 + $0x118] sm:$0xff] %vm1678, %v1569
      %1715 = vst.msk [vmem:[#allocation2 + $0x120] sm:$0xff] %vm1678, %v1571
      %1716 = vst.msk [vmem:[#allocation2 + $0x128] sm:$0xff] %vm1678, %v1573
      %1717 = vst.msk [vmem:[#allocation2 + $0x130] sm:$0xff] %vm1678, %v1575
      %1718 = vst.msk [vmem:[#allocation2 + $0x138] sm:$0xff] %vm1678, %v1577
      %1719 = vst.msk [vmem:[#allocation2 + $0x140] sm:$0xff] %vm1678, %v1579
      %1720 = vst.msk [vmem:[#allocation2 + $0x148] sm:$0xff] %vm1678, %v1581
      %1721 = vst.msk [vmem:[#allocation2 + $0x150] sm:$0xff] %vm1678, %v1583
      %1722 = vst.msk [vmem:[#allocation2 + $0x158] sm:$0xff] %vm1678, %v1585
      %1723 = vst.msk [vmem:[#allocation2 + $0x160] sm:$0xff] %vm1678, %v1587
      %1724 = vst.msk [vmem:[#allocation2 + $0x168] sm:$0xff] %vm1678, %v1589
      %1725 = vst.msk [vmem:[#allocation2 + $0x170] sm:$0xff] %vm1678, %v1591
      %1726 = vst.msk [vmem:[#allocation2 + $0x178] sm:$0xff] %vm1678, %v1593
      %1727 = vst.msk [vmem:[#allocation2 + $0x180] sm:$0xff] %vm1678, %v1595
      %1728 = vst.msk [vmem:[#allocation2 + $0x188] sm:$0xff] %vm1678, %v1597
      %1729 = vst.msk [vmem:[#allocation2 + $0x190] sm:$0xff] %vm1678, %v1599
      %1730 = vst.msk [vmem:[#allocation2 + $0x198] sm:$0xff] %vm1678, %v1601
      %1731 = vst.msk [vmem:[#allocation2 + $0x1a0] sm:$0xff] %vm1678, %v1603
      %1732 = vst.msk [vmem:[#allocation2 + $0x1a8] sm:$0xff] %vm1678, %v1605
      %1733 = vst.msk [vmem:[#allocation2 + $0x1b0] sm:$0xff] %vm1678, %v1607
      %1734 = vst.msk [vmem:[#allocation2 + $0x1b8] sm:$0xff] %vm1678, %v1609
      %1735 = vst.msk [vmem:[#allocation2 + $0x1c0] sm:$0xff] %vm1678, %v1611
      %1736 = vst.msk [vmem:[#allocation2 + $0x1c8] sm:$0xff] %vm1678, %v1613
      %1737 = vst.msk [vmem:[#allocation2 + $0x1d0] sm:$0xff] %vm1678, %v1615
      %1738 = vst.msk [vmem:[#allocation2 + $0x1d8] sm:$0xff] %vm1678, %v1617
      %1740 = vrot.lane.b32.xlu0 %v465, 9
      %v1741 = vpop.permute.xlu0 %1740
      %1742 = vrot.lane.b32.xlu0 %v466, 9
      %v1743 = vpop.permute.xlu0 %1742
      %1744 = vrot.lane.b32.xlu0 %v467, 9
      %v1745 = vpop.permute.xlu0 %1744
      %1746 = vrot.lane.b32.xlu0 %v468, 9
      %v1747 = vpop.permute.xlu0 %1746
      %1748 = vrot.lane.b32.xlu0 %v469, 9
      %v1749 = vpop.permute.xlu0 %1748
      %1750 = vrot.lane.b32.xlu0 %v470, 9
      %v1751 = vpop.permute.xlu0 %1750
      %1752 = vrot.lane.b32.xlu0 %v471, 9
      %v1753 = vpop.permute.xlu0 %1752
      %1754 = vrot.lane.b32.xlu0 %v472, 9
      %v1755 = vpop.permute.xlu0 %1754
      %1756 = vrot.lane.b32.xlu0 %v473, 9
      %v1757 = vpop.permute.xlu0 %1756
      %1758 = vrot.lane.b32.xlu0 %v474, 9
      %v1759 = vpop.permute.xlu0 %1758
      %1760 = vrot.lane.b32.xlu0 %v475, 9
      %v1761 = vpop.permute.xlu0 %1760
      %1762 = vrot.lane.b32.xlu0 %v476, 9
      %v1763 = vpop.permute.xlu0 %1762
      %1764 = vrot.lane.b32.xlu0 %v477, 9
      %v1765 = vpop.permute.xlu0 %1764
      %1766 = vrot.lane.b32.xlu0 %v478, 9
      %v1767 = vpop.permute.xlu0 %1766
      %1768 = vrot.lane.b32.xlu0 %v479, 9
      %v1769 = vpop.permute.xlu0 %1768
      %1770 = vrot.lane.b32.xlu0 %v480, 9
      %v1771 = vpop.permute.xlu0 %1770
      %1772 = vrot.lane.b32.xlu0 %v481, 9
      %v1773 = vpop.permute.xlu0 %1772
      %1774 = vrot.lane.b32.xlu0 %v482, 9
      %v1775 = vpop.permute.xlu0 %1774
      %1776 = vrot.lane.b32.xlu0 %v483, 9
      %v1777 = vpop.permute.xlu0 %1776
      %1778 = vrot.lane.b32.xlu0 %v484, 9
      %v1779 = vpop.permute.xlu0 %1778
      %1780 = vrot.lane.b32.xlu0 %v485, 9
      %v1781 = vpop.permute.xlu0 %1780
      %1782 = vrot.lane.b32.xlu0 %v486, 9
      %v1783 = vpop.permute.xlu0 %1782
      %1784 = vrot.lane.b32.xlu0 %v487, 9
      %v1785 = vpop.permute.xlu0 %1784
      %1786 = vrot.lane.b32.xlu0 %v488, 9
      %v1787 = vpop.permute.xlu0 %1786
      %1788 = vrot.lane.b32.xlu0 %v489, 9
      %v1789 = vpop.permute.xlu0 %1788
      %1790 = vrot.lane.b32.xlu0 %v490, 9
      %v1791 = vpop.permute.xlu0 %1790
      %1792 = vrot.lane.b32.xlu0 %v491, 9
      %v1793 = vpop.permute.xlu0 %1792
      %1794 = vrot.lane.b32.xlu0 %v492, 9
      %v1795 = vpop.permute.xlu0 %1794
      %1796 = vrot.lane.b32.xlu0 %v493, 9
      %v1797 = vpop.permute.xlu0 %1796
      %1798 = vrot.lane.b32.xlu0 %v494, 9
      %v1799 = vpop.permute.xlu0 %1798
      %1800 = vrot.lane.b32.xlu0 %v495, 9
      %v1801 = vpop.permute.xlu0 %1800
      %1802 = vrot.lane.b32.xlu0 %v496, 9
      %v1803 = vpop.permute.xlu0 %1802
      %1804 = vrot.lane.b32.xlu0 %v497, 9
      %v1805 = vpop.permute.xlu0 %1804
      %1806 = vrot.lane.b32.xlu0 %v498, 9
      %v1807 = vpop.permute.xlu0 %1806
      %1808 = vrot.lane.b32.xlu0 %v499, 9
      %v1809 = vpop.permute.xlu0 %1808
      %1810 = vrot.lane.b32.xlu0 %v500, 9
      %v1811 = vpop.permute.xlu0 %1810
      %1812 = vrot.lane.b32.xlu0 %v501, 9
      %v1813 = vpop.permute.xlu0 %1812
      %1814 = vrot.lane.b32.xlu0 %v502, 9
      %v1815 = vpop.permute.xlu0 %1814
      %1816 = vrot.lane.b32.xlu0 %v503, 9
      %v1817 = vpop.permute.xlu0 %1816
      %1818 = vrot.lane.b32.xlu0 %v504, 9
      %v1819 = vpop.permute.xlu0 %1818
      %1820 = vrot.lane.b32.xlu0 %v505, 9
      %v1821 = vpop.permute.xlu0 %1820
      %1822 = vrot.lane.b32.xlu0 %v506, 9
      %v1823 = vpop.permute.xlu0 %1822
      %1824 = vrot.lane.b32.xlu0 %v507, 9
      %v1825 = vpop.permute.xlu0 %1824
      %1826 = vrot.lane.b32.xlu0 %v508, 9
      %v1827 = vpop.permute.xlu0 %1826
      %1828 = vrot.lane.b32.xlu0 %v509, 9
      %v1829 = vpop.permute.xlu0 %1828
      %1830 = vrot.lane.b32.xlu0 %v510, 9
      %v1831 = vpop.permute.xlu0 %1830
      %1832 = vrot.lane.b32.xlu0 %v511, 9
      %v1833 = vpop.permute.xlu0 %1832
      %1834 = vrot.lane.b32.xlu0 %v512, 9
      %v1835 = vpop.permute.xlu0 %1834
      %1836 = vrot.lane.b32.xlu0 %v513, 9
      %v1837 = vpop.permute.xlu0 %1836
      %1838 = vrot.lane.b32.xlu0 %v514, 9
      %v1839 = vpop.permute.xlu0 %1838
      %1840 = vrot.lane.b32.xlu0 %v515, 9
      %v1841 = vpop.permute.xlu0 %1840
      %1842 = vrot.lane.b32.xlu0 %v516, 9
      %v1843 = vpop.permute.xlu0 %1842
      %1844 = vrot.lane.b32.xlu0 %v517, 9
      %v1845 = vpop.permute.xlu0 %1844
      %1846 = vrot.lane.b32.xlu0 %v518, 9
      %v1847 = vpop.permute.xlu0 %1846
      %1848 = vrot.lane.b32.xlu0 %v519, 9
      %v1849 = vpop.permute.xlu0 %1848
      %1850 = vrot.lane.b32.xlu0 %v520, 9
      %v1851 = vpop.permute.xlu0 %1850
      %1852 = vrot.lane.b32.xlu0 %v521, 9
      %v1853 = vpop.permute.xlu0 %1852
      %1854 = vrot.lane.b32.xlu0 %v522, 9
      %v1855 = vpop.permute.xlu0 %1854
      %1856 = vrot.lane.b32.xlu0 %v523, 9
      %v1857 = vpop.permute.xlu0 %1856
      %1858 = vrot.lane.b32.xlu0 %v524, 9
      %v1859 = vpop.permute.xlu0 %1858
      %vm1920 = vcmask 97352
      %1921 = vst.msk [vmem:[#allocation2] sm:$0xff] %vm1920, %v1741
      %1922 = vst.msk [vmem:[#allocation2 + $0x8] sm:$0xff] %vm1920, %v1743
      %1923 = vst.msk [vmem:[#allocation2 + $0x10] sm:$0xff] %vm1920, %v1745
      %1924 = vst.msk [vmem:[#allocation2 + $0x18] sm:$0xff] %vm1920, %v1747
      %1925 = vst.msk [vmem:[#allocation2 + $0x20] sm:$0xff] %vm1920, %v1749
      %1926 = vst.msk [vmem:[#allocation2 + $0x28] sm:$0xff] %vm1920, %v1751
      %1927 = vst.msk [vmem:[#allocation2 + $0x30] sm:$0xff] %vm1920, %v1753
      %1928 = vst.msk [vmem:[#allocation2 + $0x38] sm:$0xff] %vm1920, %v1755
      %1929 = vst.msk [vmem:[#allocation2 + $0x40] sm:$0xff] %vm1920, %v1757
      %1930 = vst.msk [vmem:[#allocation2 + $0x48] sm:$0xff] %vm1920, %v1759
      %1931 = vst.msk [vmem:[#allocation2 + $0x50] sm:$0xff] %vm1920, %v1761
      %1932 = vst.msk [vmem:[#allocation2 + $0x58] sm:$0xff] %vm1920, %v1763
      %1933 = vst.msk [vmem:[#allocation2 + $0x60] sm:$0xff] %vm1920, %v1765
      %1934 = vst.msk [vmem:[#allocation2 + $0x68] sm:$0xff] %vm1920, %v1767
      %1935 = vst.msk [vmem:[#allocation2 + $0x70] sm:$0xff] %vm1920, %v1769
      %1936 = vst.msk [vmem:[#allocation2 + $0x78] sm:$0xff] %vm1920, %v1771
      %1937 = vst.msk [vmem:[#allocation2 + $0x80] sm:$0xff] %vm1920, %v1773
      %1938 = vst.msk [vmem:[#allocation2 + $0x88] sm:$0xff] %vm1920, %v1775
      %1939 = vst.msk [vmem:[#allocation2 + $0x90] sm:$0xff] %vm1920, %v1777
      %1940 = vst.msk [vmem:[#allocation2 + $0x98] sm:$0xff] %vm1920, %v1779
      %1941 = vst.msk [vmem:[#allocation2 + $0xa0] sm:$0xff] %vm1920, %v1781
      %1942 = vst.msk [vmem:[#allocation2 + $0xa8] sm:$0xff] %vm1920, %v1783
      %1943 = vst.msk [vmem:[#allocation2 + $0xb0] sm:$0xff] %vm1920, %v1785
      %1944 = vst.msk [vmem:[#allocation2 + $0xb8] sm:$0xff] %vm1920, %v1787
      %1945 = vst.msk [vmem:[#allocation2 + $0xc0] sm:$0xff] %vm1920, %v1789
      %1946 = vst.msk [vmem:[#allocation2 + $0xc8] sm:$0xff] %vm1920, %v1791
      %1947 = vst.msk [vmem:[#allocation2 + $0xd0] sm:$0xff] %vm1920, %v1793
      %1948 = vst.msk [vmem:[#allocation2 + $0xd8] sm:$0xff] %vm1920, %v1795
      %1949 = vst.msk [vmem:[#allocation2 + $0xe0] sm:$0xff] %vm1920, %v1797
      %1950 = vst.msk [vmem:[#allocation2 + $0xe8] sm:$0xff] %vm1920, %v1799
      %1951 = vst.msk [vmem:[#allocation2 + $0xf0] sm:$0xff] %vm1920, %v1801
      %1952 = vst.msk [vmem:[#allocation2 + $0xf8] sm:$0xff] %vm1920, %v1803
      %1953 = vst.msk [vmem:[#allocation2 + $0x100] sm:$0xff] %vm1920, %v1805
      %1954 = vst.msk [vmem:[#allocation2 + $0x108] sm:$0xff] %vm1920, %v1807
      %1955 = vst.msk [vmem:[#allocation2 + $0x110] sm:$0xff] %vm1920, %v1809
      %1956 = vst.msk [vmem:[#allocation2 + $0x118] sm:$0xff] %vm1920, %v1811
      %1957 = vst.msk [vmem:[#allocation2 + $0x120] sm:$0xff] %vm1920, %v1813
      %1958 = vst.msk [vmem:[#allocation2 + $0x128] sm:$0xff] %vm1920, %v1815
      %1959 = vst.msk [vmem:[#allocation2 + $0x130] sm:$0xff] %vm1920, %v1817
      %1960 = vst.msk [vmem:[#allocation2 + $0x138] sm:$0xff] %vm1920, %v1819
      %1961 = vst.msk [vmem:[#allocation2 + $0x140] sm:$0xff] %vm1920, %v1821
      %1962 = vst.msk [vmem:[#allocation2 + $0x148] sm:$0xff] %vm1920, %v1823
      %1963 = vst.msk [vmem:[#allocation2 + $0x150] sm:$0xff] %vm1920, %v1825
      %1964 = vst.msk [vmem:[#allocation2 + $0x158] sm:$0xff] %vm1920, %v1827
      %1965 = vst.msk [vmem:[#allocation2 + $0x160] sm:$0xff] %vm1920, %v1829
      %1966 = vst.msk [vmem:[#allocation2 + $0x168] sm:$0xff] %vm1920, %v1831
      %1967 = vst.msk [vmem:[#allocation2 + $0x170] sm:$0xff] %vm1920, %v1833
      %1968 = vst.msk [vmem:[#allocation2 + $0x178] sm:$0xff] %vm1920, %v1835
      %1969 = vst.msk [vmem:[#allocation2 + $0x180] sm:$0xff] %vm1920, %v1837
      %1970 = vst.msk [vmem:[#allocation2 + $0x188] sm:$0xff] %vm1920, %v1839
      %1971 = vst.msk [vmem:[#allocation2 + $0x190] sm:$0xff] %vm1920, %v1841
      %1972 = vst.msk [vmem:[#allocation2 + $0x198] sm:$0xff] %vm1920, %v1843
      %1973 = vst.msk [vmem:[#allocation2 + $0x1a0] sm:$0xff] %vm1920, %v1845
      %1974 = vst.msk [vmem:[#allocation2 + $0x1a8] sm:$0xff] %vm1920, %v1847
      %1975 = vst.msk [vmem:[#allocation2 + $0x1b0] sm:$0xff] %vm1920, %v1849
      %1976 = vst.msk [vmem:[#allocation2 + $0x1b8] sm:$0xff] %vm1920, %v1851
      %1977 = vst.msk [vmem:[#allocation2 + $0x1c0] sm:$0xff] %vm1920, %v1853
      %1978 = vst.msk [vmem:[#allocation2 + $0x1c8] sm:$0xff] %vm1920, %v1855
      %1979 = vst.msk [vmem:[#allocation2 + $0x1d0] sm:$0xff] %vm1920, %v1857
      %1980 = vst.msk [vmem:[#allocation2 + $0x1d8] sm:$0xff] %vm1920, %v1859
      %v1981 = vshrl.u32 %v523, 16
      %v1983 = vor.u32 %v1981, %v1072
      %v1985 = vshll.u32 %v524, 16
      %v1987 = vrot.slane %v1985, 1
      %v1988 = vsel %vm589, %v1983, %v1987
      %v1989 = vshrl.u32 %v524, 16
      %v1991 = vor.u32 %v1989, %v1987
      %v1993 = vshll.u32 %v525, 16
      %v1995 = vrot.slane %v1993, 1
      %v1996 = vsel %vm589, %v1991, %v1995
      %1997 = vrot.lane.b32.xlu0 %v617, 12
      %v1998 = vpop.permute.xlu0 %1997
      %1999 = vrot.lane.b32.xlu0 %v625, 12
      %v2000 = vpop.permute.xlu0 %1999
      %2001 = vrot.lane.b32.xlu0 %v633, 12
      %v2002 = vpop.permute.xlu0 %2001
      %2003 = vrot.lane.b32.xlu0 %v641, 12
      %v2004 = vpop.permute.xlu0 %2003
      %2005 = vrot.lane.b32.xlu0 %v649, 12
      %v2006 = vpop.permute.xlu0 %2005
      %2007 = vrot.lane.b32.xlu0 %v657, 12
      %v2008 = vpop.permute.xlu0 %2007
      %2009 = vrot.lane.b32.xlu0 %v665, 12
      %v2010 = vpop.permute.xlu0 %2009
      %2011 = vrot.lane.b32.xlu0 %v673, 12
      %v2012 = vpop.permute.xlu0 %2011
      %2013 = vrot.lane.b32.xlu0 %v681, 12
      %v2014 = vpop.permute.xlu0 %2013
      %2015 = vrot.lane.b32.xlu0 %v689, 12
      %v2016 = vpop.permute.xlu0 %2015
      %2017 = vrot.lane.b32.xlu0 %v697, 12
      %v2018 = vpop.permute.xlu0 %2017
      %2019 = vrot.lane.b32.xlu0 %v705, 12
      %v2020 = vpop.permute.xlu0 %2019
      %2021 = vrot.lane.b32.xlu0 %v713, 12
      %v2022 = vpop.permute.xlu0 %2021
      %2023 = vrot.lane.b32.xlu0 %v721, 12
      %v2024 = vpop.permute.xlu0 %2023
      %2025 = vrot.lane.b32.xlu0 %v729, 12
      %v2026 = vpop.permute.xlu0 %2025
      %2027 = vrot.lane.b32.xlu0 %v737, 12
      %v2028 = vpop.permute.xlu0 %2027
      %2029 = vrot.lane.b32.xlu0 %v745, 12
      %v2030 = vpop.permute.xlu0 %2029
      %2031 = vrot.lane.b32.xlu0 %v753, 12
      %v2032 = vpop.permute.xlu0 %2031
      %2033 = vrot.lane.b32.xlu0 %v761, 12
      %v2034 = vpop.permute.xlu0 %2033
      %2035 = vrot.lane.b32.xlu0 %v769, 12
      %v2036 = vpop.permute.xlu0 %2035
      %2037 = vrot.lane.b32.xlu0 %v777, 12
      %v2038 = vpop.permute.xlu0 %2037
      %2039 = vrot.lane.b32.xlu0 %v785, 12
      %v2040 = vpop.permute.xlu0 %2039
      %2041 = vrot.lane.b32.xlu0 %v793, 12
      %v2042 = vpop.permute.xlu0 %2041
      %2043 = vrot.lane.b32.xlu0 %v801, 12
      %v2044 = vpop.permute.xlu0 %2043
      %2045 = vrot.lane.b32.xlu0 %v809, 12
      %v2046 = vpop.permute.xlu0 %2045
      %2047 = vrot.lane.b32.xlu0 %v817, 12
      %v2048 = vpop.permute.xlu0 %2047
      %2049 = vrot.lane.b32.xlu0 %v825, 12
      %v2050 = vpop.permute.xlu0 %2049
      %2051 = vrot.lane.b32.xlu0 %v833, 12
      %v2052 = vpop.permute.xlu0 %2051
      %2053 = vrot.lane.b32.xlu0 %v841, 12
      %v2054 = vpop.permute.xlu0 %2053
      %2055 = vrot.lane.b32.xlu0 %v849, 12
      %v2056 = vpop.permute.xlu0 %2055
      %2057 = vrot.lane.b32.xlu0 %v857, 12
      %v2058 = vpop.permute.xlu0 %2057
      %2059 = vrot.lane.b32.xlu0 %v865, 12
      %v2060 = vpop.permute.xlu0 %2059
      %2061 = vrot.lane.b32.xlu0 %v873, 12
      %v2062 = vpop.permute.xlu0 %2061
      %2063 = vrot.lane.b32.xlu0 %v881, 12
      %v2064 = vpop.permute.xlu0 %2063
      %2065 = vrot.lane.b32.xlu0 %v889, 12
      %v2066 = vpop.permute.xlu0 %2065
      %2067 = vrot.lane.b32.xlu0 %v897, 12
      %v2068 = vpop.permute.xlu0 %2067
      %2069 = vrot.lane.b32.xlu0 %v905, 12
      %v2070 = vpop.permute.xlu0 %2069
      %2071 = vrot.lane.b32.xlu0 %v913, 12
      %v2072 = vpop.permute.xlu0 %2071
      %2073 = vrot.lane.b32.xlu0 %v921, 12
      %v2074 = vpop.permute.xlu0 %2073
      %2075 = vrot.lane.b32.xlu0 %v929, 12
      %v2076 = vpop.permute.xlu0 %2075
      %2077 = vrot.lane.b32.xlu0 %v937, 12
      %v2078 = vpop.permute.xlu0 %2077
      %2079 = vrot.lane.b32.xlu0 %v945, 12
      %v2080 = vpop.permute.xlu0 %2079
      %2081 = vrot.lane.b32.xlu0 %v953, 12
      %v2082 = vpop.permute.xlu0 %2081
      %2083 = vrot.lane.b32.xlu0 %v961, 12
      %v2084 = vpop.permute.xlu0 %2083
      %2085 = vrot.lane.b32.xlu0 %v969, 12
      %v2086 = vpop.permute.xlu0 %2085
      %2087 = vrot.lane.b32.xlu0 %v977, 12
      %v2088 = vpop.permute.xlu0 %2087
      %2089 = vrot.lane.b32.xlu0 %v985, 12
      %v2090 = vpop.permute.xlu0 %2089
      %2091 = vrot.lane.b32.xlu0 %v993, 12
      %v2092 = vpop.permute.xlu0 %2091
      %2093 = vrot.lane.b32.xlu0 %v1001, 12
      %v2094 = vpop.permute.xlu0 %2093
      %2095 = vrot.lane.b32.xlu0 %v1009, 12
      %v2096 = vpop.permute.xlu0 %2095
      %2097 = vrot.lane.b32.xlu0 %v1017, 12
      %v2098 = vpop.permute.xlu0 %2097
      %2099 = vrot.lane.b32.xlu0 %v1025, 12
      %v2100 = vpop.permute.xlu0 %2099
      %2101 = vrot.lane.b32.xlu0 %v1033, 12
      %v2102 = vpop.permute.xlu0 %2101
      %2103 = vrot.lane.b32.xlu0 %v1041, 12
      %v2104 = vpop.permute.xlu0 %2103
      %2105 = vrot.lane.b32.xlu0 %v1049, 12
      %v2106 = vpop.permute.xlu0 %2105
      %2107 = vrot.lane.b32.xlu0 %v1057, 12
      %v2108 = vpop.permute.xlu0 %2107
      %2109 = vrot.lane.b32.xlu0 %v1065, 12
      %v2110 = vpop.permute.xlu0 %2109
      %2111 = vrot.lane.b32.xlu0 %v1073, 12
      %v2112 = vpop.permute.xlu0 %2111
      %2113 = vrot.lane.b32.xlu0 %v1988, 12
      %v2114 = vpop.permute.xlu0 %2113
      %2115 = vrot.lane.b32.xlu0 %v1996, 12
      %v2116 = vpop.permute.xlu0 %2115
      %vm2177 = vcmask 121952
      %2178 = vst.msk [vmem:[#allocation2] sm:$0xff] %vm2177, %v1998
      %2179 = vst.msk [vmem:[#allocation2 + $0x8] sm:$0xff] %vm2177, %v2000
      %2180 = vst.msk [vmem:[#allocation2 + $0x10] sm:$0xff] %vm2177, %v2002
      %2181 = vst.msk [vmem:[#allocation2 + $0x18] sm:$0xff] %vm2177, %v2004
      %2182 = vst.msk [vmem:[#allocation2 + $0x20] sm:$0xff] %vm2177, %v2006
      %2183 = vst.msk [vmem:[#allocation2 + $0x28] sm:$0xff] %vm2177, %v2008
      %2184 = vst.msk [vmem:[#allocation2 + $0x30] sm:$0xff] %vm2177, %v2010
      %2185 = vst.msk [vmem:[#allocation2 + $0x38] sm:$0xff] %vm2177, %v2012
      %2186 = vst.msk [vmem:[#allocation2 + $0x40] sm:$0xff] %vm2177, %v2014
      %2187 = vst.msk [vmem:[#allocation2 + $0x48] sm:$0xff] %vm2177, %v2016
      %2188 = vst.msk [vmem:[#allocation2 + $0x50] sm:$0xff] %vm2177, %v2018
      %2189 = vst.msk [vmem:[#allocation2 + $0x58] sm:$0xff] %vm2177, %v2020
      %2190 = vst.msk [vmem:[#allocation2 + $0x60] sm:$0xff] %vm2177, %v2022
      %2191 = vst.msk [vmem:[#allocation2 + $0x68] sm:$0xff] %vm2177, %v2024
      %2192 = vst.msk [vmem:[#allocation2 + $0x70] sm:$0xff] %vm2177, %v2026
      %2193 = vst.msk [vmem:[#allocation2 + $0x78] sm:$0xff] %vm2177, %v2028
      %2194 = vst.msk [vmem:[#allocation2 + $0x80] sm:$0xff] %vm2177, %v2030
      %2195 = vst.msk [vmem:[#allocation2 + $0x88] sm:$0xff] %vm2177, %v2032
      %2196 = vst.msk [vmem:[#allocation2 + $0x90] sm:$0xff] %vm2177, %v2034
      %2197 = vst.msk [vmem:[#allocation2 + $0x98] sm:$0xff] %vm2177, %v2036
      %2198 = vst.msk [vmem:[#allocation2 + $0xa0] sm:$0xff] %vm2177, %v2038
      %2199 = vst.msk [vmem:[#allocation2 + $0xa8] sm:$0xff] %vm2177, %v2040
      %2200 = vst.msk [vmem:[#allocation2 + $0xb0] sm:$0xff] %vm2177, %v2042
      %2201 = vst.msk [vmem:[#allocation2 + $0xb8] sm:$0xff] %vm2177, %v2044
      %2202 = vst.msk [vmem:[#allocation2 + $0xc0] sm:$0xff] %vm2177, %v2046
      %2203 = vst.msk [vmem:[#allocation2 + $0xc8] sm:$0xff] %vm2177, %v2048
      %2204 = vst.msk [vmem:[#allocation2 + $0xd0] sm:$0xff] %vm2177, %v2050
      %2205 = vst.msk [vmem:[#allocation2 + $0xd8] sm:$0xff] %vm2177, %v2052
      %2206 = vst.msk [vmem:[#allocation2 + $0xe0] sm:$0xff] %vm2177, %v2054
      %2207 = vst.msk [vmem:[#allocation2 + $0xe8] sm:$0xff] %vm2177, %v2056
      %2208 = vst.msk [vmem:[#allocation2 + $0xf0] sm:$0xff] %vm2177, %v2058
      %2209 = vst.msk [vmem:[#allocation2 + $0xf8] sm:$0xff] %vm2177, %v2060
      %2210 = vst.msk [vmem:[#allocation2 + $0x100] sm:$0xff] %vm2177, %v2062
      %2211 = vst.msk [vmem:[#allocation2 + $0x108] sm:$0xff] %vm2177, %v2064
      %2212 = vst.msk [vmem:[#allocation2 + $0x110] sm:$0xff] %vm2177, %v2066
      %2213 = vst.msk [vmem:[#allocation2 + $0x118] sm:$0xff] %vm2177, %v2068
      %2214 = vst.msk [vmem:[#allocation2 + $0x120] sm:$0xff] %vm2177, %v2070
      %2215 = vst.msk [vmem:[#allocation2 + $0x128] sm:$0xff] %vm2177, %v2072
      %2216 = vst.msk [vmem:[#allocation2 + $0x130] sm:$0xff] %vm2177, %v2074
      %2217 = vst.msk [vmem:[#allocation2 + $0x138] sm:$0xff] %vm2177, %v2076
      %2218 = vst.msk [vmem:[#allocation2 + $0x140] sm:$0xff] %vm2177, %v2078
      %2219 = vst.msk [vmem:[#allocation2 + $0x148] sm:$0xff] %vm2177, %v2080
      %2220 = vst.msk [vmem:[#allocation2 + $0x150] sm:$0xff] %vm2177, %v2082
      %2221 = vst.msk [vmem:[#allocation2 + $0x158] sm:$0xff] %vm2177, %v2084
      %2222 = vst.msk [vmem:[#allocation2 + $0x160] sm:$0xff] %vm2177, %v2086
      %2223 = vst.msk [vmem:[#allocation2 + $0x168] sm:$0xff] %vm2177, %v2088
      %2224 = vst.msk [vmem:[#allocation2 + $0x170] sm:$0xff] %vm2177, %v2090
      %2225 = vst.msk [vmem:[#allocation2 + $0x178] sm:$0xff] %vm2177, %v2092
      %2226 = vst.msk [vmem:[#allocation2 + $0x180] sm:$0xff] %vm2177, %v2094
      %2227 = vst.msk [vmem:[#allocation2 + $0x188] sm:$0xff] %vm2177, %v2096
      %2228 = vst.msk [vmem:[#allocation2 + $0x190] sm:$0xff] %vm2177, %v2098
      %2229 = vst.msk [vmem:[#allocation2 + $0x198] sm:$0xff] %vm2177, %v2100
      %2230 = vst.msk [vmem:[#allocation2 + $0x1a0] sm:$0xff] %vm2177, %v2102
      %2231 = vst.msk [vmem:[#allocation2 + $0x1a8] sm:$0xff] %vm2177, %v2104
      %2232 = vst.msk [vmem:[#allocation2 + $0x1b0] sm:$0xff] %vm2177, %v2106
      %2233 = vst.msk [vmem:[#allocation2 + $0x1b8] sm:$0xff] %vm2177, %v2108
      %2234 = vst.msk [vmem:[#allocation2 + $0x1c0] sm:$0xff] %vm2177, %v2110
      %2235 = vst.msk [vmem:[#allocation2 + $0x1c8] sm:$0xff] %vm2177, %v2112
      %2236 = vst.msk [vmem:[#allocation2 + $0x1d0] sm:$0xff] %vm2177, %v2114
      %2237 = vst.msk [vmem:[#allocation2 + $0x1d8] sm:$0xff] %vm2177, %v2116
      %v2239 = vrot.slane %v524, 1
      %v2240 = vsel %vm1376, %v1496, %v2239
      %v2241 = vrot.slane %v525, 1
      %v2242 = vsel %vm1376, %v2239, %v2241
      %2243 = vrot.lane.b32.xlu0 %v1383, 15
      %v2244 = vpop.permute.xlu0 %2243
      %2245 = vrot.lane.b32.xlu0 %v1385, 15
      %v2246 = vpop.permute.xlu0 %2245
      %2247 = vrot.lane.b32.xlu0 %v1387, 15
      %v2248 = vpop.permute.xlu0 %2247
      %2249 = vrot.lane.b32.xlu0 %v1389, 15
      %v2250 = vpop.permute.xlu0 %2249
      %2251 = vrot.lane.b32.xlu0 %v1391, 15
      %v2252 = vpop.permute.xlu0 %2251
      %2253 = vrot.lane.b32.xlu0 %v1393, 15
      %v2254 = vpop.permute.xlu0 %2253
      %2255 = vrot.lane.b32.xlu0 %v1395, 15
      %v2256 = vpop.permute.xlu0 %2255
      %2257 = vrot.lane.b32.xlu0 %v1397, 15
      %v2258 = vpop.permute.xlu0 %2257
      %2259 = vrot.lane.b32.xlu0 %v1399, 15
      %v2260 = vpop.permute.xlu0 %2259
      %2261 = vrot.lane.b32.xlu0 %v1401, 15
      %v2262 = vpop.permute.xlu0 %2261
      %2263 = vrot.lane.b32.xlu0 %v1403, 15
      %v2264 = vpop.permute.xlu0 %2263
      %2265 = vrot.lane.b32.xlu0 %v1405, 15
      %v2266 = vpop.permute.xlu0 %2265
      %2267 = vrot.lane.b32.xlu0 %v1407, 15
      %v2268 = vpop.permute.xlu0 %2267
      %2269 = vrot.lane.b32.xlu0 %v1409, 15
      %v2270 = vpop.permute.xlu0 %2269
      %2271 = vrot.lane.b32.xlu0 %v1411, 15
      %v2272 = vpop.permute.xlu0 %2271
      %2273 = vrot.lane.b32.xlu0 %v1413, 15
      %v2274 = vpop.permute.xlu0 %2273
      %2275 = vrot.lane.b32.xlu0 %v1415, 15
      %v2276 = vpop.permute.xlu0 %2275
      %2277 = vrot.lane.b32.xlu0 %v1417, 15
      %v2278 = vpop.permute.xlu0 %2277
      %2279 = vrot.lane.b32.xlu0 %v1419, 15
      %v2280 = vpop.permute.xlu0 %2279
      %2281 = vrot.lane.b32.xlu0 %v1421, 15
      %v2282 = vpop.permute.xlu0 %2281
      %2283 = vrot.lane.b32.xlu0 %v1423, 15
      %v2284 = vpop.permute.xlu0 %2283
      %2285 = vrot.lane.b32.xlu0 %v1425, 15
      %v2286 = vpop.permute.xlu0 %2285
      %2287 = vrot.lane.b32.xlu0 %v1427, 15
      %v2288 = vpop.permute.xlu0 %2287
      %2289 = vrot.lane.b32.xlu0 %v1429, 15
      %v2290 = vpop.permute.xlu0 %2289
      %2291 = vrot.lane.b32.xlu0 %v1431, 15
      %v2292 = vpop.permute.xlu0 %2291
      %2293 = vrot.lane.b32.xlu0 %v1433, 15
      %v2294 = vpop.permute.xlu0 %2293
      %2295 = vrot.lane.b32.xlu0 %v1435, 15
      %v2296 = vpop.permute.xlu0 %2295
      %2297 = vrot.lane.b32.xlu0 %v1437, 15
      %v2298 = vpop.permute.xlu0 %2297
      %2299 = vrot.lane.b32.xlu0 %v1439, 15
      %v2300 = vpop.permute.xlu0 %2299
      %2301 = vrot.lane.b32.xlu0 %v1441, 15
      %v2302 = vpop.permute.xlu0 %2301
      %2303 = vrot.lane.b32.xlu0 %v1443, 15
      %v2304 = vpop.permute.xlu0 %2303
      %2305 = vrot.lane.b32.xlu0 %v1445, 15
      %v2306 = vpop.permute.xlu0 %2305
      %2307 = vrot.lane.b32.xlu0 %v1447, 15
      %v2308 = vpop.permute.xlu0 %2307
      %2309 = vrot.lane.b32.xlu0 %v1449, 15
      %v2310 = vpop.permute.xlu0 %2309
      %2311 = vrot.lane.b32.xlu0 %v1451, 15
      %v2312 = vpop.permute.xlu0 %2311
      %2313 = vrot.lane.b32.xlu0 %v1453, 15
      %v2314 = vpop.permute.xlu0 %2313
      %2315 = vrot.lane.b32.xlu0 %v1455, 15
      %v2316 = vpop.permute.xlu0 %2315
      %2317 = vrot.lane.b32.xlu0 %v1457, 15
      %v2318 = vpop.permute.xlu0 %2317
      %2319 = vrot.lane.b32.xlu0 %v1459, 15
      %v2320 = vpop.permute.xlu0 %2319
      %2321 = vrot.lane.b32.xlu0 %v1461, 15
      %v2322 = vpop.permute.xlu0 %2321
      %2323 = vrot.lane.b32.xlu0 %v1463, 15
      %v2324 = vpop.permute.xlu0 %2323
      %2325 = vrot.lane.b32.xlu0 %v1465, 15
      %v2326 = vpop.permute.xlu0 %2325
      %2327 = vrot.lane.b32.xlu0 %v1467, 15
      %v2328 = vpop.permute.xlu0 %2327
      %2329 = vrot.lane.b32.xlu0 %v1469, 15
      %v2330 = vpop.permute.xlu0 %2329
      %2331 = vrot.lane.b32.xlu0 %v1471, 15
      %v2332 = vpop.permute.xlu0 %2331
      %2333 = vrot.lane.b32.xlu0 %v1473, 15
      %v2334 = vpop.permute.xlu0 %2333
      %2335 = vrot.lane.b32.xlu0 %v1475, 15
      %v2336 = vpop.permute.xlu0 %2335
      %2337 = vrot.lane.b32.xlu0 %v1477, 15
      %v2338 = vpop.permute.xlu0 %2337
      %2339 = vrot.lane.b32.xlu0 %v1479, 15
      %v2340 = vpop.permute.xlu0 %2339
      %2341 = vrot.lane.b32.xlu0 %v1481, 15
      %v2342 = vpop.permute.xlu0 %2341
      %2343 = vrot.lane.b32.xlu0 %v1483, 15
      %v2344 = vpop.permute.xlu0 %2343
      %2345 = vrot.lane.b32.xlu0 %v1485, 15
      %v2346 = vpop.permute.xlu0 %2345
      %2347 = vrot.lane.b32.xlu0 %v1487, 15
      %v2348 = vpop.permute.xlu0 %2347
      %2349 = vrot.lane.b32.xlu0 %v1489, 15
      %v2350 = vpop.permute.xlu0 %2349
      %2351 = vrot.lane.b32.xlu0 %v1491, 15
      %v2352 = vpop.permute.xlu0 %2351
      %2353 = vrot.lane.b32.xlu0 %v1493, 15
      %v2354 = vpop.permute.xlu0 %2353
      %2355 = vrot.lane.b32.xlu0 %v1495, 15
      %v2356 = vpop.permute.xlu0 %2355
      %2357 = vrot.lane.b32.xlu0 %v1497, 15
      %v2358 = vpop.permute.xlu0 %2357
      %2359 = vrot.lane.b32.xlu0 %v2240, 15
      %v2360 = vpop.permute.xlu0 %2359
      %2361 = vrot.lane.b32.xlu0 %v2242, 15
      %v2362 = vpop.permute.xlu0 %2361
      %vm2423 = vcmask 146552
      %2424 = vst.msk [vmem:[#allocation2] sm:$0xff] %vm2423, %v2244
      %2425 = vst.msk [vmem:[#allocation2 + $0x8] sm:$0xff] %vm2423, %v2246
      %2426 = vst.msk [vmem:[#allocation2 + $0x10] sm:$0xff] %vm2423, %v2248
      %2427 = vst.msk [vmem:[#allocation2 + $0x18] sm:$0xff] %vm2423, %v2250
      %2428 = vst.msk [vmem:[#allocation2 + $0x20] sm:$0xff] %vm2423, %v2252
      %2429 = vst.msk [vmem:[#allocation2 + $0x28] sm:$0xff] %vm2423, %v2254
      %2430 = vst.msk [vmem:[#allocation2 + $0x30] sm:$0xff] %vm2423, %v2256
      %2431 = vst.msk [vmem:[#allocation2 + $0x38] sm:$0xff] %vm2423, %v2258
      %2432 = vst.msk [vmem:[#allocation2 + $0x40] sm:$0xff] %vm2423, %v2260
      %2433 = vst.msk [vmem:[#allocation2 + $0x48] sm:$0xff] %vm2423, %v2262
      %2434 = vst.msk [vmem:[#allocation2 + $0x50] sm:$0xff] %vm2423, %v2264
      %2435 = vst.msk [vmem:[#allocation2 + $0x58] sm:$0xff] %vm2423, %v2266
      %2436 = vst.msk [vmem:[#allocation2 + $0x60] sm:$0xff] %vm2423, %v2268
      %2437 = vst.msk [vmem:[#allocation2 + $0x68] sm:$0xff] %vm2423, %v2270
      %2438 = vst.msk [vmem:[#allocation2 + $0x70] sm:$0xff] %vm2423, %v2272
      %2439 = vst.msk [vmem:[#allocation2 + $0x78] sm:$0xff] %vm2423, %v2274
      %2440 = vst.msk [vmem:[#allocation2 + $0x80] sm:$0xff] %vm2423, %v2276
      %2441 = vst.msk [vmem:[#allocation2 + $0x88] sm:$0xff] %vm2423, %v2278
      %2442 = vst.msk [vmem:[#allocation2 + $0x90] sm:$0xff] %vm2423, %v2280
      %2443 = vst.msk [vmem:[#allocation2 + $0x98] sm:$0xff] %vm2423, %v2282
      %2444 = vst.msk [vmem:[#allocation2 + $0xa0] sm:$0xff] %vm2423, %v2284
      %2445 = vst.msk [vmem:[#allocation2 + $0xa8] sm:$0xff] %vm2423, %v2286
      %2446 = vst.msk [vmem:[#allocation2 + $0xb0] sm:$0xff] %vm2423, %v2288
      %2447 = vst.msk [vmem:[#allocation2 + $0xb8] sm:$0xff] %vm2423, %v2290
      %2448 = vst.msk [vmem:[#allocation2 + $0xc0] sm:$0xff] %vm2423, %v2292
      %2449 = vst.msk [vmem:[#allocation2 + $0xc8] sm:$0xff] %vm2423, %v2294
      %2450 = vst.msk [vmem:[#allocation2 + $0xd0] sm:$0xff] %vm2423, %v2296
      %2451 = vst.msk [vmem:[#allocation2 + $0xd8] sm:$0xff] %vm2423, %v2298
      %2452 = vst.msk [vmem:[#allocation2 + $0xe0] sm:$0xff] %vm2423, %v2300
      %2453 = vst.msk [vmem:[#allocation2 + $0xe8] sm:$0xff] %vm2423, %v2302
      %2454 = vst.msk [vmem:[#allocation2 + $0xf0] sm:$0xff] %vm2423, %v2304
      %2455 = vst.msk [vmem:[#allocation2 + $0xf8] sm:$0xff] %vm2423, %v2306
      %2456 = vst.msk [vmem:[#allocation2 + $0x100] sm:$0xff] %vm2423, %v2308
      %2457 = vst.msk [vmem:[#allocation2 + $0x108] sm:$0xff] %vm2423, %v2310
      %2458 = vst.msk [vmem:[#allocation2 + $0x110] sm:$0xff] %vm2423, %v2312
      %2459 = vst.msk [vmem:[#allocation2 + $0x118] sm:$0xff] %vm2423, %v2314
      %2460 = vst.msk [vmem:[#allocation2 + $0x120] sm:$0xff] %vm2423, %v2316
      %2461 = vst.msk [vmem:[#allocation2 + $0x128] sm:$0xff] %vm2423, %v2318
      %2462 = vst.msk [vmem:[#allocation2 + $0x130] sm:$0xff] %vm2423, %v2320
      %2463 = vst.msk [vmem:[#allocation2 + $0x138] sm:$0xff] %vm2423, %v2322
      %2464 = vst.msk [vmem:[#allocation2 + $0x140] sm:$0xff] %vm2423, %v2324
      %2465 = vst.msk [vmem:[#allocation2 + $0x148] sm:$0xff] %vm2423, %v2326
      %2466 = vst.msk [vmem:[#allocation2 + $0x150] sm:$0xff] %vm2423, %v2328
      %2467 = vst.msk [vmem:[#allocation2 + $0x158] sm:$0xff] %vm2423, %v2330
      %2468 = vst.msk [vmem:[#allocation2 + $0x160] sm:$0xff] %vm2423, %v2332
      %2469 = vst.msk [vmem:[#allocation2 + $0x168] sm:$0xff] %vm2423, %v2334
      %2470 = vst.msk [vmem:[#allocation2 + $0x170] sm:$0xff] %vm2423, %v2336
      %2471 = vst.msk [vmem:[#allocation2 + $0x178] sm:$0xff] %vm2423, %v2338
      %2472 = vst.msk [vmem:[#allocation2 + $0x180] sm:$0xff] %vm2423, %v2340
      %2473 = vst.msk [vmem:[#allocation2 + $0x188] sm:$0xff] %vm2423, %v2342
      %2474 = vst.msk [vmem:[#allocation2 + $0x190] sm:$0xff] %vm2423, %v2344
      %2475 = vst.msk [vmem:[#allocation2 + $0x198] sm:$0xff] %vm2423, %v2346
      %2476 = vst.msk [vmem:[#allocation2 + $0x1a0] sm:$0xff] %vm2423, %v2348
      %2477 = vst.msk [vmem:[#allocation2 + $0x1a8] sm:$0xff] %vm2423, %v2350
      %2478 = vst.msk [vmem:[#allocation2 + $0x1b0] sm:$0xff] %vm2423, %v2352
      %2479 = vst.msk [vmem:[#allocation2 + $0x1b8] sm:$0xff] %vm2423, %v2354
      %2480 = vst.msk [vmem:[#allocation2 + $0x1c0] sm:$0xff] %vm2423, %v2356
      %2481 = vst.msk [vmem:[#allocation2 + $0x1c8] sm:$0xff] %vm2423, %v2358
      %2482 = vst.msk [vmem:[#allocation2 + $0x1d0] sm:$0xff] %vm2423, %v2360
      %2483 = vst.msk [vmem:[#allocation2 + $0x1d8] sm:$0xff] %vm2423, %v2362
      %2485 = vrot.lane.b32.xlu0 %v467, 18
      %v2486 = vpop.permute.xlu0 %2485
      %2487 = vrot.lane.b32.xlu0 %v468, 18
      %v2488 = vpop.permute.xlu0 %2487
      %2489 = vrot.lane.b32.xlu0 %v469, 18
      %v2490 = vpop.permute.xlu0 %2489
      %2491 = vrot.lane.b32.xlu0 %v470, 18
      %v2492 = vpop.permute.xlu0 %2491
      %2493 = vrot.lane.b32.xlu0 %v471, 18
      %v2494 = vpop.permute.xlu0 %2493
      %2495 = vrot.lane.b32.xlu0 %v472, 18
      %v2496 = vpop.permute.xlu0 %2495
      %2497 = vrot.lane.b32.xlu0 %v473, 18
      %v2498 = vpop.permute.xlu0 %2497
      %2499 = vrot.lane.b32.xlu0 %v474, 18
      %v2500 = vpop.permute.xlu0 %2499
      %2501 = vrot.lane.b32.xlu0 %v475, 18
      %v2502 = vpop.permute.xlu0 %2501
      %2503 = vrot.lane.b32.xlu0 %v476, 18
      %v2504 = vpop.permute.xlu0 %2503
      %2505 = vrot.lane.b32.xlu0 %v477, 18
      %v2506 = vpop.permute.xlu0 %2505
      %2507 = vrot.lane.b32.xlu0 %v478, 18
      %v2508 = vpop.permute.xlu0 %2507
      %2509 = vrot.lane.b32.xlu0 %v479, 18
      %v2510 = vpop.permute.xlu0 %2509
      %2511 = vrot.lane.b32.xlu0 %v480, 18
      %v2512 = vpop.permute.xlu0 %2511
      %2513 = vrot.lane.b32.xlu0 %v481, 18
      %v2514 = vpop.permute.xlu0 %2513
      %2515 = vrot.lane.b32.xlu0 %v482, 18
      %v2516 = vpop.permute.xlu0 %2515
      %2517 = vrot.lane.b32.xlu0 %v483, 18
      %v2518 = vpop.permute.xlu0 %2517
      %2519 = vrot.lane.b32.xlu0 %v484, 18
      %v2520 = vpop.permute.xlu0 %2519
      %2521 = vrot.lane.b32.xlu0 %v485, 18
      %v2522 = vpop.permute.xlu0 %2521
      %2523 = vrot.lane.b32.xlu0 %v486, 18
      %v2524 = vpop.permute.xlu0 %2523
      %2525 = vrot.lane.b32.xlu0 %v487, 18
      %v2526 = vpop.permute.xlu0 %2525
      %2527 = vrot.lane.b32.xlu0 %v488, 18
      %v2528 = vpop.permute.xlu0 %2527
      %2529 = vrot.lane.b32.xlu0 %v489, 18
      %v2530 = vpop.permute.xlu0 %2529
      %2531 = vrot.lane.b32.xlu0 %v490, 18
      %v2532 = vpop.permute.xlu0 %2531
      %2533 = vrot.lane.b32.xlu0 %v491, 18
      %v2534 = vpop.permute.xlu0 %2533
      %2535 = vrot.lane.b32.xlu0 %v492, 18
      %v2536 = vpop.permute.xlu0 %2535
      %2537 = vrot.lane.b32.xlu0 %v493, 18
      %v2538 = vpop.permute.xlu0 %2537
      %2539 = vrot.lane.b32.xlu0 %v494, 18
      %v2540 = vpop.permute.xlu0 %2539
      %2541 = vrot.lane.b32.xlu0 %v495, 18
      %v2542 = vpop.permute.xlu0 %2541
      %2543 = vrot.lane.b32.xlu0 %v496, 18
      %v2544 = vpop.permute.xlu0 %2543
      %2545 = vrot.lane.b32.xlu0 %v497, 18
      %v2546 = vpop.permute.xlu0 %2545
      %2547 = vrot.lane.b32.xlu0 %v498, 18
      %v2548 = vpop.permute.xlu0 %2547
      %2549 = vrot.lane.b32.xlu0 %v499, 18
      %v2550 = vpop.permute.xlu0 %2549
      %2551 = vrot.lane.b32.xlu0 %v500, 18
      %v2552 = vpop.permute.xlu0 %2551
      %2553 = vrot.lane.b32.xlu0 %v501, 18
      %v2554 = vpop.permute.xlu0 %2553
      %2555 = vrot.lane.b32.xlu0 %v502, 18
      %v2556 = vpop.permute.xlu0 %2555
      %2557 = vrot.lane.b32.xlu0 %v503, 18
      %v2558 = vpop.permute.xlu0 %2557
      %2559 = vrot.lane.b32.xlu0 %v504, 18
      %v2560 = vpop.permute.xlu0 %2559
      %2561 = vrot.lane.b32.xlu0 %v505, 18
      %v2562 = vpop.permute.xlu0 %2561
      %2563 = vrot.lane.b32.xlu0 %v506, 18
      %v2564 = vpop.permute.xlu0 %2563
      %2565 = vrot.lane.b32.xlu0 %v507, 18
      %v2566 = vpop.permute.xlu0 %2565
      %2567 = vrot.lane.b32.xlu0 %v508, 18
      %v2568 = vpop.permute.xlu0 %2567
      %2569 = vrot.lane.b32.xlu0 %v509, 18
      %v2570 = vpop.permute.xlu0 %2569
      %2571 = vrot.lane.b32.xlu0 %v510, 18
      %v2572 = vpop.permute.xlu0 %2571
      %2573 = vrot.lane.b32.xlu0 %v511, 18
      %v2574 = vpop.permute.xlu0 %2573
      %2575 = vrot.lane.b32.xlu0 %v512, 18
      %v2576 = vpop.permute.xlu0 %2575
      %2577 = vrot.lane.b32.xlu0 %v513, 18
      %v2578 = vpop.permute.xlu0 %2577
      %2579 = vrot.lane.b32.xlu0 %v514, 18
      %v2580 = vpop.permute.xlu0 %2579
      %2581 = vrot.lane.b32.xlu0 %v515, 18
      %v2582 = vpop.permute.xlu0 %2581
      %2583 = vrot.lane.b32.xlu0 %v516, 18
      %v2584 = vpop.permute.xlu0 %2583
      %2585 = vrot.lane.b32.xlu0 %v517, 18
      %v2586 = vpop.permute.xlu0 %2585
      %2587 = vrot.lane.b32.xlu0 %v518, 18
      %v2588 = vpop.permute.xlu0 %2587
      %2589 = vrot.lane.b32.xlu0 %v519, 18
      %v2590 = vpop.permute.xlu0 %2589
      %2591 = vrot.lane.b32.xlu0 %v520, 18
      %v2592 = vpop.permute.xlu0 %2591
      %2593 = vrot.lane.b32.xlu0 %v521, 18
      %v2594 = vpop.permute.xlu0 %2593
      %2595 = vrot.lane.b32.xlu0 %v522, 18
      %v2596 = vpop.permute.xlu0 %2595
      %2597 = vrot.lane.b32.xlu0 %v523, 18
      %v2598 = vpop.permute.xlu0 %2597
      %2599 = vrot.lane.b32.xlu0 %v524, 18
      %v2600 = vpop.permute.xlu0 %2599
      %2601 = vrot.lane.b32.xlu0 %v525, 18
      %v2602 = vpop.permute.xlu0 %2601
      %2603 = vrot.lane.b32.xlu0 %v526, 18
      %v2604 = vpop.permute.xlu0 %2603
      %vm2665 = vcmask 171152
      %2666 = vst.msk [vmem:[#allocation2] sm:$0xff] %vm2665, %v2486
      %2667 = vst.msk [vmem:[#allocation2 + $0x8] sm:$0xff] %vm2665, %v2488
      %2668 = vst.msk [vmem:[#allocation2 + $0x10] sm:$0xff] %vm2665, %v2490
      %2669 = vst.msk [vmem:[#allocation2 + $0x18] sm:$0xff] %vm2665, %v2492
      %2670 = vst.msk [vmem:[#allocation2 + $0x20] sm:$0xff] %vm2665, %v2494
      %2671 = vst.msk [vmem:[#allocation2 + $0x28] sm:$0xff] %vm2665, %v2496
      %2672 = vst.msk [vmem:[#allocation2 + $0x30] sm:$0xff] %vm2665, %v2498
      %2673 = vst.msk [vmem:[#allocation2 + $0x38] sm:$0xff] %vm2665, %v2500
      %2674 = vst.msk [vmem:[#allocation2 + $0x40] sm:$0xff] %vm2665, %v2502
      %2675 = vst.msk [vmem:[#allocation2 + $0x48] sm:$0xff] %vm2665, %v2504
      %2676 = vst.msk [vmem:[#allocation2 + $0x50] sm:$0xff] %vm2665, %v2506
      %2677 = vst.msk [vmem:[#allocation2 + $0x58] sm:$0xff] %vm2665, %v2508
      %2678 = vst.msk [vmem:[#allocation2 + $0x60] sm:$0xff] %vm2665, %v2510
      %2679 = vst.msk [vmem:[#allocation2 + $0x68] sm:$0xff] %vm2665, %v2512
      %2680 = vst.msk [vmem:[#allocation2 + $0x70] sm:$0xff] %vm2665, %v2514
      %2681 = vst.msk [vmem:[#allocation2 + $0x78] sm:$0xff] %vm2665, %v2516
      %2682 = vst.msk [vmem:[#allocation2 + $0x80] sm:$0xff] %vm2665, %v2518
      %2683 = vst.msk [vmem:[#allocation2 + $0x88] sm:$0xff] %vm2665, %v2520
      %2684 = vst.msk [vmem:[#allocation2 + $0x90] sm:$0xff] %vm2665, %v2522
      %2685 = vst.msk [vmem:[#allocation2 + $0x98] sm:$0xff] %vm2665, %v2524
      %2686 = vst.msk [vmem:[#allocation2 + $0xa0] sm:$0xff] %vm2665, %v2526
      %2687 = vst.msk [vmem:[#allocation2 + $0xa8] sm:$0xff] %vm2665, %v2528
      %2688 = vst.msk [vmem:[#allocation2 + $0xb0] sm:$0xff] %vm2665, %v2530
      %2689 = vst.msk [vmem:[#allocation2 + $0xb8] sm:$0xff] %vm2665, %v2532
      %2690 = vst.msk [vmem:[#allocation2 + $0xc0] sm:$0xff] %vm2665, %v2534
      %2691 = vst.msk [vmem:[#allocation2 + $0xc8] sm:$0xff] %vm2665, %v2536
      %2692 = vst.msk [vmem:[#allocation2 + $0xd0] sm:$0xff] %vm2665, %v2538
      %2693 = vst.msk [vmem:[#allocation2 + $0xd8] sm:$0xff] %vm2665, %v2540
      %2694 = vst.msk [vmem:[#allocation2 + $0xe0] sm:$0xff] %vm2665, %v2542
      %2695 = vst.msk [vmem:[#allocation2 + $0xe8] sm:$0xff] %vm2665, %v2544
      %2696 = vst.msk [vmem:[#allocation2 + $0xf0] sm:$0xff] %vm2665, %v2546
      %2697 = vst.msk [vmem:[#allocation2 + $0xf8] sm:$0xff] %vm2665, %v2548
      %2698 = vst.msk [vmem:[#allocation2 + $0x100] sm:$0xff] %vm2665, %v2550
      %2699 = vst.msk [vmem:[#allocation2 + $0x108] sm:$0xff] %vm2665, %v2552
      %2700 = vst.msk [vmem:[#allocation2 + $0x110] sm:$0xff] %vm2665, %v2554
      %2701 = vst.msk [vmem:[#allocation2 + $0x118] sm:$0xff] %vm2665, %v2556
      %2702 = vst.msk [vmem:[#allocation2 + $0x120] sm:$0xff] %vm2665, %v2558
      %2703 = vst.msk [vmem:[#allocation2 + $0x128] sm:$0xff] %vm2665, %v2560
      %2704 = vst.msk [vmem:[#allocation2 + $0x130] sm:$0xff] %vm2665, %v2562
      %2705 = vst.msk [vmem:[#allocation2 + $0x138] sm:$0xff] %vm2665, %v2564
      %2706 = vst.msk [vmem:[#allocation2 + $0x140] sm:$0xff] %vm2665, %v2566
      %2707 = vst.msk [vmem:[#allocation2 + $0x148] sm:$0xff] %vm2665, %v2568
      %2708 = vst.msk [vmem:[#allocation2 + $0x150] sm:$0xff] %vm2665, %v2570
      %2709 = vst.msk [vmem:[#allocation2 + $0x158] sm:$0xff] %vm2665, %v2572
      %2710 = vst.msk [vmem:[#allocation2 + $0x160] sm:$0xff] %vm2665, %v2574
      %2711 = vst.msk [vmem:[#allocation2 + $0x168] sm:$0xff] %vm2665, %v2576
      %2712 = vst.msk [vmem:[#allocation2 + $0x170] sm:$0xff] %vm2665, %v2578
      %2713 = vst.msk [vmem:[#allocation2 + $0x178] sm:$0xff] %vm2665, %v2580
      %2714 = vst.msk [vmem:[#allocation2 + $0x180] sm:$0xff] %vm2665, %v2582
      %2715 = vst.msk [vmem:[#allocation2 + $0x188] sm:$0xff] %vm2665, %v2584
      %2716 = vst.msk [vmem:[#allocation2 + $0x190] sm:$0xff] %vm2665, %v2586
      %2717 = vst.msk [vmem:[#allocation2 + $0x198] sm:$0xff] %vm2665, %v2588
      %2718 = vst.msk [vmem:[#allocation2 + $0x1a0] sm:$0xff] %vm2665, %v2590
      %2719 = vst.msk [vmem:[#allocation2 + $0x1a8] sm:$0xff] %vm2665, %v2592
      %2720 = vst.msk [vmem:[#allocation2 + $0x1b0] sm:$0xff] %vm2665, %v2594
      %2721 = vst.msk [vmem:[#allocation2 + $0x1b8] sm:$0xff] %vm2665, %v2596
      %2722 = vst.msk [vmem:[#allocation2 + $0x1c0] sm:$0xff] %vm2665, %v2598
      %2723 = vst.msk [vmem:[#allocation2 + $0x1c8] sm:$0xff] %vm2665, %v2600
      %2724 = vst.msk [vmem:[#allocation2 + $0x1d0] sm:$0xff] %vm2665, %v2602
      %2725 = vst.msk [vmem:[#allocation2 + $0x1d8] sm:$0xff] %vm2665, %v2604
      %v2726 = vshrl.u32 %v525, 16
      %v2728 = vor.u32 %v2726, %v1995
      %v2730 = vshll.u32 %v526, 16
      %v2732 = vrot.slane %v2730, 1
      %v2733 = vsel %vm589, %v2728, %v2732
      %v2734 = vshrl.u32 %v526, 16
      %v2736 = vor.u32 %v2734, %v2732
      %v2738 = vshll.u32 %v527, 16
      %v2740 = vrot.slane %v2738, 1
      %v2741 = vsel %vm589, %v2736, %v2740
      %2742 = vrot.lane.b32.xlu0 %v633, 21
      %v2743 = vpop.permute.xlu0 %2742
      %2744 = vrot.lane.b32.xlu0 %v641, 21
      %v2745 = vpop.permute.xlu0 %2744
      %2746 = vrot.lane.b32.xlu0 %v649, 21
      %v2747 = vpop.permute.xlu0 %2746
      %2748 = vrot.lane.b32.xlu0 %v657, 21
      %v2749 = vpop.permute.xlu0 %2748
      %2750 = vrot.lane.b32.xlu0 %v665, 21
      %v2751 = vpop.permute.xlu0 %2750
      %2752 = vrot.lane.b32.xlu0 %v673, 21
      %v2753 = vpop.permute.xlu0 %2752
      %2754 = vrot.lane.b32.xlu0 %v681, 21
      %v2755 = vpop.permute.xlu0 %2754
      %2756 = vrot.lane.b32.xlu0 %v689, 21
      %v2757 = vpop.permute.xlu0 %2756
      %2758 = vrot.lane.b32.xlu0 %v697, 21
      %v2759 = vpop.permute.xlu0 %2758
      %2760 = vrot.lane.b32.xlu0 %v705, 21
      %v2761 = vpop.permute.xlu0 %2760
      %2762 = vrot.lane.b32.xlu0 %v713, 21
      %v2763 = vpop.permute.xlu0 %2762
      %2764 = vrot.lane.b32.xlu0 %v721, 21
      %v2765 = vpop.permute.xlu0 %2764
      %2766 = vrot.lane.b32.xlu0 %v729, 21
      %v2767 = vpop.permute.xlu0 %2766
      %2768 = vrot.lane.b32.xlu0 %v737, 21
      %v2769 = vpop.permute.xlu0 %2768
      %2770 = vrot.lane.b32.xlu0 %v745, 21
      %v2771 = vpop.permute.xlu0 %2770
      %2772 = vrot.lane.b32.xlu0 %v753, 21
      %v2773 = vpop.permute.xlu0 %2772
      %2774 = vrot.lane.b32.xlu0 %v761, 21
      %v2775 = vpop.permute.xlu0 %2774
      %2776 = vrot.lane.b32.xlu0 %v769, 21
      %v2777 = vpop.permute.xlu0 %2776
      %2778 = vrot.lane.b32.xlu0 %v777, 21
      %v2779 = vpop.permute.xlu0 %2778
      %2780 = vrot.lane.b32.xlu0 %v785, 21
      %v2781 = vpop.permute.xlu0 %2780
      %2782 = vrot.lane.b32.xlu0 %v793, 21
      %v2783 = vpop.permute.xlu0 %2782
      %2784 = vrot.lane.b32.xlu0 %v801, 21
      %v2785 = vpop.permute.xlu0 %2784
      %2786 = vrot.lane.b32.xlu0 %v809, 21
      %v2787 = vpop.permute.xlu0 %2786
      %2788 = vrot.lane.b32.xlu0 %v817, 21
      %v2789 = vpop.permute.xlu0 %2788
      %2790 = vrot.lane.b32.xlu0 %v825, 21
      %v2791 = vpop.permute.xlu0 %2790
      %2792 = vrot.lane.b32.xlu0 %v833, 21
      %v2793 = vpop.permute.xlu0 %2792
      %2794 = vrot.lane.b32.xlu0 %v841, 21
      %v2795 = vpop.permute.xlu0 %2794
      %2796 = vrot.lane.b32.xlu0 %v849, 21
      %v2797 = vpop.permute.xlu0 %2796
      %2798 = vrot.lane.b32.xlu0 %v857, 21
      %v2799 = vpop.permute.xlu0 %2798
      %2800 = vrot.lane.b32.xlu0 %v865, 21
      %v2801 = vpop.permute.xlu0 %2800
      %2802 = vrot.lane.b32.xlu0 %v873, 21
      %v2803 = vpop.permute.xlu0 %2802
      %2804 = vrot.lane.b32.xlu0 %v881, 21
      %v2805 = vpop.permute.xlu0 %2804
      %2806 = vrot.lane.b32.xlu0 %v889, 21
      %v2807 = vpop.permute.xlu0 %2806
      %2808 = vrot.lane.b32.xlu0 %v897, 21
      %v2809 = vpop.permute.xlu0 %2808
      %2810 = vrot.lane.b32.xlu0 %v905, 21
      %v2811 = vpop.permute.xlu0 %2810
      %2812 = vrot.lane.b32.xlu0 %v913, 21
      %v2813 = vpop.permute.xlu0 %2812
      %2814 = vrot.lane.b32.xlu0 %v921, 21
      %v2815 = vpop.permute.xlu0 %2814
      %2816 = vrot.lane.b32.xlu0 %v929, 21
      %v2817 = vpop.permute.xlu0 %2816
      %2818 = vrot.lane.b32.xlu0 %v937, 21
      %v2819 = vpop.permute.xlu0 %2818
      %2820 = vrot.lane.b32.xlu0 %v945, 21
      %v2821 = vpop.permute.xlu0 %2820
      %2822 = vrot.lane.b32.xlu0 %v953, 21
      %v2823 = vpop.permute.xlu0 %2822
      %2824 = vrot.lane.b32.xlu0 %v961, 21
      %v2825 = vpop.permute.xlu0 %2824
      %2826 = vrot.lane.b32.xlu0 %v969, 21
      %v2827 = vpop.permute.xlu0 %2826
      %2828 = vrot.lane.b32.xlu0 %v977, 21
      %v2829 = vpop.permute.xlu0 %2828
      %2830 = vrot.lane.b32.xlu0 %v985, 21
      %v2831 = vpop.permute.xlu0 %2830
      %2832 = vrot.lane.b32.xlu0 %v993, 21
      %v2833 = vpop.permute.xlu0 %2832
      %2834 = vrot.lane.b32.xlu0 %v1001, 21
      %v2835 = vpop.permute.xlu0 %2834
      %2836 = vrot.lane.b32.xlu0 %v1009, 21
      %v2837 = vpop.permute.xlu0 %2836
      %2838 = vrot.lane.b32.xlu0 %v1017, 21
      %v2839 = vpop.permute.xlu0 %2838
      %2840 = vrot.lane.b32.xlu0 %v1025, 21
      %v2841 = vpop.permute.xlu0 %2840
      %2842 = vrot.lane.b32.xlu0 %v1033, 21
      %v2843 = vpop.permute.xlu0 %2842
      %2844 = vrot.lane.b32.xlu0 %v1041, 21
      %v2845 = vpop.permute.xlu0 %2844
      %2846 = vrot.lane.b32.xlu0 %v1049, 21
      %v2847 = vpop.permute.xlu0 %2846
      %2848 = vrot.lane.b32.xlu0 %v1057, 21
      %v2849 = vpop.permute.xlu0 %2848
      %2850 = vrot.lane.b32.xlu0 %v1065, 21
      %v2851 = vpop.permute.xlu0 %2850
      %2852 = vrot.lane.b32.xlu0 %v1073, 21
      %v2853 = vpop.permute.xlu0 %2852
      %2854 = vrot.lane.b32.xlu0 %v1988, 21
      %v2855 = vpop.permute.xlu0 %2854
      %2856 = vrot.lane.b32.xlu0 %v1996, 21
      %v2857 = vpop.permute.xlu0 %2856
      %2858 = vrot.lane.b32.xlu0 %v2733, 21
      %v2859 = vpop.permute.xlu0 %2858
      %2860 = vrot.lane.b32.xlu0 %v2741, 21
      %v2861 = vpop.permute.xlu0 %2860
      %vm2922 = vcmask 195752
      %2923 = vst.msk [vmem:[#allocation2] sm:$0xff] %vm2922, %v2743
      %2924 = vst.msk [vmem:[#allocation2 + $0x8] sm:$0xff] %vm2922, %v2745
      %2925 = vst.msk [vmem:[#allocation2 + $0x10] sm:$0xff] %vm2922, %v2747
      %2926 = vst.msk [vmem:[#allocation2 + $0x18] sm:$0xff] %vm2922, %v2749
      %2927 = vst.msk [vmem:[#allocation2 + $0x20] sm:$0xff] %vm2922, %v2751
      %2928 = vst.msk [vmem:[#allocation2 + $0x28] sm:$0xff] %vm2922, %v2753
      %2929 = vst.msk [vmem:[#allocation2 + $0x30] sm:$0xff] %vm2922, %v2755
      %2930 = vst.msk [vmem:[#allocation2 + $0x38] sm:$0xff] %vm2922, %v2757
      %2931 = vst.msk [vmem:[#allocation2 + $0x40] sm:$0xff] %vm2922, %v2759
      %2932 = vst.msk [vmem:[#allocation2 + $0x48] sm:$0xff] %vm2922, %v2761
      %2933 = vst.msk [vmem:[#allocation2 + $0x50] sm:$0xff] %vm2922, %v2763
      %2934 = vst.msk [vmem:[#allocation2 + $0x58] sm:$0xff] %vm2922, %v2765
      %2935 = vst.msk [vmem:[#allocation2 + $0x60] sm:$0xff] %vm2922, %v2767
      %2936 = vst.msk [vmem:[#allocation2 + $0x68] sm:$0xff] %vm2922, %v2769
      %2937 = vst.msk [vmem:[#allocation2 + $0x70] sm:$0xff] %vm2922, %v2771
      %2938 = vst.msk [vmem:[#allocation2 + $0x78] sm:$0xff] %vm2922, %v2773
      %2939 = vst.msk [vmem:[#allocation2 + $0x80] sm:$0xff] %vm2922, %v2775
      %2940 = vst.msk [vmem:[#allocation2 + $0x88] sm:$0xff] %vm2922, %v2777
      %2941 = vst.msk [vmem:[#allocation2 + $0x90] sm:$0xff] %vm2922, %v2779
      %2942 = vst.msk [vmem:[#allocation2 + $0x98] sm:$0xff] %vm2922, %v2781
      %2943 = vst.msk [vmem:[#allocation2 + $0xa0] sm:$0xff] %vm2922, %v2783
      %2944 = vst.msk [vmem:[#allocation2 + $0xa8] sm:$0xff] %vm2922, %v2785
      %2945 = vst.msk [vmem:[#allocation2 + $0xb0] sm:$0xff] %vm2922, %v2787
      %2946 = vst.msk [vmem:[#allocation2 + $0xb8] sm:$0xff] %vm2922, %v2789
      %2947 = vst.msk [vmem:[#allocation2 + $0xc0] sm:$0xff] %vm2922, %v2791
      %2948 = vst.msk [vmem:[#allocation2 + $0xc8] sm:$0xff] %vm2922, %v2793
      %2949 = vst.msk [vmem:[#allocation2 + $0xd0] sm:$0xff] %vm2922, %v2795
      %2950 = vst.msk [vmem:[#allocation2 + $0xd8] sm:$0xff] %vm2922, %v2797
      %2951 = vst.msk [vmem:[#allocation2 + $0xe0] sm:$0xff] %vm2922, %v2799
      %2952 = vst.msk [vmem:[#allocation2 + $0xe8] sm:$0xff] %vm2922, %v2801
      %2953 = vst.msk [vmem:[#allocation2 + $0xf0] sm:$0xff] %vm2922, %v2803
      %2954 = vst.msk [vmem:[#allocation2 + $0xf8] sm:$0xff] %vm2922, %v2805
      %2955 = vst.msk [vmem:[#allocation2 + $0x100] sm:$0xff] %vm2922, %v2807
      %2956 = vst.msk [vmem:[#allocation2 + $0x108] sm:$0xff] %vm2922, %v2809
      %2957 = vst.msk [vmem:[#allocation2 + $0x110] sm:$0xff] %vm2922, %v2811
      %2958 = vst.msk [vmem:[#allocation2 + $0x118] sm:$0xff] %vm2922, %v2813
      %2959 = vst.msk [vmem:[#allocation2 + $0x120] sm:$0xff] %vm2922, %v2815
      %2960 = vst.msk [vmem:[#allocation2 + $0x128] sm:$0xff] %vm2922, %v2817
      %2961 = vst.msk [vmem:[#allocation2 + $0x130] sm:$0xff] %vm2922, %v2819
      %2962 = vst.msk [vmem:[#allocation2 + $0x138] sm:$0xff] %vm2922, %v2821
      %2963 = vst.msk [vmem:[#allocation2 + $0x140] sm:$0xff] %vm2922, %v2823
      %2964 = vst.msk [vmem:[#allocation2 + $0x148] sm:$0xff] %vm2922, %v2825
      %2965 = vst.msk [vmem:[#allocation2 + $0x150] sm:$0xff] %vm2922, %v2827
      %2966 = vst.msk [vmem:[#allocation2 + $0x158] sm:$0xff] %vm2922, %v2829
      %2967 = vst.msk [vmem:[#allocation2 + $0x160] sm:$0xff] %vm2922, %v2831
      %2968 = vst.msk [vmem:[#allocation2 + $0x168] sm:$0xff] %vm2922, %v2833
      %2969 = vst.msk [vmem:[#allocation2 + $0x170] sm:$0xff] %vm2922, %v2835
      %2970 = vst.msk [vmem:[#allocation2 + $0x178] sm:$0xff] %vm2922, %v2837
      %2971 = vst.msk [vmem:[#allocation2 + $0x180] sm:$0xff] %vm2922, %v2839
      %2972 = vst.msk [vmem:[#allocation2 + $0x188] sm:$0xff] %vm2922, %v2841
      %2973 = vst.msk [vmem:[#allocation2 + $0x190] sm:$0xff] %vm2922, %v2843
      %2974 = vst.msk [vmem:[#allocation2 + $0x198] sm:$0xff] %vm2922, %v2845
      %2975 = vst.msk [vmem:[#allocation2 + $0x1a0] sm:$0xff] %vm2922, %v2847
      %2976 = vst.msk [vmem:[#allocation2 + $0x1a8] sm:$0xff] %vm2922, %v2849
      %2977 = vst.msk [vmem:[#allocation2 + $0x1b0] sm:$0xff] %vm2922, %v2851
      %2978 = vst.msk [vmem:[#allocation2 + $0x1b8] sm:$0xff] %vm2922, %v2853
      %2979 = vst.msk [vmem:[#allocation2 + $0x1c0] sm:$0xff] %vm2922, %v2855
      %2980 = vst.msk [vmem:[#allocation2 + $0x1c8] sm:$0xff] %vm2922, %v2857
      %2981 = vst.msk [vmem:[#allocation2 + $0x1d0] sm:$0xff] %vm2922, %v2859
      %2982 = vst.msk [vmem:[#allocation2 + $0x1d8] sm:$0xff] %vm2922, %v2861
      %v2984 = vrot.slane %v526, 1
      %v2985 = vsel %vm1376, %v2241, %v2984
      %v2986 = vrot.slane %v527, 1
      %v2987 = vsel %vm1376, %v2984, %v2986
      %2988 = vrot.lane.b32.xlu0 %v1387, 24
      %v2989 = vpop.permute.xlu0 %2988
      %2990 = vrot.lane.b32.xlu0 %v1389, 24
      %v2991 = vpop.permute.xlu0 %2990
      %2992 = vrot.lane.b32.xlu0 %v1391, 24
      %v2993 = vpop.permute.xlu0 %2992
      %2994 = vrot.lane.b32.xlu0 %v1393, 24
      %v2995 = vpop.permute.xlu0 %2994
      %2996 = vrot.lane.b32.xlu0 %v1395, 24
      %v2997 = vpop.permute.xlu0 %2996
      %2998 = vrot.lane.b32.xlu0 %v1397, 24
      %v2999 = vpop.permute.xlu0 %2998
      %3000 = vrot.lane.b32.xlu0 %v1399, 24
      %v3001 = vpop.permute.xlu0 %3000
      %3002 = vrot.lane.b32.xlu0 %v1401, 24
      %v3003 = vpop.permute.xlu0 %3002
      %3004 = vrot.lane.b32.xlu0 %v1403, 24
      %v3005 = vpop.permute.xlu0 %3004
      %3006 = vrot.lane.b32.xlu0 %v1405, 24
      %v3007 = vpop.permute.xlu0 %3006
      %3008 = vrot.lane.b32.xlu0 %v1407, 24
      %v3009 = vpop.permute.xlu0 %3008
      %3010 = vrot.lane.b32.xlu0 %v1409, 24
      %v3011 = vpop.permute.xlu0 %3010
      %3012 = vrot.lane.b32.xlu0 %v1411, 24
      %v3013 = vpop.permute.xlu0 %3012
      %3014 = vrot.lane.b32.xlu0 %v1413, 24
      %v3015 = vpop.permute.xlu0 %3014
      %3016 = vrot.lane.b32.xlu0 %v1415, 24
      %v3017 = vpop.permute.xlu0 %3016
      %3018 = vrot.lane.b32.xlu0 %v1417, 24
      %v3019 = vpop.permute.xlu0 %3018
      %3020 = vrot.lane.b32.xlu0 %v1419, 24
      %v3021 = vpop.permute.xlu0 %3020
      %3022 = vrot.lane.b32.xlu0 %v1421, 24
      %v3023 = vpop.permute.xlu0 %3022
      %3024 = vrot.lane.b32.xlu0 %v1423, 24
      %v3025 = vpop.permute.xlu0 %3024
      %3026 = vrot.lane.b32.xlu0 %v1425, 24
      %v3027 = vpop.permute.xlu0 %3026
      %3028 = vrot.lane.b32.xlu0 %v1427, 24
      %v3029 = vpop.permute.xlu0 %3028
      %3030 = vrot.lane.b32.xlu0 %v1429, 24
      %v3031 = vpop.permute.xlu0 %3030
      %3032 = vrot.lane.b32.xlu0 %v1431, 24
      %v3033 = vpop.permute.xlu0 %3032
      %3034 = vrot.lane.b32.xlu0 %v1433, 24
      %v3035 = vpop.permute.xlu0 %3034
      %3036 = vrot.lane.b32.xlu0 %v1435, 24
      %v3037 = vpop.permute.xlu0 %3036
      %3038 = vrot.lane.b32.xlu0 %v1437, 24
      %v3039 = vpop.permute.xlu0 %3038
      %3040 = vrot.lane.b32.xlu0 %v1439, 24
      %v3041 = vpop.permute.xlu0 %3040
      %3042 = vrot.lane.b32.xlu0 %v1441, 24
      %v3043 = vpop.permute.xlu0 %3042
      %3044 = vrot.lane.b32.xlu0 %v1443, 24
      %v3045 = vpop.permute.xlu0 %3044
      %3046 = vrot.lane.b32.xlu0 %v1445, 24
      %v3047 = vpop.permute.xlu0 %3046
      %3048 = vrot.lane.b32.xlu0 %v1447, 24
      %v3049 = vpop.permute.xlu0 %3048
      %3050 = vrot.lane.b32.xlu0 %v1449, 24
      %v3051 = vpop.permute.xlu0 %3050
      %3052 = vrot.lane.b32.xlu0 %v1451, 24
      %v3053 = vpop.permute.xlu0 %3052
      %3054 = vrot.lane.b32.xlu0 %v1453, 24
      %v3055 = vpop.permute.xlu0 %3054
      %3056 = vrot.lane.b32.xlu0 %v1455, 24
      %v3057 = vpop.permute.xlu0 %3056
      %3058 = vrot.lane.b32.xlu0 %v1457, 24
      %v3059 = vpop.permute.xlu0 %3058
      %3060 = vrot.lane.b32.xlu0 %v1459, 24
      %v3061 = vpop.permute.xlu0 %3060
      %3062 = vrot.lane.b32.xlu0 %v1461, 24
      %v3063 = vpop.permute.xlu0 %3062
      %3064 = vrot.lane.b32.xlu0 %v1463, 24
      %v3065 = vpop.permute.xlu0 %3064
      %3066 = vrot.lane.b32.xlu0 %v1465, 24
      %v3067 = vpop.permute.xlu0 %3066
      %3068 = vrot.lane.b32.xlu0 %v1467, 24
      %v3069 = vpop.permute.xlu0 %3068
      %3070 = vrot.lane.b32.xlu0 %v1469, 24
      %v3071 = vpop.permute.xlu0 %3070
      %3072 = vrot.lane.b32.xlu0 %v1471, 24
      %v3073 = vpop.permute.xlu0 %3072
      %3074 = vrot.lane.b32.xlu0 %v1473, 24
      %v3075 = vpop.permute.xlu0 %3074
      %3076 = vrot.lane.b32.xlu0 %v1475, 24
      %v3077 = vpop.permute.xlu0 %3076
      %3078 = vrot.lane.b32.xlu0 %v1477, 24
      %v3079 = vpop.permute.xlu0 %3078
      %3080 = vrot.lane.b32.xlu0 %v1479, 24
      %v3081 = vpop.permute.xlu0 %3080
      %3082 = vrot.lane.b32.xlu0 %v1481, 24
      %v3083 = vpop.permute.xlu0 %3082
      %3084 = vrot.lane.b32.xlu0 %v1483, 24
      %v3085 = vpop.permute.xlu0 %3084
      %3086 = vrot.lane.b32.xlu0 %v1485, 24
      %v3087 = vpop.permute.xlu0 %3086
      %3088 = vrot.lane.b32.xlu0 %v1487, 24
      %v3089 = vpop.permute.xlu0 %3088
      %3090 = vrot.lane.b32.xlu0 %v1489, 24
      %v3091 = vpop.permute.xlu0 %3090
      %3092 = vrot.lane.b32.xlu0 %v1491, 24
      %v3093 = vpop.permute.xlu0 %3092
      %3094 = vrot.lane.b32.xlu0 %v1493, 24
      %v3095 = vpop.permute.xlu0 %3094
      %3096 = vrot.lane.b32.xlu0 %v1495, 24
      %v3097 = vpop.permute.xlu0 %3096
      %3098 = vrot.lane.b32.xlu0 %v1497, 24
      %v3099 = vpop.permute.xlu0 %3098
      %3100 = vrot.lane.b32.xlu0 %v2240, 24
      %v3101 = vpop.permute.xlu0 %3100
      %3102 = vrot.lane.b32.xlu0 %v2242, 24
      %v3103 = vpop.permute.xlu0 %3102
      %3104 = vrot.lane.b32.xlu0 %v2985, 24
      %v3105 = vpop.permute.xlu0 %3104
      %3106 = vrot.lane.b32.xlu0 %v2987, 24
      %v3107 = vpop.permute.xlu0 %3106
      %vm3168 = vcmask 220352
      %3169 = vst.msk [vmem:[#allocation2] sm:$0xff] %vm3168, %v2989
      %3170 = vst.msk [vmem:[#allocation2 + $0x8] sm:$0xff] %vm3168, %v2991
      %3171 = vst.msk [vmem:[#allocation2 + $0x10] sm:$0xff] %vm3168, %v2993
      %3172 = vst.msk [vmem:[#allocation2 + $0x18] sm:$0xff] %vm3168, %v2995
      %3173 = vst.msk [vmem:[#allocation2 + $0x20] sm:$0xff] %vm3168, %v2997
      %3174 = vst.msk [vmem:[#allocation2 + $0x28] sm:$0xff] %vm3168, %v2999
      %3175 = vst.msk [vmem:[#allocation2 + $0x30] sm:$0xff] %vm3168, %v3001
      %3176 = vst.msk [vmem:[#allocation2 + $0x38] sm:$0xff] %vm3168, %v3003
      %3177 = vst.msk [vmem:[#allocation2 + $0x40] sm:$0xff] %vm3168, %v3005
      %3178 = vst.msk [vmem:[#allocation2 + $0x48] sm:$0xff] %vm3168, %v3007
      %3179 = vst.msk [vmem:[#allocation2 + $0x50] sm:$0xff] %vm3168, %v3009
      %3180 = vst.msk [vmem:[#allocation2 + $0x58] sm:$0xff] %vm3168, %v3011
      %3181 = vst.msk [vmem:[#allocation2 + $0x60] sm:$0xff] %vm3168, %v3013
      %3182 = vst.msk [vmem:[#allocation2 + $0x68] sm:$0xff] %vm3168, %v3015
      %3183 = vst.msk [vmem:[#allocation2 + $0x70] sm:$0xff] %vm3168, %v3017
      %3184 = vst.msk [vmem:[#allocation2 + $0x78] sm:$0xff] %vm3168, %v3019
      %3185 = vst.msk [vmem:[#allocation2 + $0x80] sm:$0xff] %vm3168, %v3021
      %3186 = vst.msk [vmem:[#allocation2 + $0x88] sm:$0xff] %vm3168, %v3023
      %3187 = vst.msk [vmem:[#allocation2 + $0x90] sm:$0xff] %vm3168, %v3025
      %3188 = vst.msk [vmem:[#allocation2 + $0x98] sm:$0xff] %vm3168, %v3027
      %3189 = vst.msk [vmem:[#allocation2 + $0xa0] sm:$0xff] %vm3168, %v3029
      %3190 = vst.msk [vmem:[#allocation2 + $0xa8] sm:$0xff] %vm3168, %v3031
      %3191 = vst.msk [vmem:[#allocation2 + $0xb0] sm:$0xff] %vm3168, %v3033
      %3192 = vst.msk [vmem:[#allocation2 + $0xb8] sm:$0xff] %vm3168, %v3035
      %3193 = vst.msk [vmem:[#allocation2 + $0xc0] sm:$0xff] %vm3168, %v3037
      %3194 = vst.msk [vmem:[#allocation2 + $0xc8] sm:$0xff] %vm3168, %v3039
      %3195 = vst.msk [vmem:[#allocation2 + $0xd0] sm:$0xff] %vm3168, %v3041
      %3196 = vst.msk [vmem:[#allocation2 + $0xd8] sm:$0xff] %vm3168, %v3043
      %3197 = vst.msk [vmem:[#allocation2 + $0xe0] sm:$0xff] %vm3168, %v3045
      %3198 = vst.msk [vmem:[#allocation2 + $0xe8] sm:$0xff] %vm3168, %v3047
      %3199 = vst.msk [vmem:[#allocation2 + $0xf0] sm:$0xff] %vm3168, %v3049
      %3200 = vst.msk [vmem:[#allocation2 + $0xf8] sm:$0xff] %vm3168, %v3051
      %3201 = vst.msk [vmem:[#allocation2 + $0x100] sm:$0xff] %vm3168, %v3053
      %3202 = vst.msk [vmem:[#allocation2 + $0x108] sm:$0xff] %vm3168, %v3055
      %3203 = vst.msk [vmem:[#allocation2 + $0x110] sm:$0xff] %vm3168, %v3057
      %3204 = vst.msk [vmem:[#allocation2 + $0x118] sm:$0xff] %vm3168, %v3059
      %3205 = vst.msk [vmem:[#allocation2 + $0x120] sm:$0xff] %vm3168, %v3061
      %3206 = vst.msk [vmem:[#allocation2 + $0x128] sm:$0xff] %vm3168, %v3063
      %3207 = vst.msk [vmem:[#allocation2 + $0x130] sm:$0xff] %vm3168, %v3065
      %3208 = vst.msk [vmem:[#allocation2 + $0x138] sm:$0xff] %vm3168, %v3067
      %3209 = vst.msk [vmem:[#allocation2 + $0x140] sm:$0xff] %vm3168, %v3069
      %3210 = vst.msk [vmem:[#allocation2 + $0x148] sm:$0xff] %vm3168, %v3071
      %3211 = vst.msk [vmem:[#allocation2 + $0x150] sm:$0xff] %vm3168, %v3073
      %3212 = vst.msk [vmem:[#allocation2 + $0x158] sm:$0xff] %vm3168, %v3075
      %3213 = vst.msk [vmem:[#allocation2 + $0x160] sm:$0xff] %vm3168, %v3077
      %3214 = vst.msk [vmem:[#allocation2 + $0x168] sm:$0xff] %vm3168, %v3079
      %3215 = vst.msk [vmem:[#allocation2 + $0x170] sm:$0xff] %vm3168, %v3081
      %3216 = vst.msk [vmem:[#allocation2 + $0x178] sm:$0xff] %vm3168, %v3083
      %3217 = vst.msk [vmem:[#allocation2 + $0x180] sm:$0xff] %vm3168, %v3085
      %3218 = vst.msk [vmem:[#allocation2 + $0x188] sm:$0xff] %vm3168, %v3087
      %3219 = vst.msk [vmem:[#allocation2 + $0x190] sm:$0xff] %vm3168, %v3089
      %3220 = vst.msk [vmem:[#allocation2 + $0x198] sm:$0xff] %vm3168, %v3091
      %3221 = vst.msk [vmem:[#allocation2 + $0x1a0] sm:$0xff] %vm3168, %v3093
      %3222 = vst.msk [vmem:[#allocation2 + $0x1a8] sm:$0xff] %vm3168, %v3095
      %3223 = vst.msk [vmem:[#allocation2 + $0x1b0] sm:$0xff] %vm3168, %v3097
      %3224 = vst.msk [vmem:[#allocation2 + $0x1b8] sm:$0xff] %vm3168, %v3099
      %3225 = vst.msk [vmem:[#allocation2 + $0x1c0] sm:$0xff] %vm3168, %v3101
      %3226 = vst.msk [vmem:[#allocation2 + $0x1c8] sm:$0xff] %vm3168, %v3103
      %3227 = vst.msk [vmem:[#allocation2 + $0x1d0] sm:$0xff] %vm3168, %v3105
      %3228 = vst.msk [vmem:[#allocation2 + $0x1d8] sm:$0xff] %vm3168, %v3107
      %v3229 = vld [vmem:[#allocation2] sm:$0xff]
      %v3230 = vld [vmem:[#allocation2 + $0x8] sm:$0xff]
      %v3231 = vld [vmem:[#allocation2 + $0x10] sm:$0xff]
      %v3232 = vld [vmem:[#allocation2 + $0x18] sm:$0xff]
      %v3233 = vld [vmem:[#allocation2 + $0x20] sm:$0xff]
      %v3234 = vld [vmem:[#allocation2 + $0x28] sm:$0xff]
      %v3235 = vld [vmem:[#allocation2 + $0x30] sm:$0xff]
      %v3236 = vld [vmem:[#allocation2 + $0x38] sm:$0xff]
      %v3237 = vld [vmem:[#allocation2 + $0x40] sm:$0xff]
      %v3238 = vld [vmem:[#allocation2 + $0x48] sm:$0xff]
      %v3239 = vld [vmem:[#allocation2 + $0x50] sm:$0xff]
      %v3240 = vld [vmem:[#allocation2 + $0x58] sm:$0xff]
      %v3241 = vld [vmem:[#allocation2 + $0x60] sm:$0xff]
      %v3242 = vld [vmem:[#allocation2 + $0x68] sm:$0xff]
      %v3243 = vld [vmem:[#allocation2 + $0x70] sm:$0xff]
      %v3244 = vld [vmem:[#allocation2 + $0x78] sm:$0xff]
      %v3245 = vld [vmem:[#allocation2 + $0x80] sm:$0xff]
      %v3246 = vld [vmem:[#allocation2 + $0x88] sm:$0xff]
      %v3247 = vld [vmem:[#allocation2 + $0x90] sm:$0xff]
      %v3248 = vld [vmem:[#allocation2 + $0x98] sm:$0xff]
      %v3249 = vld [vmem:[#allocation2 + $0xa0] sm:$0xff]
      %v3250 = vld [vmem:[#allocation2 + $0xa8] sm:$0xff]
      %v3251 = vld [vmem:[#allocation2 + $0xb0] sm:$0xff]
      %v3252 = vld [vmem:[#allocation2 + $0xb8] sm:$0xff]
      %v3253 = vld [vmem:[#allocation2 + $0xc0] sm:$0xff]
      %v3254 = vld [vmem:[#allocation2 + $0xc8] sm:$0xff]
      %v3255 = vld [vmem:[#allocation2 + $0xd0] sm:$0xff]
      %v3256 = vld [vmem:[#allocation2 + $0xd8] sm:$0xff]
      %v3257 = vld [vmem:[#allocation2 + $0xe0] sm:$0xff]
      %v3258 = vld [vmem:[#allocation2 + $0xe8] sm:$0xff]
      %v3259 = vld [vmem:[#allocation2 + $0xf0] sm:$0xff]
      %v3260 = vld [vmem:[#allocation2 + $0xf8] sm:$0xff]
      %v3261 = vld [vmem:[#allocation2 + $0x100] sm:$0xff]
      %v3262 = vld [vmem:[#allocation2 + $0x108] sm:$0xff]
      %v3263 = vld [vmem:[#allocation2 + $0x110] sm:$0xff]
      %v3264 = vld [vmem:[#allocation2 + $0x118] sm:$0xff]
      %v3265 = vld [vmem:[#allocation2 + $0x120] sm:$0xff]
      %v3266 = vld [vmem:[#allocation2 + $0x128] sm:$0xff]
      %v3267 = vld [vmem:[#allocation2 + $0x130] sm:$0xff]
      %v3268 = vld [vmem:[#allocation2 + $0x138] sm:$0xff]
      %v3269 = vld [vmem:[#allocation2 + $0x140] sm:$0xff]
      %v3270 = vld [vmem:[#allocation2 + $0x148] sm:$0xff]
      %v3271 = vld [vmem:[#allocation2 + $0x150] sm:$0xff]
      %v3272 = vld [vmem:[#allocation2 + $0x158] sm:$0xff]
      %v3273 = vld [vmem:[#allocation2 + $0x160] sm:$0xff]
      %v3274 = vld [vmem:[#allocation2 + $0x168] sm:$0xff]
      %v3275 = vld [vmem:[#allocation2 + $0x170] sm:$0xff]
      %v3276 = vld [vmem:[#allocation2 + $0x178] sm:$0xff]
      %v3277 = vld [vmem:[#allocation2 + $0x180] sm:$0xff]
      %v3278 = vld [vmem:[#allocation2 + $0x188] sm:$0xff]
      %v3279 = vld [vmem:[#allocation2 + $0x190] sm:$0xff]
      %v3280 = vld [vmem:[#allocation2 + $0x198] sm:$0xff]
      %v3281 = vld [vmem:[#allocation2 + $0x1a0] sm:$0xff]
      %v3282 = vld [vmem:[#allocation2 + $0x1a8] sm:$0xff]
      %v3283 = vld [vmem:[#allocation2 + $0x1b0] sm:$0xff]
      %v3284 = vld [vmem:[#allocation2 + $0x1b8] sm:$0xff]
      %v3285 = vld [vmem:[#allocation2 + $0x1c0] sm:$0xff]
      %v3286 = vld [vmem:[#allocation2 + $0x1c8] sm:$0xff]
      %v3287 = vld [vmem:[#allocation2 + $0x1d0] sm:$0xff]
      %v3288 = vld [vmem:[#allocation2 + $0x1d8] sm:$0xff]
      %v3289 = vld [vmem:[%s1] sm:$0xf]
      %v3290 = vld [vmem:[%s1 + $0x4] sm:$0xf]
      %v3291 = vld [vmem:[%s1 + $0x8] sm:$0xf]
      %v3292 = vld [vmem:[%s1 + $0xc] sm:$0x3]
      %v3293 = vld [vmem:[%s2] sm:$0x1]
      %v3295 = vlaneseq
      %v3296 = vshrl.u32 %v3295, 7
      %v3297 = vsub.s32 0, %v3296
      %v3298 = vrot.slane %v3293, %v3297
      %v3304 = vunpack.c.l.b16 %v3289
      %v3305 = vunpack.c.l.b16 %v3290
      %v3306 = vunpack.c.l.b16 %v3291
      %v3307 = vunpack.c.l.b16 %v3292
      %v3308 = vpack.c.b16 %v3305, %v3304
      %v3309 = vpack.c.b16 %v3307, %v3306
      %vm3311 = vcmask 220160
      %v3313 = vsel %vm3311, %v3229, 0
      %v3316 = vsel %vm3311, %v3230, 0
      %v3319 = vsel %vm3311, %v3231, 0
      %v3322 = vsel %vm3311, %v3232, 0
      %v3325 = vsel %vm3311, %v3233, 0
      %v3328 = vsel %vm3311, %v3234, 0
      %v3331 = vsel %vm3311, %v3235, 0
      %v3334 = vsel %vm3311, %v3236, 0
      %v3337 = vsel %vm3311, %v3237, 0
      %v3340 = vsel %vm3311, %v3238, 0
      %v3343 = vsel %vm3311, %v3239, 0
      %v3346 = vsel %vm3311, %v3240, 0
      %v3349 = vsel %vm3311, %v3241, 0
      %v3352 = vsel %vm3311, %v3242, 0
      %v3355 = vsel %vm3311, %v3243, 0
      %v3358 = vsel %vm3311, %v3244, 0
      %v3361 = vsel %vm3311, %v3245, 0
      %v3364 = vsel %vm3311, %v3246, 0
      %v3367 = vsel %vm3311, %v3247, 0
      %v3370 = vsel %vm3311, %v3248, 0
      %v3373 = vsel %vm3311, %v3249, 0
      %v3376 = vsel %vm3311, %v3250, 0
      %v3379 = vsel %vm3311, %v3251, 0
      %v3382 = vsel %vm3311, %v3252, 0
      %v3385 = vsel %vm3311, %v3253, 0
      %v3388 = vsel %vm3311, %v3254, 0
      %v3391 = vsel %vm3311, %v3255, 0
      %v3394 = vsel %vm3311, %v3256, 0
      %v3397 = vsel %vm3311, %v3257, 0
      %v3400 = vsel %vm3311, %v3258, 0
      %v3403 = vsel %vm3311, %v3259, 0
      %v3406 = vsel %vm3311, %v3260, 0
      %v3409 = vsel %vm3311, %v3261, 0
      %v3412 = vsel %vm3311, %v3262, 0
      %v3415 = vsel %vm3311, %v3263, 0
      %v3418 = vsel %vm3311, %v3264, 0
      %v3421 = vsel %vm3311, %v3265, 0
      %v3424 = vsel %vm3311, %v3266, 0
      %v3427 = vsel %vm3311, %v3267, 0
      %v3430 = vsel %vm3311, %v3268, 0
      %v3433 = vsel %vm3311, %v3269, 0
      %v3436 = vsel %vm3311, %v3270, 0
      %v3439 = vsel %vm3311, %v3271, 0
      %v3442 = vsel %vm3311, %v3272, 0
      %v3445 = vsel %vm3311, %v3273, 0
      %v3448 = vsel %vm3311, %v3274, 0
      %v3451 = vsel %vm3311, %v3275, 0
      %v3454 = vsel %vm3311, %v3276, 0
      %v3457 = vsel %vm3311, %v3277, 0
      %v3460 = vsel %vm3311, %v3278, 0
      %v3463 = vsel %vm3311, %v3279, 0
      %v3466 = vsel %vm3311, %v3280, 0
      %v3469 = vsel %vm3311, %v3281, 0
      %v3472 = vsel %vm3311, %v3282, 0
      %v3475 = vsel %vm3311, %v3283, 0
      %v3478 = vsel %vm3311, %v3284, 0
      %v3481 = vsel %vm3311, %v3285, 0
      %v3484 = vsel %vm3311, %v3286, 0
      %v3487 = vsel %vm3311, %v3287, 0
      %v3490 = vsel %vm3311, %v3288, 0
      %vm3492 = vcmask 1044480
      %vm3493 = vcmask 1045504
      %v3494 = vsel %vm3492, 4294967295, 65535
      %v3495 = vsel %vm3493, %v3494, 0
      %v3497 = vand.u32 %v3309, %v3495
      %3499 = vmatprep.subr.bf16.mxu0 0
      %3500 = vmatpush1.bf16.msra.mxu0 %v3308
      %3501 = vmatprep.subr.bf16.mxu0 0
      %3502 = vmatpush1.bf16.msra.mxu0 %v3497
      %3503 = vmatprep.subr.bf16.mxu0 0
      %3504 = vmatpush1.bf16.msra.mxu0 0
      %3505 = vmatprep.subr.bf16.mxu0 0
      %3506 = vmatpush1.bf16.msra.mxu0 0
      %3507 = vmatprep.subr.bf16.mxu0 0
      %3508 = vmatpush1.bf16.msra.mxu0 0
      %3509 = vmatprep.subr.bf16.mxu0 0
      %3510 = vmatpush1.bf16.msra.mxu0 0
      %3511 = vmatprep.subr.bf16.mxu0 0
      %3512 = vmatpush1.bf16.msra.mxu0 0
      %3513 = vmatprep.subr.bf16.mxu0 0
      %3514 = vmatpush1.bf16.msra.mxu0 0
      %3515 = vmatprep.subr.bf16.mxu0 0
      %3516 = vmatpush1.bf16.msra.mxu0 0
      %3517 = vmatprep.subr.bf16.mxu0 0
      %3518 = vmatpush1.bf16.msra.mxu0 0
      %3519 = vmatprep.subr.bf16.mxu0 0
      %3520 = vmatpush1.bf16.msra.mxu0 0
      %3521 = vmatprep.subr.bf16.mxu0 0
      %3522 = vmatpush1.bf16.msra.mxu0 0
      %3523 = vmatprep.subr.bf16.mxu0 0
      %3524 = vmatpush1.bf16.msra.mxu0 0
      %3525 = vmatprep.subr.bf16.mxu0 0
      %3526 = vmatpush1.bf16.msra.mxu0 0
      %3527 = vmatprep.subr.bf16.mxu0 0
      %3528 = vmatpush1.bf16.msra.mxu0 0
      %3529 = vmatprep.subr.bf16.mxu0 0
      %3530 = vmatpush1.bf16.msra.mxu0 0
      %3531 = vmatprep.mubr.bf16.mxu0 0
      %3532 = vmatmul.mubr.bf16.gmra.mrb[0].mxu0 %v3313
      %v3533 = vpop.f32.mrb[0].mxu0
      %v3534 = vadd.f32 %v3298, %v3533
      %v3535 = vpop.f32.mrb[0].mxu0
      %v3536 = vpop.f32.mrb[0].mxu0
      %v3537 = vadd.f32 %v3298, %v3536
      %v3538 = vpop.f32.mrb[0].mxu0
      %3539 = vmatprep.mubr.bf16.mxu0 0
      %3540 = vmatmul.mubr.bf16.gmra.mrb[0].mxu0 %v3316
      %v3541 = vpop.f32.mrb[0].mxu0
      %v3542 = vadd.f32 %v3298, %v3541
      %v3543 = vpop.f32.mrb[0].mxu0
      %v3544 = vpop.f32.mrb[0].mxu0
      %v3545 = vadd.f32 %v3298, %v3544
      %v3546 = vpop.f32.mrb[0].mxu0
      %3547 = vmatprep.mubr.bf16.mxu0 0
      %3548 = vmatmul.mubr.bf16.gmra.mrb[0].mxu0 %v3319
      %v3549 = vpop.f32.mrb[0].mxu0
      %v3550 = vadd.f32 %v3298, %v3549
      %v3551 = vpop.f32.mrb[0].mxu0
      %v3552 = vpop.f32.mrb[0].mxu0
      %v3553 = vadd.f32 %v3298, %v3552
      %v3554 = vpop.f32.mrb[0].mxu0
      %3555 = vmatprep.mubr.bf16.mxu0 0
      %3556 = vmatmul.mubr.bf16.gmra.mrb[0].mxu0 %v3322
      %v3557 = vpop.f32.mrb[0].mxu0
      %v3558 = vadd.f32 %v3298, %v3557
      %v3559 = vpop.f32.mrb[0].mxu0
      %v3560 = vpop.f32.mrb[0].mxu0
      %v3561 = vadd.f32 %v3298, %v3560
      %v3562 = vpop.f32.mrb[0].mxu0
      %3563 = vmatprep.mubr.bf16.mxu0 0
      %3564 = vmatmul.mubr.bf16.gmra.mrb[0].mxu0 %v3325
      %v3565 = vpop.f32.mrb[0].mxu0
      %v3566 = vadd.f32 %v3298, %v3565
      %v3567 = vpop.f32.mrb[0].mxu0
      %v3568 = vpop.f32.mrb[0].mxu0
      %v3569 = vadd.f32 %v3298, %v3568
      %v3570 = vpop.f32.mrb[0].mxu0
      %3571 = vmatprep.mubr.bf16.mxu0 0
      %3572 = vmatmul.mubr.bf16.gmra.mrb[0].mxu0 %v3328
      %v3573 = vpop.f32.mrb[0].mxu0
      %v3574 = vadd.f32 %v3298, %v3573
      %v3575 = vpop.f32.mrb[0].mxu0
      %v3576 = vpop.f32.mrb[0].mxu0
      %v3577 = vadd.f32 %v3298, %v3576
      %v3578 = vpop.f32.mrb[0].mxu0
      %3579 = vmatprep.mubr.bf16.mxu0 0
      %3580 = vmatmul.mubr.bf16.gmra.mrb[0].mxu0 %v3331
      %v3581 = vpop.f32.mrb[0].mxu0
      %v3582 = vadd.f32 %v3298, %v3581
      %v3583 = vpop.f32.mrb[0].mxu0
      %v3584 = vpop.f32.mrb[0].mxu0
      %v3585 = vadd.f32 %v3298, %v3584
      %v3586 = vpop.f32.mrb[0].mxu0
      %3587 = vmatprep.mubr.bf16.mxu0 0
      %3588 = vmatmul.mubr.bf16.gmra.mrb[0].mxu0 %v3334
      %v3589 = vpop.f32.mrb[0].mxu0
      %v3590 = vadd.f32 %v3298, %v3589
      %v3591 = vpop.f32.mrb[0].mxu0
      %v3592 = vpop.f32.mrb[0].mxu0
      %v3593 = vadd.f32 %v3298, %v3592
      %v3594 = vpop.f32.mrb[0].mxu0
      %3595 = vmatprep.mubr.bf16.mxu0 0
      %3596 = vmatmul.mubr.bf16.gmra.mrb[0].mxu0 %v3337
      %v3597 = vpop.f32.mrb[0].mxu0
      %v3598 = vadd.f32 %v3298, %v3597
      %v3599 = vpop.f32.mrb[0].mxu0
      %v3600 = vpop.f32.mrb[0].mxu0
      %v3601 = vadd.f32 %v3298, %v3600
      %v3602 = vpop.f32.mrb[0].mxu0
      %3603 = vmatprep.mubr.bf16.mxu0 0
      %3604 = vmatmul.mubr.bf16.gmra.mrb[0].mxu0 %v3340
      %v3605 = vpop.f32.mrb[0].mxu0
      %v3606 = vadd.f32 %v3298, %v3605
      %v3607 = vpop.f32.mrb[0].mxu0
      %v3608 = vpop.f32.mrb[0].mxu0
      %v3609 = vadd.f32 %v3298, %v3608
      %v3610 = vpop.f32.mrb[0].mxu0
      %3611 = vmatprep.mubr.bf16.mxu0 0
      %3612 = vmatmul.mubr.bf16.gmra.mrb[0].mxu0 %v3343
      %v3613 = vpop.f32.mrb[0].mxu0
      %v3614 = vadd.f32 %v3298, %v3613
      %v3615 = vpop.f32.mrb[0].mxu0
      %v3616 = vpop.f32.mrb[0].mxu0
      %v3617 = vadd.f32 %v3298, %v3616
      %v3618 = vpop.f32.mrb[0].mxu0
      %3619 = vmatprep.mubr.bf16.mxu0 0
      %3620 = vmatmul.mubr.bf16.gmra.mrb[0].mxu0 %v3346
      %v3621 = vpop.f32.mrb[0].mxu0
      %v3622 = vadd.f32 %v3298, %v3621
      %v3623 = vpop.f32.mrb[0].mxu0
      %v3624 = vpop.f32.mrb[0].mxu0
      %v3625 = vadd.f32 %v3298, %v3624
      %v3626 = vpop.f32.mrb[0].mxu0
      %3627 = vmatprep.mubr.bf16.mxu0 0
      %3628 = vmatmul.mubr.bf16.gmra.mrb[0].mxu0 %v3349
      %v3629 = vpop.f32.mrb[0].mxu0
      %v3630 = vadd.f32 %v3298, %v3629
      %v3631 = vpop.f32.mrb[0].mxu0
      %v3632 = vpop.f32.mrb[0].mxu0
      %v3633 = vadd.f32 %v3298, %v3632
      %v3634 = vpop.f32.mrb[0].mxu0
      %3635 = vmatprep.mubr.bf16.mxu0 0
      %3636 = vmatmul.mubr.bf16.gmra.mrb[0].mxu0 %v3352
      %v3637 = vpop.f32.mrb[0].mxu0
      %v3638 = vadd.f32 %v3298, %v3637
      %v3639 = vpop.f32.mrb[0].mxu0
      %v3640 = vpop.f32.mrb[0].mxu0
      %v3641 = vadd.f32 %v3298, %v3640
      %v3642 = vpop.f32.mrb[0].mxu0
      %3643 = vmatprep.mubr.bf16.mxu0 0
      %3644 = vmatmul.mubr.bf16.gmra.mrb[0].mxu0 %v3355
      %v3645 = vpop.f32.mrb[0].mxu0
      %v3646 = vadd.f32 %v3298, %v3645
      %v3647 = vpop.f32.mrb[0].mxu0
      %v3648 = vpop.f32.mrb[0].mxu0
      %v3649 = vadd.f32 %v3298, %v3648
      %v3650 = vpop.f32.mrb[0].mxu0
      %3651 = vmatprep.mubr.bf16.mxu0 0
      %3652 = vmatmul.mubr.bf16.gmra.mrb[0].mxu0 %v3358
      %v3653 = vpop.f32.mrb[0].mxu0
      %v3654 = vadd.f32 %v3298, %v3653
      %v3655 = vpop.f32.mrb[0].mxu0
      %v3656 = vpop.f32.mrb[0].mxu0
      %v3657 = vadd.f32 %v3298, %v3656
      %v3658 = vpop.f32.mrb[0].mxu0
      %3659 = vmatprep.mubr.bf16.mxu0 0
      %3660 = vmatmul.mubr.bf16.gmra.mrb[0].mxu0 %v3361
      %v3661 = vpop.f32.mrb[0].mxu0
      %v3662 = vadd.f32 %v3298, %v3661
      %v3663 = vpop.f32.mrb[0].mxu0
      %v3664 = vpop.f32.mrb[0].mxu0
      %v3665 = vadd.f32 %v3298, %v3664
      %v3666 = vpop.f32.mrb[0].mxu0
      %3667 = vmatprep.mubr.bf16.mxu0 0
      %3668 = vmatmul.mubr.bf16.gmra.mrb[0].mxu0 %v3364
      %v3669 = vpop.f32.mrb[0].mxu0
      %v3670 = vadd.f32 %v3298, %v3669
      %v3671 = vpop.f32.mrb[0].mxu0
      %v3672 = vpop.f32.mrb[0].mxu0
      %v3673 = vadd.f32 %v3298, %v3672
      %v3674 = vpop.f32.mrb[0].mxu0
      %3675 = vmatprep.mubr.bf16.mxu0 0
      %3676 = vmatmul.mubr.bf16.gmra.mrb[0].mxu0 %v3367
      %v3677 = vpop.f32.mrb[0].mxu0
      %v3678 = vadd.f32 %v3298, %v3677
      %v3679 = vpop.f32.mrb[0].mxu0
      %v3680 = vpop.f32.mrb[0].mxu0
      %v3681 = vadd.f32 %v3298, %v3680
      %v3682 = vpop.f32.mrb[0].mxu0
      %3683 = vmatprep.mubr.bf16.mxu0 0
      %3684 = vmatmul.mubr.bf16.gmra.mrb[0].mxu0 %v3370
      %v3685 = vpop.f32.mrb[0].mxu0
      %v3686 = vadd.f32 %v3298, %v3685
      %v3687 = vpop.f32.mrb[0].mxu0
      %v3688 = vpop.f32.mrb[0].mxu0
      %v3689 = vadd.f32 %v3298, %v3688
      %v3690 = vpop.f32.mrb[0].mxu0
      %3691 = vmatprep.mubr.bf16.mxu0 0
      %3692 = vmatmul.mubr.bf16.gmra.mrb[0].mxu0 %v3373
      %v3693 = vpop.f32.mrb[0].mxu0
      %v3694 = vadd.f32 %v3298, %v3693
      %v3695 = vpop.f32.mrb[0].mxu0
      %v3696 = vpop.f32.mrb[0].mxu0
      %v3697 = vadd.f32 %v3298, %v3696
      %v3698 = vpop.f32.mrb[0].mxu0
      %3699 = vmatprep.mubr.bf16.mxu0 0
      %3700 = vmatmul.mubr.bf16.gmra.mrb[0].mxu0 %v3376
      %v3701 = vpop.f32.mrb[0].mxu0
      %v3702 = vadd.f32 %v3298, %v3701
      %v3703 = vpop.f32.mrb[0].mxu0
      %v3704 = vpop.f32.mrb[0].mxu0
      %v3705 = vadd.f32 %v3298, %v3704
      %v3706 = vpop.f32.mrb[0].mxu0
      %3707 = vmatprep.mubr.bf16.mxu0 0
      %3708 = vmatmul.mubr.bf16.gmra.mrb[0].mxu0 %v3379
      %v3709 = vpop.f32.mrb[0].mxu0
      %v3710 = vadd.f32 %v3298, %v3709
      %v3711 = vpop.f32.mrb[0].mxu0
      %v3712 = vpop.f32.mrb[0].mxu0
      %v3713 = vadd.f32 %v3298, %v3712
      %v3714 = vpop.f32.mrb[0].mxu0
      %3715 = vmatprep.mubr.bf16.mxu0 0
      %3716 = vmatmul.mubr.bf16.gmra.mrb[0].mxu0 %v3382
      %v3717 = vpop.f32.mrb[0].mxu0
      %v3718 = vadd.f32 %v3298, %v3717
      %v3719 = vpop.f32.mrb[0].mxu0
      %v3720 = vpop.f32.mrb[0].mxu0
      %v3721 = vadd.f32 %v3298, %v3720
      %v3722 = vpop.f32.mrb[0].mxu0
      %3723 = vmatprep.mubr.bf16.mxu0 0
      %3724 = vmatmul.mubr.bf16.gmra.mrb[0].mxu0 %v3385
      %v3725 = vpop.f32.mrb[0].mxu0
      %v3726 = vadd.f32 %v3298, %v3725
      %v3727 = vpop.f32.mrb[0].mxu0
      %v3728 = vpop.f32.mrb[0].mxu0
      %v3729 = vadd.f32 %v3298, %v3728
      %v3730 = vpop.f32.mrb[0].mxu0
      %3731 = vmatprep.mubr.bf16.mxu0 0
      %3732 = vmatmul.mubr.bf16.gmra.mrb[0].mxu0 %v3388
      %v3733 = vpop.f32.mrb[0].mxu0
      %v3734 = vadd.f32 %v3298, %v3733
      %v3735 = vpop.f32.mrb[0].mxu0
      %v3736 = vpop.f32.mrb[0].mxu0
      %v3737 = vadd.f32 %v3298, %v3736
      %v3738 = vpop.f32.mrb[0].mxu0
      %3739 = vmatprep.mubr.bf16.mxu0 0
      %3740 = vmatmul.mubr.bf16.gmra.mrb[0].mxu0 %v3391
      %v3741 = vpop.f32.mrb[0].mxu0
      %v3742 = vadd.f32 %v3298, %v3741
      %v3743 = vpop.f32.mrb[0].mxu0
      %v3744 = vpop.f32.mrb[0].mxu0
      %v3745 = vadd.f32 %v3298, %v3744
      %v3746 = vpop.f32.mrb[0].mxu0
      %3747 = vmatprep.mubr.bf16.mxu0 0
      %3748 = vmatmul.mubr.bf16.gmra.mrb[0].mxu0 %v3394
      %v3749 = vpop.f32.mrb[0].mxu0
      %v3750 = vadd.f32 %v3298, %v3749
      %v3751 = vpop.f32.mrb[0].mxu0
      %v3752 = vpop.f32.mrb[0].mxu0
      %v3753 = vadd.f32 %v3298, %v3752
      %v3754 = vpop.f32.mrb[0].mxu0
      %3755 = vmatprep.mubr.bf16.mxu0 0
      %3756 = vmatmul.mubr.bf16.gmra.mrb[0].mxu0 %v3397
      %v3757 = vpop.f32.mrb[0].mxu0
      %v3758 = vadd.f32 %v3298, %v3757
      %v3759 = vpop.f32.mrb[0].mxu0
      %v3760 = vpop.f32.mrb[0].mxu0
      %v3761 = vadd.f32 %v3298, %v3760
      %v3762 = vpop.f32.mrb[0].mxu0
      %3763 = vmatprep.mubr.bf16.mxu0 0
      %3764 = vmatmul.mubr.bf16.gmra.mrb[0].mxu0 %v3400
      %v3765 = vpop.f32.mrb[0].mxu0
      %v3766 = vadd.f32 %v3298, %v3765
      %v3767 = vpop.f32.mrb[0].mxu0
      %v3768 = vpop.f32.mrb[0].mxu0
      %v3769 = vadd.f32 %v3298, %v3768
      %v3770 = vpop.f32.mrb[0].mxu0
      %3771 = vmatprep.mubr.bf16.mxu0 0
      %3772 = vmatmul.mubr.bf16.gmra.mrb[0].mxu0 %v3403
      %v3773 = vpop.f32.mrb[0].mxu0
      %v3774 = vadd.f32 %v3298, %v3773
      %v3775 = vpop.f32.mrb[0].mxu0
      %v3776 = vpop.f32.mrb[0].mxu0
      %v3777 = vadd.f32 %v3298, %v3776
      %v3778 = vpop.f32.mrb[0].mxu0
      %3779 = vmatprep.mubr.bf16.mxu0 0
      %3780 = vmatmul.mubr.bf16.gmra.mrb[0].mxu0 %v3406
      %v3781 = vpop.f32.mrb[0].mxu0
      %v3782 = vadd.f32 %v3298, %v3781
      %v3783 = vpop.f32.mrb[0].mxu0
      %v3784 = vpop.f32.mrb[0].mxu0
      %v3785 = vadd.f32 %v3298, %v3784
      %v3786 = vpop.f32.mrb[0].mxu0
      %3787 = vmatprep.mubr.bf16.mxu0 0
      %3788 = vmatmul.mubr.bf16.gmra.mrb[0].mxu0 %v3409
      %v3789 = vpop.f32.mrb[0].mxu0
      %v3790 = vadd.f32 %v3298, %v3789
      %v3791 = vpop.f32.mrb[0].mxu0
      %v3792 = vpop.f32.mrb[0].mxu0
      %v3793 = vadd.f32 %v3298, %v3792
      %v3794 = vpop.f32.mrb[0].mxu0
      %3795 = vmatprep.mubr.bf16.mxu0 0
      %3796 = vmatmul.mubr.bf16.gmra.mrb[0].mxu0 %v3412
      %v3797 = vpop.f32.mrb[0].mxu0
      %v3798 = vadd.f32 %v3298, %v3797
      %v3799 = vpop.f32.mrb[0].mxu0
      %v3800 = vpop.f32.mrb[0].mxu0
      %v3801 = vadd.f32 %v3298, %v3800
      %v3802 = vpop.f32.mrb[0].mxu0
      %3803 = vmatprep.mubr.bf16.mxu0 0
      %3804 = vmatmul.mubr.bf16.gmra.mrb[0].mxu0 %v3415
      %v3805 = vpop.f32.mrb[0].mxu0
      %v3806 = vadd.f32 %v3298, %v3805
      %v3807 = vpop.f32.mrb[0].mxu0
      %v3808 = vpop.f32.mrb[0].mxu0
      %v3809 = vadd.f32 %v3298, %v3808
      %v3810 = vpop.f32.mrb[0].mxu0
      %3811 = vmatprep.mubr.bf16.mxu0 0
      %3812 = vmatmul.mubr.bf16.gmra.mrb[0].mxu0 %v3418
      %v3813 = vpop.f32.mrb[0].mxu0
      %v3814 = vadd.f32 %v3298, %v3813
      %v3815 = vpop.f32.mrb[0].mxu0
      %v3816 = vpop.f32.mrb[0].mxu0
      %v3817 = vadd.f32 %v3298, %v3816
      %v3818 = vpop.f32.mrb[0].mxu0
      %3819 = vmatprep.mubr.bf16.mxu0 0
      %3820 = vmatmul.mubr.bf16.gmra.mrb[0].mxu0 %v3421
      %v3821 = vpop.f32.mrb[0].mxu0
      %v3822 = vadd.f32 %v3298, %v3821
      %v3823 = vpop.f32.mrb[0].mxu0
      %v3824 = vpop.f32.mrb[0].mxu0
      %v3825 = vadd.f32 %v3298, %v3824
      %v3826 = vpop.f32.mrb[0].mxu0
      %3827 = vmatprep.mubr.bf16.mxu0 0
      %3828 = vmatmul.mubr.bf16.gmra.mrb[0].mxu0 %v3424
      %v3829 = vpop.f32.mrb[0].mxu0
      %v3830 = vadd.f32 %v3298, %v3829
      %v3831 = vpop.f32.mrb[0].mxu0
      %v3832 = vpop.f32.mrb[0].mxu0
      %v3833 = vadd.f32 %v3298, %v3832
      %v3834 = vpop.f32.mrb[0].mxu0
      %3835 = vmatprep.mubr.bf16.mxu0 0
      %3836 = vmatmul.mubr.bf16.gmra.mrb[0].mxu0 %v3427
      %v3837 = vpop.f32.mrb[0].mxu0
      %v3838 = vadd.f32 %v3298, %v3837
      %v3839 = vpop.f32.mrb[0].mxu0
      %v3840 = vpop.f32.mrb[0].mxu0
      %v3841 = vadd.f32 %v3298, %v3840
      %v3842 = vpop.f32.mrb[0].mxu0
      %3843 = vmatprep.mubr.bf16.mxu0 0
      %3844 = vmatmul.mubr.bf16.gmra.mrb[0].mxu0 %v3430
      %v3845 = vpop.f32.mrb[0].mxu0
      %v3846 = vadd.f32 %v3298, %v3845
      %v3847 = vpop.f32.mrb[0].mxu0
      %v3848 = vpop.f32.mrb[0].mxu0
      %v3849 = vadd.f32 %v3298, %v3848
      %v3850 = vpop.f32.mrb[0].mxu0
      %3851 = vmatprep.mubr.bf16.mxu0 0
      %3852 = vmatmul.mubr.bf16.gmra.mrb[0].mxu0 %v3433
      %v3853 = vpop.f32.mrb[0].mxu0
      %v3854 = vadd.f32 %v3298, %v3853
      %v3855 = vpop.f32.mrb[0].mxu0
      %v3856 = vpop.f32.mrb[0].mxu0
      %v3857 = vadd.f32 %v3298, %v3856
      %v3858 = vpop.f32.mrb[0].mxu0
      %3859 = vmatprep.mubr.bf16.mxu0 0
      %3860 = vmatmul.mubr.bf16.gmra.mrb[0].mxu0 %v3436
      %v3861 = vpop.f32.mrb[0].mxu0
      %v3862 = vadd.f32 %v3298, %v3861
      %v3863 = vpop.f32.mrb[0].mxu0
      %v3864 = vpop.f32.mrb[0].mxu0
      %v3865 = vadd.f32 %v3298, %v3864
      %v3866 = vpop.f32.mrb[0].mxu0
      %3867 = vmatprep.mubr.bf16.mxu0 0
      %3868 = vmatmul.mubr.bf16.gmra.mrb[0].mxu0 %v3439
      %v3869 = vpop.f32.mrb[0].mxu0
      %v3870 = vadd.f32 %v3298, %v3869
      %v3871 = vpop.f32.mrb[0].mxu0
      %v3872 = vpop.f32.mrb[0].mxu0
      %v3873 = vadd.f32 %v3298, %v3872
      %v3874 = vpop.f32.mrb[0].mxu0
      %3875 = vmatprep.mubr.bf16.mxu0 0
      %3876 = vmatmul.mubr.bf16.gmra.mrb[0].mxu0 %v3442
      %v3877 = vpop.f32.mrb[0].mxu0
      %v3878 = vadd.f32 %v3298, %v3877
      %v3879 = vpop.f32.mrb[0].mxu0
      %v3880 = vpop.f32.mrb[0].mxu0
      %v3881 = vadd.f32 %v3298, %v3880
      %v3882 = vpop.f32.mrb[0].mxu0
      %3883 = vmatprep.mubr.bf16.mxu0 0
      %3884 = vmatmul.mubr.bf16.gmra.mrb[0].mxu0 %v3445
      %v3885 = vpop.f32.mrb[0].mxu0
      %v3886 = vadd.f32 %v3298, %v3885
      %v3887 = vpop.f32.mrb[0].mxu0
      %v3888 = vpop.f32.mrb[0].mxu0
      %v3889 = vadd.f32 %v3298, %v3888
      %v3890 = vpop.f32.mrb[0].mxu0
      %3891 = vmatprep.mubr.bf16.mxu0 0
      %3892 = vmatmul.mubr.bf16.gmra.mrb[0].mxu0 %v3448
      %v3893 = vpop.f32.mrb[0].mxu0
      %v3894 = vadd.f32 %v3298, %v3893
      %v3895 = vpop.f32.mrb[0].mxu0
      %v3896 = vpop.f32.mrb[0].mxu0
      %v3897 = vadd.f32 %v3298, %v3896
      %v3898 = vpop.f32.mrb[0].mxu0
      %3899 = vmatprep.mubr.bf16.mxu0 0
      %3900 = vmatmul.mubr.bf16.gmra.mrb[0].mxu0 %v3451
      %v3901 = vpop.f32.mrb[0].mxu0
      %v3902 = vadd.f32 %v3298, %v3901
      %v3903 = vpop.f32.mrb[0].mxu0
      %v3904 = vpop.f32.mrb[0].mxu0
      %v3905 = vadd.f32 %v3298, %v3904
      %v3906 = vpop.f32.mrb[0].mxu0
      %3907 = vmatprep.mubr.bf16.mxu0 0
      %3908 = vmatmul.mubr.bf16.gmra.mrb[0].mxu0 %v3454
      %v3909 = vpop.f32.mrb[0].mxu0
      %v3910 = vadd.f32 %v3298, %v3909
      %v3911 = vpop.f32.mrb[0].mxu0
      %v3912 = vpop.f32.mrb[0].mxu0
      %v3913 = vadd.f32 %v3298, %v3912
      %v3914 = vpop.f32.mrb[0].mxu0
      %3915 = vmatprep.mubr.bf16.mxu0 0
      %3916 = vmatmul.mubr.bf16.gmra.mrb[0].mxu0 %v3457
      %v3917 = vpop.f32.mrb[0].mxu0
      %v3918 = vadd.f32 %v3298, %v3917
      %v3919 = vpop.f32.mrb[0].mxu0
      %v3920 = vpop.f32.mrb[0].mxu0
      %v3921 = vadd.f32 %v3298, %v3920
      %v3922 = vpop.f32.mrb[0].mxu0
      %3923 = vmatprep.mubr.bf16.mxu0 0
      %3924 = vmatmul.mubr.bf16.gmra.mrb[0].mxu0 %v3460
      %v3925 = vpop.f32.mrb[0].mxu0
      %v3926 = vadd.f32 %v3298, %v3925
      %v3927 = vpop.f32.mrb[0].mxu0
      %v3928 = vpop.f32.mrb[0].mxu0
      %v3929 = vadd.f32 %v3298, %v3928
      %v3930 = vpop.f32.mrb[0].mxu0
      %3931 = vmatprep.mubr.bf16.mxu0 0
      %3932 = vmatmul.mubr.bf16.gmra.mrb[0].mxu0 %v3463
      %v3933 = vpop.f32.mrb[0].mxu0
      %v3934 = vadd.f32 %v3298, %v3933
      %v3935 = vpop.f32.mrb[0].mxu0
      %v3936 = vpop.f32.mrb[0].mxu0
      %v3937 = vadd.f32 %v3298, %v3936
      %v3938 = vpop.f32.mrb[0].mxu0
      %3939 = vmatprep.mubr.bf16.mxu0 0
      %3940 = vmatmul.mubr.bf16.gmra.mrb[0].mxu0 %v3466
      %v3941 = vpop.f32.mrb[0].mxu0
      %v3942 = vadd.f32 %v3298, %v3941
      %v3943 = vpop.f32.mrb[0].mxu0
      %v3944 = vpop.f32.mrb[0].mxu0
      %v3945 = vadd.f32 %v3298, %v3944
      %v3946 = vpop.f32.mrb[0].mxu0
      %3947 = vmatprep.mubr.bf16.mxu0 0
      %3948 = vmatmul.mubr.bf16.gmra.mrb[0].mxu0 %v3469
      %v3949 = vpop.f32.mrb[0].mxu0
      %v3950 = vadd.f32 %v3298, %v3949
      %v3951 = vpop.f32.mrb[0].mxu0
      %v3952 = vpop.f32.mrb[0].mxu0
      %v3953 = vadd.f32 %v3298, %v3952
      %v3954 = vpop.f32.mrb[0].mxu0
      %3955 = vmatprep.mubr.bf16.mxu0 0
      %3956 = vmatmul.mubr.bf16.gmra.mrb[0].mxu0 %v3472
      %v3957 = vpop.f32.mrb[0].mxu0
      %v3958 = vadd.f32 %v3298, %v3957
      %v3959 = vpop.f32.mrb[0].mxu0
      %v3960 = vpop.f32.mrb[0].mxu0
      %v3961 = vadd.f32 %v3298, %v3960
      %v3962 = vpop.f32.mrb[0].mxu0
      %3963 = vmatprep.mubr.bf16.mxu0 0
      %3964 = vmatmul.mubr.bf16.gmra.mrb[0].mxu0 %v3475
      %v3965 = vpop.f32.mrb[0].mxu0
      %v3966 = vadd.f32 %v3298, %v3965
      %v3967 = vpop.f32.mrb[0].mxu0
      %v3968 = vpop.f32.mrb[0].mxu0
      %v3969 = vadd.f32 %v3298, %v3968
      %v3970 = vpop.f32.mrb[0].mxu0
      %3971 = vmatprep.mubr.bf16.mxu0 0
      %3972 = vmatmul.mubr.bf16.gmra.mrb[0].mxu0 %v3478
      %v3973 = vpop.f32.mrb[0].mxu0
      %v3974 = vadd.f32 %v3298, %v3973
      %v3975 = vpop.f32.mrb[0].mxu0
      %v3976 = vpop.f32.mrb[0].mxu0
      %v3977 = vadd.f32 %v3298, %v3976
      %v3978 = vpop.f32.mrb[0].mxu0
      %3979 = vmatprep.mubr.bf16.mxu0 0
      %3980 = vmatmul.mubr.bf16.gmra.mrb[0].mxu0 %v3481
      %v3981 = vpop.f32.mrb[0].mxu0
      %v3982 = vadd.f32 %v3298, %v3981
      %v3983 = vpop.f32.mrb[0].mxu0
      %v3984 = vpop.f32.mrb[0].mxu0
      %v3985 = vadd.f32 %v3298, %v3984
      %v3986 = vpop.f32.mrb[0].mxu0
      %3987 = vmatprep.mubr.bf16.mxu0 0
      %3988 = vmatmul.mubr.bf16.gmra.mrb[0].mxu0 %v3484
      %v3989 = vpop.f32.mrb[0].mxu0
      %v3990 = vadd.f32 %v3298, %v3989
      %v3991 = vpop.f32.mrb[0].mxu0
      %v3992 = vpop.f32.mrb[0].mxu0
      %v3993 = vadd.f32 %v3298, %v3992
      %v3994 = vpop.f32.mrb[0].mxu0
      %3995 = vmatprep.mubr.bf16.mxu0 0
      %3996 = vmatmul.mubr.bf16.gmra.mrb[0].mxu0 %v3487
      %v3997 = vpop.f32.mrb[0].mxu0
      %v3998 = vadd.f32 %v3298, %v3997
      %v3999 = vpop.f32.mrb[0].mxu0
      %v4000 = vpop.f32.mrb[0].mxu0
      %v4001 = vadd.f32 %v3298, %v4000
      %v4002 = vpop.f32.mrb[0].mxu0
      %4003 = vmatprep.mubr.bf16.mxu0 0
      %4004 = vmatmul.mubr.bf16.gmra.mrb[0].mxu0 %v3490
      %v4005 = vpop.f32.mrb[0].mxu0
      %v4006 = vadd.f32 %v3298, %v4005
      %v4007 = vpop.f32.mrb[0].mxu0
      %v4008 = vpop.f32.mrb[0].mxu0
      %v4009 = vadd.f32 %v3298, %v4008
      %v4010 = vpop.f32.mrb[0].mxu0
      %4011 = vdwg.mxu0
      %v4012 = vmul.f32 %v3534, 0.5
      %v4013 = vmul.f32 %v3537, 0.5
      %v4014 = vmul.f32 %v3542, 0.5
      %v4015 = vmul.f32 %v3545, 0.5
      %v4016 = vmul.f32 %v3550, 0.5
      %v4017 = vmul.f32 %v3553, 0.5
      %v4018 = vmul.f32 %v3558, 0.5
      %v4019 = vmul.f32 %v3561, 0.5
      %v4020 = vmul.f32 %v3566, 0.5
      %v4021 = vmul.f32 %v3569, 0.5
      %v4022 = vmul.f32 %v3574, 0.5
      %v4023 = vmul.f32 %v3577, 0.5
      %v4024 = vmul.f32 %v3582, 0.5
      %v4025 = vmul.f32 %v3585, 0.5
      %v4026 = vmul.f32 %v3590, 0.5
      %v4027 = vmul.f32 %v3593, 0.5
      %v4028 = vmul.f32 %v3598, 0.5
      %v4029 = vmul.f32 %v3601, 0.5
      %v4030 = vmul.f32 %v3606, 0.5
      %v4031 = vmul.f32 %v3609, 0.5
      %v4032 = vmul.f32 %v3614, 0.5
      %v4033 = vmul.f32 %v3617, 0.5
      %v4034 = vmul.f32 %v3622, 0.5
      %v4035 = vmul.f32 %v3625, 0.5
      %v4036 = vmul.f32 %v3630, 0.5
      %v4037 = vmul.f32 %v3633, 0.5
      %v4038 = vmul.f32 %v3638, 0.5
      %v4039 = vmul.f32 %v3641, 0.5
      %v4040 = vmul.f32 %v3646, 0.5
      %v4041 = vmul.f32 %v3649, 0.5
      %v4042 = vmul.f32 %v3654, 0.5
      %v4043 = vmul.f32 %v3657, 0.5
      %v4044 = vmul.f32 %v3662, 0.5
      %v4045 = vmul.f32 %v3665, 0.5
      %v4046 = vmul.f32 %v3670, 0.5
      %v4047 = vmul.f32 %v3673, 0.5
      %v4048 = vmul.f32 %v3678, 0.5
      %v4049 = vmul.f32 %v3681, 0.5
      %v4050 = vmul.f32 %v3686, 0.5
      %v4051 = vmul.f32 %v3689, 0.5
      %v4052 = vmul.f32 %v3694, 0.5
      %v4053 = vmul.f32 %v3697, 0.5
      %v4054 = vmul.f32 %v3702, 0.5
      %v4055 = vmul.f32 %v3705, 0.5
      %v4056 = vmul.f32 %v3710, 0.5
      %v4057 = vmul.f32 %v3713, 0.5
      %v4058 = vmul.f32 %v3718, 0.5
      %v4059 = vmul.f32 %v3721, 0.5
      %v4060 = vmul.f32 %v3726, 0.5
      %v4061 = vmul.f32 %v3729, 0.5
      %v4062 = vmul.f32 %v3734, 0.5
      %v4063 = vmul.f32 %v3737, 0.5
      %v4064 = vmul.f32 %v3742, 0.5
      %v4065 = vmul.f32 %v3745, 0.5
      %v4066 = vmul.f32 %v3750, 0.5
      %v4067 = vmul.f32 %v3753, 0.5
      %v4068 = vmul.f32 %v3758, 0.5
      %v4069 = vmul.f32 %v3761, 0.5
      %v4070 = vmul.f32 %v3766, 0.5
      %v4071 = vmul.f32 %v3769, 0.5
      %v4072 = vmul.f32 %v3774, 0.5
      %v4073 = vmul.f32 %v3777, 0.5
      %v4074 = vmul.f32 %v3782, 0.5
      %v4075 = vmul.f32 %v3785, 0.5
      %v4076 = vmul.f32 %v3790, 0.5
      %v4077 = vmul.f32 %v3793, 0.5
      %v4078 = vmul.f32 %v3798, 0.5
      %v4079 = vmul.f32 %v3801, 0.5
      %v4080 = vmul.f32 %v3806, 0.5
      %v4081 = vmul.f32 %v3809, 0.5
      %v4082 = vmul.f32 %v3814, 0.5
      %v4083 = vmul.f32 %v3817, 0.5
      %v4084 = vmul.f32 %v3822, 0.5
      %v4085 = vmul.f32 %v3825, 0.5
      %v4086 = vmul.f32 %v3830, 0.5
      %v4087 = vmul.f32 %v3833, 0.5
      %v4088 = vmul.f32 %v3838, 0.5
      %v4089 = vmul.f32 %v3841, 0.5
      %v4090 = vmul.f32 %v3846, 0.5
      %v4091 = vmul.f32 %v3849, 0.5
      %v4092 = vmul.f32 %v3854, 0.5
      %v4093 = vmul.f32 %v3857, 0.5
      %v4094 = vmul.f32 %v3862, 0.5
      %v4095 = vmul.f32 %v3865, 0.5
      %v4096 = vmul.f32 %v3870, 0.5
      %v4097 = vmul.f32 %v3873, 0.5
      %v4098 = vmul.f32 %v3878, 0.5
      %v4099 = vmul.f32 %v3881, 0.5
      %v4100 = vmul.f32 %v3886, 0.5
      %v4101 = vmul.f32 %v3889, 0.5
      %v4102 = vmul.f32 %v3894, 0.5
      %v4103 = vmul.f32 %v3897, 0.5
      %v4104 = vmul.f32 %v3902, 0.5
      %v4105 = vmul.f32 %v3905, 0.5
      %v4106 = vmul.f32 %v3910, 0.5
      %v4107 = vmul.f32 %v3913, 0.5
      %v4108 = vmul.f32 %v3918, 0.5
      %v4109 = vmul.f32 %v3921, 0.5
      %v4110 = vmul.f32 %v3926, 0.5
      %v4111 = vmul.f32 %v3929, 0.5
      %v4112 = vmul.f32 %v3934, 0.5
      %v4113 = vmul.f32 %v3937, 0.5
      %v4114 = vmul.f32 %v3942, 0.5
      %v4115 = vmul.f32 %v3945, 0.5
      %v4116 = vmul.f32 %v3950, 0.5
      %v4117 = vmul.f32 %v3953, 0.5
      %v4118 = vmul.f32 %v3958, 0.5
      %v4119 = vmul.f32 %v3961, 0.5
      %v4120 = vmul.f32 %v3966, 0.5
      %v4121 = vmul.f32 %v3969, 0.5
      %v4122 = vmul.f32 %v3974, 0.5
      %v4123 = vmul.f32 %v3977, 0.5
      %v4124 = vmul.f32 %v3982, 0.5
      %v4125 = vmul.f32 %v3985, 0.5
      %v4126 = vmul.f32 %v3990, 0.5
      %v4127 = vmul.f32 %v3993, 0.5
      %v4128 = vmul.f32 %v3998, 0.5
      %v4129 = vmul.f32 %v4001, 0.5
      %v4130 = vmul.f32 %v4006, 0.5
      %v4131 = vmul.f32 %v4009, 0.5
      %v4132 = vmul.f32 %v3534, 0.70710677
      %v4133 = vmul.f32 %v3537, 0.70710677
      %v4134 = vmul.f32 %v3542, 0.70710677
      %v4135 = vmul.f32 %v3545, 0.70710677
      %v4136 = vmul.f32 %v3550, 0.70710677
      %v4137 = vmul.f32 %v3553, 0.70710677
      %v4138 = vmul.f32 %v3558, 0.70710677
      %v4139 = vmul.f32 %v3561, 0.70710677
      %v4140 = vmul.f32 %v3566, 0.70710677
      %v4141 = vmul.f32 %v3569, 0.70710677
      %v4142 = vmul.f32 %v3574, 0.70710677
      %v4143 = vmul.f32 %v3577, 0.70710677
      %v4144 = vmul.f32 %v3582, 0.70710677
      %v4145 = vmul.f32 %v3585, 0.70710677
      %v4146 = vmul.f32 %v3590, 0.70710677
      %v4147 = vmul.f32 %v3593, 0.70710677
      %v4148 = vmul.f32 %v3598, 0.70710677
      %v4149 = vmul.f32 %v3601, 0.70710677
      %v4150 = vmul.f32 %v3606, 0.70710677
      %v4151 = vmul.f32 %v3609, 0.70710677
      %v4152 = vmul.f32 %v3614, 0.70710677
      %v4153 = vmul.f32 %v3617, 0.70710677
      %v4154 = vmul.f32 %v3622, 0.70710677
      %v4155 = vmul.f32 %v3625, 0.70710677
      %v4156 = vmul.f32 %v3630, 0.70710677
      %v4157 = vmul.f32 %v3633, 0.70710677
      %v4158 = vmul.f32 %v3638, 0.70710677
      %v4159 = vmul.f32 %v3641, 0.70710677
      %v4160 = vmul.f32 %v3646, 0.70710677
      %v4161 = vmul.f32 %v3649, 0.70710677
      %v4162 = vmul.f32 %v3654, 0.70710677
      %v4163 = vmul.f32 %v3657, 0.70710677
      %v4164 = vmul.f32 %v3662, 0.70710677
      %v4165 = vmul.f32 %v3665, 0.70710677
      %v4166 = vmul.f32 %v3670, 0.70710677
      %v4167 = vmul.f32 %v3673, 0.70710677
      %v4168 = vmul.f32 %v3678, 0.70710677
      %v4169 = vmul.f32 %v3681, 0.70710677
      %v4170 = vmul.f32 %v3686, 0.70710677
      %v4171 = vmul.f32 %v3689, 0.70710677
      %v4172 = vmul.f32 %v3694, 0.70710677
      %v4173 = vmul.f32 %v3697, 0.70710677
      %v4174 = vmul.f32 %v3702, 0.70710677
      %v4175 = vmul.f32 %v3705, 0.70710677
      %v4176 = vmul.f32 %v3710, 0.70710677
      %v4177 = vmul.f32 %v3713, 0.70710677
      %v4178 = vmul.f32 %v3718, 0.70710677
      %v4179 = vmul.f32 %v3721, 0.70710677
      %v4180 = vmul.f32 %v3726, 0.70710677
      %v4181 = vmul.f32 %v3729, 0.70710677
      %v4182 = vmul.f32 %v3734, 0.70710677
      %v4183 = vmul.f32 %v3737, 0.70710677
      %v4184 = vmul.f32 %v3742, 0.70710677
      %v4185 = vmul.f32 %v3745, 0.70710677
      %v4186 = vmul.f32 %v3750, 0.70710677
      %v4187 = vmul.f32 %v3753, 0.70710677
      %v4188 = vmul.f32 %v3758, 0.70710677
      %v4189 = vmul.f32 %v3761, 0.70710677
      %v4190 = vmul.f32 %v3766, 0.70710677
      %v4191 = vmul.f32 %v3769, 0.70710677
      %v4192 = vmul.f32 %v3774, 0.70710677
      %v4193 = vmul.f32 %v3777, 0.70710677
      %v4194 = vmul.f32 %v3782, 0.70710677
      %v4195 = vmul.f32 %v3785, 0.70710677
      %v4196 = vmul.f32 %v3790, 0.70710677
      %v4197 = vmul.f32 %v3793, 0.70710677
      %v4198 = vmul.f32 %v3798, 0.70710677
      %v4199 = vmul.f32 %v3801, 0.70710677
      %v4200 = vmul.f32 %v3806, 0.70710677
      %v4201 = vmul.f32 %v3809, 0.70710677
      %v4202 = vmul.f32 %v3814, 0.70710677
      %v4203 = vmul.f32 %v3817, 0.70710677
      %v4204 = vmul.f32 %v3822, 0.70710677
      %v4205 = vmul.f32 %v3825, 0.70710677
      %v4206 = vmul.f32 %v3830, 0.70710677
      %v4207 = vmul.f32 %v3833, 0.70710677
      %v4208 = vmul.f32 %v3838, 0.70710677
      %v4209 = vmul.f32 %v3841, 0.70710677
      %v4210 = vmul.f32 %v3846, 0.70710677
      %v4211 = vmul.f32 %v3849, 0.70710677
      %v4212 = vmul.f32 %v3854, 0.70710677
      %v4213 = vmul.f32 %v3857, 0.70710677
      %v4214 = vmul.f32 %v3862, 0.70710677
      %v4215 = vmul.f32 %v3865, 0.70710677
      %v4216 = vmul.f32 %v3870, 0.70710677
      %v4217 = vmul.f32 %v3873, 0.70710677
      %v4218 = vmul.f32 %v3878, 0.70710677
      %v4219 = vmul.f32 %v3881, 0.70710677
      %v4220 = vmul.f32 %v3886, 0.70710677
      %v4221 = vmul.f32 %v3889, 0.70710677
      %v4222 = vmul.f32 %v3894, 0.70710677
      %v4223 = vmul.f32 %v3897, 0.70710677
      %v4224 = vmul.f32 %v3902, 0.70710677
      %v4225 = vmul.f32 %v3905, 0.70710677
      %v4226 = vmul.f32 %v3910, 0.70710677
      %v4227 = vmul.f32 %v3913, 0.70710677
      %v4228 = vmul.f32 %v3918, 0.70710677
      %v4229 = vmul.f32 %v3921, 0.70710677
      %v4230 = vmul.f32 %v3926, 0.70710677
      %v4231 = vmul.f32 %v3929, 0.70710677
      %v4232 = vmul.f32 %v3934, 0.70710677
      %v4233 = vmul.f32 %v3937, 0.70710677
      %v4234 = vmul.f32 %v3942, 0.70710677
      %v4235 = vmul.f32 %v3945, 0.70710677
      %v4236 = vmul.f32 %v3950, 0.70710677
      %v4237 = vmul.f32 %v3953, 0.70710677
      %v4238 = vmul.f32 %v3958, 0.70710677
      %v4239 = vmul.f32 %v3961, 0.70710677
      %v4240 = vmul.f32 %v3966, 0.70710677
      %v4241 = vmul.f32 %v3969, 0.70710677
      %v4242 = vmul.f32 %v3974, 0.70710677
      %v4243 = vmul.f32 %v3977, 0.70710677
      %v4244 = vmul.f32 %v3982, 0.70710677
      %v4245 = vmul.f32 %v3985, 0.70710677
      %v4246 = vmul.f32 %v3990, 0.70710677
      %v4247 = vmul.f32 %v3993, 0.70710677
      %v4248 = vmul.f32 %v3998, 0.70710677
      %v4249 = vmul.f32 %v4001, 0.70710677
      %v4250 = vmul.f32 %v4006, 0.70710677
      %v4251 = vmul.f32 %v4009, 0.70710677
      %v4252 = verf.f32.pop %v4132
      %v4253 = verf.f32.pop %v4133
      %v4254 = verf.f32.pop %v4134
      %v4255 = verf.f32.pop %v4135
      %v4256 = verf.f32.pop %v4136
      %v4257 = verf.f32.pop %v4137
      %v4258 = verf.f32.pop %v4138
      %v4259 = verf.f32.pop %v4139
      %v4260 = verf.f32.pop %v4140
      %v4261 = verf.f32.pop %v4141
      %v4262 = verf.f32.pop %v4142
      %v4263 = verf.f32.pop %v4143
      %v4264 = verf.f32.pop %v4144
      %v4265 = verf.f32.pop %v4145
      %v4266 = verf.f32.pop %v4146
      %v4267 = verf.f32.pop %v4147
      %v4268 = verf.f32.pop %v4148
      %v4269 = verf.f32.pop %v4149
      %v4270 = verf.f32.pop %v4150
      %v4271 = verf.f32.pop %v4151
      %v4272 = verf.f32.pop %v4152
      %v4273 = verf.f32.pop %v4153
      %v4274 = verf.f32.pop %v4154
      %v4275 = verf.f32.pop %v4155
      %v4276 = verf.f32.pop %v4156
      %v4277 = verf.f32.pop %v4157
      %v4278 = verf.f32.pop %v4158
      %v4279 = verf.f32.pop %v4159
      %v4280 = verf.f32.pop %v4160
      %v4281 = verf.f32.pop %v4161
      %v4282 = verf.f32.pop %v4162
      %v4283 = verf.f32.pop %v4163
      %v4284 = verf.f32.pop %v4164
      %v4285 = verf.f32.pop %v4165
      %v4286 = verf.f32.pop %v4166
      %v4287 = verf.f32.pop %v4167
      %v4288 = verf.f32.pop %v4168
      %v4289 = verf.f32.pop %v4169
      %v4290 = verf.f32.pop %v4170
      %v4291 = verf.f32.pop %v4171
      %v4292 = verf.f32.pop %v4172
      %v4293 = verf.f32.pop %v4173
      %v4294 = verf.f32.pop %v4174
      %v4295 = verf.f32.pop %v4175
      %v4296 = verf.f32.pop %v4176
      %v4297 = verf.f32.pop %v4177
      %v4298 = verf.f32.pop %v4178
      %v4299 = verf.f32.pop %v4179
      %v4300 = verf.f32.pop %v4180
      %v4301 = verf.f32.pop %v4181
      %v4302 = verf.f32.pop %v4182
      %v4303 = verf.f32.pop %v4183
      %v4304 = verf.f32.pop %v4184
      %v4305 = verf.f32.pop %v4185
      %v4306 = verf.f32.pop %v4186
      %v4307 = verf.f32.pop %v4187
      %v4308 = verf.f32.pop %v4188
      %v4309 = verf.f32.pop %v4189
      %v4310 = verf.f32.pop %v4190
      %v4311 = verf.f32.pop %v4191
      %v4312 = verf.f32.pop %v4192
      %v4313 = verf.f32.pop %v4193
      %v4314 = verf.f32.pop %v4194
      %v4315 = verf.f32.pop %v4195
      %v4316 = verf.f32.pop %v4196
      %v4317 = verf.f32.pop %v4197
      %v4318 = verf.f32.pop %v4198
      %v4319 = verf.f32.pop %v4199
      %v4320 = verf.f32.pop %v4200
      %v4321 = verf.f32.pop %v4201
      %v4322 = verf.f32.pop %v4202
      %v4323 = verf.f32.pop %v4203
      %v4324 = verf.f32.pop %v4204
      %v4325 = verf.f32.pop %v4205
      %v4326 = verf.f32.pop %v4206
      %v4327 = verf.f32.pop %v4207
      %v4328 = verf.f32.pop %v4208
      %v4329 = verf.f32.pop %v4209
      %v4330 = verf.f32.pop %v4210
      %v4331 = verf.f32.pop %v4211
      %v4332 = verf.f32.pop %v4212
      %v4333 = verf.f32.pop %v4213
      %v4334 = verf.f32.pop %v4214
      %v4335 = verf.f32.pop %v4215
      %v4336 = verf.f32.pop %v4216
      %v4337 = verf.f32.pop %v4217
      %v4338 = verf.f32.pop %v4218
      %v4339 = verf.f32.pop %v4219
      %v4340 = verf.f32.pop %v4220
      %v4341 = verf.f32.pop %v4221
      %v4342 = verf.f32.pop %v4222
      %v4343 = verf.f32.pop %v4223
      %v4344 = verf.f32.pop %v4224
      %v4345 = verf.f32.pop %v4225
      %v4346 = verf.f32.pop %v4226
      %v4347 = verf.f32.pop %v4227
      %v4348 = verf.f32.pop %v4228
      %v4349 = verf.f32.pop %v4229
      %v4350 = verf.f32.pop %v4230
      %v4351 = verf.f32.pop %v4231
      %v4352 = verf.f32.pop %v4232
      %v4353 = verf.f32.pop %v4233
      %v4354 = verf.f32.pop %v4234
      %v4355 = verf.f32.pop %v4235
      %v4356 = verf.f32.pop %v4236
      %v4357 = verf.f32.pop %v4237
      %v4358 = verf.f32.pop %v4238
      %v4359 = verf.f32.pop %v4239
      %v4360 = verf.f32.pop %v4240
      %v4361 = verf.f32.pop %v4241
      %v4362 = verf.f32.pop %v4242
      %v4363 = verf.f32.pop %v4243
      %v4364 = verf.f32.pop %v4244
      %v4365 = verf.f32.pop %v4245
      %v4366 = verf.f32.pop %v4246
      %v4367 = verf.f32.pop %v4247
      %v4368 = verf.f32.pop %v4248
      %v4369 = verf.f32.pop %v4249
      %v4370 = verf.f32.pop %v4250
      %v4371 = verf.f32.pop %v4251
      %v4372 = vadd.f32 %v4252, 1.0
      %v4373 = vadd.f32 %v4253, 1.0
      %v4374 = vadd.f32 %v4254, 1.0
      %v4375 = vadd.f32 %v4255, 1.0
      %v4376 = vadd.f32 %v4256, 1.0
      %v4377 = vadd.f32 %v4257, 1.0
      %v4378 = vadd.f32 %v4258, 1.0
      %v4379 = vadd.f32 %v4259, 1.0
      %v4380 = vadd.f32 %v4260, 1.0
      %v4381 = vadd.f32 %v4261, 1.0
      %v4382 = vadd.f32 %v4262, 1.0
      %v4383 = vadd.f32 %v4263, 1.0
      %v4384 = vadd.f32 %v4264, 1.0
      %v4385 = vadd.f32 %v4265, 1.0
      %v4386 = vadd.f32 %v4266, 1.0
      %v4387 = vadd.f32 %v4267, 1.0
      %v4388 = vadd.f32 %v4268, 1.0
      %v4389 = vadd.f32 %v4269, 1.0
      %v4390 = vadd.f32 %v4270, 1.0
      %v4391 = vadd.f32 %v4271, 1.0
      %v4392 = vadd.f32 %v4272, 1.0
      %v4393 = vadd.f32 %v4273, 1.0
      %v4394 = vadd.f32 %v4274, 1.0
      %v4395 = vadd.f32 %v4275, 1.0
      %v4396 = vadd.f32 %v4276, 1.0
      %v4397 = vadd.f32 %v4277, 1.0
      %v4398 = vadd.f32 %v4278, 1.0
      %v4399 = vadd.f32 %v4279, 1.0
      %v4400 = vadd.f32 %v4280, 1.0
      %v4401 = vadd.f32 %v4281, 1.0
      %v4402 = vadd.f32 %v4282, 1.0
      %v4403 = vadd.f32 %v4283, 1.0
      %v4404 = vadd.f32 %v4284, 1.0
      %v4405 = vadd.f32 %v4285, 1.0
      %v4406 = vadd.f32 %v4286, 1.0
      %v4407 = vadd.f32 %v4287, 1.0
      %v4408 = vadd.f32 %v4288, 1.0
      %v4409 = vadd.f32 %v4289, 1.0
      %v4410 = vadd.f32 %v4290, 1.0
      %v4411 = vadd.f32 %v4291, 1.0
      %v4412 = vadd.f32 %v4292, 1.0
      %v4413 = vadd.f32 %v4293, 1.0
      %v4414 = vadd.f32 %v4294, 1.0
      %v4415 = vadd.f32 %v4295, 1.0
      %v4416 = vadd.f32 %v4296, 1.0
      %v4417 = vadd.f32 %v4297, 1.0
      %v4418 = vadd.f32 %v4298, 1.0
      %v4419 = vadd.f32 %v4299, 1.0
      %v4420 = vadd.f32 %v4300, 1.0
      %v4421 = vadd.f32 %v4301, 1.0
      %v4422 = vadd.f32 %v4302, 1.0
      %v4423 = vadd.f32 %v4303, 1.0
      %v4424 = vadd.f32 %v4304, 1.0
      %v4425 = vadd.f32 %v4305, 1.0
      %v4426 = vadd.f32 %v4306, 1.0
      %v4427 = vadd.f32 %v4307, 1.0
      %v4428 = vadd.f32 %v4308, 1.0
      %v4429 = vadd.f32 %v4309, 1.0
      %v4430 = vadd.f32 %v4310, 1.0
      %v4431 = vadd.f32 %v4311, 1.0
      %v4432 = vadd.f32 %v4312, 1.0
      %v4433 = vadd.f32 %v4313, 1.0
      %v4434 = vadd.f32 %v4314, 1.0
      %v4435 = vadd.f32 %v4315, 1.0
      %v4436 = vadd.f32 %v4316, 1.0
      %v4437 = vadd.f32 %v4317, 1.0
      %v4438 = vadd.f32 %v4318, 1.0
      %v4439 = vadd.f32 %v4319, 1.0
      %v4440 = vadd.f32 %v4320, 1.0
      %v4441 = vadd.f32 %v4321, 1.0
      %v4442 = vadd.f32 %v4322, 1.0
      %v4443 = vadd.f32 %v4323, 1.0
      %v4444 = vadd.f32 %v4324, 1.0
      %v4445 = vadd.f32 %v4325, 1.0
      %v4446 = vadd.f32 %v4326, 1.0
      %v4447 = vadd.f32 %v4327, 1.0
      %v4448 = vadd.f32 %v4328, 1.0
      %v4449 = vadd.f32 %v4329, 1.0
      %v4450 = vadd.f32 %v4330, 1.0
      %v4451 = vadd.f32 %v4331, 1.0
      %v4452 = vadd.f32 %v4332, 1.0
      %v4453 = vadd.f32 %v4333, 1.0
      %v4454 = vadd.f32 %v4334, 1.0
      %v4455 = vadd.f32 %v4335, 1.0
      %v4456 = vadd.f32 %v4336, 1.0
      %v4457 = vadd.f32 %v4337, 1.0
      %v4458 = vadd.f32 %v4338, 1.0
      %v4459 = vadd.f32 %v4339, 1.0
      %v4460 = vadd.f32 %v4340, 1.0
      %v4461 = vadd.f32 %v4341, 1.0
      %v4462 = vadd.f32 %v4342, 1.0
      %v4463 = vadd.f32 %v4343, 1.0
      %v4464 = vadd.f32 %v4344, 1.0
      %v4465 = vadd.f32 %v4345, 1.0
      %v4466 = vadd.f32 %v4346, 1.0
      %v4467 = vadd.f32 %v4347, 1.0
      %v4468 = vadd.f32 %v4348, 1.0
      %v4469 = vadd.f32 %v4349, 1.0
      %v4470 = vadd.f32 %v4350, 1.0
      %v4471 = vadd.f32 %v4351, 1.0
      %v4472 = vadd.f32 %v4352, 1.0
      %v4473 = vadd.f32 %v4353, 1.0
      %v4474 = vadd.f32 %v4354, 1.0
      %v4475 = vadd.f32 %v4355, 1.0
      %v4476 = vadd.f32 %v4356, 1.0
      %v4477 = vadd.f32 %v4357, 1.0
      %v4478 = vadd.f32 %v4358, 1.0
      %v4479 = vadd.f32 %v4359, 1.0
      %v4480 = vadd.f32 %v4360, 1.0
      %v4481 = vadd.f32 %v4361, 1.0
      %v4482 = vadd.f32 %v4362, 1.0
      %v4483 = vadd.f32 %v4363, 1.0
      %v4484 = vadd.f32 %v4364, 1.0
      %v4485 = vadd.f32 %v4365, 1.0
      %v4486 = vadd.f32 %v4366, 1.0
      %v4487 = vadd.f32 %v4367, 1.0
      %v4488 = vadd.f32 %v4368, 1.0
      %v4489 = vadd.f32 %v4369, 1.0
      %v4490 = vadd.f32 %v4370, 1.0
      %v4491 = vadd.f32 %v4371, 1.0
      %v4492 = vmul.f32 %v4012, %v4372
      %v4493 = vmul.f32 %v4013, %v4373
      %v4494 = vmul.f32 %v4014, %v4374
      %v4495 = vmul.f32 %v4015, %v4375
      %v4496 = vmul.f32 %v4016, %v4376
      %v4497 = vmul.f32 %v4017, %v4377
      %v4498 = vmul.f32 %v4018, %v4378
      %v4499 = vmul.f32 %v4019, %v4379
      %v4500 = vmul.f32 %v4020, %v4380
      %v4501 = vmul.f32 %v4021, %v4381
      %v4502 = vmul.f32 %v4022, %v4382
      %v4503 = vmul.f32 %v4023, %v4383
      %v4504 = vmul.f32 %v4024, %v4384
      %v4505 = vmul.f32 %v4025, %v4385
      %v4506 = vmul.f32 %v4026, %v4386
      %v4507 = vmul.f32 %v4027, %v4387
      %v4508 = vmul.f32 %v4028, %v4388
      %v4509 = vmul.f32 %v4029, %v4389
      %v4510 = vmul.f32 %v4030, %v4390
      %v4511 = vmul.f32 %v4031, %v4391
      %v4512 = vmul.f32 %v4032, %v4392
      %v4513 = vmul.f32 %v4033, %v4393
      %v4514 = vmul.f32 %v4034, %v4394
      %v4515 = vmul.f32 %v4035, %v4395
      %v4516 = vmul.f32 %v4036, %v4396
      %v4517 = vmul.f32 %v4037, %v4397
      %v4518 = vmul.f32 %v4038, %v4398
      %v4519 = vmul.f32 %v4039, %v4399
      %v4520 = vmul.f32 %v4040, %v4400
      %v4521 = vmul.f32 %v4041, %v4401
      %v4522 = vmul.f32 %v4042, %v4402
      %v4523 = vmul.f32 %v4043, %v4403
      %v4524 = vmul.f32 %v4044, %v4404
      %v4525 = vmul.f32 %v4045, %v4405
      %v4526 = vmul.f32 %v4046, %v4406
      %v4527 = vmul.f32 %v4047, %v4407
      %v4528 = vmul.f32 %v4048, %v4408
      %v4529 = vmul.f32 %v4049, %v4409
      %v4530 = vmul.f32 %v4050, %v4410
      %v4531 = vmul.f32 %v4051, %v4411
      %v4532 = vmul.f32 %v4052, %v4412
      %v4533 = vmul.f32 %v4053, %v4413
      %v4534 = vmul.f32 %v4054, %v4414
      %v4535 = vmul.f32 %v4055, %v4415
      %v4536 = vmul.f32 %v4056, %v4416
      %v4537 = vmul.f32 %v4057, %v4417
      %v4538 = vmul.f32 %v4058, %v4418
      %v4539 = vmul.f32 %v4059, %v4419
      %v4540 = vmul.f32 %v4060, %v4420
      %v4541 = vmul.f32 %v4061, %v4421
      %v4542 = vmul.f32 %v4062, %v4422
      %v4543 = vmul.f32 %v4063, %v4423
      %v4544 = vmul.f32 %v4064, %v4424
      %v4545 = vmul.f32 %v4065, %v4425
      %v4546 = vmul.f32 %v4066, %v4426
      %v4547 = vmul.f32 %v4067, %v4427
      %v4548 = vmul.f32 %v4068, %v4428
      %v4549 = vmul.f32 %v4069, %v4429
      %v4550 = vmul.f32 %v4070, %v4430
      %v4551 = vmul.f32 %v4071, %v4431
      %v4552 = vmul.f32 %v4072, %v4432
      %v4553 = vmul.f32 %v4073, %v4433
      %v4554 = vmul.f32 %v4074, %v4434
      %v4555 = vmul.f32 %v4075, %v4435
      %v4556 = vmul.f32 %v4076, %v4436
      %v4557 = vmul.f32 %v4077, %v4437
      %v4558 = vmul.f32 %v4078, %v4438
      %v4559 = vmul.f32 %v4079, %v4439
      %v4560 = vmul.f32 %v4080, %v4440
      %v4561 = vmul.f32 %v4081, %v4441
      %v4562 = vmul.f32 %v4082, %v4442
      %v4563 = vmul.f32 %v4083, %v4443
      %v4564 = vmul.f32 %v4084, %v4444
      %v4565 = vmul.f32 %v4085, %v4445
      %v4566 = vmul.f32 %v4086, %v4446
      %v4567 = vmul.f32 %v4087, %v4447
      %v4568 = vmul.f32 %v4088, %v4448
      %v4569 = vmul.f32 %v4089, %v4449
      %v4570 = vmul.f32 %v4090, %v4450
      %v4571 = vmul.f32 %v4091, %v4451
      %v4572 = vmul.f32 %v4092, %v4452
      %v4573 = vmul.f32 %v4093, %v4453
      %v4574 = vmul.f32 %v4094, %v4454
      %v4575 = vmul.f32 %v4095, %v4455
      %v4576 = vmul.f32 %v4096, %v4456
      %v4577 = vmul.f32 %v4097, %v4457
      %v4578 = vmul.f32 %v4098, %v4458
      %v4579 = vmul.f32 %v4099, %v4459
      %v4580 = vmul.f32 %v4100, %v4460
      %v4581 = vmul.f32 %v4101, %v4461
      %v4582 = vmul.f32 %v4102, %v4462
      %v4583 = vmul.f32 %v4103, %v4463
      %v4584 = vmul.f32 %v4104, %v4464
      %v4585 = vmul.f32 %v4105, %v4465
      %v4586 = vmul.f32 %v4106, %v4466
      %v4587 = vmul.f32 %v4107, %v4467
      %v4588 = vmul.f32 %v4108, %v4468
      %v4589 = vmul.f32 %v4109, %v4469
      %v4590 = vmul.f32 %v4110, %v4470
      %v4591 = vmul.f32 %v4111, %v4471
      %v4592 = vmul.f32 %v4112, %v4472
      %v4593 = vmul.f32 %v4113, %v4473
      %v4594 = vmul.f32 %v4114, %v4474
      %v4595 = vmul.f32 %v4115, %v4475
      %v4596 = vmul.f32 %v4116, %v4476
      %v4597 = vmul.f32 %v4117, %v4477
      %v4598 = vmul.f32 %v4118, %v4478
      %v4599 = vmul.f32 %v4119, %v4479
      %v4600 = vmul.f32 %v4120, %v4480
      %v4601 = vmul.f32 %v4121, %v4481
      %v4602 = vmul.f32 %v4122, %v4482
      %v4603 = vmul.f32 %v4123, %v4483
      %v4604 = vmul.f32 %v4124, %v4484
      %v4605 = vmul.f32 %v4125, %v4485
      %v4606 = vmul.f32 %v4126, %v4486
      %v4607 = vmul.f32 %v4127, %v4487
      %v4608 = vmul.f32 %v4128, %v4488
      %v4609 = vmul.f32 %v4129, %v4489
      %v4610 = vmul.f32 %v4130, %v4490
      %v4611 = vmul.f32 %v4131, %v4491
      %v4612 = vmax.f32 %v4492, %v4496
      %v4613 = vmax.f32 %v4493, %v4497
      %v4614 = vmax.f32 %v4494, %v4498
      %v4615 = vmax.f32 %v4495, %v4499
      %v4616 = vmax.f32 %v4500, %v4504
      %v4617 = vmax.f32 %v4501, %v4505
      %v4618 = vmax.f32 %v4502, %v4506
      %v4619 = vmax.f32 %v4503, %v4507
      %v4620 = vmax.f32 %v4508, %v4512
      %v4621 = vmax.f32 %v4509, %v4513
      %v4622 = vmax.f32 %v4510, %v4514
      %v4623 = vmax.f32 %v4511, %v4515
      %v4624 = vmax.f32 %v4516, %v4520
      %v4625 = vmax.f32 %v4517, %v4521
      %v4626 = vmax.f32 %v4518, %v4522
      %v4627 = vmax.f32 %v4519, %v4523
      %v4628 = vmax.f32 %v4524, %v4528
      %v4629 = vmax.f32 %v4525, %v4529
      %v4630 = vmax.f32 %v4526, %v4530
      %v4631 = vmax.f32 %v4527, %v4531
      %v4632 = vmax.f32 %v4532, %v4536
      %v4633 = vmax.f32 %v4533, %v4537
      %v4634 = vmax.f32 %v4534, %v4538
      %v4635 = vmax.f32 %v4535, %v4539
      %v4636 = vmax.f32 %v4540, %v4544
      %v4637 = vmax.f32 %v4541, %v4545
      %v4638 = vmax.f32 %v4542, %v4546
      %v4639 = vmax.f32 %v4543, %v4547
      %v4640 = vmax.f32 %v4548, %v4552
      %v4641 = vmax.f32 %v4549, %v4553
      %v4642 = vmax.f32 %v4550, %v4554
      %v4643 = vmax.f32 %v4551, %v4555
      %v4644 = vmax.f32 %v4556, %v4560
      %v4645 = vmax.f32 %v4557, %v4561
      %v4646 = vmax.f32 %v4558, %v4562
      %v4647 = vmax.f32 %v4559, %v4563
      %v4648 = vmax.f32 %v4564, %v4568
      %v4649 = vmax.f32 %v4565, %v4569
      %v4650 = vmax.f32 %v4566, %v4570
      %v4651 = vmax.f32 %v4567, %v4571
      %v4652 = vmax.f32 %v4572, %v4576
      %v4653 = vmax.f32 %v4573, %v4577
      %v4654 = vmax.f32 %v4574, %v4578
      %v4655 = vmax.f32 %v4575, %v4579
      %v4656 = vmax.f32 %v4580, %v4584
      %v4657 = vmax.f32 %v4581, %v4585
      %v4658 = vmax.f32 %v4582, %v4586
      %v4659 = vmax.f32 %v4583, %v4587
      %v4660 = vmax.f32 %v4588, %v4592
      %v4661 = vmax.f32 %v4589, %v4593
      %v4662 = vmax.f32 %v4590, %v4594
      %v4663 = vmax.f32 %v4591, %v4595
      %v4664 = vmax.f32 %v4596, %v4600
      %v4665 = vmax.f32 %v4597, %v4601
      %v4666 = vmax.f32 %v4598, %v4602
      %v4667 = vmax.f32 %v4599, %v4603
      %v4668 = vmax.f32 %v4604, %v4608
      %v4669 = vmax.f32 %v4605, %v4609
      %v4670 = vmax.f32 %v4606, %v4610
      %v4671 = vmax.f32 %v4607, %v4611
      %vm4672 = vcmask 523264
      %4673 = vst.msk [vmem:[#allocation3] sm:$0xff] %vm4672, %v4612
      %4674 = vst.msk [vmem:[#allocation3 + $0x8] sm:$0xff] %vm4672, %v4613
      %4675 = vst.msk [vmem:[#allocation3 + $0x10] sm:$0xff] %vm4672, %v4614
      %4676 = vst.msk [vmem:[#allocation3 + $0x18] sm:$0xff] %vm4672, %v4615
      %4677 = vst.msk [vmem:[#allocation3 + $0x20] sm:$0xff] %vm4672, %v4616
      %4678 = vst.msk [vmem:[#allocation3 + $0x28] sm:$0xff] %vm4672, %v4617
      %4679 = vst.msk [vmem:[#allocation3 + $0x30] sm:$0xff] %vm4672, %v4618
      %4680 = vst.msk [vmem:[#allocation3 + $0x38] sm:$0xff] %vm4672, %v4619
      %4681 = vst.msk [vmem:[#allocation3 + $0x40] sm:$0xff] %vm4672, %v4620
      %4682 = vst.msk [vmem:[#allocation3 + $0x48] sm:$0xff] %vm4672, %v4621
      %4683 = vst.msk [vmem:[#allocation3 + $0x50] sm:$0xff] %vm4672, %v4622
      %4684 = vst.msk [vmem:[#allocation3 + $0x58] sm:$0xff] %vm4672, %v4623
      %4685 = vst.msk [vmem:[#allocation3 + $0x60] sm:$0xff] %vm4672, %v4624
      %4686 = vst.msk [vmem:[#allocation3 + $0x68] sm:$0xff] %vm4672, %v4625
      %4687 = vst.msk [vmem:[#allocation3 + $0x70] sm:$0xff] %vm4672, %v4626
      %4688 = vst.msk [vmem:[#allocation3 + $0x78] sm:$0xff] %vm4672, %v4627
      %4689 = vst.msk [vmem:[#allocation3 + $0x80] sm:$0xff] %vm4672, %v4628
      %4690 = vst.msk [vmem:[#allocation3 + $0x88] sm:$0xff] %vm4672, %v4629
      %4691 = vst.msk [vmem:[#allocation3 + $0x90] sm:$0xff] %vm4672, %v4630
      %4692 = vst.msk [vmem:[#allocation3 + $0x98] sm:$0xff] %vm4672, %v4631
      %4693 = vst.msk [vmem:[#allocation3 + $0xa0] sm:$0xff] %vm4672, %v4632
      %4694 = vst.msk [vmem:[#allocation3 + $0xa8] sm:$0xff] %vm4672, %v4633
      %4695 = vst.msk [vmem:[#allocation3 + $0xb0] sm:$0xff] %vm4672, %v4634
      %4696 = vst.msk [vmem:[#allocation3 + $0xb8] sm:$0xff] %vm4672, %v4635
      %4697 = vst.msk [vmem:[#allocation3 + $0xc0] sm:$0xff] %vm4672, %v4636
      %4698 = vst.msk [vmem:[#allocation3 + $0xc8] sm:$0xff] %vm4672, %v4637
      %4699 = vst.msk [vmem:[#allocation3 + $0xd0] sm:$0xff] %vm4672, %v4638
      %4700 = vst.msk [vmem:[#allocation3 + $0xd8] sm:$0xff] %vm4672, %v4639
      %4701 = vst.msk [vmem:[#allocation3 + $0xe0] sm:$0xff] %vm4672, %v4640
      %4702 = vst.msk [vmem:[#allocation3 + $0xe8] sm:$0xff] %vm4672, %v4641
      %4703 = vst.msk [vmem:[#allocation3 + $0xf0] sm:$0xff] %vm4672, %v4642
      %4704 = vst.msk [vmem:[#allocation3 + $0xf8] sm:$0xff] %vm4672, %v4643
      %4705 = vst.msk [vmem:[#allocation3 + $0x100] sm:$0xff] %vm4672, %v4644
      %4706 = vst.msk [vmem:[#allocation3 + $0x108] sm:$0xff] %vm4672, %v4645
      %4707 = vst.msk [vmem:[#allocation3 + $0x110] sm:$0xff] %vm4672, %v4646
      %4708 = vst.msk [vmem:[#allocation3 + $0x118] sm:$0xff] %vm4672, %v4647
      %4709 = vst.msk [vmem:[#allocation3 + $0x120] sm:$0xff] %vm4672, %v4648
      %4710 = vst.msk [vmem:[#allocation3 + $0x128] sm:$0xff] %vm4672, %v4649
      %4711 = vst.msk [vmem:[#allocation3 + $0x130] sm:$0xff] %vm4672, %v4650
      %4712 = vst.msk [vmem:[#allocation3 + $0x138] sm:$0xff] %vm4672, %v4651
      %4713 = vst.msk [vmem:[#allocation3 + $0x140] sm:$0xff] %vm4672, %v4652
      %4714 = vst.msk [vmem:[#allocation3 + $0x148] sm:$0xff] %vm4672, %v4653
      %4715 = vst.msk [vmem:[#allocation3 + $0x150] sm:$0xff] %vm4672, %v4654
      %4716 = vst.msk [vmem:[#allocation3 + $0x158] sm:$0xff] %vm4672, %v4655
      %4717 = vst.msk [vmem:[#allocation3 + $0x160] sm:$0xff] %vm4672, %v4656
      %4718 = vst.msk [vmem:[#allocation3 + $0x168] sm:$0xff] %vm4672, %v4657
      %4719 = vst.msk [vmem:[#allocation3 + $0x170] sm:$0xff] %vm4672, %v4658
      %4720 = vst.msk [vmem:[#allocation3 + $0x178] sm:$0xff] %vm4672, %v4659
      %4721 = vst.msk [vmem:[#allocation3 + $0x180] sm:$0xff] %vm4672, %v4660
      %4722 = vst.msk [vmem:[#allocation3 + $0x188] sm:$0xff] %vm4672, %v4661
      %4723 = vst.msk [vmem:[#allocation3 + $0x190] sm:$0xff] %vm4672, %v4662
      %4724 = vst.msk [vmem:[#allocation3 + $0x198] sm:$0xff] %vm4672, %v4663
      %4725 = vst.msk [vmem:[#allocation3 + $0x1a0] sm:$0xff] %vm4672, %v4664
      %4726 = vst.msk [vmem:[#allocation3 + $0x1a8] sm:$0xff] %vm4672, %v4665
      %4727 = vst.msk [vmem:[#allocation3 + $0x1b0] sm:$0xff] %vm4672, %v4666
      %4728 = vst.msk [vmem:[#allocation3 + $0x1b8] sm:$0xff] %vm4672, %v4667
      %4729 = vst.msk [vmem:[#allocation3 + $0x1c0] sm:$0xff] %vm4672, %v4668
      %4730 = vst.msk [vmem:[#allocation3 + $0x1c8] sm:$0xff] %vm4672, %v4669
      %4731 = vst.msk [vmem:[#allocation3 + $0x1d0] sm:$0xff] %vm4672, %v4670
      %4732 = vst.msk [vmem:[#allocation3 + $0x1d8] sm:$0xff] %vm4672, %v4671
      %v4733 = vld [vmem:[#allocation3] ss:$2 sm:$0xff]
      %s4734 = scalar_lea.vmem [#allocation3], 16
      %v4735 = vld [vmem:[%s4734] ss:$2 sm:$0xff]
      %s4736 = scalar_lea.vmem [#allocation3], 32
      %v4737 = vld [vmem:[%s4736] ss:$2 sm:$0xff]
      %s4738 = scalar_lea.vmem [#allocation3], 48
      %v4739 = vld [vmem:[%s4738] ss:$2 sm:$0xff]
      %s4740 = scalar_lea.vmem [#allocation3], 64
      %v4741 = vld [vmem:[%s4740] ss:$2 sm:$0xff]
      %s4742 = scalar_lea.vmem [#allocation3], 80
      %v4743 = vld [vmem:[%s4742] ss:$2 sm:$0xff]
      %s4744 = scalar_lea.vmem [#allocation3], 96
      %v4745 = vld [vmem:[%s4744] ss:$2 sm:$0xff]
      %s4746 = scalar_lea.vmem [#allocation3], 112
      %v4747 = vld [vmem:[%s4746] ss:$2 sm:$0xff]
      %s4748 = scalar_lea.vmem [#allocation3], 128
      %v4749 = vld [vmem:[%s4748] ss:$2 sm:$0xff]
      %s4750 = scalar_lea.vmem [#allocation3], 144
      %v4751 = vld [vmem:[%s4750] ss:$2 sm:$0xff]
      %s4752 = scalar_lea.vmem [#allocation3], 160
      %v4753 = vld [vmem:[%s4752] ss:$2 sm:$0xff]
      %s4754 = scalar_lea.vmem [#allocation3], 176
      %v4755 = vld [vmem:[%s4754] ss:$2 sm:$0xff]
      %s4756 = scalar_lea.vmem [#allocation3], 192
      %v4757 = vld [vmem:[%s4756] ss:$2 sm:$0xff]
      %s4758 = scalar_lea.vmem [#allocation3], 208
      %v4759 = vld [vmem:[%s4758] ss:$2 sm:$0xff]
      %s4760 = scalar_lea.vmem [#allocation3], 224
      %v4761 = vld [vmem:[%s4760] ss:$2 sm:$0xff]
      %s4762 = scalar_lea.vmem [#allocation3], 240
      %v4763 = vld [vmem:[%s4762] ss:$2 sm:$0xff]
      %s4764 = scalar_lea.vmem [#allocation3], 256
      %v4765 = vld [vmem:[%s4764] ss:$2 sm:$0xff]
      %s4766 = scalar_lea.vmem [#allocation3], 272
      %v4767 = vld [vmem:[%s4766] ss:$2 sm:$0xff]
      %s4768 = scalar_lea.vmem [#allocation3], 288
      %v4769 = vld [vmem:[%s4768] ss:$2 sm:$0xff]
      %s4770 = scalar_lea.vmem [#allocation3], 304
      %v4771 = vld [vmem:[%s4770] ss:$2 sm:$0xff]
      %s4772 = scalar_lea.vmem [#allocation3], 320
      %v4773 = vld [vmem:[%s4772] ss:$2 sm:$0xff]
      %s4774 = scalar_lea.vmem [#allocation3], 336
      %v4775 = vld [vmem:[%s4774] ss:$2 sm:$0xff]
      %s4776 = scalar_lea.vmem [#allocation3], 352
      %v4777 = vld [vmem:[%s4776] ss:$2 sm:$0xff]
      %s4778 = scalar_lea.vmem [#allocation3], 368
      %v4779 = vld [vmem:[%s4778] ss:$2 sm:$0xff]
      %s4780 = scalar_lea.vmem [#allocation3], 384
      %v4781 = vld [vmem:[%s4780] ss:$2 sm:$0xff]
      %s4782 = scalar_lea.vmem [#allocation3], 400
      %v4783 = vld [vmem:[%s4782] ss:$2 sm:$0xff]
      %s4784 = scalar_lea.vmem [#allocation3], 416
      %v4785 = vld [vmem:[%s4784] ss:$2 sm:$0xff]
      %s4786 = scalar_lea.vmem [#allocation3], 432
      %v4787 = vld [vmem:[%s4786] ss:$2 sm:$0xff]
      %s4788 = scalar_lea.vmem [#allocation3], 448
      %v4789 = vld [vmem:[%s4788] ss:$2 sm:$0xff]
      %s4790 = scalar_lea.vmem [#allocation3], 464
      %v4791 = vld [vmem:[%s4790] ss:$2 sm:$0xff]
      %s4792 = scalar_lea.vmem [#allocation3], 1
      %v4793 = vld [vmem:[%s4792] ss:$2 sm:$0xff]
      %s4794 = scalar_lea.vmem [#allocation3], 17
      %v4795 = vld [vmem:[%s4794] ss:$2 sm:$0xff]
      %s4796 = scalar_lea.vmem [#allocation3], 33
      %v4797 = vld [vmem:[%s4796] ss:$2 sm:$0xff]
      %s4798 = scalar_lea.vmem [#allocation3], 49
      %v4799 = vld [vmem:[%s4798] ss:$2 sm:$0xff]
      %s4800 = scalar_lea.vmem [#allocation3], 65
      %v4801 = vld [vmem:[%s4800] ss:$2 sm:$0xff]
      %s4802 = scalar_lea.vmem [#allocation3], 81
      %v4803 = vld [vmem:[%s4802] ss:$2 sm:$0xff]
      %s4804 = scalar_lea.vmem [#allocation3], 97
      %v4805 = vld [vmem:[%s4804] ss:$2 sm:$0xff]
      %s4806 = scalar_lea.vmem [#allocation3], 113
      %v4807 = vld [vmem:[%s4806] ss:$2 sm:$0xff]
      %s4808 = scalar_lea.vmem [#allocation3], 129
      %v4809 = vld [vmem:[%s4808] ss:$2 sm:$0xff]
      %s4810 = scalar_lea.vmem [#allocation3], 145
      %v4811 = vld [vmem:[%s4810] ss:$2 sm:$0xff]
      %s4812 = scalar_lea.vmem [#allocation3], 161
      %v4813 = vld [vmem:[%s4812] ss:$2 sm:$0xff]
      %s4814 = scalar_lea.vmem [#allocation3], 177
      %v4815 = vld [vmem:[%s4814] ss:$2 sm:$0xff]
      %s4816 = scalar_lea.vmem [#allocation3], 193
      %v4817 = vld [vmem:[%s4816] ss:$2 sm:$0xff]
      %s4818 = scalar_lea.vmem [#allocation3], 209
      %v4819 = vld [vmem:[%s4818] ss:$2 sm:$0xff]
      %s4820 = scalar_lea.vmem [#allocation3], 225
      %v4821 = vld [vmem:[%s4820] ss:$2 sm:$0xff]
      %s4822 = scalar_lea.vmem [#allocation3], 241
      %v4823 = vld [vmem:[%s4822] ss:$2 sm:$0xff]
      %s4824 = scalar_lea.vmem [#allocation3], 257
      %v4825 = vld [vmem:[%s4824] ss:$2 sm:$0xff]
      %s4826 = scalar_lea.vmem [#allocation3], 273
      %v4827 = vld [vmem:[%s4826] ss:$2 sm:$0xff]
      %s4828 = scalar_lea.vmem [#allocation3], 289
      %v4829 = vld [vmem:[%s4828] ss:$2 sm:$0xff]
      %s4830 = scalar_lea.vmem [#allocation3], 305
      %v4831 = vld [vmem:[%s4830] ss:$2 sm:$0xff]
      %s4832 = scalar_lea.vmem [#allocation3], 321
      %v4833 = vld [vmem:[%s4832] ss:$2 sm:$0xff]
      %s4834 = scalar_lea.vmem [#allocation3], 337
      %v4835 = vld [vmem:[%s4834] ss:$2 sm:$0xff]
      %s4836 = scalar_lea.vmem [#allocation3], 353
      %v4837 = vld [vmem:[%s4836] ss:$2 sm:$0xff]
      %s4838 = scalar_lea.vmem [#allocation3], 369
      %v4839 = vld [vmem:[%s4838] ss:$2 sm:$0xff]
      %s4840 = scalar_lea.vmem [#allocation3], 385
      %v4841 = vld [vmem:[%s4840] ss:$2 sm:$0xff]
      %s4842 = scalar_lea.vmem [#allocation3], 401
      %v4843 = vld [vmem:[%s4842] ss:$2 sm:$0xff]
      %s4844 = scalar_lea.vmem [#allocation3], 417
      %v4845 = vld [vmem:[%s4844] ss:$2 sm:$0xff]
      %s4846 = scalar_lea.vmem [#allocation3], 433
      %v4847 = vld [vmem:[%s4846] ss:$2 sm:$0xff]
      %s4848 = scalar_lea.vmem [#allocation3], 449
      %v4849 = vld [vmem:[%s4848] ss:$2 sm:$0xff]
      %s4850 = scalar_lea.vmem [#allocation3], 465
      %v4851 = vld [vmem:[%s4850] ss:$2 sm:$0xff]
      %v4852 = vmax.f32 %v4733, %v4793
      %v4853 = vmax.f32 %v4735, %v4795
      %v4854 = vmax.f32 %v4737, %v4797
      %v4855 = vmax.f32 %v4739, %v4799
      %v4856 = vmax.f32 %v4741, %v4801
      %v4857 = vmax.f32 %v4743, %v4803
      %v4858 = vmax.f32 %v4745, %v4805
      %v4859 = vmax.f32 %v4747, %v4807
      %v4860 = vmax.f32 %v4749, %v4809
      %v4861 = vmax.f32 %v4751, %v4811
      %v4862 = vmax.f32 %v4753, %v4813
      %v4863 = vmax.f32 %v4755, %v4815
      %v4864 = vmax.f32 %v4757, %v4817
      %v4865 = vmax.f32 %v4759, %v4819
      %v4866 = vmax.f32 %v4761, %v4821
      %v4867 = vmax.f32 %v4763, %v4823
      %v4868 = vmax.f32 %v4765, %v4825
      %v4869 = vmax.f32 %v4767, %v4827
      %v4870 = vmax.f32 %v4769, %v4829
      %v4871 = vmax.f32 %v4771, %v4831
      %v4872 = vmax.f32 %v4773, %v4833
      %v4873 = vmax.f32 %v4775, %v4835
      %v4874 = vmax.f32 %v4777, %v4837
      %v4875 = vmax.f32 %v4779, %v4839
      %v4876 = vmax.f32 %v4781, %v4841
      %v4877 = vmax.f32 %v4783, %v4843
      %v4878 = vmax.f32 %v4785, %v4845
      %v4879 = vmax.f32 %v4787, %v4847
      %v4880 = vmax.f32 %v4789, %v4849
      %v4881 = vmax.f32 %v4791, %v4851
      %v4882 = vld [vmem:[%s3] sm:$0x1]
      %v4884 = vlaneseq
      %v4885 = vshrl.u32 %v4884, 7
      %v4886 = vsub.s32 0, %v4885
      %v4887 = vrot.slane %v4882, %v4886
      %v4889 = vmul.f32 %v4852, %v4887
      %v4890 = vmul.f32 %v4853, %v4887
      %v4891 = vmul.f32 %v4854, %v4887
      %v4892 = vmul.f32 %v4855, %v4887
      %v4893 = vmul.f32 %v4856, %v4887
      %v4894 = vmul.f32 %v4857, %v4887
      %v4895 = vmul.f32 %v4858, %v4887
      %v4896 = vmul.f32 %v4859, %v4887
      %v4897 = vmul.f32 %v4860, %v4887
      %v4898 = vmul.f32 %v4861, %v4887
      %v4899 = vmul.f32 %v4862, %v4887
      %v4900 = vmul.f32 %v4863, %v4887
      %v4901 = vmul.f32 %v4864, %v4887
      %v4902 = vmul.f32 %v4865, %v4887
      %v4903 = vmul.f32 %v4866, %v4887
      %v4904 = vmul.f32 %v4867, %v4887
      %v4905 = vmul.f32 %v4868, %v4887
      %v4906 = vmul.f32 %v4869, %v4887
      %v4907 = vmul.f32 %v4870, %v4887
      %v4908 = vmul.f32 %v4871, %v4887
      %v4909 = vmul.f32 %v4872, %v4887
      %v4910 = vmul.f32 %v4873, %v4887
      %v4911 = vmul.f32 %v4874, %v4887
      %v4912 = vmul.f32 %v4875, %v4887
      %v4913 = vmul.f32 %v4876, %v4887
      %v4914 = vmul.f32 %v4877, %v4887
      %v4915 = vmul.f32 %v4878, %v4887
      %v4916 = vmul.f32 %v4879, %v4887
      %v4917 = vmul.f32 %v4880, %v4887
      %v4918 = vmul.f32 %v4881, %v4887
      %v4919 = vld [vmem:[%s4] sm:$0x1]
      %v4921 = vlaneseq
      %v4922 = vshrl.u32 %v4921, 7
      %v4923 = vsub.s32 0, %v4922
      %v4924 = vrot.slane %v4919, %v4923
      %v4926 = vadd.f32 %v4889, %v4924
      %v4927 = vadd.f32 %v4890, %v4924
      %v4928 = vadd.f32 %v4891, %v4924
      %v4929 = vadd.f32 %v4892, %v4924
      %v4930 = vadd.f32 %v4893, %v4924
      %v4931 = vadd.f32 %v4894, %v4924
      %v4932 = vadd.f32 %v4895, %v4924
      %v4933 = vadd.f32 %v4896, %v4924
      %v4934 = vadd.f32 %v4897, %v4924
      %v4935 = vadd.f32 %v4898, %v4924
      %v4936 = vadd.f32 %v4899, %v4924
      %v4937 = vadd.f32 %v4900, %v4924
      %v4938 = vadd.f32 %v4901, %v4924
      %v4939 = vadd.f32 %v4902, %v4924
      %v4940 = vadd.f32 %v4903, %v4924
      %v4941 = vadd.f32 %v4904, %v4924
      %v4942 = vadd.f32 %v4905, %v4924
      %v4943 = vadd.f32 %v4906, %v4924
      %v4944 = vadd.f32 %v4907, %v4924
      %v4945 = vadd.f32 %v4908, %v4924
      %v4946 = vadd.f32 %v4909, %v4924
      %v4947 = vadd.f32 %v4910, %v4924
      %v4948 = vadd.f32 %v4911, %v4924
      %v4949 = vadd.f32 %v4912, %v4924
      %v4950 = vadd.f32 %v4913, %v4924
      %v4951 = vadd.f32 %v4914, %v4924
      %v4952 = vadd.f32 %v4915, %v4924
      %v4953 = vadd.f32 %v4916, %v4924
      %v4954 = vadd.f32 %v4917, %v4924
      %v4955 = vadd.f32 %v4918, %v4924
      %v4956 = vpack.c.bf16 %v4927, %v4926
      %v4957 = vpack.c.bf16 %v4929, %v4928
      %v4958 = vpack.c.bf16 %v4931, %v4930
      %v4959 = vpack.c.bf16 %v4933, %v4932
      %v4960 = vpack.c.bf16 %v4935, %v4934
      %v4961 = vpack.c.bf16 %v4937, %v4936
      %v4962 = vpack.c.bf16 %v4939, %v4938
      %v4963 = vpack.c.bf16 %v4941, %v4940
      %v4964 = vpack.c.bf16 %v4943, %v4942
      %v4965 = vpack.c.bf16 %v4945, %v4944
      %v4966 = vpack.c.bf16 %v4947, %v4946
      %v4967 = vpack.c.bf16 %v4949, %v4948
      %v4968 = vpack.c.bf16 %v4951, %v4950
      %v4969 = vpack.c.bf16 %v4953, %v4952
      %v4970 = vpack.c.bf16 %v4955, %v4954
      %vm4971 = vcmask 519168
      %4972 = vst.msk [vmem:[#allocation4] sm:$0xf] %vm4971, 0
      %4973 = vst.msk [vmem:[#allocation4 + $0x4] sm:$0xf] %vm4971, 0
      %4974 = vst.msk [vmem:[#allocation4 + $0x8] sm:$0xf] %vm4971, 0
      %4975 = vst.msk [vmem:[#allocation4 + $0xc] sm:$0xf] %vm4971, 0
      %4976 = vst.msk [vmem:[#allocation4 + $0x10] sm:$0xf] %vm4971, 0
      %4977 = vst.msk [vmem:[#allocation4 + $0x14] sm:$0xf] %vm4971, 0
      %4978 = vst.msk [vmem:[#allocation4 + $0x18] sm:$0xf] %vm4971, 0
      %4979 = vst.msk [vmem:[#allocation4 + $0x1c] sm:$0xf] %vm4971, 0
      %4980 = vst.msk [vmem:[#allocation4 + $0x20] sm:$0xf] %vm4971, 0
      %4981 = vst.msk [vmem:[#allocation4 + $0x24] sm:$0xf] %vm4971, 0
      %4982 = vst.msk [vmem:[#allocation4 + $0x28] sm:$0xf] %vm4971, 0
      %4983 = vst.msk [vmem:[#allocation4 + $0x2c] sm:$0xf] %vm4971, 0
      %4984 = vst.msk [vmem:[#allocation4 + $0x30] sm:$0xf] %vm4971, 0
      %4985 = vst.msk [vmem:[#allocation4 + $0x34] sm:$0xf] %vm4971, 0
      %4986 = vst.msk [vmem:[#allocation4 + $0x38] sm:$0xf] %vm4971, 0
      %4987 = vst.msk [vmem:[#allocation4 + $0x3c] sm:$0xf] %vm4971, 0
      %4988 = vst.msk [vmem:[#allocation4 + $0x40] sm:$0xf] %vm4971, 0
      %4989 = vst.msk [vmem:[#allocation4 + $0x44] sm:$0xf] %vm4971, 0
      %4990 = vst.msk [vmem:[#allocation4 + $0x48] sm:$0xf] %vm4971, 0
      %4991 = vst.msk [vmem:[#allocation4 + $0x4c] sm:$0xf] %vm4971, 0
      %4992 = vst.msk [vmem:[#allocation4 + $0x50] sm:$0xf] %vm4971, 0
      %4993 = vst.msk [vmem:[#allocation4 + $0x54] sm:$0xf] %vm4971, 0
      %4994 = vst.msk [vmem:[#allocation4 + $0x58] sm:$0xf] %vm4971, 0
      %4995 = vst.msk [vmem:[#allocation4 + $0x5c] sm:$0xf] %vm4971, 0
      %4996 = vst.msk [vmem:[#allocation4 + $0x60] sm:$0xf] %vm4971, 0
      %4997 = vst.msk [vmem:[#allocation4 + $0x64] sm:$0xf] %vm4971, 0
      %4998 = vst.msk [vmem:[#allocation4 + $0x68] sm:$0xf] %vm4971, 0
      %4999 = vst.msk [vmem:[#allocation4 + $0x6c] sm:$0xf] %vm4971, 0
      %5000 = vst.msk [vmem:[#allocation4 + $0x70] sm:$0xf] %vm4971, 0
      %5001 = vst.msk [vmem:[#allocation4 + $0x74] sm:$0xf] %vm4971, 0
      %5002 = vst.msk [vmem:[#allocation4 + $0x78] sm:$0xf] %vm4971, 0
      %v5018 = vunpack.c.l.b16 %v4956
      %v5019 = vunpack.c.h.b16 %v4956
      %v5020 = vunpack.c.l.b16 %v4957
      %v5021 = vunpack.c.h.b16 %v4957
      %v5022 = vunpack.c.l.b16 %v4958
      %v5023 = vunpack.c.h.b16 %v4958
      %v5024 = vunpack.c.l.b16 %v4959
      %v5025 = vunpack.c.h.b16 %v4959
      %v5026 = vunpack.c.l.b16 %v4960
      %v5027 = vunpack.c.h.b16 %v4960
      %v5028 = vunpack.c.l.b16 %v4961
      %v5029 = vunpack.c.h.b16 %v4961
      %v5030 = vunpack.c.l.b16 %v4962
      %v5031 = vunpack.c.h.b16 %v4962
      %v5032 = vunpack.c.l.b16 %v4963
      %v5033 = vunpack.c.h.b16 %v4963
      %v5034 = vunpack.c.l.b16 %v4964
      %v5035 = vunpack.c.h.b16 %v4964
      %v5036 = vunpack.c.l.b16 %v4965
      %v5037 = vunpack.c.h.b16 %v4965
      %v5038 = vunpack.c.l.b16 %v4966
      %v5039 = vunpack.c.h.b16 %v4966
      %v5040 = vunpack.c.l.b16 %v4967
      %v5041 = vunpack.c.h.b16 %v4967
      %v5042 = vunpack.c.l.b16 %v4968
      %v5043 = vunpack.c.h.b16 %v4968
      %v5044 = vunpack.c.l.b16 %v4969
      %v5045 = vunpack.c.h.b16 %v4969
      %v5046 = vunpack.c.l.b16 %v4970
      %v5047 = vunpack.c.h.b16 %v4970
      %v5048 = vpack.c.b16 %v5018, %v5018
      %v5049 = vpack.c.b16 %v5019, %v5019
      %v5050 = vpack.c.b16 %v5020, %v5020
      %v5051 = vpack.c.b16 %v5021, %v5021
      %v5052 = vpack.c.b16 %v5022, %v5022
      %v5053 = vpack.c.b16 %v5023, %v5023
      %v5054 = vpack.c.b16 %v5024, %v5024
      %v5055 = vpack.c.b16 %v5025, %v5025
      %v5056 = vpack.c.b16 %v5026, %v5026
      %v5057 = vpack.c.b16 %v5027, %v5027
      %v5058 = vpack.c.b16 %v5028, %v5028
      %v5059 = vpack.c.b16 %v5029, %v5029
      %v5060 = vpack.c.b16 %v5030, %v5030
      %v5061 = vpack.c.b16 %v5031, %v5031
      %v5062 = vpack.c.b16 %v5032, %v5032
      %v5063 = vpack.c.b16 %v5033, %v5033
      %v5064 = vpack.c.b16 %v5034, %v5034
      %v5065 = vpack.c.b16 %v5035, %v5035
      %v5066 = vpack.c.b16 %v5036, %v5036
      %v5067 = vpack.c.b16 %v5037, %v5037
      %v5068 = vpack.c.b16 %v5038, %v5038
      %v5069 = vpack.c.b16 %v5039, %v5039
      %v5070 = vpack.c.b16 %v5040, %v5040
      %v5071 = vpack.c.b16 %v5041, %v5041
      %v5072 = vpack.c.b16 %v5042, %v5042
      %v5073 = vpack.c.b16 %v5043, %v5043
      %v5074 = vpack.c.b16 %v5044, %v5044
      %v5075 = vpack.c.b16 %v5045, %v5045
      %v5076 = vpack.c.b16 %v5046, %v5046
      %v5077 = vpack.c.b16 %v5047, %v5047
      %5108 = vst.msk [vmem:[#allocation4] sm:$0xf] %vm4971, %v5048
      %5109 = vst.msk [vmem:[#allocation4 + $0x4] sm:$0xf] %vm4971, %v5049
      %5110 = vst.msk [vmem:[#allocation4 + $0x8] sm:$0xf] %vm4971, %v5050
      %5111 = vst.msk [vmem:[#allocation4 + $0xc] sm:$0xf] %vm4971, %v5051
      %5112 = vst.msk [vmem:[#allocation4 + $0x10] sm:$0xf] %vm4971, %v5052
      %5113 = vst.msk [vmem:[#allocation4 + $0x14] sm:$0xf] %vm4971, %v5053
      %5114 = vst.msk [vmem:[#allocation4 + $0x18] sm:$0xf] %vm4971, %v5054
      %5115 = vst.msk [vmem:[#allocation4 + $0x1c] sm:$0xf] %vm4971, %v5055
      %5116 = vst.msk [vmem:[#allocation4 + $0x20] sm:$0xf] %vm4971, %v5056
      %5117 = vst.msk [vmem:[#allocation4 + $0x24] sm:$0xf] %vm4971, %v5057
      %5118 = vst.msk [vmem:[#allocation4 + $0x28] sm:$0xf] %vm4971, %v5058
      %5119 = vst.msk [vmem:[#allocation4 + $0x2c] sm:$0xf] %vm4971, %v5059
      %5120 = vst.msk [vmem:[#allocation4 + $0x30] sm:$0xf] %vm4971, %v5060
      %5121 = vst.msk [vmem:[#allocation4 + $0x34] sm:$0xf] %vm4971, %v5061
      %5122 = vst.msk [vmem:[#allocation4 + $0x38] sm:$0xf] %vm4971, %v5062
      %5123 = vst.msk [vmem:[#allocation4 + $0x3c] sm:$0xf] %vm4971, %v5063
      %5124 = vst.msk [vmem:[#allocation4 + $0x40] sm:$0xf] %vm4971, %v5064
      %5125 = vst.msk [vmem:[#allocation4 + $0x44] sm:$0xf] %vm4971, %v5065
      %5126 = vst.msk [vmem:[#allocation4 + $0x48] sm:$0xf] %vm4971, %v5066
      %5127 = vst.msk [vmem:[#allocation4 + $0x4c] sm:$0xf] %vm4971, %v5067
      %5128 = vst.msk [vmem:[#allocation4 + $0x50] sm:$0xf] %vm4971, %v5068
      %5129 = vst.msk [vmem:[#allocation4 + $0x54] sm:$0xf] %vm4971, %v5069
      %5130 = vst.msk [vmem:[#allocation4 + $0x58] sm:$0xf] %vm4971, %v5070
      %5131 = vst.msk [vmem:[#allocation4 + $0x5c] sm:$0xf] %vm4971, %v5071
      %5132 = vst.msk [vmem:[#allocation4 + $0x60] sm:$0xf] %vm4971, %v5072
      %5133 = vst.msk [vmem:[#allocation4 + $0x64] sm:$0xf] %vm4971, %v5073
      %5134 = vst.msk [vmem:[#allocation4 + $0x68] sm:$0xf] %vm4971, %v5074
      %5135 = vst.msk [vmem:[#allocation4 + $0x6c] sm:$0xf] %vm4971, %v5075
      %5136 = vst.msk [vmem:[#allocation4 + $0x70] sm:$0xf] %vm4971, %v5076
      %5137 = vst.msk [vmem:[#allocation4 + $0x74] sm:$0xf] %vm4971, %v5077
      %v5138 = vld [vmem:[#allocation4] sm:$0xf]
      %v5139 = vld [vmem:[#allocation4 + $0x4] sm:$0xf]
      %v5140 = vld [vmem:[#allocation4 + $0x8] sm:$0xf]
      %v5141 = vld [vmem:[#allocation4 + $0xc] sm:$0xf]
      %v5142 = vld [vmem:[#allocation4 + $0x10] sm:$0xf]
      %v5143 = vld [vmem:[#allocation4 + $0x14] sm:$0xf]
      %v5144 = vld [vmem:[#allocation4 + $0x18] sm:$0xf]
      %v5145 = vld [vmem:[#allocation4 + $0x1c] sm:$0xf]
      %v5146 = vld [vmem:[#allocation4 + $0x20] sm:$0xf]
      %v5147 = vld [vmem:[#allocation4 + $0x24] sm:$0xf]
      %v5148 = vld [vmem:[#allocation4 + $0x28] sm:$0xf]
      %v5149 = vld [vmem:[#allocation4 + $0x2c] sm:$0xf]
      %v5150 = vld [vmem:[#allocation4 + $0x30] sm:$0xf]
      %v5151 = vld [vmem:[#allocation4 + $0x34] sm:$0xf]
      %v5152 = vld [vmem:[#allocation4 + $0x38] sm:$0xf]
      %v5153 = vld [vmem:[#allocation4 + $0x3c] sm:$0xf]
      %v5154 = vld [vmem:[#allocation4 + $0x40] sm:$0xf]
      %v5155 = vld [vmem:[#allocation4 + $0x44] sm:$0xf]
      %v5156 = vld [vmem:[#allocation4 + $0x48] sm:$0xf]
      %v5157 = vld [vmem:[#allocation4 + $0x4c] sm:$0xf]
      %v5158 = vld [vmem:[#allocation4 + $0x50] sm:$0xf]
      %v5159 = vld [vmem:[#allocation4 + $0x54] sm:$0xf]
      %v5160 = vld [vmem:[#allocation4 + $0x58] sm:$0xf]
      %v5161 = vld [vmem:[#allocation4 + $0x5c] sm:$0xf]
      %v5162 = vld [vmem:[#allocation4 + $0x60] sm:$0xf]
      %v5163 = vld [vmem:[#allocation4 + $0x64] sm:$0xf]
      %v5190 = vunpack.c.l.b16 %v5138
      %v5191 = vunpack.c.l.b16 %v5139
      %v5192 = vunpack.c.l.b16 %v5140
      %v5193 = vunpack.c.l.b16 %v5141
      %v5194 = vunpack.c.l.b16 %v5142
      %v5195 = vunpack.c.l.b16 %v5143
      %v5196 = vunpack.c.l.b16 %v5144
      %v5197 = vunpack.c.l.b16 %v5145
      %v5198 = vunpack.c.l.b16 %v5146
      %v5199 = vunpack.c.l.b16 %v5147
      %v5200 = vunpack.c.l.b16 %v5148
      %v5201 = vunpack.c.l.b16 %v5149
      %v5202 = vunpack.c.l.b16 %v5150
      %v5203 = vunpack.c.l.b16 %v5151
      %v5204 = vunpack.c.l.b16 %v5152
      %v5205 = vunpack.c.l.b16 %v5153
      %v5206 = vunpack.c.l.b16 %v5154
      %v5207 = vunpack.c.l.b16 %v5155
      %v5208 = vunpack.c.l.b16 %v5156
      %v5209 = vunpack.c.l.b16 %v5157
      %v5210 = vunpack.c.l.b16 %v5158
      %v5211 = vunpack.c.l.b16 %v5159
      %v5212 = vunpack.c.l.b16 %v5160
      %v5213 = vunpack.c.l.b16 %v5161
      %v5214 = vunpack.c.l.b16 %v5162
      %v5215 = vunpack.c.l.b16 %v5163
      %v5216 = vpack.c.b16 %v5191, %v5190
      %v5217 = vpack.c.b16 %v5193, %v5192
      %v5218 = vpack.c.b16 %v5195, %v5194
      %v5219 = vpack.c.b16 %v5197, %v5196
      %v5220 = vpack.c.b16 %v5199, %v5198
      %v5221 = vpack.c.b16 %v5201, %v5200
      %v5222 = vpack.c.b16 %v5203, %v5202
      %v5223 = vpack.c.b16 %v5205, %v5204
      %v5224 = vpack.c.b16 %v5207, %v5206
      %v5225 = vpack.c.b16 %v5209, %v5208
      %v5226 = vpack.c.b16 %v5211, %v5210
      %v5227 = vpack.c.b16 %v5213, %v5212
      %v5228 = vpack.c.b16 %v5215, %v5214
      %5242 = vst.msk [vmem:[#allocation5] sm:$0xff] %vm4672, %v5216
      %5243 = vst.msk [vmem:[#allocation5 + $0x28] sm:$0xff] %vm4672, %v5217
      %5244 = vst.msk [vmem:[#allocation5 + $0x50] sm:$0xff] %vm4672, %v5218
      %5245 = vst.msk [vmem:[#allocation5 + $0x78] sm:$0xff] %vm4672, %v5219
      %5246 = vst.msk [vmem:[#allocation5 + $0xa0] sm:$0xff] %vm4672, %v5220
      %5247 = vst.msk [vmem:[#allocation5 + $0xc8] sm:$0xff] %vm4672, %v5221
      %5248 = vst.msk [vmem:[#allocation5 + $0xf0] sm:$0xff] %vm4672, %v5222
      %5249 = vst.msk [vmem:[#allocation5 + $0x118] sm:$0xff] %vm4672, %v5223
      %5250 = vst.msk [vmem:[#allocation5 + $0x140] sm:$0xff] %vm4672, %v5224
      %5251 = vst.msk [vmem:[#allocation5 + $0x168] sm:$0xff] %vm4672, %v5225
      %5252 = vst.msk [vmem:[#allocation5 + $0x190] sm:$0xff] %vm4672, %v5226
      %5253 = vst.msk [vmem:[#allocation5 + $0x1b8] sm:$0xff] %vm4672, %v5227
      %5254 = vst.msk [vmem:[#allocation5 + $0x1e0] sm:$0xff] %vm4672, %v5228
      %v5255 = vld [vmem:[#allocation4] sm:$0xf]
      %v5256 = vld [vmem:[#allocation4 + $0x4] sm:$0xf]
      %v5257 = vld [vmem:[#allocation4 + $0x8] sm:$0xf]
      %v5258 = vld [vmem:[#allocation4 + $0xc] sm:$0xf]
      %v5259 = vld [vmem:[#allocation4 + $0x10] sm:$0xf]
      %v5260 = vld [vmem:[#allocation4 + $0x14] sm:$0xf]
      %v5261 = vld [vmem:[#allocation4 + $0x18] sm:$0xf]
      %v5262 = vld [vmem:[#allocation4 + $0x1c] sm:$0xf]
      %v5263 = vld [vmem:[#allocation4 + $0x20] sm:$0xf]
      %v5264 = vld [vmem:[#allocation4 + $0x24] sm:$0xf]
      %v5265 = vld [vmem:[#allocation4 + $0x28] sm:$0xf]
      %v5266 = vld [vmem:[#allocation4 + $0x2c] sm:$0xf]
      %v5267 = vld [vmem:[#allocation4 + $0x30] sm:$0xf]
      %v5268 = vld [vmem:[#allocation4 + $0x34] sm:$0xf]
      %v5269 = vld [vmem:[#allocation4 + $0x38] sm:$0xf]
      %v5270 = vld [vmem:[#allocation4 + $0x3c] sm:$0xf]
      %v5271 = vld [vmem:[#allocation4 + $0x40] sm:$0xf]
      %v5272 = vld [vmem:[#allocation4 + $0x44] sm:$0xf]
      %v5273 = vld [vmem:[#allocation4 + $0x48] sm:$0xf]
      %v5274 = vld [vmem:[#allocation4 + $0x4c] sm:$0xf]
      %v5275 = vld [vmem:[#allocation4 + $0x50] sm:$0xf]
      %v5276 = vld [vmem:[#allocation4 + $0x54] sm:$0xf]
      %v5277 = vld [vmem:[#allocation4 + $0x58] sm:$0xf]
      %v5278 = vld [vmem:[#allocation4 + $0x5c] sm:$0xf]
      %v5279 = vld [vmem:[#allocation4 + $0x60] sm:$0xf]
      %v5280 = vld [vmem:[#allocation4 + $0x64] sm:$0xf]
      %v5281 = vld [vmem:[#allocation4 + $0x68] sm:$0x1]
      %v5309 = vunpack.c.l.b16 %v5255
      %v5310 = vunpack.c.l.b16 %v5256
      %v5311 = vunpack.c.l.b16 %v5257
      %v5312 = vunpack.c.l.b16 %v5258
      %v5313 = vunpack.c.l.b16 %v5259
      %v5314 = vunpack.c.l.b16 %v5260
      %v5315 = vunpack.c.l.b16 %v5261
      %v5316 = vunpack.c.l.b16 %v5262
      %v5317 = vunpack.c.l.b16 %v5263
      %v5318 = vunpack.c.l.b16 %v5264
      %v5319 = vunpack.c.l.b16 %v5265
      %v5320 = vunpack.c.l.b16 %v5266
      %v5321 = vunpack.c.l.b16 %v5267
      %v5322 = vunpack.c.l.b16 %v5268
      %v5323 = vunpack.c.l.b16 %v5269
      %v5324 = vunpack.c.l.b16 %v5270
      %v5325 = vunpack.c.l.b16 %v5271
      %v5326 = vunpack.c.l.b16 %v5272
      %v5327 = vunpack.c.l.b16 %v5273
      %v5328 = vunpack.c.l.b16 %v5274
      %v5329 = vunpack.c.l.b16 %v5275
      %v5330 = vunpack.c.l.b16 %v5276
      %v5331 = vunpack.c.l.b16 %v5277
      %v5332 = vunpack.c.l.b16 %v5278
      %v5333 = vunpack.c.l.b16 %v5279
      %v5334 = vunpack.c.l.b16 %v5280
      %v5335 = vunpack.c.l.b16 %v5281
      %v5336 = vpack.c.b16 %v5310, %v5309
      %v5337 = vpack.c.b16 %v5312, %v5311
      %v5338 = vpack.c.b16 %v5314, %v5313
      %v5339 = vpack.c.b16 %v5316, %v5315
      %v5340 = vpack.c.b16 %v5318, %v5317
      %v5341 = vpack.c.b16 %v5320, %v5319
      %v5342 = vpack.c.b16 %v5322, %v5321
      %v5343 = vpack.c.b16 %v5324, %v5323
      %v5344 = vpack.c.b16 %v5326, %v5325
      %v5345 = vpack.c.b16 %v5328, %v5327
      %v5346 = vpack.c.b16 %v5330, %v5329
      %v5347 = vpack.c.b16 %v5332, %v5331
      %v5348 = vpack.c.b16 %v5334, %v5333
      %v5349 = vpack.c.b16 %v5335, %v5335
      %v5351 = vshrl.u32 %v5336, 16
      %v5353 = vshll.u32 %v5336, 16
      %v5355 = vrot.slane %v5353, 1
      %v5356 = vor.u32 %v5351, %v5355
      %v5358 = vshll.u32 %v5337, 16
      %v5360 = vrot.slane %v5358, 1
      %v5361 = vsel %vm589, %v5356, %v5360
      %v5362 = vshrl.u32 %v5337, 16
      %v5364 = vor.u32 %v5362, %v5360
      %v5366 = vshll.u32 %v5338, 16
      %v5368 = vrot.slane %v5366, 1
      %v5369 = vsel %vm589, %v5364, %v5368
      %v5370 = vshrl.u32 %v5338, 16
      %v5372 = vor.u32 %v5370, %v5368
      %v5374 = vshll.u32 %v5339, 16
      %v5376 = vrot.slane %v5374, 1
      %v5377 = vsel %vm589, %v5372, %v5376
      %v5378 = vshrl.u32 %v5339, 16
      %v5380 = vor.u32 %v5378, %v5376
      %v5382 = vshll.u32 %v5340, 16
      %v5384 = vrot.slane %v5382, 1
      %v5385 = vsel %vm589, %v5380, %v5384
      %v5386 = vshrl.u32 %v5340, 16
      %v5388 = vor.u32 %v5386, %v5384
      %v5390 = vshll.u32 %v5341, 16
      %v5392 = vrot.slane %v5390, 1
      %v5393 = vsel %vm589, %v5388, %v5392
      %v5394 = vshrl.u32 %v5341, 16
      %v5396 = vor.u32 %v5394, %v5392
      %v5398 = vshll.u32 %v5342, 16
      %v5400 = vrot.slane %v5398, 1
      %v5401 = vsel %vm589, %v5396, %v5400
      %v5402 = vshrl.u32 %v5342, 16
      %v5404 = vor.u32 %v5402, %v5400
      %v5406 = vshll.u32 %v5343, 16
      %v5408 = vrot.slane %v5406, 1
      %v5409 = vsel %vm589, %v5404, %v5408
      %v5410 = vshrl.u32 %v5343, 16
      %v5412 = vor.u32 %v5410, %v5408
      %v5414 = vshll.u32 %v5344, 16
      %v5416 = vrot.slane %v5414, 1
      %v5417 = vsel %vm589, %v5412, %v5416
      %v5418 = vshrl.u32 %v5344, 16
      %v5420 = vor.u32 %v5418, %v5416
      %v5422 = vshll.u32 %v5345, 16
      %v5424 = vrot.slane %v5422, 1
      %v5425 = vsel %vm589, %v5420, %v5424
      %v5426 = vshrl.u32 %v5345, 16
      %v5428 = vor.u32 %v5426, %v5424
      %v5430 = vshll.u32 %v5346, 16
      %v5432 = vrot.slane %v5430, 1
      %v5433 = vsel %vm589, %v5428, %v5432
      %v5434 = vshrl.u32 %v5346, 16
      %v5436 = vor.u32 %v5434, %v5432
      %v5438 = vshll.u32 %v5347, 16
      %v5440 = vrot.slane %v5438, 1
      %v5441 = vsel %vm589, %v5436, %v5440
      %v5442 = vshrl.u32 %v5347, 16
      %v5444 = vor.u32 %v5442, %v5440
      %v5446 = vshll.u32 %v5348, 16
      %v5448 = vrot.slane %v5446, 1
      %v5449 = vsel %vm589, %v5444, %v5448
      %v5450 = vshrl.u32 %v5348, 16
      %v5452 = vor.u32 %v5450, %v5448
      %v5454 = vshll.u32 %v5349, 16
      %v5456 = vrot.slane %v5454, 1
      %v5457 = vsel %vm589, %v5452, %v5456
      %5458 = vrot.lane.b32.xlu0 %v5361, 64
      %v5459 = vpop.permute.xlu0 %5458
      %5460 = vrot.lane.b32.xlu0 %v5369, 64
      %v5461 = vpop.permute.xlu0 %5460
      %5462 = vrot.lane.b32.xlu0 %v5377, 64
      %v5463 = vpop.permute.xlu0 %5462
      %5464 = vrot.lane.b32.xlu0 %v5385, 64
      %v5465 = vpop.permute.xlu0 %5464
      %5466 = vrot.lane.b32.xlu0 %v5393, 64
      %v5467 = vpop.permute.xlu0 %5466
      %5468 = vrot.lane.b32.xlu0 %v5401, 64
      %v5469 = vpop.permute.xlu0 %5468
      %5470 = vrot.lane.b32.xlu0 %v5409, 64
      %v5471 = vpop.permute.xlu0 %5470
      %5472 = vrot.lane.b32.xlu0 %v5417, 64
      %v5473 = vpop.permute.xlu0 %5472
      %5474 = vrot.lane.b32.xlu0 %v5425, 64
      %v5475 = vpop.permute.xlu0 %5474
      %5476 = vrot.lane.b32.xlu0 %v5433, 64
      %v5477 = vpop.permute.xlu0 %5476
      %5478 = vrot.lane.b32.xlu0 %v5441, 64
      %v5479 = vpop.permute.xlu0 %5478
      %5480 = vrot.lane.b32.xlu0 %v5449, 64
      %v5481 = vpop.permute.xlu0 %5480
      %5482 = vrot.lane.b32.xlu0 %v5457, 64
      %v5483 = vpop.permute.xlu0 %5482
      %vm5497 = vcmask 1048064
      %5498 = vst.msk [vmem:[#allocation5] sm:$0xff] %vm5497, %v5459
      %5499 = vst.msk [vmem:[#allocation5 + $0x28] sm:$0xff] %vm5497, %v5461
      %5500 = vst.msk [vmem:[#allocation5 + $0x50] sm:$0xff] %vm5497, %v5463
      %5501 = vst.msk [vmem:[#allocation5 + $0x78] sm:$0xff] %vm5497, %v5465
      %5502 = vst.msk [vmem:[#allocation5 + $0xa0] sm:$0xff] %vm5497, %v5467
      %5503 = vst.msk [vmem:[#allocation5 + $0xc8] sm:$0xff] %vm5497, %v5469
      %5504 = vst.msk [vmem:[#allocation5 + $0xf0] sm:$0xff] %vm5497, %v5471
      %5505 = vst.msk [vmem:[#allocation5 + $0x118] sm:$0xff] %vm5497, %v5473
      %5506 = vst.msk [vmem:[#allocation5 + $0x140] sm:$0xff] %vm5497, %v5475
      %5507 = vst.msk [vmem:[#allocation5 + $0x168] sm:$0xff] %vm5497, %v5477
      %5508 = vst.msk [vmem:[#allocation5 + $0x190] sm:$0xff] %vm5497, %v5479
      %5509 = vst.msk [vmem:[#allocation5 + $0x1b8] sm:$0xff] %vm5497, %v5481
      %5510 = vst.msk [vmem:[#allocation5 + $0x1e0] sm:$0xff] %vm5497, %v5483
      %v5511 = vld [vmem:[#allocation4] sm:$0xe]
      %v5512 = vld [vmem:[#allocation4 + $0x4] sm:$0xf]
      %v5513 = vld [vmem:[#allocation4 + $0x8] sm:$0xf]
      %v5514 = vld [vmem:[#allocation4 + $0xc] sm:$0xf]
      %v5515 = vld [vmem:[#allocation4 + $0x10] sm:$0xf]
      %v5516 = vld [vmem:[#allocation4 + $0x14] sm:$0xf]
      %v5517 = vld [vmem:[#allocation4 + $0x18] sm:$0xf]
      %v5518 = vld [vmem:[#allocation4 + $0x1c] sm:$0xf]
      %v5519 = vld [vmem:[#allocation4 + $0x20] sm:$0xf]
      %v5520 = vld [vmem:[#allocation4 + $0x24] sm:$0xf]
      %v5521 = vld [vmem:[#allocation4 + $0x28] sm:$0xf]
      %v5522 = vld [vmem:[#allocation4 + $0x2c] sm:$0xf]
      %v5523 = vld [vmem:[#allocation4 + $0x30] sm:$0xf]
      %v5524 = vld [vmem:[#allocation4 + $0x34] sm:$0xf]
      %v5525 = vld [vmem:[#allocation4 + $0x38] sm:$0xf]
      %v5526 = vld [vmem:[#allocation4 + $0x3c] sm:$0xf]
      %v5527 = vld [vmem:[#allocation4 + $0x40] sm:$0xf]
      %v5528 = vld [vmem:[#allocation4 + $0x44] sm:$0xf]
      %v5529 = vld [vmem:[#allocation4 + $0x48] sm:$0xf]
      %v5530 = vld [vmem:[#allocation4 + $0x4c] sm:$0xf]
      %v5531 = vld [vmem:[#allocation4 + $0x50] sm:$0xf]
      %v5532 = vld [vmem:[#allocation4 + $0x54] sm:$0xf]
      %v5533 = vld [vmem:[#allocation4 + $0x58] sm:$0xf]
      %v5534 = vld [vmem:[#allocation4 + $0x5c] sm:$0xf]
      %v5535 = vld [vmem:[#allocation4 + $0x60] sm:$0xf]
      %v5536 = vld [vmem:[#allocation4 + $0x64] sm:$0xf]
      %v5537 = vld [vmem:[#allocation4 + $0x68] sm:$0x1]
      %v5565 = vunpack.c.l.b16 %v5511
      %v5566 = vunpack.c.l.b16 %v5512
      %v5567 = vunpack.c.l.b16 %v5513
      %v5568 = vunpack.c.l.b16 %v5514
      %v5569 = vunpack.c.l.b16 %v5515
      %v5570 = vunpack.c.l.b16 %v5516
      %v5571 = vunpack.c.l.b16 %v5517
      %v5572 = vunpack.c.l.b16 %v5518
      %v5573 = vunpack.c.l.b16 %v5519
      %v5574 = vunpack.c.l.b16 %v5520
      %v5575 = vunpack.c.l.b16 %v5521
      %v5576 = vunpack.c.l.b16 %v5522
      %v5577 = vunpack.c.l.b16 %v5523
      %v5578 = vunpack.c.l.b16 %v5524
      %v5579 = vunpack.c.l.b16 %v5525
      %v5580 = vunpack.c.l.b16 %v5526
      %v5581 = vunpack.c.l.b16 %v5527
      %v5582 = vunpack.c.l.b16 %v5528
      %v5583 = vunpack.c.l.b16 %v5529
      %v5584 = vunpack.c.l.b16 %v5530
      %v5585 = vunpack.c.l.b16 %v5531
      %v5586 = vunpack.c.l.b16 %v5532
      %v5587 = vunpack.c.l.b16 %v5533
      %v5588 = vunpack.c.l.b16 %v5534
      %v5589 = vunpack.c.l.b16 %v5535
      %v5590 = vunpack.c.l.b16 %v5536
      %v5591 = vunpack.c.l.b16 %v5537
      %v5592 = vpack.c.b16 %v5566, %v5565
      %v5593 = vpack.c.b16 %v5568, %v5567
      %v5594 = vpack.c.b16 %v5570, %v5569
      %v5595 = vpack.c.b16 %v5572, %v5571
      %v5596 = vpack.c.b16 %v5574, %v5573
      %v5597 = vpack.c.b16 %v5576, %v5575
      %v5598 = vpack.c.b16 %v5578, %v5577
      %v5599 = vpack.c.b16 %v5580, %v5579
      %v5600 = vpack.c.b16 %v5582, %v5581
      %v5601 = vpack.c.b16 %v5584, %v5583
      %v5602 = vpack.c.b16 %v5586, %v5585
      %v5603 = vpack.c.b16 %v5588, %v5587
      %v5604 = vpack.c.b16 %v5590, %v5589
      %v5605 = vpack.c.b16 %v5591, %v5591
      %v5606 = vrot.slane %v5592, 1
      %v5607 = vrot.slane %v5593, 1
      %v5608 = vsel %vm1376, %v5606, %v5607
      %v5609 = vrot.slane %v5594, 1
      %v5610 = vsel %vm1376, %v5607, %v5609
      %v5611 = vrot.slane %v5595, 1
      %v5612 = vsel %vm1376, %v5609, %v5611
      %v5613 = vrot.slane %v5596, 1
      %v5614 = vsel %vm1376, %v5611, %v5613
      %v5615 = vrot.slane %v5597, 1
      %v5616 = vsel %vm1376, %v5613, %v5615
      %v5617 = vrot.slane %v5598, 1
      %v5618 = vsel %vm1376, %v5615, %v5617
      %v5619 = vrot.slane %v5599, 1
      %v5620 = vsel %vm1376, %v5617, %v5619
      %v5621 = vrot.slane %v5600, 1
      %v5622 = vsel %vm1376, %v5619, %v5621
      %v5623 = vrot.slane %v5601, 1
      %v5624 = vsel %vm1376, %v5621, %v5623
      %v5625 = vrot.slane %v5602, 1
      %v5626 = vsel %vm1376, %v5623, %v5625
      %v5627 = vrot.slane %v5603, 1
      %v5628 = vsel %vm1376, %v5625, %v5627
      %v5629 = vrot.slane %v5604, 1
      %v5630 = vsel %vm1376, %v5627, %v5629
      %v5631 = vrot.slane %v5605, 1
      %v5632 = vsel %vm1376, %v5629, %v5631
      %5646 = vst.msk [vmem:[#allocation5 + $0x8] sm:$0xff] %vm4672, %v5608
      %5647 = vst.msk [vmem:[#allocation5 + $0x30] sm:$0xff] %vm4672, %v5610
      %5648 = vst.msk [vmem:[#allocation5 + $0x58] sm:$0xff] %vm4672, %v5612
      %5649 = vst.msk [vmem:[#allocation5 + $0x80] sm:$0xff] %vm4672, %v5614
      %5650 = vst.msk [vmem:[#allocation5 + $0xa8] sm:$0xff] %vm4672, %v5616
      %5651 = vst.msk [vmem:[#allocation5 + $0xd0] sm:$0xff] %vm4672, %v5618
      %5652 = vst.msk [vmem:[#allocation5 + $0xf8] sm:$0xff] %vm4672, %v5620
      %5653 = vst.msk [vmem:[#allocation5 + $0x120] sm:$0xff] %vm4672, %v5622
      %5654 = vst.msk [vmem:[#allocation5 + $0x148] sm:$0xff] %vm4672, %v5624
      %5655 = vst.msk [vmem:[#allocation5 + $0x170] sm:$0xff] %vm4672, %v5626
      %5656 = vst.msk [vmem:[#allocation5 + $0x198] sm:$0xff] %vm4672, %v5628
      %5657 = vst.msk [vmem:[#allocation5 + $0x1c0] sm:$0xff] %vm4672, %v5630
      %5658 = vst.msk [vmem:[#allocation5 + $0x1e8] sm:$0xff] %vm4672, %v5632
      %v5659 = vld [vmem:[#allocation4 + $0x8] sm:$0xf]
      %v5660 = vld [vmem:[#allocation4 + $0xc] sm:$0xf]
      %v5661 = vld [vmem:[#allocation4 + $0x10] sm:$0xf]
      %v5662 = vld [vmem:[#allocation4 + $0x14] sm:$0xf]
      %v5663 = vld [vmem:[#allocation4 + $0x18] sm:$0xf]
      %v5664 = vld [vmem:[#allocation4 + $0x1c] sm:$0xf]
      %v5665 = vld [vmem:[#allocation4 + $0x20] sm:$0xf]
      %v5666 = vld [vmem:[#allocation4 + $0x24] sm:$0xf]
      %v5667 = vld [vmem:[#allocation4 + $0x28] sm:$0xf]
      %v5668 = vld [vmem:[#allocation4 + $0x2c] sm:$0xf]
      %v5669 = vld [vmem:[#allocation4 + $0x30] sm:$0xf]
      %v5670 = vld [vmem:[#allocation4 + $0x34] sm:$0xf]
      %v5671 = vld [vmem:[#allocation4 + $0x38] sm:$0xf]
      %v5672 = vld [vmem:[#allocation4 + $0x3c] sm:$0xf]
      %v5673 = vld [vmem:[#allocation4 + $0x40] sm:$0xf]
      %v5674 = vld [vmem:[#allocation4 + $0x44] sm:$0xf]
      %v5675 = vld [vmem:[#allocation4 + $0x48] sm:$0xf]
      %v5676 = vld [vmem:[#allocation4 + $0x4c] sm:$0xf]
      %v5677 = vld [vmem:[#allocation4 + $0x50] sm:$0xf]
      %v5678 = vld [vmem:[#allocation4 + $0x54] sm:$0xf]
      %v5679 = vld [vmem:[#allocation4 + $0x58] sm:$0xf]
      %v5680 = vld [vmem:[#allocation4 + $0x5c] sm:$0xf]
      %v5681 = vld [vmem:[#allocation4 + $0x60] sm:$0xf]
      %v5682 = vld [vmem:[#allocation4 + $0x64] sm:$0xf]
      %v5683 = vld [vmem:[#allocation4 + $0x68] sm:$0xf]
      %v5684 = vld [vmem:[#allocation4 + $0x6c] sm:$0xf]
      %v5711 = vunpack.c.l.b16 %v5659
      %v5712 = vunpack.c.l.b16 %v5660
      %v5713 = vunpack.c.l.b16 %v5661
      %v5714 = vunpack.c.l.b16 %v5662
      %v5715 = vunpack.c.l.b16 %v5663
      %v5716 = vunpack.c.l.b16 %v5664
      %v5717 = vunpack.c.l.b16 %v5665
      %v5718 = vunpack.c.l.b16 %v5666
      %v5719 = vunpack.c.l.b16 %v5667
      %v5720 = vunpack.c.l.b16 %v5668
      %v5721 = vunpack.c.l.b16 %v5669
      %v5722 = vunpack.c.l.b16 %v5670
      %v5723 = vunpack.c.l.b16 %v5671
      %v5724 = vunpack.c.l.b16 %v5672
      %v5725 = vunpack.c.l.b16 %v5673
      %v5726 = vunpack.c.l.b16 %v5674
      %v5727 = vunpack.c.l.b16 %v5675
      %v5728 = vunpack.c.l.b16 %v5676
      %v5729 = vunpack.c.l.b16 %v5677
      %v5730 = vunpack.c.l.b16 %v5678
      %v5731 = vunpack.c.l.b16 %v5679
      %v5732 = vunpack.c.l.b16 %v5680
      %v5733 = vunpack.c.l.b16 %v5681
      %v5734 = vunpack.c.l.b16 %v5682
      %v5735 = vunpack.c.l.b16 %v5683
      %v5736 = vunpack.c.l.b16 %v5684
      %v5737 = vpack.c.b16 %v5712, %v5711
      %v5738 = vpack.c.b16 %v5714, %v5713
      %v5739 = vpack.c.b16 %v5716, %v5715
      %v5740 = vpack.c.b16 %v5718, %v5717
      %v5741 = vpack.c.b16 %v5720, %v5719
      %v5742 = vpack.c.b16 %v5722, %v5721
      %v5743 = vpack.c.b16 %v5724, %v5723
      %v5744 = vpack.c.b16 %v5726, %v5725
      %v5745 = vpack.c.b16 %v5728, %v5727
      %v5746 = vpack.c.b16 %v5730, %v5729
      %v5747 = vpack.c.b16 %v5732, %v5731
      %v5748 = vpack.c.b16 %v5734, %v5733
      %v5749 = vpack.c.b16 %v5736, %v5735
      %5750 = vrot.lane.b32.xlu0 %v5737, 64
      %v5751 = vpop.permute.xlu0 %5750
      %5752 = vrot.lane.b32.xlu0 %v5738, 64
      %v5753 = vpop.permute.xlu0 %5752
      %5754 = vrot.lane.b32.xlu0 %v5739, 64
      %v5755 = vpop.permute.xlu0 %5754
      %5756 = vrot.lane.b32.xlu0 %v5740, 64
      %v5757 = vpop.permute.xlu0 %5756
      %5758 = vrot.lane.b32.xlu0 %v5741, 64
      %v5759 = vpop.permute.xlu0 %5758
      %5760 = vrot.lane.b32.xlu0 %v5742, 64
      %v5761 = vpop.permute.xlu0 %5760
      %5762 = vrot.lane.b32.xlu0 %v5743, 64
      %v5763 = vpop.permute.xlu0 %5762
      %5764 = vrot.lane.b32.xlu0 %v5744, 64
      %v5765 = vpop.permute.xlu0 %5764
      %5766 = vrot.lane.b32.xlu0 %v5745, 64
      %v5767 = vpop.permute.xlu0 %5766
      %5768 = vrot.lane.b32.xlu0 %v5746, 64
      %v5769 = vpop.permute.xlu0 %5768
      %5770 = vrot.lane.b32.xlu0 %v5747, 64
      %v5771 = vpop.permute.xlu0 %5770
      %5772 = vrot.lane.b32.xlu0 %v5748, 64
      %v5773 = vpop.permute.xlu0 %5772
      %5774 = vrot.lane.b32.xlu0 %v5749, 64
      %v5775 = vpop.permute.xlu0 %5774
      %5789 = vst.msk [vmem:[#allocation5 + $0x8] sm:$0xff] %vm5497, %v5751
      %5790 = vst.msk [vmem:[#allocation5 + $0x30] sm:$0xff] %vm5497, %v5753
      %5791 = vst.msk [vmem:[#allocation5 + $0x58] sm:$0xff] %vm5497, %v5755
      %5792 = vst.msk [vmem:[#allocation5 + $0x80] sm:$0xff] %vm5497, %v5757
      %5793 = vst.msk [vmem:[#allocation5 + $0xa8] sm:$0xff] %vm5497, %v5759
      %5794 = vst.msk [vmem:[#allocation5 + $0xd0] sm:$0xff] %vm5497, %v5761
      %5795 = vst.msk [vmem:[#allocation5 + $0xf8] sm:$0xff] %vm5497, %v5763
      %5796 = vst.msk [vmem:[#allocation5 + $0x120] sm:$0xff] %vm5497, %v5765
      %5797 = vst.msk [vmem:[#allocation5 + $0x148] sm:$0xff] %vm5497, %v5767
      %5798 = vst.msk [vmem:[#allocation5 + $0x170] sm:$0xff] %vm5497, %v5769
      %5799 = vst.msk [vmem:[#allocation5 + $0x198] sm:$0xff] %vm5497, %v5771
      %5800 = vst.msk [vmem:[#allocation5 + $0x1c0] sm:$0xff] %vm5497, %v5773
      %5801 = vst.msk [vmem:[#allocation5 + $0x1e8] sm:$0xff] %vm5497, %v5775
      %v5802 = vld [vmem:[#allocation4 + $0x8] sm:$0xf]
      %v5803 = vld [vmem:[#allocation4 + $0xc] sm:$0xf]
      %v5804 = vld [vmem:[#allocation4 + $0x10] sm:$0xf]
      %v5805 = vld [vmem:[#allocation4 + $0x14] sm:$0xf]
      %v5806 = vld [vmem:[#allocation4 + $0x18] sm:$0xf]
      %v5807 = vld [vmem:[#allocation4 + $0x1c] sm:$0xf]
      %v5808 = vld [vmem:[#allocation4 + $0x20] sm:$0xf]
      %v5809 = vld [vmem:[#allocation4 + $0x24] sm:$0xf]
      %v5810 = vld [vmem:[#allocation4 + $0x28] sm:$0xf]
      %v5811 = vld [vmem:[#allocation4 + $0x2c] sm:$0xf]
      %v5812 = vld [vmem:[#allocation4 + $0x30] sm:$0xf]
      %v5813 = vld [vmem:[#allocation4 + $0x34] sm:$0xf]
      %v5814 = vld [vmem:[#allocation4 + $0x38] sm:$0xf]
      %v5815 = vld [vmem:[#allocation4 + $0x3c] sm:$0xf]
      %v5816 = vld [vmem:[#allocation4 + $0x40] sm:$0xf]
      %v5817 = vld [vmem:[#allocation4 + $0x44] sm:$0xf]
      %v5818 = vld [vmem:[#allocation4 + $0x48] sm:$0xf]
      %v5819 = vld [vmem:[#allocation4 + $0x4c] sm:$0xf]
      %v5820 = vld [vmem:[#allocation4 + $0x50] sm:$0xf]
      %v5821 = vld [vmem:[#allocation4 + $0x54] sm:$0xf]
      %v5822 = vld [vmem:[#allocation4 + $0x58] sm:$0xf]
      %v5823 = vld [vmem:[#allocation4 + $0x5c] sm:$0xf]
      %v5824 = vld [vmem:[#allocation4 + $0x60] sm:$0xf]
      %v5825 = vld [vmem:[#allocation4 + $0x64] sm:$0xf]
      %v5826 = vld [vmem:[#allocation4 + $0x68] sm:$0xf]
      %v5827 = vld [vmem:[#allocation4 + $0x6c] sm:$0xf]
      %v5828 = vld [vmem:[#allocation4 + $0x70] sm:$0x1]
      %v5856 = vunpack.c.l.b16 %v5802
      %v5857 = vunpack.c.l.b16 %v5803
      %v5858 = vunpack.c.l.b16 %v5804
      %v5859 = vunpack.c.l.b16 %v5805
      %v5860 = vunpack.c.l.b16 %v5806
      %v5861 = vunpack.c.l.b16 %v5807
      %v5862 = vunpack.c.l.b16 %v5808
      %v5863 = vunpack.c.l.b16 %v5809
      %v5864 = vunpack.c.l.b16 %v5810
      %v5865 = vunpack.c.l.b16 %v5811
      %v5866 = vunpack.c.l.b16 %v5812
      %v5867 = vunpack.c.l.b16 %v5813
      %v5868 = vunpack.c.l.b16 %v5814
      %v5869 = vunpack.c.l.b16 %v5815
      %v5870 = vunpack.c.l.b16 %v5816
      %v5871 = vunpack.c.l.b16 %v5817
      %v5872 = vunpack.c.l.b16 %v5818
      %v5873 = vunpack.c.l.b16 %v5819
      %v5874 = vunpack.c.l.b16 %v5820
      %v5875 = vunpack.c.l.b16 %v5821
      %v5876 = vunpack.c.l.b16 %v5822
      %v5877 = vunpack.c.l.b16 %v5823
      %v5878 = vunpack.c.l.b16 %v5824
      %v5879 = vunpack.c.l.b16 %v5825
      %v5880 = vunpack.c.l.b16 %v5826
      %v5881 = vunpack.c.l.b16 %v5827
      %v5882 = vunpack.c.l.b16 %v5828
      %v5883 = vpack.c.b16 %v5857, %v5856
      %v5884 = vpack.c.b16 %v5859, %v5858
      %v5885 = vpack.c.b16 %v5861, %v5860
      %v5886 = vpack.c.b16 %v5863, %v5862
      %v5887 = vpack.c.b16 %v5865, %v5864
      %v5888 = vpack.c.b16 %v5867, %v5866
      %v5889 = vpack.c.b16 %v5869, %v5868
      %v5890 = vpack.c.b16 %v5871, %v5870
      %v5891 = vpack.c.b16 %v5873, %v5872
      %v5892 = vpack.c.b16 %v5875, %v5874
      %v5893 = vpack.c.b16 %v5877, %v5876
      %v5894 = vpack.c.b16 %v5879, %v5878
      %v5895 = vpack.c.b16 %v5881, %v5880
      %v5896 = vpack.c.b16 %v5882, %v5882
      %v5898 = vshrl.u32 %v5883, 16
      %v5900 = vshll.u32 %v5883, 16
      %v5902 = vrot.slane %v5900, 1
      %v5903 = vor.u32 %v5898, %v5902
      %v5905 = vshll.u32 %v5884, 16
      %v5907 = vrot.slane %v5905, 1
      %v5908 = vsel %vm589, %v5903, %v5907
      %v5909 = vshrl.u32 %v5884, 16
      %v5911 = vor.u32 %v5909, %v5907
      %v5913 = vshll.u32 %v5885, 16
      %v5915 = vrot.slane %v5913, 1
      %v5916 = vsel %vm589, %v5911, %v5915
      %v5917 = vshrl.u32 %v5885, 16
      %v5919 = vor.u32 %v5917, %v5915
      %v5921 = vshll.u32 %v5886, 16
      %v5923 = vrot.slane %v5921, 1
      %v5924 = vsel %vm589, %v5919, %v5923
      %v5925 = vshrl.u32 %v5886, 16
      %v5927 = vor.u32 %v5925, %v5923
      %v5929 = vshll.u32 %v5887, 16
      %v5931 = vrot.slane %v5929, 1
      %v5932 = vsel %vm589, %v5927, %v5931
      %v5933 = vshrl.u32 %v5887, 16
      %v5935 = vor.u32 %v5933, %v5931
      %v5937 = vshll.u32 %v5888, 16
      %v5939 = vrot.slane %v5937, 1
      %v5940 = vsel %vm589, %v5935, %v5939
      %v5941 = vshrl.u32 %v5888, 16
      %v5943 = vor.u32 %v5941, %v5939
      %v5945 = vshll.u32 %v5889, 16
      %v5947 = vrot.slane %v5945, 1
      %v5948 = vsel %vm589, %v5943, %v5947
      %v5949 = vshrl.u32 %v5889, 16
      %v5951 = vor.u32 %v5949, %v5947
      %v5953 = vshll.u32 %v5890, 16
      %v5955 = vrot.slane %v5953, 1
      %v5956 = vsel %vm589, %v5951, %v5955
      %v5957 = vshrl.u32 %v5890, 16
      %v5959 = vor.u32 %v5957, %v5955
      %v5961 = vshll.u32 %v5891, 16
      %v5963 = vrot.slane %v5961, 1
      %v5964 = vsel %vm589, %v5959, %v5963
      %v5965 = vshrl.u32 %v5891, 16
      %v5967 = vor.u32 %v5965, %v5963
      %v5969 = vshll.u32 %v5892, 16
      %v5971 = vrot.slane %v5969, 1
      %v5972 = vsel %vm589, %v5967, %v5971
      %v5973 = vshrl.u32 %v5892, 16
      %v5975 = vor.u32 %v5973, %v5971
      %v5977 = vshll.u32 %v5893, 16
      %v5979 = vrot.slane %v5977, 1
      %v5980 = vsel %vm589, %v5975, %v5979
      %v5981 = vshrl.u32 %v5893, 16
      %v5983 = vor.u32 %v5981, %v5979
      %v5985 = vshll.u32 %v5894, 16
      %v5987 = vrot.slane %v5985, 1
      %v5988 = vsel %vm589, %v5983, %v5987
      %v5989 = vshrl.u32 %v5894, 16
      %v5991 = vor.u32 %v5989, %v5987
      %v5993 = vshll.u32 %v5895, 16
      %v5995 = vrot.slane %v5993, 1
      %v5996 = vsel %vm589, %v5991, %v5995
      %v5997 = vshrl.u32 %v5895, 16
      %v5999 = vor.u32 %v5997, %v5995
      %v6001 = vshll.u32 %v5896, 16
      %v6003 = vrot.slane %v6001, 1
      %v6004 = vsel %vm589, %v5999, %v6003
      %6018 = vst.msk [vmem:[#allocation5 + $0x10] sm:$0xff] %vm4672, %v5908
      %6019 = vst.msk [vmem:[#allocation5 + $0x38] sm:$0xff] %vm4672, %v5916
      %6020 = vst.msk [vmem:[#allocation5 + $0x60] sm:$0xff] %vm4672, %v5924
      %6021 = vst.msk [vmem:[#allocation5 + $0x88] sm:$0xff] %vm4672, %v5932
      %6022 = vst.msk [vmem:[#allocation5 + $0xb0] sm:$0xff] %vm4672, %v5940
      %6023 = vst.msk [vmem:[#allocation5 + $0xd8] sm:$0xff] %vm4672, %v5948
      %6024 = vst.msk [vmem:[#allocation5 + $0x100] sm:$0xff] %vm4672, %v5956
      %6025 = vst.msk [vmem:[#allocation5 + $0x128] sm:$0xff] %vm4672, %v5964
      %6026 = vst.msk [vmem:[#allocation5 + $0x150] sm:$0xff] %vm4672, %v5972
      %6027 = vst.msk [vmem:[#allocation5 + $0x178] sm:$0xff] %vm4672, %v5980
      %6028 = vst.msk [vmem:[#allocation5 + $0x1a0] sm:$0xff] %vm4672, %v5988
      %6029 = vst.msk [vmem:[#allocation5 + $0x1c8] sm:$0xff] %vm4672, %v5996
      %6030 = vst.msk [vmem:[#allocation5 + $0x1f0] sm:$0xff] %vm4672, %v6004
      %v6031 = vld [vmem:[#allocation4 + $0x8] sm:$0xe]
      %v6032 = vld [vmem:[#allocation4 + $0xc] sm:$0xf]
      %v6033 = vld [vmem:[#allocation4 + $0x10] sm:$0xf]
      %v6034 = vld [vmem:[#allocation4 + $0x14] sm:$0xf]
      %v6035 = vld [vmem:[#allocation4 + $0x18] sm:$0xf]
      %v6036 = vld [vmem:[#allocation4 + $0x1c] sm:$0xf]
      %v6037 = vld [vmem:[#allocation4 + $0x20] sm:$0xf]
      %v6038 = vld [vmem:[#allocation4 + $0x24] sm:$0xf]
      %v6039 = vld [vmem:[#allocation4 + $0x28] sm:$0xf]
      %v6040 = vld [vmem:[#allocation4 + $0x2c] sm:$0xf]
      %v6041 = vld [vmem:[#allocation4 + $0x30] sm:$0xf]
      %v6042 = vld [vmem:[#allocation4 + $0x34] sm:$0xf]
      %v6043 = vld [vmem:[#allocation4 + $0x38] sm:$0xf]
      %v6044 = vld [vmem:[#allocation4 + $0x3c] sm:$0xf]
      %v6045 = vld [vmem:[#allocation4 + $0x40] sm:$0xf]
      %v6046 = vld [vmem:[#allocation4 + $0x44] sm:$0xf]
      %v6047 = vld [vmem:[#allocation4 + $0x48] sm:$0xf]
      %v6048 = vld [vmem:[#allocation4 + $0x4c] sm:$0xf]
      %v6049 = vld [vmem:[#allocation4 + $0x50] sm:$0xf]
      %v6050 = vld [vmem:[#allocation4 + $0x54] sm:$0xf]
      %v6051 = vld [vmem:[#allocation4 + $0x58] sm:$0xf]
      %v6052 = vld [vmem:[#allocation4 + $0x5c] sm:$0xf]
      %v6053 = vld [vmem:[#allocation4 + $0x60] sm:$0xf]
      %v6054 = vld [vmem:[#allocation4 + $0x64] sm:$0xf]
      %v6055 = vld [vmem:[#allocation4 + $0x68] sm:$0xf]
      %v6056 = vld [vmem:[#allocation4 + $0x6c] sm:$0xf]
      %v6057 = vld [vmem:[#allocation4 + $0x70] sm:$0x1]
      %v6085 = vunpack.c.l.b16 %v6031
      %v6086 = vunpack.c.l.b16 %v6032
      %v6087 = vunpack.c.l.b16 %v6033
      %v6088 = vunpack.c.l.b16 %v6034
      %v6089 = vunpack.c.l.b16 %v6035
      %v6090 = vunpack.c.l.b16 %v6036
      %v6091 = vunpack.c.l.b16 %v6037
      %v6092 = vunpack.c.l.b16 %v6038
      %v6093 = vunpack.c.l.b16 %v6039
      %v6094 = vunpack.c.l.b16 %v6040
      %v6095 = vunpack.c.l.b16 %v6041
      %v6096 = vunpack.c.l.b16 %v6042
      %v6097 = vunpack.c.l.b16 %v6043
      %v6098 = vunpack.c.l.b16 %v6044
      %v6099 = vunpack.c.l.b16 %v6045
      %v6100 = vunpack.c.l.b16 %v6046
      %v6101 = vunpack.c.l.b16 %v6047
      %v6102 = vunpack.c.l.b16 %v6048
      %v6103 = vunpack.c.l.b16 %v6049
      %v6104 = vunpack.c.l.b16 %v6050
      %v6105 = vunpack.c.l.b16 %v6051
      %v6106 = vunpack.c.l.b16 %v6052
      %v6107 = vunpack.c.l.b16 %v6053
      %v6108 = vunpack.c.l.b16 %v6054
      %v6109 = vunpack.c.l.b16 %v6055
      %v6110 = vunpack.c.l.b16 %v6056
      %v6111 = vunpack.c.l.b16 %v6057
      %v6112 = vpack.c.b16 %v6086, %v6085
      %v6113 = vpack.c.b16 %v6088, %v6087
      %v6114 = vpack.c.b16 %v6090, %v6089
      %v6115 = vpack.c.b16 %v6092, %v6091
      %v6116 = vpack.c.b16 %v6094, %v6093
      %v6117 = vpack.c.b16 %v6096, %v6095
      %v6118 = vpack.c.b16 %v6098, %v6097
      %v6119 = vpack.c.b16 %v6100, %v6099
      %v6120 = vpack.c.b16 %v6102, %v6101
      %v6121 = vpack.c.b16 %v6104, %v6103
      %v6122 = vpack.c.b16 %v6106, %v6105
      %v6123 = vpack.c.b16 %v6108, %v6107
      %v6124 = vpack.c.b16 %v6110, %v6109
      %v6125 = vpack.c.b16 %v6111, %v6111
      %v6126 = vrot.slane %v6112, 1
      %v6127 = vrot.slane %v6113, 1
      %v6128 = vsel %vm1376, %v6126, %v6127
      %v6129 = vrot.slane %v6114, 1
      %v6130 = vsel %vm1376, %v6127, %v6129
      %v6131 = vrot.slane %v6115, 1
      %v6132 = vsel %vm1376, %v6129, %v6131
      %v6133 = vrot.slane %v6116, 1
      %v6134 = vsel %vm1376, %v6131, %v6133
      %v6135 = vrot.slane %v6117, 1
      %v6136 = vsel %vm1376, %v6133, %v6135
      %v6137 = vrot.slane %v6118, 1
      %v6138 = vsel %vm1376, %v6135, %v6137
      %v6139 = vrot.slane %v6119, 1
      %v6140 = vsel %vm1376, %v6137, %v6139
      %v6141 = vrot.slane %v6120, 1
      %v6142 = vsel %vm1376, %v6139, %v6141
      %v6143 = vrot.slane %v6121, 1
      %v6144 = vsel %vm1376, %v6141, %v6143
      %v6145 = vrot.slane %v6122, 1
      %v6146 = vsel %vm1376, %v6143, %v6145
      %v6147 = vrot.slane %v6123, 1
      %v6148 = vsel %vm1376, %v6145, %v6147
      %v6149 = vrot.slane %v6124, 1
      %v6150 = vsel %vm1376, %v6147, %v6149
      %v6151 = vrot.slane %v6125, 1
      %v6152 = vsel %vm1376, %v6149, %v6151
      %6153 = vrot.lane.b32.xlu0 %v6128, 64
      %v6154 = vpop.permute.xlu0 %6153
      %6155 = vrot.lane.b32.xlu0 %v6130, 64
      %v6156 = vpop.permute.xlu0 %6155
      %6157 = vrot.lane.b32.xlu0 %v6132, 64
      %v6158 = vpop.permute.xlu0 %6157
      %6159 = vrot.lane.b32.xlu0 %v6134, 64
      %v6160 = vpop.permute.xlu0 %6159
      %6161 = vrot.lane.b32.xlu0 %v6136, 64
      %v6162 = vpop.permute.xlu0 %6161
      %6163 = vrot.lane.b32.xlu0 %v6138, 64
      %v6164 = vpop.permute.xlu0 %6163
      %6165 = vrot.lane.b32.xlu0 %v6140, 64
      %v6166 = vpop.permute.xlu0 %6165
      %6167 = vrot.lane.b32.xlu0 %v6142, 64
      %v6168 = vpop.permute.xlu0 %6167
      %6169 = vrot.lane.b32.xlu0 %v6144, 64
      %v6170 = vpop.permute.xlu0 %6169
      %6171 = vrot.lane.b32.xlu0 %v6146, 64
      %v6172 = vpop.permute.xlu0 %6171
      %6173 = vrot.lane.b32.xlu0 %v6148, 64
      %v6174 = vpop.permute.xlu0 %6173
      %6175 = vrot.lane.b32.xlu0 %v6150, 64
      %v6176 = vpop.permute.xlu0 %6175
      %6177 = vrot.lane.b32.xlu0 %v6152, 64
      %v6178 = vpop.permute.xlu0 %6177
      %6192 = vst.msk [vmem:[#allocation5 + $0x10] sm:$0xff] %vm5497, %v6154
      %6193 = vst.msk [vmem:[#allocation5 + $0x38] sm:$0xff] %vm5497, %v6156
      %6194 = vst.msk [vmem:[#allocation5 + $0x60] sm:$0xff] %vm5497, %v6158
      %6195 = vst.msk [vmem:[#allocation5 + $0x88] sm:$0xff] %vm5497, %v6160
      %6196 = vst.msk [vmem:[#allocation5 + $0xb0] sm:$0xff] %vm5497, %v6162
      %6197 = vst.msk [vmem:[#allocation5 + $0xd8] sm:$0xff] %vm5497, %v6164
      %6198 = vst.msk [vmem:[#allocation5 + $0x100] sm:$0xff] %vm5497, %v6166
      %6199 = vst.msk [vmem:[#allocation5 + $0x128] sm:$0xff] %vm5497, %v6168
      %6200 = vst.msk [vmem:[#allocation5 + $0x150] sm:$0xff] %vm5497, %v6170
      %6201 = vst.msk [vmem:[#allocation5 + $0x178] sm:$0xff] %vm5497, %v6172
      %6202 = vst.msk [vmem:[#allocation5 + $0x1a0] sm:$0xff] %vm5497, %v6174
      %6203 = vst.msk [vmem:[#allocation5 + $0x1c8] sm:$0xff] %vm5497, %v6176
      %6204 = vst.msk [vmem:[#allocation5 + $0x1f0] sm:$0xff] %vm5497, %v6178
      %v6205 = vld [vmem:[#allocation4 + $0x10] sm:$0xf]
      %v6206 = vld [vmem:[#allocation4 + $0x14] sm:$0xf]
      %v6207 = vld [vmem:[#allocation4 + $0x18] sm:$0xf]
      %v6208 = vld [vmem:[#allocation4 + $0x1c] sm:$0xf]
      %v6209 = vld [vmem:[#allocation4 + $0x20] sm:$0xf]
      %v6210 = vld [vmem:[#allocation4 + $0x24] sm:$0xf]
      %v6211 = vld [vmem:[#allocation4 + $0x28] sm:$0xf]
      %v6212 = vld [vmem:[#allocation4 + $0x2c] sm:$0xf]
      %v6213 = vld [vmem:[#allocation4 + $0x30] sm:$0xf]
      %v6214 = vld [vmem:[#allocation4 + $0x34] sm:$0xf]
      %v6215 = vld [vmem:[#allocation4 + $0x38] sm:$0xf]
      %v6216 = vld [vmem:[#allocation4 + $0x3c] sm:$0xf]
      %v6217 = vld [vmem:[#allocation4 + $0x40] sm:$0xf]
      %v6218 = vld [vmem:[#allocation4 + $0x44] sm:$0xf]
      %v6219 = vld [vmem:[#allocation4 + $0x48] sm:$0xf]
      %v6220 = vld [vmem:[#allocation4 + $0x4c] sm:$0xf]
      %v6221 = vld [vmem:[#allocation4 + $0x50] sm:$0xf]
      %v6222 = vld [vmem:[#allocation4 + $0x54] sm:$0xf]
      %v6223 = vld [vmem:[#allocation4 + $0x58] sm:$0xf]
      %v6224 = vld [vmem:[#allocation4 + $0x5c] sm:$0xf]
      %v6225 = vld [vmem:[#allocation4 + $0x60] sm:$0xf]
      %v6226 = vld [vmem:[#allocation4 + $0x64] sm:$0xf]
      %v6227 = vld [vmem:[#allocation4 + $0x68] sm:$0xf]
      %v6228 = vld [vmem:[#allocation4 + $0x6c] sm:$0xf]
      %v6229 = vld [vmem:[#allocation4 + $0x70] sm:$0xf]
      %v6230 = vld [vmem:[#allocation4 + $0x74] sm:$0xf]
      %v6257 = vunpack.c.l.b16 %v6205
      %v6258 = vunpack.c.l.b16 %v6206
      %v6259 = vunpack.c.l.b16 %v6207
      %v6260 = vunpack.c.l.b16 %v6208
      %v6261 = vunpack.c.l.b16 %v6209
      %v6262 = vunpack.c.l.b16 %v6210
      %v6263 = vunpack.c.l.b16 %v6211
      %v6264 = vunpack.c.l.b16 %v6212
      %v6265 = vunpack.c.l.b16 %v6213
      %v6266 = vunpack.c.l.b16 %v6214
      %v6267 = vunpack.c.l.b16 %v6215
      %v6268 = vunpack.c.l.b16 %v6216
      %v6269 = vunpack.c.l.b16 %v6217
      %v6270 = vunpack.c.l.b16 %v6218
      %v6271 = vunpack.c.l.b16 %v6219
      %v6272 = vunpack.c.l.b16 %v6220
      %v6273 = vunpack.c.l.b16 %v6221
      %v6274 = vunpack.c.l.b16 %v6222
      %v6275 = vunpack.c.l.b16 %v6223
      %v6276 = vunpack.c.l.b16 %v6224
      %v6277 = vunpack.c.l.b16 %v6225
      %v6278 = vunpack.c.l.b16 %v6226
      %v6279 = vunpack.c.l.b16 %v6227
      %v6280 = vunpack.c.l.b16 %v6228
      %v6281 = vunpack.c.l.b16 %v6229
      %v6282 = vunpack.c.l.b16 %v6230
      %v6283 = vpack.c.b16 %v6258, %v6257
      %v6284 = vpack.c.b16 %v6260, %v6259
      %v6285 = vpack.c.b16 %v6262, %v6261
      %v6286 = vpack.c.b16 %v6264, %v6263
      %v6287 = vpack.c.b16 %v6266, %v6265
      %v6288 = vpack.c.b16 %v6268, %v6267
      %v6289 = vpack.c.b16 %v6270, %v6269
      %v6290 = vpack.c.b16 %v6272, %v6271
      %v6291 = vpack.c.b16 %v6274, %v6273
      %v6292 = vpack.c.b16 %v6276, %v6275
      %v6293 = vpack.c.b16 %v6278, %v6277
      %v6294 = vpack.c.b16 %v6280, %v6279
      %v6295 = vpack.c.b16 %v6282, %v6281
      %6309 = vst.msk [vmem:[#allocation5 + $0x18] sm:$0xff] %vm4672, %v6283
      %6310 = vst.msk [vmem:[#allocation5 + $0x40] sm:$0xff] %vm4672, %v6284
      %6311 = vst.msk [vmem:[#allocation5 + $0x68] sm:$0xff] %vm4672, %v6285
      %6312 = vst.msk [vmem:[#allocation5 + $0x90] sm:$0xff] %vm4672, %v6286
      %6313 = vst.msk [vmem:[#allocation5 + $0xb8] sm:$0xff] %vm4672, %v6287
      %6314 = vst.msk [vmem:[#allocation5 + $0xe0] sm:$0xff] %vm4672, %v6288
      %6315 = vst.msk [vmem:[#allocation5 + $0x108] sm:$0xff] %vm4672, %v6289
      %6316 = vst.msk [vmem:[#allocation5 + $0x130] sm:$0xff] %vm4672, %v6290
      %6317 = vst.msk [vmem:[#allocation5 + $0x158] sm:$0xff] %vm4672, %v6291
      %6318 = vst.msk [vmem:[#allocation5 + $0x180] sm:$0xff] %vm4672, %v6292
      %6319 = vst.msk [vmem:[#allocation5 + $0x1a8] sm:$0xff] %vm4672, %v6293
      %6320 = vst.msk [vmem:[#allocation5 + $0x1d0] sm:$0xff] %vm4672, %v6294
      %6321 = vst.msk [vmem:[#allocation5 + $0x1f8] sm:$0xff] %vm4672, %v6295
      %v6322 = vld [vmem:[#allocation4 + $0x10] sm:$0xf]
      %v6323 = vld [vmem:[#allocation4 + $0x14] sm:$0xf]
      %v6324 = vld [vmem:[#allocation4 + $0x18] sm:$0xf]
      %v6325 = vld [vmem:[#allocation4 + $0x1c] sm:$0xf]
      %v6326 = vld [vmem:[#allocation4 + $0x20] sm:$0xf]
      %v6327 = vld [vmem:[#allocation4 + $0x24] sm:$0xf]
      %v6328 = vld [vmem:[#allocation4 + $0x28] sm:$0xf]
      %v6329 = vld [vmem:[#allocation4 + $0x2c] sm:$0xf]
      %v6330 = vld [vmem:[#allocation4 + $0x30] sm:$0xf]
      %v6331 = vld [vmem:[#allocation4 + $0x34] sm:$0xf]
      %v6332 = vld [vmem:[#allocation4 + $0x38] sm:$0xf]
      %v6333 = vld [vmem:[#allocation4 + $0x3c] sm:$0xf]
      %v6334 = vld [vmem:[#allocation4 + $0x40] sm:$0xf]
      %v6335 = vld [vmem:[#allocation4 + $0x44] sm:$0xf]
      %v6336 = vld [vmem:[#allocation4 + $0x48] sm:$0xf]
      %v6337 = vld [vmem:[#allocation4 + $0x4c] sm:$0xf]
      %v6338 = vld [vmem:[#allocation4 + $0x50] sm:$0xf]
      %v6339 = vld [vmem:[#allocation4 + $0x54] sm:$0xf]
      %v6340 = vld [vmem:[#allocation4 + $0x58] sm:$0xf]
      %v6341 = vld [vmem:[#allocation4 + $0x5c] sm:$0xf]
      %v6342 = vld [vmem:[#allocation4 + $0x60] sm:$0xf]
      %v6343 = vld [vmem:[#allocation4 + $0x64] sm:$0xf]
      %v6344 = vld [vmem:[#allocation4 + $0x68] sm:$0xf]
      %v6345 = vld [vmem:[#allocation4 + $0x6c] sm:$0xf]
      %v6346 = vld [vmem:[#allocation4 + $0x70] sm:$0xf]
      %v6347 = vld [vmem:[#allocation4 + $0x74] sm:$0xf]
      %v6348 = vld [vmem:[#allocation4 + $0x78] sm:$0x1]
      %v6376 = vunpack.c.l.b16 %v6322
      %v6377 = vunpack.c.l.b16 %v6323
      %v6378 = vunpack.c.l.b16 %v6324
      %v6379 = vunpack.c.l.b16 %v6325
      %v6380 = vunpack.c.l.b16 %v6326
      %v6381 = vunpack.c.l.b16 %v6327
      %v6382 = vunpack.c.l.b16 %v6328
      %v6383 = vunpack.c.l.b16 %v6329
      %v6384 = vunpack.c.l.b16 %v6330
      %v6385 = vunpack.c.l.b16 %v6331
      %v6386 = vunpack.c.l.b16 %v6332
      %v6387 = vunpack.c.l.b16 %v6333
      %v6388 = vunpack.c.l.b16 %v6334
      %v6389 = vunpack.c.l.b16 %v6335
      %v6390 = vunpack.c.l.b16 %v6336
      %v6391 = vunpack.c.l.b16 %v6337
      %v6392 = vunpack.c.l.b16 %v6338
      %v6393 = vunpack.c.l.b16 %v6339
      %v6394 = vunpack.c.l.b16 %v6340
      %v6395 = vunpack.c.l.b16 %v6341
      %v6396 = vunpack.c.l.b16 %v6342
      %v6397 = vunpack.c.l.b16 %v6343
      %v6398 = vunpack.c.l.b16 %v6344
      %v6399 = vunpack.c.l.b16 %v6345
      %v6400 = vunpack.c.l.b16 %v6346
      %v6401 = vunpack.c.l.b16 %v6347
      %v6402 = vunpack.c.l.b16 %v6348
      %v6403 = vpack.c.b16 %v6377, %v6376
      %v6404 = vpack.c.b16 %v6379, %v6378
      %v6405 = vpack.c.b16 %v6381, %v6380
      %v6406 = vpack.c.b16 %v6383, %v6382
      %v6407 = vpack.c.b16 %v6385, %v6384
      %v6408 = vpack.c.b16 %v6387, %v6386
      %v6409 = vpack.c.b16 %v6389, %v6388
      %v6410 = vpack.c.b16 %v6391, %v6390
      %v6411 = vpack.c.b16 %v6393, %v6392
      %v6412 = vpack.c.b16 %v6395, %v6394
      %v6413 = vpack.c.b16 %v6397, %v6396
      %v6414 = vpack.c.b16 %v6399, %v6398
      %v6415 = vpack.c.b16 %v6401, %v6400
      %v6416 = vpack.c.b16 %v6402, %v6402
      %v6418 = vshrl.u32 %v6403, 16
      %v6420 = vshll.u32 %v6403, 16
      %v6422 = vrot.slane %v6420, 1
      %v6423 = vor.u32 %v6418, %v6422
      %v6425 = vshll.u32 %v6404, 16
      %v6427 = vrot.slane %v6425, 1
      %v6428 = vsel %vm589, %v6423, %v6427
      %v6429 = vshrl.u32 %v6404, 16
      %v6431 = vor.u32 %v6429, %v6427
      %v6433 = vshll.u32 %v6405, 16
      %v6435 = vrot.slane %v6433, 1
      %v6436 = vsel %vm589, %v6431, %v6435
      %v6437 = vshrl.u32 %v6405, 16
      %v6439 = vor.u32 %v6437, %v6435
      %v6441 = vshll.u32 %v6406, 16
      %v6443 = vrot.slane %v6441, 1
      %v6444 = vsel %vm589, %v6439, %v6443
      %v6445 = vshrl.u32 %v6406, 16
      %v6447 = vor.u32 %v6445, %v6443
      %v6449 = vshll.u32 %v6407, 16
      %v6451 = vrot.slane %v6449, 1
      %v6452 = vsel %vm589, %v6447, %v6451
      %v6453 = vshrl.u32 %v6407, 16
      %v6455 = vor.u32 %v6453, %v6451
      %v6457 = vshll.u32 %v6408, 16
      %v6459 = vrot.slane %v6457, 1
      %v6460 = vsel %vm589, %v6455, %v6459
      %v6461 = vshrl.u32 %v6408, 16
      %v6463 = vor.u32 %v6461, %v6459
      %v6465 = vshll.u32 %v6409, 16
      %v6467 = vrot.slane %v6465, 1
      %v6468 = vsel %vm589, %v6463, %v6467
      %v6469 = vshrl.u32 %v6409, 16
      %v6471 = vor.u32 %v6469, %v6467
      %v6473 = vshll.u32 %v6410, 16
      %v6475 = vrot.slane %v6473, 1
      %v6476 = vsel %vm589, %v6471, %v6475
      %v6477 = vshrl.u32 %v6410, 16
      %v6479 = vor.u32 %v6477, %v6475
      %v6481 = vshll.u32 %v6411, 16
      %v6483 = vrot.slane %v6481, 1
      %v6484 = vsel %vm589, %v6479, %v6483
      %v6485 = vshrl.u32 %v6411, 16
      %v6487 = vor.u32 %v6485, %v6483
      %v6489 = vshll.u32 %v6412, 16
      %v6491 = vrot.slane %v6489, 1
      %v6492 = vsel %vm589, %v6487, %v6491
      %v6493 = vshrl.u32 %v6412, 16
      %v6495 = vor.u32 %v6493, %v6491
      %v6497 = vshll.u32 %v6413, 16
      %v6499 = vrot.slane %v6497, 1
      %v6500 = vsel %vm589, %v6495, %v6499
      %v6501 = vshrl.u32 %v6413, 16
      %v6503 = vor.u32 %v6501, %v6499
      %v6505 = vshll.u32 %v6414, 16
      %v6507 = vrot.slane %v6505, 1
      %v6508 = vsel %vm589, %v6503, %v6507
      %v6509 = vshrl.u32 %v6414, 16
      %v6511 = vor.u32 %v6509, %v6507
      %v6513 = vshll.u32 %v6415, 16
      %v6515 = vrot.slane %v6513, 1
      %v6516 = vsel %vm589, %v6511, %v6515
      %v6517 = vshrl.u32 %v6415, 16
      %v6519 = vor.u32 %v6517, %v6515
      %v6521 = vshll.u32 %v6416, 16
      %v6523 = vrot.slane %v6521, 1
      %v6524 = vsel %vm589, %v6519, %v6523
      %6525 = vrot.lane.b32.xlu0 %v6428, 64
      %v6526 = vpop.permute.xlu0 %6525
      %6527 = vrot.lane.b32.xlu0 %v6436, 64
      %v6528 = vpop.permute.xlu0 %6527
      %6529 = vrot.lane.b32.xlu0 %v6444, 64
      %v6530 = vpop.permute.xlu0 %6529
      %6531 = vrot.lane.b32.xlu0 %v6452, 64
      %v6532 = vpop.permute.xlu0 %6531
      %6533 = vrot.lane.b32.xlu0 %v6460, 64
      %v6534 = vpop.permute.xlu0 %6533
      %6535 = vrot.lane.b32.xlu0 %v6468, 64
      %v6536 = vpop.permute.xlu0 %6535
      %6537 = vrot.lane.b32.xlu0 %v6476, 64
      %v6538 = vpop.permute.xlu0 %6537
      %6539 = vrot.lane.b32.xlu0 %v6484, 64
      %v6540 = vpop.permute.xlu0 %6539
      %6541 = vrot.lane.b32.xlu0 %v6492, 64
      %v6542 = vpop.permute.xlu0 %6541
      %6543 = vrot.lane.b32.xlu0 %v6500, 64
      %v6544 = vpop.permute.xlu0 %6543
      %6545 = vrot.lane.b32.xlu0 %v6508, 64
      %v6546 = vpop.permute.xlu0 %6545
      %6547 = vrot.lane.b32.xlu0 %v6516, 64
      %v6548 = vpop.permute.xlu0 %6547
      %6549 = vrot.lane.b32.xlu0 %v6524, 64
      %v6550 = vpop.permute.xlu0 %6549
      %6564 = vst.msk [vmem:[#allocation5 + $0x18] sm:$0xff] %vm5497, %v6526
      %6565 = vst.msk [vmem:[#allocation5 + $0x40] sm:$0xff] %vm5497, %v6528
      %6566 = vst.msk [vmem:[#allocation5 + $0x68] sm:$0xff] %vm5497, %v6530
      %6567 = vst.msk [vmem:[#allocation5 + $0x90] sm:$0xff] %vm5497, %v6532
      %6568 = vst.msk [vmem:[#allocation5 + $0xb8] sm:$0xff] %vm5497, %v6534
      %6569 = vst.msk [vmem:[#allocation5 + $0xe0] sm:$0xff] %vm5497, %v6536
      %6570 = vst.msk [vmem:[#allocation5 + $0x108] sm:$0xff] %vm5497, %v6538
      %6571 = vst.msk [vmem:[#allocation5 + $0x130] sm:$0xff] %vm5497, %v6540
      %6572 = vst.msk [vmem:[#allocation5 + $0x158] sm:$0xff] %vm5497, %v6542
      %6573 = vst.msk [vmem:[#allocation5 + $0x180] sm:$0xff] %vm5497, %v6544
      %6574 = vst.msk [vmem:[#allocation5 + $0x1a8] sm:$0xff] %vm5497, %v6546
      %6575 = vst.msk [vmem:[#allocation5 + $0x1d0] sm:$0xff] %vm5497, %v6548
      %6576 = vst.msk [vmem:[#allocation5 + $0x1f8] sm:$0xff] %vm5497, %v6550
      %v6577 = vld [vmem:[#allocation4 + $0x10] sm:$0xe]
      %v6578 = vld [vmem:[#allocation4 + $0x14] sm:$0xf]
      %v6579 = vld [vmem:[#allocation4 + $0x18] sm:$0xf]
      %v6580 = vld [vmem:[#allocation4 + $0x1c] sm:$0xf]
      %v6581 = vld [vmem:[#allocation4 + $0x20] sm:$0xf]
      %v6582 = vld [vmem:[#allocation4 + $0x24] sm:$0xf]
      %v6583 = vld [vmem:[#allocation4 + $0x28] sm:$0xf]
      %v6584 = vld [vmem:[#allocation4 + $0x2c] sm:$0xf]
      %v6585 = vld [vmem:[#allocation4 + $0x30] sm:$0xf]
      %v6586 = vld [vmem:[#allocation4 + $0x34] sm:$0xf]
      %v6587 = vld [vmem:[#allocation4 + $0x38] sm:$0xf]
      %v6588 = vld [vmem:[#allocation4 + $0x3c] sm:$0xf]
      %v6589 = vld [vmem:[#allocation4 + $0x40] sm:$0xf]
      %v6590 = vld [vmem:[#allocation4 + $0x44] sm:$0xf]
      %v6591 = vld [vmem:[#allocation4 + $0x48] sm:$0xf]
      %v6592 = vld [vmem:[#allocation4 + $0x4c] sm:$0xf]
      %v6593 = vld [vmem:[#allocation4 + $0x50] sm:$0xf]
      %v6594 = vld [vmem:[#allocation4 + $0x54] sm:$0xf]
      %v6595 = vld [vmem:[#allocation4 + $0x58] sm:$0xf]
      %v6596 = vld [vmem:[#allocation4 + $0x5c] sm:$0xf]
      %v6597 = vld [vmem:[#allocation4 + $0x60] sm:$0xf]
      %v6598 = vld [vmem:[#allocation4 + $0x64] sm:$0xf]
      %v6599 = vld [vmem:[#allocation4 + $0x68] sm:$0xf]
      %v6600 = vld [vmem:[#allocation4 + $0x6c] sm:$0xf]
      %v6601 = vld [vmem:[#allocation4 + $0x70] sm:$0xf]
      %v6602 = vld [vmem:[#allocation4 + $0x74] sm:$0xf]
      %v6603 = vld [vmem:[#allocation4 + $0x78] sm:$0x1]
      %v6631 = vunpack.c.l.b16 %v6577
      %v6632 = vunpack.c.l.b16 %v6578
      %v6633 = vunpack.c.l.b16 %v6579
      %v6634 = vunpack.c.l.b16 %v6580
      %v6635 = vunpack.c.l.b16 %v6581
      %v6636 = vunpack.c.l.b16 %v6582
      %v6637 = vunpack.c.l.b16 %v6583
      %v6638 = vunpack.c.l.b16 %v6584
      %v6639 = vunpack.c.l.b16 %v6585
      %v6640 = vunpack.c.l.b16 %v6586
      %v6641 = vunpack.c.l.b16 %v6587
      %v6642 = vunpack.c.l.b16 %v6588
      %v6643 = vunpack.c.l.b16 %v6589
      %v6644 = vunpack.c.l.b16 %v6590
      %v6645 = vunpack.c.l.b16 %v6591
      %v6646 = vunpack.c.l.b16 %v6592
      %v6647 = vunpack.c.l.b16 %v6593
      %v6648 = vunpack.c.l.b16 %v6594
      %v6649 = vunpack.c.l.b16 %v6595
      %v6650 = vunpack.c.l.b16 %v6596
      %v6651 = vunpack.c.l.b16 %v6597
      %v6652 = vunpack.c.l.b16 %v6598
      %v6653 = vunpack.c.l.b16 %v6599
      %v6654 = vunpack.c.l.b16 %v6600
      %v6655 = vunpack.c.l.b16 %v6601
      %v6656 = vunpack.c.l.b16 %v6602
      %v6657 = vunpack.c.l.b16 %v6603
      %v6658 = vpack.c.b16 %v6632, %v6631
      %v6659 = vpack.c.b16 %v6634, %v6633
      %v6660 = vpack.c.b16 %v6636, %v6635
      %v6661 = vpack.c.b16 %v6638, %v6637
      %v6662 = vpack.c.b16 %v6640, %v6639
      %v6663 = vpack.c.b16 %v6642, %v6641
      %v6664 = vpack.c.b16 %v6644, %v6643
      %v6665 = vpack.c.b16 %v6646, %v6645
      %v6666 = vpack.c.b16 %v6648, %v6647
      %v6667 = vpack.c.b16 %v6650, %v6649
      %v6668 = vpack.c.b16 %v6652, %v6651
      %v6669 = vpack.c.b16 %v6654, %v6653
      %v6670 = vpack.c.b16 %v6656, %v6655
      %v6671 = vpack.c.b16 %v6657, %v6657
      %v6672 = vrot.slane %v6658, 1
      %v6673 = vrot.slane %v6659, 1
      %v6674 = vsel %vm1376, %v6672, %v6673
      %v6675 = vrot.slane %v6660, 1
      %v6676 = vsel %vm1376, %v6673, %v6675
      %v6677 = vrot.slane %v6661, 1
      %v6678 = vsel %vm1376, %v6675, %v6677
      %v6679 = vrot.slane %v6662, 1
      %v6680 = vsel %vm1376, %v6677, %v6679
      %v6681 = vrot.slane %v6663, 1
      %v6682 = vsel %vm1376, %v6679, %v6681
      %v6683 = vrot.slane %v6664, 1
      %v6684 = vsel %vm1376, %v6681, %v6683
      %v6685 = vrot.slane %v6665, 1
      %v6686 = vsel %vm1376, %v6683, %v6685
      %v6687 = vrot.slane %v6666, 1
      %v6688 = vsel %vm1376, %v6685, %v6687
      %v6689 = vrot.slane %v6667, 1
      %v6690 = vsel %vm1376, %v6687, %v6689
      %v6691 = vrot.slane %v6668, 1
      %v6692 = vsel %vm1376, %v6689, %v6691
      %v6693 = vrot.slane %v6669, 1
      %v6694 = vsel %vm1376, %v6691, %v6693
      %v6695 = vrot.slane %v6670, 1
      %v6696 = vsel %vm1376, %v6693, %v6695
      %v6697 = vrot.slane %v6671, 1
      %v6698 = vsel %vm1376, %v6695, %v6697
      %6712 = vst.msk [vmem:[#allocation5 + $0x20] sm:$0xff] %vm4672, %v6674
      %6713 = vst.msk [vmem:[#allocation5 + $0x48] sm:$0xff] %vm4672, %v6676
      %6714 = vst.msk [vmem:[#allocation5 + $0x70] sm:$0xff] %vm4672, %v6678
      %6715 = vst.msk [vmem:[#allocation5 + $0x98] sm:$0xff] %vm4672, %v6680
      %6716 = vst.msk [vmem:[#allocation5 + $0xc0] sm:$0xff] %vm4672, %v6682
      %6717 = vst.msk [vmem:[#allocation5 + $0xe8] sm:$0xff] %vm4672, %v6684
      %6718 = vst.msk [vmem:[#allocation5 + $0x110] sm:$0xff] %vm4672, %v6686
      %6719 = vst.msk [vmem:[#allocation5 + $0x138] sm:$0xff] %vm4672, %v6688
      %6720 = vst.msk [vmem:[#allocation5 + $0x160] sm:$0xff] %vm4672, %v6690
      %6721 = vst.msk [vmem:[#allocation5 + $0x188] sm:$0xff] %vm4672, %v6692
      %6722 = vst.msk [vmem:[#allocation5 + $0x1b0] sm:$0xff] %vm4672, %v6694
      %6723 = vst.msk [vmem:[#allocation5 + $0x1d8] sm:$0xff] %vm4672, %v6696
      %6724 = vst.msk [vmem:[#allocation5 + $0x200] sm:$0xff] %vm4672, %v6698
      %v6725 = vld [vmem:[#allocation5] sm:$0xff]
      %v6726 = vld [vmem:[#allocation5 + $0x8] sm:$0xff]
      %v6727 = vld [vmem:[#allocation5 + $0x10] sm:$0xff]
      %v6728 = vld [vmem:[#allocation5 + $0x18] sm:$0xff]
      %v6729 = vld [vmem:[#allocation5 + $0x20] sm:$0xff]
      %v6730 = vld [vmem:[#allocation5 + $0x28] sm:$0xff]
      %v6731 = vld [vmem:[#allocation5 + $0x30] sm:$0xff]
      %v6732 = vld [vmem:[#allocation5 + $0x38] sm:$0xff]
      %v6733 = vld [vmem:[#allocation5 + $0x40] sm:$0xff]
      %v6734 = vld [vmem:[#allocation5 + $0x48] sm:$0xff]
      %v6735 = vld [vmem:[#allocation5 + $0x50] sm:$0xff]
      %v6736 = vld [vmem:[#allocation5 + $0x58] sm:$0xff]
      %v6737 = vld [vmem:[#allocation5 + $0x60] sm:$0xff]
      %v6738 = vld [vmem:[#allocation5 + $0x68] sm:$0xff]
      %v6739 = vld [vmem:[#allocation5 + $0x70] sm:$0xff]
      %v6740 = vld [vmem:[#allocation5 + $0x78] sm:$0xff]
      %v6741 = vld [vmem:[#allocation5 + $0x80] sm:$0xff]
      %v6742 = vld [vmem:[#allocation5 + $0x88] sm:$0xff]
      %v6743 = vld [vmem:[#allocation5 + $0x90] sm:$0xff]
      %v6744 = vld [vmem:[#allocation5 + $0x98] sm:$0xff]
      %v6745 = vld [vmem:[#allocation5 + $0xa0] sm:$0xff]
      %v6746 = vld [vmem:[#allocation5 + $0xa8] sm:$0xff]
      %v6747 = vld [vmem:[#allocation5 + $0xb0] sm:$0xff]
      %v6748 = vld [vmem:[#allocation5 + $0xb8] sm:$0xff]
      %v6749 = vld [vmem:[#allocation5 + $0xc0] sm:$0xff]
      %v6750 = vld [vmem:[#allocation5 + $0xc8] sm:$0xff]
      %v6751 = vld [vmem:[#allocation5 + $0xd0] sm:$0xff]
      %v6752 = vld [vmem:[#allocation5 + $0xd8] sm:$0xff]
      %v6753 = vld [vmem:[#allocation5 + $0xe0] sm:$0xff]
      %v6754 = vld [vmem:[#allocation5 + $0xe8] sm:$0xff]
      %v6755 = vld [vmem:[#allocation5 + $0xf0] sm:$0xff]
      %v6756 = vld [vmem:[#allocation5 + $0xf8] sm:$0xff]
      %v6757 = vld [vmem:[#allocation5 + $0x100] sm:$0xff]
      %v6758 = vld [vmem:[#allocation5 + $0x108] sm:$0xff]
      %v6759 = vld [vmem:[#allocation5 + $0x110] sm:$0xff]
      %v6760 = vld [vmem:[#allocation5 + $0x118] sm:$0xff]
      %v6761 = vld [vmem:[#allocation5 + $0x120] sm:$0xff]
      %v6762 = vld [vmem:[#allocation5 + $0x128] sm:$0xff]
      %v6763 = vld [vmem:[#allocation5 + $0x130] sm:$0xff]
      %v6764 = vld [vmem:[#allocation5 + $0x138] sm:$0xff]
      %v6765 = vld [vmem:[#allocation5 + $0x140] sm:$0xff]
      %v6766 = vld [vmem:[#allocation5 + $0x148] sm:$0xff]
      %v6767 = vld [vmem:[#allocation5 + $0x150] sm:$0xff]
      %v6768 = vld [vmem:[#allocation5 + $0x158] sm:$0xff]
      %v6769 = vld [vmem:[#allocation5 + $0x160] sm:$0xff]
      %v6770 = vld [vmem:[#allocation5 + $0x168] sm:$0xff]
      %v6771 = vld [vmem:[#allocation5 + $0x170] sm:$0xff]
      %v6772 = vld [vmem:[#allocation5 + $0x178] sm:$0xff]
      %v6773 = vld [vmem:[#allocation5 + $0x180] sm:$0xff]
      %v6774 = vld [vmem:[#allocation5 + $0x188] sm:$0xff]
      %v6775 = vld [vmem:[#allocation5 + $0x190] sm:$0xff]
      %v6776 = vld [vmem:[#allocation5 + $0x198] sm:$0xff]
      %v6777 = vld [vmem:[#allocation5 + $0x1a0] sm:$0xff]
      %v6778 = vld [vmem:[#allocation5 + $0x1a8] sm:$0xff]
      %v6779 = vld [vmem:[#allocation5 + $0x1b0] sm:$0xff]
      %v6780 = vld [vmem:[#allocation5 + $0x1b8] sm:$0xff]
      %v6781 = vld [vmem:[#allocation5 + $0x1c0] sm:$0xff]
      %v6782 = vld [vmem:[#allocation5 + $0x1c8] sm:$0xff]
      %v6783 = vld [vmem:[#allocation5 + $0x1d0] sm:$0xff]
      %v6784 = vld [vmem:[#allocation5 + $0x1d8] sm:$0xff]
      %v6785 = vld [vmem:[#allocation5 + $0x1e0] sm:$0xff]
      %v6786 = vld [vmem:[#allocation5 + $0x1e8] sm:$0xff]
      %v6787 = vld [vmem:[#allocation5 + $0x1f0] sm:$0xff]
      %v6788 = vld [vmem:[#allocation5 + $0x1f8] sm:$0xff]
      %v6789 = vld [vmem:[#allocation5 + $0x200] sm:$0xff]
      %v6790 = vld [vmem:[%s5] sm:$0xf]
      %v6791 = vld [vmem:[%s5 + $0x4] sm:$0xf]
      %v6792 = vld [vmem:[%s5 + $0x8] sm:$0xf]
      %v6793 = vld [vmem:[%s5 + $0xc] sm:$0xf]
      %v6794 = vld [vmem:[%s5 + $0x10] sm:$0xf]
      %v6795 = vld [vmem:[%s5 + $0x14] sm:$0xf]
      %v6796 = vld [vmem:[%s5 + $0x18] sm:$0xf]
      %v6797 = vld [vmem:[%s5 + $0x1c] sm:$0xf]
      %v6798 = vld [vmem:[%s5 + $0x20] sm:$0xf]
      %v6799 = vld [vmem:[%s5 + $0x24] sm:$0xf]
      %v6800 = vld [vmem:[%s5 + $0x28] sm:$0xf]
      %v6801 = vld [vmem:[%s5 + $0x2c] sm:$0xf]
      %v6802 = vld [vmem:[%s5 + $0x30] sm:$0xf]
      %v6803 = vld [vmem:[%s5 + $0x34] sm:$0xf]
      %v6804 = vld [vmem:[%s5 + $0x38] sm:$0xf]
      %v6805 = vld [vmem:[%s5 + $0x3c] sm:$0xf]
      %v6806 = vld [vmem:[%s5 + $0x40] sm:$0xf]
      %v6807 = vld [vmem:[%s5 + $0x44] sm:$0xf]
      %v6808 = vld [vmem:[%s5 + $0x48] sm:$0xf]
      %v6809 = vld [vmem:[%s5 + $0x4c] sm:$0xf]
      %v6810 = vld [vmem:[%s5 + $0x50] sm:$0xf]
      %v6811 = vld [vmem:[%s5 + $0x54] sm:$0xf]
      %v6812 = vld [vmem:[%s5 + $0x58] sm:$0xf]
      %v6813 = vld [vmem:[%s5 + $0x5c] sm:$0xf]
      %v6814 = vld [vmem:[%s5 + $0x60] sm:$0xf]
      %v6815 = vld [vmem:[%s5 + $0x64] sm:$0xf]
      %v6816 = vld [vmem:[%s5 + $0x68] sm:$0xf]
      %v6817 = vld [vmem:[%s5 + $0x6c] sm:$0xf]
      %v6818 = vld [vmem:[%s5 + $0x70] sm:$0xf]
      %v6819 = vld [vmem:[%s5 + $0x74] sm:$0xf]
      %v6820 = vld [vmem:[%s5 + $0x78] sm:$0xf]
      %v6821 = vld [vmem:[%s5 + $0x7c] sm:$0xf]
      %v6822 = vld [vmem:[%s5 + $0x80] sm:$0xf]
      %v6823 = vld [vmem:[%s5 + $0x84] sm:$0xf]
      %v6824 = vld [vmem:[%s5 + $0x88] sm:$0xf]
      %v6825 = vld [vmem:[%s5 + $0x8c] sm:$0xf]
      %v6826 = vld [vmem:[%s5 + $0x90] sm:$0xf]
      %v6827 = vld [vmem:[%s5 + $0x94] sm:$0xf]
      %v6828 = vld [vmem:[%s5 + $0x98] sm:$0xf]
      %v6829 = vld [vmem:[%s5 + $0x9c] sm:$0xf]
      %v6830 = vld [vmem:[%s5 + $0xa0] sm:$0xf]
      %v6831 = vld [vmem:[%s5 + $0xa4] sm:$0xf]
      %v6832 = vld [vmem:[%s5 + $0xa8] sm:$0xf]
      %v6833 = vld [vmem:[%s5 + $0xac] sm:$0xf]
      %v6834 = vld [vmem:[%s5 + $0xb0] sm:$0xf]
      %v6835 = vld [vmem:[%s5 + $0xb4] sm:$0xf]
      %v6836 = vld [vmem:[%s5 + $0xb8] sm:$0xf]
      %v6837 = vld [vmem:[%s5 + $0xbc] sm:$0xf]
      %v6838 = vld [vmem:[%s5 + $0xc0] sm:$0xf]
      %v6839 = vld [vmem:[%s5 + $0xc4] sm:$0xf]
      %v6840 = vld [vmem:[%s5 + $0xc8] sm:$0xf]
      %v6841 = vld [vmem:[%s5 + $0xcc] sm:$0xf]
      %v6842 = vld [vmem:[%s5 + $0xd0] sm:$0xf]
      %v6843 = vld [vmem:[%s5 + $0xd4] sm:$0xf]
      %v6844 = vld [vmem:[%s5 + $0xd8] sm:$0xf]
      %v6845 = vld [vmem:[%s5 + $0xdc] sm:$0xf]
      %v6846 = vld [vmem:[%s5 + $0xe0] sm:$0xf]
      %v6847 = vld [vmem:[%s5 + $0xe4] sm:$0xf]
      %v6848 = vld [vmem:[%s5 + $0xe8] sm:$0xf]
      %v6849 = vld [vmem:[%s5 + $0xec] sm:$0xf]
      %v6850 = vld [vmem:[%s5 + $0xf0] sm:$0xf]
      %v6851 = vld [vmem:[%s5 + $0xf4] sm:$0xf]
      %v6852 = vld [vmem:[%s5 + $0xf8] sm:$0xf]
      %v6853 = vld [vmem:[%s5 + $0xfc] sm:$0xf]
      %v6854 = vld [vmem:[%s5 + $0x100] sm:$0xf]
      %v6855 = vld [vmem:[%s5 + $0x104] sm:$0xf]
      %v6856 = vld [vmem:[%s5 + $0x108] sm:$0xf]
      %v6857 = vld [vmem:[%s5 + $0x10c] sm:$0xf]
      %v6858 = vld [vmem:[%s5 + $0x110] sm:$0xf]
      %v6859 = vld [vmem:[%s5 + $0x114] sm:$0xf]
      %v6860 = vld [vmem:[%s5 + $0x118] sm:$0xf]
      %v6861 = vld [vmem:[%s5 + $0x11c] sm:$0xf]
      %v6862 = vld [vmem:[%s6] sm:$0x1]
      %v6864 = vlaneseq
      %v6865 = vshrl.u32 %v6864, 7
      %v6866 = vsub.s32 0, %v6865
      %v6867 = vrot.slane %v6862, %v6866
      %v6941 = vunpack.c.l.b16 %v6790
      %v6942 = vunpack.c.l.b16 %v6791
      %v6943 = vunpack.c.l.b16 %v6792
      %v6944 = vunpack.c.l.b16 %v6793
      %v6945 = vunpack.c.l.b16 %v6794
      %v6946 = vunpack.c.l.b16 %v6795
      %v6947 = vunpack.c.l.b16 %v6796
      %v6948 = vunpack.c.l.b16 %v6797
      %v6949 = vunpack.c.l.b16 %v6798
      %v6950 = vunpack.c.l.b16 %v6799
      %v6951 = vunpack.c.l.b16 %v6800
      %v6952 = vunpack.c.l.b16 %v6801
      %v6953 = vunpack.c.l.b16 %v6802
      %v6954 = vunpack.c.l.b16 %v6803
      %v6955 = vunpack.c.l.b16 %v6804
      %v6956 = vunpack.c.l.b16 %v6805
      %v6957 = vunpack.c.l.b16 %v6806
      %v6958 = vunpack.c.l.b16 %v6807
      %v6959 = vunpack.c.l.b16 %v6808
      %v6960 = vunpack.c.l.b16 %v6809
      %v6961 = vunpack.c.l.b16 %v6810
      %v6962 = vunpack.c.l.b16 %v6811
      %v6963 = vunpack.c.l.b16 %v6812
      %v6964 = vunpack.c.l.b16 %v6813
      %v6965 = vunpack.c.l.b16 %v6814
      %v6966 = vunpack.c.l.b16 %v6815
      %v6967 = vunpack.c.l.b16 %v6816
      %v6968 = vunpack.c.l.b16 %v6817
      %v6969 = vunpack.c.l.b16 %v6818
      %v6970 = vunpack.c.l.b16 %v6819
      %v6971 = vunpack.c.l.b16 %v6820
      %v6972 = vunpack.c.l.b16 %v6821
      %v6973 = vunpack.c.l.b16 %v6822
      %v6974 = vunpack.c.l.b16 %v6823
      %v6975 = vunpack.c.l.b16 %v6824
      %v6976 = vunpack.c.l.b16 %v6825
      %v6977 = vunpack.c.l.b16 %v6826
      %v6978 = vunpack.c.l.b16 %v6827
      %v6979 = vunpack.c.l.b16 %v6828
      %v6980 = vunpack.c.l.b16 %v6829
      %v6981 = vunpack.c.l.b16 %v6830
      %v6982 = vunpack.c.l.b16 %v6831
      %v6983 = vunpack.c.l.b16 %v6832
      %v6984 = vunpack.c.l.b16 %v6833
      %v6985 = vunpack.c.l.b16 %v6834
      %v6986 = vunpack.c.l.b16 %v6835
      %v6987 = vunpack.c.l.b16 %v6836
      %v6988 = vunpack.c.l.b16 %v6837
      %v6989 = vunpack.c.l.b16 %v6838
      %v6990 = vunpack.c.l.b16 %v6839
      %v6991 = vunpack.c.l.b16 %v6840
      %v6992 = vunpack.c.l.b16 %v6841
      %v6993 = vunpack.c.l.b16 %v6842
      %v6994 = vunpack.c.l.b16 %v6843
      %v6995 = vunpack.c.l.b16 %v6844
      %v6996 = vunpack.c.l.b16 %v6845
      %v6997 = vunpack.c.l.b16 %v6846
      %v6998 = vunpack.c.l.b16 %v6847
      %v6999 = vunpack.c.l.b16 %v6848
      %v7000 = vunpack.c.l.b16 %v6849
      %v7001 = vunpack.c.l.b16 %v6850
      %v7002 = vunpack.c.l.b16 %v6851
      %v7003 = vunpack.c.l.b16 %v6852
      %v7004 = vunpack.c.l.b16 %v6853
      %v7005 = vunpack.c.l.b16 %v6854
      %v7006 = vunpack.c.l.b16 %v6855
      %v7007 = vunpack.c.l.b16 %v6856
      %v7008 = vunpack.c.l.b16 %v6857
      %v7009 = vunpack.c.l.b16 %v6858
      %v7010 = vunpack.c.l.b16 %v6859
      %v7011 = vunpack.c.l.b16 %v6860
      %v7012 = vunpack.c.l.b16 %v6861
      %v7013 = vpack.c.b16 %v6942, %v6941
      %v7014 = vpack.c.b16 %v6944, %v6943
      %v7015 = vpack.c.b16 %v6946, %v6945
      %v7016 = vpack.c.b16 %v6948, %v6947
      %v7017 = vpack.c.b16 %v6950, %v6949
      %v7018 = vpack.c.b16 %v6952, %v6951
      %v7019 = vpack.c.b16 %v6954, %v6953
      %v7020 = vpack.c.b16 %v6956, %v6955
      %v7021 = vpack.c.b16 %v6958, %v6957
      %v7022 = vpack.c.b16 %v6960, %v6959
      %v7023 = vpack.c.b16 %v6962, %v6961
      %v7024 = vpack.c.b16 %v6964, %v6963
      %v7025 = vpack.c.b16 %v6966, %v6965
      %v7026 = vpack.c.b16 %v6968, %v6967
      %v7027 = vpack.c.b16 %v6970, %v6969
      %v7028 = vpack.c.b16 %v6972, %v6971
      %v7029 = vpack.c.b16 %v6974, %v6973
      %v7030 = vpack.c.b16 %v6976, %v6975
      %v7031 = vpack.c.b16 %v6978, %v6977
      %v7032 = vpack.c.b16 %v6980, %v6979
      %v7033 = vpack.c.b16 %v6982, %v6981
      %v7034 = vpack.c.b16 %v6984, %v6983
      %v7035 = vpack.c.b16 %v6986, %v6985
      %v7036 = vpack.c.b16 %v6988, %v6987
      %v7037 = vpack.c.b16 %v6990, %v6989
      %v7038 = vpack.c.b16 %v6992, %v6991
      %v7039 = vpack.c.b16 %v6994, %v6993
      %v7040 = vpack.c.b16 %v6996, %v6995
      %v7041 = vpack.c.b16 %v6998, %v6997
      %v7042 = vpack.c.b16 %v7000, %v6999
      %v7043 = vpack.c.b16 %v7002, %v7001
      %v7044 = vpack.c.b16 %v7004, %v7003
      %v7045 = vpack.c.b16 %v7006, %v7005
      %v7046 = vpack.c.b16 %v7008, %v7007
      %v7047 = vpack.c.b16 %v7010, %v7009
      %v7048 = vpack.c.b16 %v7012, %v7011
      %v7086 = vsel %vm4672, %v6729, 0
      %v7089 = vsel %vm4672, %v6734, 0
      %v7092 = vsel %vm4672, %v6739, 0
      %v7095 = vsel %vm4672, %v6744, 0
      %v7098 = vsel %vm4672, %v6749, 0
      %v7101 = vsel %vm4672, %v6754, 0
      %v7104 = vsel %vm4672, %v6759, 0
      %v7107 = vsel %vm4672, %v6764, 0
      %v7110 = vsel %vm4672, %v6769, 0
      %v7113 = vsel %vm4672, %v6774, 0
      %v7116 = vsel %vm4672, %v6779, 0
      %v7119 = vsel %vm4672, %v6784, 0
      %v7122 = vsel %vm4672, %v6789, 0
      %7124 = vmatprep.subr.bf16.mxu0 0
      %7125 = vmatpush1.bf16.msra.mxu0 %v7013
      %7126 = vmatprep.subr.bf16.mxu0 0
      %7127 = vmatpush1.bf16.msra.mxu0 %v7014
      %7128 = vmatprep.subr.bf16.mxu0 0
      %7129 = vmatpush1.bf16.msra.mxu0 %v7015
      %7130 = vmatprep.subr.bf16.mxu0 0
      %7131 = vmatpush1.bf16.msra.mxu0 %v7016
      %7132 = vmatprep.subr.bf16.mxu0 0
      %7133 = vmatpush1.bf16.msra.mxu0 %v7017
      %7134 = vmatprep.subr.bf16.mxu0 0
      %7135 = vmatpush1.bf16.msra.mxu0 %v7018
      %7136 = vmatprep.subr.bf16.mxu0 0
      %7137 = vmatpush1.bf16.msra.mxu0 %v7019
      %7138 = vmatprep.subr.bf16.mxu0 0
      %7139 = vmatpush1.bf16.msra.mxu0 %v7020
      %7140 = vmatprep.subr.bf16.mxu0 0
      %7141 = vmatpush1.bf16.msra.mxu0 %v7021
      %7142 = vmatprep.subr.bf16.mxu0 0
      %7143 = vmatpush1.bf16.msra.mxu0 %v7022
      %7144 = vmatprep.subr.bf16.mxu0 0
      %7145 = vmatpush1.bf16.msra.mxu0 %v7023
      %7146 = vmatprep.subr.bf16.mxu0 0
      %7147 = vmatpush1.bf16.msra.mxu0 %v7024
      %7148 = vmatprep.subr.bf16.mxu0 0
      %7149 = vmatpush1.bf16.msra.mxu0 %v7025
      %7150 = vmatprep.subr.bf16.mxu0 0
      %7151 = vmatpush1.bf16.msra.mxu0 %v7026
      %7152 = vmatprep.subr.bf16.mxu0 0
      %7153 = vmatpush1.bf16.msra.mxu0 %v7027
      %7154 = vmatprep.subr.bf16.mxu0 0
      %7155 = vmatpush1.bf16.msra.mxu0 %v7028
      %7156 = vmatprep.mubr.bf16.mxu0 %v6726
      %7157 = vmatmul.mubr.bf16.gmra.mrb[0].mxu0 %v6725
      %v7158 = vpop.f32.mrb[0].mxu0
      %v7159 = vadd.f32 %v6867, %v7158
      %v7160 = vpop.f32.mrb[0].mxu0
      %v7161 = vpop.f32.mrb[0].mxu0
      %v7162 = vadd.f32 %v6867, %v7161
      %v7163 = vpop.f32.mrb[0].mxu0
      %7164 = vmatprep.mubr.bf16.mxu0 %v6731
      %7165 = vmatmul.mubr.bf16.gmra.mrb[0].mxu0 %v6730
      %v7166 = vpop.f32.mrb[0].mxu0
      %v7167 = vadd.f32 %v6867, %v7166
      %v7168 = vpop.f32.mrb[0].mxu0
      %v7169 = vpop.f32.mrb[0].mxu0
      %v7170 = vadd.f32 %v6867, %v7169
      %v7171 = vpop.f32.mrb[0].mxu0
      %7172 = vmatprep.mubr.bf16.mxu0 %v6736
      %7173 = vmatmul.mubr.bf16.gmra.mrb[0].mxu0 %v6735
      %v7174 = vpop.f32.mrb[0].mxu0
      %v7175 = vadd.f32 %v6867, %v7174
      %v7176 = vpop.f32.mrb[0].mxu0
      %v7177 = vpop.f32.mrb[0].mxu0
      %v7178 = vadd.f32 %v6867, %v7177
      %v7179 = vpop.f32.mrb[0].mxu0
      %7180 = vmatprep.mubr.bf16.mxu0 %v6741
      %7181 = vmatmul.mubr.bf16.gmra.mrb[0].mxu0 %v6740
      %v7182 = vpop.f32.mrb[0].mxu0
      %v7183 = vadd.f32 %v6867, %v7182
      %v7184 = vpop.f32.mrb[0].mxu0
      %v7185 = vpop.f32.mrb[0].mxu0
      %v7186 = vadd.f32 %v6867, %v7185
      %v7187 = vpop.f32.mrb[0].mxu0
      %7188 = vmatprep.mubr.bf16.mxu0 %v6746
      %7189 = vmatmul.mubr.bf16.gmra.mrb[0].mxu0 %v6745
      %v7190 = vpop.f32.mrb[0].mxu0
      %v7191 = vadd.f32 %v6867, %v7190
      %v7192 = vpop.f32.mrb[0].mxu0
      %v7193 = vpop.f32.mrb[0].mxu0
      %v7194 = vadd.f32 %v6867, %v7193
      %v7195 = vpop.f32.mrb[0].mxu0
      %7196 = vmatprep.mubr.bf16.mxu0 %v6751
      %7197 = vmatmul.mubr.bf16.gmra.mrb[0].mxu0 %v6750
      %v7198 = vpop.f32.mrb[0].mxu0
      %v7199 = vadd.f32 %v6867, %v7198
      %v7200 = vpop.f32.mrb[0].mxu0
      %v7201 = vpop.f32.mrb[0].mxu0
      %v7202 = vadd.f32 %v6867, %v7201
      %v7203 = vpop.f32.mrb[0].mxu0
      %7204 = vmatprep.mubr.bf16.mxu0 %v6756
      %7205 = vmatmul.mubr.bf16.gmra.mrb[0].mxu0 %v6755
      %v7206 = vpop.f32.mrb[0].mxu0
      %v7207 = vadd.f32 %v6867, %v7206
      %v7208 = vpop.f32.mrb[0].mxu0
      %v7209 = vpop.f32.mrb[0].mxu0
      %v7210 = vadd.f32 %v6867, %v7209
      %v7211 = vpop.f32.mrb[0].mxu0
      %7212 = vmatprep.mubr.bf16.mxu0 %v6761
      %7213 = vmatmul.mubr.bf16.gmra.mrb[0].mxu0 %v6760
      %v7214 = vpop.f32.mrb[0].mxu0
      %v7215 = vadd.f32 %v6867, %v7214
      %v7216 = vpop.f32.mrb[0].mxu0
      %v7217 = vpop.f32.mrb[0].mxu0
      %v7218 = vadd.f32 %v6867, %v7217
      %v7219 = vpop.f32.mrb[0].mxu0
      %7220 = vmatprep.mubr.bf16.mxu0 %v6766
      %7221 = vmatmul.mubr.bf16.gmra.mrb[0].mxu0 %v6765
      %v7222 = vpop.f32.mrb[0].mxu0
      %v7223 = vadd.f32 %v6867, %v7222
      %v7224 = vpop.f32.mrb[0].mxu0
      %v7225 = vpop.f32.mrb[0].mxu0
      %v7226 = vadd.f32 %v6867, %v7225
      %v7227 = vpop.f32.mrb[0].mxu0
      %7228 = vmatprep.mubr.bf16.mxu0 %v6771
      %7229 = vmatmul.mubr.bf16.gmra.mrb[0].mxu0 %v6770
      %v7230 = vpop.f32.mrb[0].mxu0
      %v7231 = vadd.f32 %v6867, %v7230
      %v7232 = vpop.f32.mrb[0].mxu0
      %v7233 = vpop.f32.mrb[0].mxu0
      %v7234 = vadd.f32 %v6867, %v7233
      %v7235 = vpop.f32.mrb[0].mxu0
      %7236 = vmatprep.mubr.bf16.mxu0 %v6776
      %7237 = vmatmul.mubr.bf16.gmra.mrb[0].mxu0 %v6775
      %v7238 = vpop.f32.mrb[0].mxu0
      %v7239 = vadd.f32 %v6867, %v7238
      %v7240 = vpop.f32.mrb[0].mxu0
      %v7241 = vpop.f32.mrb[0].mxu0
      %v7242 = vadd.f32 %v6867, %v7241
      %v7243 = vpop.f32.mrb[0].mxu0
      %7244 = vmatprep.mubr.bf16.mxu0 %v6781
      %7245 = vmatmul.mubr.bf16.gmra.mrb[0].mxu0 %v6780
      %v7246 = vpop.f32.mrb[0].mxu0
      %v7247 = vadd.f32 %v6867, %v7246
      %v7248 = vpop.f32.mrb[0].mxu0
      %v7249 = vpop.f32.mrb[0].mxu0
      %v7250 = vadd.f32 %v6867, %v7249
      %v7251 = vpop.f32.mrb[0].mxu0
      %7252 = vmatprep.mubr.bf16.mxu0 %v6786
      %7253 = vmatmul.mubr.bf16.gmra.mrb[0].mxu0 %v6785
      %v7254 = vpop.f32.mrb[0].mxu0
      %v7255 = vadd.f32 %v6867, %v7254
      %v7256 = vpop.f32.mrb[0].mxu0
      %v7257 = vpop.f32.mrb[0].mxu0
      %v7258 = vadd.f32 %v6867, %v7257
      %v7259 = vpop.f32.mrb[0].mxu0
      %7260 = vdwg.mxu0
      %7261 = vmatprep.subr.bf16.mxu0 0
      %7262 = vmatpush1.bf16.msra.mxu0 %v7029
      %7263 = vmatprep.subr.bf16.mxu0 0
      %7264 = vmatpush1.bf16.msra.mxu0 %v7030
      %7265 = vmatprep.subr.bf16.mxu0 0
      %7266 = vmatpush1.bf16.msra.mxu0 %v7031
      %7267 = vmatprep.subr.bf16.mxu0 0
      %7268 = vmatpush1.bf16.msra.mxu0 %v7032
      %7269 = vmatprep.subr.bf16.mxu0 0
      %7270 = vmatpush1.bf16.msra.mxu0 %v7033
      %7271 = vmatprep.subr.bf16.mxu0 0
      %7272 = vmatpush1.bf16.msra.mxu0 %v7034
      %7273 = vmatprep.subr.bf16.mxu0 0
      %7274 = vmatpush1.bf16.msra.mxu0 %v7035
      %7275 = vmatprep.subr.bf16.mxu0 0
      %7276 = vmatpush1.bf16.msra.mxu0 %v7036
      %7277 = vmatprep.subr.bf16.mxu0 0
      %7278 = vmatpush1.bf16.msra.mxu0 %v7037
      %7279 = vmatprep.subr.bf16.mxu0 0
      %7280 = vmatpush1.bf16.msra.mxu0 %v7038
      %7281 = vmatprep.subr.bf16.mxu0 0
      %7282 = vmatpush1.bf16.msra.mxu0 %v7039
      %7283 = vmatprep.subr.bf16.mxu0 0
      %7284 = vmatpush1.bf16.msra.mxu0 %v7040
      %7285 = vmatprep.subr.bf16.mxu0 0
      %7286 = vmatpush1.bf16.msra.mxu0 %v7041
      %7287 = vmatprep.subr.bf16.mxu0 0
      %7288 = vmatpush1.bf16.msra.mxu0 %v7042
      %7289 = vmatprep.subr.bf16.mxu0 0
      %7290 = vmatpush1.bf16.msra.mxu0 %v7043
      %7291 = vmatprep.subr.bf16.mxu0 0
      %7292 = vmatpush1.bf16.msra.mxu0 %v7044
      %7293 = vmatprep.mubr.bf16.mxu0 %v6728
      %7294 = vmatmul.mubr.bf16.gmra.mrb[0].mxu0 %v6727
      %v7295 = vpop.f32.mrb[0].mxu0
      %v7296 = vadd.f32 %v7159, %v7295
      %v7297 = vpop.f32.mrb[0].mxu0
      %v7298 = vpop.f32.mrb[0].mxu0
      %v7299 = vadd.f32 %v7162, %v7298
      %v7300 = vpop.f32.mrb[0].mxu0
      %7301 = vmatprep.mubr.bf16.mxu0 %v6733
      %7302 = vmatmul.mubr.bf16.gmra.mrb[0].mxu0 %v6732
      %v7303 = vpop.f32.mrb[0].mxu0
      %v7304 = vadd.f32 %v7167, %v7303
      %v7305 = vpop.f32.mrb[0].mxu0
      %v7306 = vpop.f32.mrb[0].mxu0
      %v7307 = vadd.f32 %v7170, %v7306
      %v7308 = vpop.f32.mrb[0].mxu0
      %7309 = vmatprep.mubr.bf16.mxu0 %v6738
      %7310 = vmatmul.mubr.bf16.gmra.mrb[0].mxu0 %v6737
      %v7311 = vpop.f32.mrb[0].mxu0
      %v7312 = vadd.f32 %v7175, %v7311
      %v7313 = vpop.f32.mrb[0].mxu0
      %v7314 = vpop.f32.mrb[0].mxu0
      %v7315 = vadd.f32 %v7178, %v7314
      %v7316 = vpop.f32.mrb[0].mxu0
      %7317 = vmatprep.mubr.bf16.mxu0 %v6743
      %7318 = vmatmul.mubr.bf16.gmra.mrb[0].mxu0 %v6742
      %v7319 = vpop.f32.mrb[0].mxu0
      %v7320 = vadd.f32 %v7183, %v7319
      %v7321 = vpop.f32.mrb[0].mxu0
      %v7322 = vpop.f32.mrb[0].mxu0
      %v7323 = vadd.f32 %v7186, %v7322
      %v7324 = vpop.f32.mrb[0].mxu0
      %7325 = vmatprep.mubr.bf16.mxu0 %v6748
      %7326 = vmatmul.mubr.bf16.gmra.mrb[0].mxu0 %v6747
      %v7327 = vpop.f32.mrb[0].mxu0
      %v7328 = vadd.f32 %v7191, %v7327
      %v7329 = vpop.f32.mrb[0].mxu0
      %v7330 = vpop.f32.mrb[0].mxu0
      %v7331 = vadd.f32 %v7194, %v7330
      %v7332 = vpop.f32.mrb[0].mxu0
      %7333 = vmatprep.mubr.bf16.mxu0 %v6753
      %7334 = vmatmul.mubr.bf16.gmra.mrb[0].mxu0 %v6752
      %v7335 = vpop.f32.mrb[0].mxu0
      %v7336 = vadd.f32 %v7199, %v7335
      %v7337 = vpop.f32.mrb[0].mxu0
      %v7338 = vpop.f32.mrb[0].mxu0
      %v7339 = vadd.f32 %v7202, %v7338
      %v7340 = vpop.f32.mrb[0].mxu0
      %7341 = vmatprep.mubr.bf16.mxu0 %v6758
      %7342 = vmatmul.mubr.bf16.gmra.mrb[0].mxu0 %v6757
      %v7343 = vpop.f32.mrb[0].mxu0
      %v7344 = vadd.f32 %v7207, %v7343
      %v7345 = vpop.f32.mrb[0].mxu0
      %v7346 = vpop.f32.mrb[0].mxu0
      %v7347 = vadd.f32 %v7210, %v7346
      %v7348 = vpop.f32.mrb[0].mxu0
      %7349 = vmatprep.mubr.bf16.mxu0 %v6763
      %7350 = vmatmul.mubr.bf16.gmra.mrb[0].mxu0 %v6762
      %v7351 = vpop.f32.mrb[0].mxu0
      %v7352 = vadd.f32 %v7215, %v7351
      %v7353 = vpop.f32.mrb[0].mxu0
      %v7354 = vpop.f32.mrb[0].mxu0
      %v7355 = vadd.f32 %v7218, %v7354
      %v7356 = vpop.f32.mrb[0].mxu0
      %7357 = vmatprep.mubr.bf16.mxu0 %v6768
      %7358 = vmatmul.mubr.bf16.gmra.mrb[0].mxu0 %v6767
      %v7359 = vpop.f32.mrb[0].mxu0
      %v7360 = vadd.f32 %v7223, %v7359
      %v7361 = vpop.f32.mrb[0].mxu0
      %v7362 = vpop.f32.mrb[0].mxu0
      %v7363 = vadd.f32 %v7226, %v7362
      %v7364 = vpop.f32.mrb[0].mxu0
      %7365 = vmatprep.mubr.bf16.mxu0 %v6773
      %7366 = vmatmul.mubr.bf16.gmra.mrb[0].mxu0 %v6772
      %v7367 = vpop.f32.mrb[0].mxu0
      %v7368 = vadd.f32 %v7231, %v7367
      %v7369 = vpop.f32.mrb[0].mxu0
      %v7370 = vpop.f32.mrb[0].mxu0
      %v7371 = vadd.f32 %v7234, %v7370
      %v7372 = vpop.f32.mrb[0].mxu0
      %7373 = vmatprep.mubr.bf16.mxu0 %v6778
      %7374 = vmatmul.mubr.bf16.gmra.mrb[0].mxu0 %v6777
      %v7375 = vpop.f32.mrb[0].mxu0
      %v7376 = vadd.f32 %v7239, %v7375
      %v7377 = vpop.f32.mrb[0].mxu0
      %v7378 = vpop.f32.mrb[0].mxu0
      %v7379 = vadd.f32 %v7242, %v7378
      %v7380 = vpop.f32.mrb[0].mxu0
      %7381 = vmatprep.mubr.bf16.mxu0 %v6783
      %7382 = vmatmul.mubr.bf16.gmra.mrb[0].mxu0 %v6782
      %v7383 = vpop.f32.mrb[0].mxu0
      %v7384 = vadd.f32 %v7247, %v7383
      %v7385 = vpop.f32.mrb[0].mxu0
      %v7386 = vpop.f32.mrb[0].mxu0
      %v7387 = vadd.f32 %v7250, %v7386
      %v7388 = vpop.f32.mrb[0].mxu0
      %7389 = vmatprep.mubr.bf16.mxu0 %v6788
      %7390 = vmatmul.mubr.bf16.gmra.mrb[0].mxu0 %v6787
      %v7391 = vpop.f32.mrb[0].mxu0
      %v7392 = vadd.f32 %v7255, %v7391
      %v7393 = vpop.f32.mrb[0].mxu0
      %v7394 = vpop.f32.mrb[0].mxu0
      %v7395 = vadd.f32 %v7258, %v7394
      %v7396 = vpop.f32.mrb[0].mxu0
      %7397 = vdwg.mxu0
      %7398 = vmatprep.subr.bf16.mxu0 0
      %7399 = vmatpush1.bf16.msra.mxu0 %v7045
      %7400 = vmatprep.subr.bf16.mxu0 0
      %7401 = vmatpush1.bf16.msra.mxu0 %v7046
      %7402 = vmatprep.subr.bf16.mxu0 0
      %7403 = vmatpush1.bf16.msra.mxu0 %v7047
      %7404 = vmatprep.subr.bf16.mxu0 0
      %7405 = vmatpush1.bf16.msra.mxu0 %v7048
      %7406 = vmatprep.subr.bf16.mxu0 0
      %7407 = vmatpush1.bf16.msra.mxu0 0
      %7408 = vmatprep.subr.bf16.mxu0 0
      %7409 = vmatpush1.bf16.msra.mxu0 0
      %7410 = vmatprep.subr.bf16.mxu0 0
      %7411 = vmatpush1.bf16.msra.mxu0 0
      %7412 = vmatprep.subr.bf16.mxu0 0
      %7413 = vmatpush1.bf16.msra.mxu0 0
      %7414 = vmatprep.subr.bf16.mxu0 0
      %7415 = vmatpush1.bf16.msra.mxu0 0
      %7416 = vmatprep.subr.bf16.mxu0 0
      %7417 = vmatpush1.bf16.msra.mxu0 0
      %7418 = vmatprep.subr.bf16.mxu0 0
      %7419 = vmatpush1.bf16.msra.mxu0 0
      %7420 = vmatprep.subr.bf16.mxu0 0
      %7421 = vmatpush1.bf16.msra.mxu0 0
      %7422 = vmatprep.subr.bf16.mxu0 0
      %7423 = vmatpush1.bf16.msra.mxu0 0
      %7424 = vmatprep.subr.bf16.mxu0 0
      %7425 = vmatpush1.bf16.msra.mxu0 0
      %7426 = vmatprep.subr.bf16.mxu0 0
      %7427 = vmatpush1.bf16.msra.mxu0 0
      %7428 = vmatprep.subr.bf16.mxu0 0
      %7429 = vmatpush1.bf16.msra.mxu0 0
      %7430 = vmatprep.mubr.bf16.mxu0 0
      %7431 = vmatmul.mubr.bf16.gmra.mrb[0].mxu0 %v7086
      %v7432 = vpop.f32.mrb[0].mxu0
      %v7433 = vadd.f32 %v7296, %v7432
      %v7434 = vpop.f32.mrb[0].mxu0
      %v7435 = vpop.f32.mrb[0].mxu0
      %v7436 = vadd.f32 %v7299, %v7435
      %v7437 = vpop.f32.mrb[0].mxu0
      %7438 = vmatprep.mubr.bf16.mxu0 0
      %7439 = vmatmul.mubr.bf16.gmra.mrb[0].mxu0 %v7089
      %v7440 = vpop.f32.mrb[0].mxu0
      %v7441 = vadd.f32 %v7304, %v7440
      %v7442 = vpop.f32.mrb[0].mxu0
      %v7443 = vpop.f32.mrb[0].mxu0
      %v7444 = vadd.f32 %v7307, %v7443
      %v7445 = vpop.f32.mrb[0].mxu0
      %7446 = vmatprep.mubr.bf16.mxu0 0
      %7447 = vmatmul.mubr.bf16.gmra.mrb[0].mxu0 %v7092
      %v7448 = vpop.f32.mrb[0].mxu0
      %v7449 = vadd.f32 %v7312, %v7448
      %v7450 = vpop.f32.mrb[0].mxu0
      %v7451 = vpop.f32.mrb[0].mxu0
      %v7452 = vadd.f32 %v7315, %v7451
      %v7453 = vpop.f32.mrb[0].mxu0
      %7454 = vmatprep.mubr.bf16.mxu0 0
      %7455 = vmatmul.mubr.bf16.gmra.mrb[0].mxu0 %v7095
      %v7456 = vpop.f32.mrb[0].mxu0
      %v7457 = vadd.f32 %v7320, %v7456
      %v7458 = vpop.f32.mrb[0].mxu0
      %v7459 = vpop.f32.mrb[0].mxu0
      %v7460 = vadd.f32 %v7323, %v7459
      %v7461 = vpop.f32.mrb[0].mxu0
      %7462 = vmatprep.mubr.bf16.mxu0 0
      %7463 = vmatmul.mubr.bf16.gmra.mrb[0].mxu0 %v7098
      %v7464 = vpop.f32.mrb[0].mxu0
      %v7465 = vadd.f32 %v7328, %v7464
      %v7466 = vpop.f32.mrb[0].mxu0
      %v7467 = vpop.f32.mrb[0].mxu0
      %v7468 = vadd.f32 %v7331, %v7467
      %v7469 = vpop.f32.mrb[0].mxu0
      %7470 = vmatprep.mubr.bf16.mxu0 0
      %7471 = vmatmul.mubr.bf16.gmra.mrb[0].mxu0 %v7101
      %v7472 = vpop.f32.mrb[0].mxu0
      %v7473 = vadd.f32 %v7336, %v7472
      %v7474 = vpop.f32.mrb[0].mxu0
      %v7475 = vpop.f32.mrb[0].mxu0
      %v7476 = vadd.f32 %v7339, %v7475
      %v7477 = vpop.f32.mrb[0].mxu0
      %7478 = vmatprep.mubr.bf16.mxu0 0
      %7479 = vmatmul.mubr.bf16.gmra.mrb[0].mxu0 %v7104
      %v7480 = vpop.f32.mrb[0].mxu0
      %v7481 = vadd.f32 %v7344, %v7480
      %v7482 = vpop.f32.mrb[0].mxu0
      %v7483 = vpop.f32.mrb[0].mxu0
      %v7484 = vadd.f32 %v7347, %v7483
      %v7485 = vpop.f32.mrb[0].mxu0
      %7486 = vmatprep.mubr.bf16.mxu0 0
      %7487 = vmatmul.mubr.bf16.gmra.mrb[0].mxu0 %v7107
      %v7488 = vpop.f32.mrb[0].mxu0
      %v7489 = vadd.f32 %v7352, %v7488
      %v7490 = vpop.f32.mrb[0].mxu0
      %v7491 = vpop.f32.mrb[0].mxu0
      %v7492 = vadd.f32 %v7355, %v7491
      %v7493 = vpop.f32.mrb[0].mxu0
      %7494 = vmatprep.mubr.bf16.mxu0 0
      %7495 = vmatmul.mubr.bf16.gmra.mrb[0].mxu0 %v7110
      %v7496 = vpop.f32.mrb[0].mxu0
      %v7497 = vadd.f32 %v7360, %v7496
      %v7498 = vpop.f32.mrb[0].mxu0
      %v7499 = vpop.f32.mrb[0].mxu0
      %v7500 = vadd.f32 %v7363, %v7499
      %v7501 = vpop.f32.mrb[0].mxu0
      %7502 = vmatprep.mubr.bf16.mxu0 0
      %7503 = vmatmul.mubr.bf16.gmra.mrb[0].mxu0 %v7113
      %v7504 = vpop.f32.mrb[0].mxu0
      %v7505 = vadd.f32 %v7368, %v7504
      %v7506 = vpop.f32.mrb[0].mxu0
      %v7507 = vpop.f32.mrb[0].mxu0
      %v7508 = vadd.f32 %v7371, %v7507
      %v7509 = vpop.f32.mrb[0].mxu0
      %7510 = vmatprep.mubr.bf16.mxu0 0
      %7511 = vmatmul.mubr.bf16.gmra.mrb[0].mxu0 %v7116
      %v7512 = vpop.f32.mrb[0].mxu0
      %v7513 = vadd.f32 %v7376, %v7512
      %v7514 = vpop.f32.mrb[0].mxu0
      %v7515 = vpop.f32.mrb[0].mxu0
      %v7516 = vadd.f32 %v7379, %v7515
      %v7517 = vpop.f32.mrb[0].mxu0
      %7518 = vmatprep.mubr.bf16.mxu0 0
      %7519 = vmatmul.mubr.bf16.gmra.mrb[0].mxu0 %v7119
      %v7520 = vpop.f32.mrb[0].mxu0
      %v7521 = vadd.f32 %v7384, %v7520
      %v7522 = vpop.f32.mrb[0].mxu0
      %v7523 = vpop.f32.mrb[0].mxu0
      %v7524 = vadd.f32 %v7387, %v7523
      %v7525 = vpop.f32.mrb[0].mxu0
      %7526 = vmatprep.mubr.bf16.mxu0 0
      %7527 = vmatmul.mubr.bf16.gmra.mrb[0].mxu0 %v7122
      %v7528 = vpop.f32.mrb[0].mxu0
      %v7529 = vadd.f32 %v7392, %v7528
      %v7530 = vpop.f32.mrb[0].mxu0
      %v7531 = vpop.f32.mrb[0].mxu0
      %v7532 = vadd.f32 %v7395, %v7531
      %v7533 = vpop.f32.mrb[0].mxu0
      %7534 = vdwg.mxu0
      %v7535 = vmul.f32 %v7433, 0.5
      %v7536 = vmul.f32 %v7436, 0.5
      %v7537 = vmul.f32 %v7441, 0.5
      %v7538 = vmul.f32 %v7444, 0.5
      %v7539 = vmul.f32 %v7449, 0.5
      %v7540 = vmul.f32 %v7452, 0.5
      %v7541 = vmul.f32 %v7457, 0.5
      %v7542 = vmul.f32 %v7460, 0.5
      %v7543 = vmul.f32 %v7465, 0.5
      %v7544 = vmul.f32 %v7468, 0.5
      %v7545 = vmul.f32 %v7473, 0.5
      %v7546 = vmul.f32 %v7476, 0.5
      %v7547 = vmul.f32 %v7481, 0.5
      %v7548 = vmul.f32 %v7484, 0.5
      %v7549 = vmul.f32 %v7489, 0.5
      %v7550 = vmul.f32 %v7492, 0.5
      %v7551 = vmul.f32 %v7497, 0.5
      %v7552 = vmul.f32 %v7500, 0.5
      %v7553 = vmul.f32 %v7505, 0.5
      %v7554 = vmul.f32 %v7508, 0.5
      %v7555 = vmul.f32 %v7513, 0.5
      %v7556 = vmul.f32 %v7516, 0.5
      %v7557 = vmul.f32 %v7521, 0.5
      %v7558 = vmul.f32 %v7524, 0.5
      %v7559 = vmul.f32 %v7529, 0.5
      %v7560 = vmul.f32 %v7532, 0.5
      %v7561 = vmul.f32 %v7433, 0.70710677
      %v7562 = vmul.f32 %v7436, 0.70710677
      %v7563 = vmul.f32 %v7441, 0.70710677
      %v7564 = vmul.f32 %v7444, 0.70710677
      %v7565 = vmul.f32 %v7449, 0.70710677
      %v7566 = vmul.f32 %v7452, 0.70710677
      %v7567 = vmul.f32 %v7457, 0.70710677
      %v7568 = vmul.f32 %v7460, 0.70710677
      %v7569 = vmul.f32 %v7465, 0.70710677
      %v7570 = vmul.f32 %v7468, 0.70710677
      %v7571 = vmul.f32 %v7473, 0.70710677
      %v7572 = vmul.f32 %v7476, 0.70710677
      %v7573 = vmul.f32 %v7481, 0.70710677
      %v7574 = vmul.f32 %v7484, 0.70710677
      %v7575 = vmul.f32 %v7489, 0.70710677
      %v7576 = vmul.f32 %v7492, 0.70710677
      %v7577 = vmul.f32 %v7497, 0.70710677
      %v7578 = vmul.f32 %v7500, 0.70710677
      %v7579 = vmul.f32 %v7505, 0.70710677
      %v7580 = vmul.f32 %v7508, 0.70710677
      %v7581 = vmul.f32 %v7513, 0.70710677
      %v7582 = vmul.f32 %v7516, 0.70710677
      %v7583 = vmul.f32 %v7521, 0.70710677
      %v7584 = vmul.f32 %v7524, 0.70710677
      %v7585 = vmul.f32 %v7529, 0.70710677
      %v7586 = vmul.f32 %v7532, 0.70710677
      %v7587 = verf.f32.pop %v7561
      %v7588 = verf.f32.pop %v7562
      %v7589 = verf.f32.pop %v7563
      %v7590 = verf.f32.pop %v7564
      %v7591 = verf.f32.pop %v7565
      %v7592 = verf.f32.pop %v7566
      %v7593 = verf.f32.pop %v7567
      %v7594 = verf.f32.pop %v7568
      %v7595 = verf.f32.pop %v7569
      %v7596 = verf.f32.pop %v7570
      %v7597 = verf.f32.pop %v7571
      %v7598 = verf.f32.pop %v7572
      %v7599 = verf.f32.pop %v7573
      %v7600 = verf.f32.pop %v7574
      %v7601 = verf.f32.pop %v7575
      %v7602 = verf.f32.pop %v7576
      %v7603 = verf.f32.pop %v7577
      %v7604 = verf.f32.pop %v7578
      %v7605 = verf.f32.pop %v7579
      %v7606 = verf.f32.pop %v7580
      %v7607 = verf.f32.pop %v7581
      %v7608 = verf.f32.pop %v7582
      %v7609 = verf.f32.pop %v7583
      %v7610 = verf.f32.pop %v7584
      %v7611 = verf.f32.pop %v7585
      %v7612 = verf.f32.pop %v7586
      %v7613 = vadd.f32 %v7587, 1.0
      %v7614 = vadd.f32 %v7588, 1.0
      %v7615 = vadd.f32 %v7589, 1.0
      %v7616 = vadd.f32 %v7590, 1.0
      %v7617 = vadd.f32 %v7591, 1.0
      %v7618 = vadd.f32 %v7592, 1.0
      %v7619 = vadd.f32 %v7593, 1.0
      %v7620 = vadd.f32 %v7594, 1.0
      %v7621 = vadd.f32 %v7595, 1.0
      %v7622 = vadd.f32 %v7596, 1.0
      %v7623 = vadd.f32 %v7597, 1.0
      %v7624 = vadd.f32 %v7598, 1.0
      %v7625 = vadd.f32 %v7599, 1.0
      %v7626 = vadd.f32 %v7600, 1.0
      %v7627 = vadd.f32 %v7601, 1.0
      %v7628 = vadd.f32 %v7602, 1.0
      %v7629 = vadd.f32 %v7603, 1.0
      %v7630 = vadd.f32 %v7604, 1.0
      %v7631 = vadd.f32 %v7605, 1.0
      %v7632 = vadd.f32 %v7606, 1.0
      %v7633 = vadd.f32 %v7607, 1.0
      %v7634 = vadd.f32 %v7608, 1.0
      %v7635 = vadd.f32 %v7609, 1.0
      %v7636 = vadd.f32 %v7610, 1.0
      %v7637 = vadd.f32 %v7611, 1.0
      %v7638 = vadd.f32 %v7612, 1.0
      %v7639 = vmul.f32 %v7535, %v7613
      %v7640 = vmul.f32 %v7536, %v7614
      %v7641 = vmul.f32 %v7537, %v7615
      %v7642 = vmul.f32 %v7538, %v7616
      %v7643 = vmul.f32 %v7539, %v7617
      %v7644 = vmul.f32 %v7540, %v7618
      %v7645 = vmul.f32 %v7541, %v7619
      %v7646 = vmul.f32 %v7542, %v7620
      %v7647 = vmul.f32 %v7543, %v7621
      %v7648 = vmul.f32 %v7544, %v7622
      %v7649 = vmul.f32 %v7545, %v7623
      %v7650 = vmul.f32 %v7546, %v7624
      %v7651 = vmul.f32 %v7547, %v7625
      %v7652 = vmul.f32 %v7548, %v7626
      %v7653 = vmul.f32 %v7549, %v7627
      %v7654 = vmul.f32 %v7550, %v7628
      %v7655 = vmul.f32 %v7551, %v7629
      %v7656 = vmul.f32 %v7552, %v7630
      %v7657 = vmul.f32 %v7553, %v7631
      %v7658 = vmul.f32 %v7554, %v7632
      %v7659 = vmul.f32 %v7555, %v7633
      %v7660 = vmul.f32 %v7556, %v7634
      %v7661 = vmul.f32 %v7557, %v7635
      %v7662 = vmul.f32 %v7558, %v7636
      %v7663 = vmul.f32 %v7559, %v7637
      %v7664 = vmul.f32 %v7560, %v7638
      %v7665 = vmax.f32 %v7639, %v7641
      %v7666 = vmax.f32 %v7640, %v7642
      %v7667 = vmax.f32 %v7665, %v7643
      %v7668 = vmax.f32 %v7666, %v7644
      %7669 = vst [vmem:[#allocation6] sm:$0xff] %v7667
      %7670 = vst [vmem:[#allocation6 + $0x8] sm:$0xff] %v7668
      %v7671 = vmax.f32 %v7643, %v7645
      %v7672 = vmax.f32 %v7644, %v7646
      %v7673 = vmax.f32 %v7671, %v7647
      %v7674 = vmax.f32 %v7672, %v7648
      %v7675 = vmax.f32 %v7673, %v7649
      %v7676 = vmax.f32 %v7674, %v7650
      %s7677 = scalar_lea.vmem [#allocation6], 16
      %7678 = vst [vmem:[%s7677] sm:$0xff] %v7675
      %7679 = vst [vmem:[%s7677 + $0x8] sm:$0xff] %v7676
      %v7680 = vmax.f32 %v7649, %v7651
      %v7681 = vmax.f32 %v7650, %v7652
      %v7682 = vmax.f32 %v7680, %v7653
      %v7683 = vmax.f32 %v7681, %v7654
      %s7684 = scalar_lea.vmem [#allocation6], 32
      %7685 = vst [vmem:[%s7684] sm:$0xff] %v7682
      %7686 = vst [vmem:[%s7684 + $0x8] sm:$0xff] %v7683
      %v7687 = vmax.f32 %v7653, %v7655
      %v7688 = vmax.f32 %v7654, %v7656
      %v7689 = vmax.f32 %v7687, %v7657
      %v7690 = vmax.f32 %v7688, %v7658
      %v7691 = vmax.f32 %v7689, %v7659
      %v7692 = vmax.f32 %v7690, %v7660
      %s7693 = scalar_lea.vmem [#allocation6], 48
      %7694 = vst [vmem:[%s7693] sm:$0xff] %v7691
      %7695 = vst [vmem:[%s7693 + $0x8] sm:$0xff] %v7692
      %v7696 = vmax.f32 %v7659, %v7661
      %v7697 = vmax.f32 %v7660, %v7662
      %v7698 = vmax.f32 %v7696, %v7663
      %v7699 = vmax.f32 %v7697, %v7664
      %s7700 = scalar_lea.vmem [#allocation6], 64
      %7701 = vst [vmem:[%s7700] sm:$0xff] %v7698
      %7702 = vst [vmem:[%s7700 + $0x8] sm:$0xff] %v7699
      %v7703 = vld [vmem:[#allocation6] sm:$0x7]
      %v7704 = vld [vmem:[#allocation6 + $0x10] sm:$0x7]
      %v7705 = vld [vmem:[#allocation6 + $0x20] sm:$0x7]
      %v7706 = vld [vmem:[#allocation6 + $0x30] sm:$0x7]
      %v7707 = vld [vmem:[#allocation6 + $0x40] sm:$0x7]
      %vm7708 = vcmask 1042432
      %v7709 = vsel %vm7708, %v7703, -inf
      %v7710 = vrot.slane %v7709, 4
      %v7711 = vmax.f32 %v7709, %v7710
      %v7712 = vrot.slane %v7711, 2
      %v7713 = vmax.f32 %v7711, %v7712
      %v7714 = vrot.slane %v7713, 1
      %v7715 = vmax.f32 %v7713, %v7714
      %v7716 = vsel %vm7708, %v7704, -inf
      %v7717 = vrot.slane %v7716, 4
      %v7718 = vmax.f32 %v7716, %v7717
      %v7719 = vrot.slane %v7718, 2
      %v7720 = vmax.f32 %v7718, %v7719
      %v7721 = vrot.slane %v7720, 1
      %v7722 = vmax.f32 %v7720, %v7721
      %v7723 = vsel %vm7708, %v7705, -inf
      %v7724 = vrot.slane %v7723, 4
      %v7725 = vmax.f32 %v7723, %v7724
      %v7726 = vrot.slane %v7725, 2
      %v7727 = vmax.f32 %v7725, %v7726
      %v7728 = vrot.slane %v7727, 1
      %v7729 = vmax.f32 %v7727, %v7728
      %v7730 = vsel %vm7708, %v7706, -inf
      %v7731 = vrot.slane %v7730, 4
      %v7732 = vmax.f32 %v7730, %v7731
      %v7733 = vrot.slane %v7732, 2
      %v7734 = vmax.f32 %v7732, %v7733
      %v7735 = vrot.slane %v7734, 1
      %v7736 = vmax.f32 %v7734, %v7735
      %v7737 = vsel %vm7708, %v7707, -inf
      %v7738 = vrot.slane %v7737, 4
      %v7739 = vmax.f32 %v7737, %v7738
      %v7740 = vrot.slane %v7739, 2
      %v7741 = vmax.f32 %v7739, %v7740
      %v7742 = vrot.slane %v7741, 1
      %v7743 = vmax.f32 %v7741, %v7742
      %v7744 = vld [vmem:[%s7] sm:$0x1]
      %v7746 = vlaneseq
      %v7747 = vshrl.u32 %v7746, 7
      %v7748 = vsub.s32 0, %v7747
      %v7749 = vrot.slane %v7744, %v7748
      %v7751 = vmul.f32 %v7715, %v7749
      %v7752 = vmul.f32 %v7722, %v7749
      %v7753 = vmul.f32 %v7729, %v7749
      %v7754 = vmul.f32 %v7736, %v7749
      %v7755 = vmul.f32 %v7743, %v7749
      %v7756 = vld [vmem:[%s8] sm:$0x1]
      %v7758 = vlaneseq
      %v7759 = vshrl.u32 %v7758, 7
      %v7760 = vsub.s32 0, %v7759
      %v7761 = vrot.slane %v7756, %v7760
      %v7763 = vadd.f32 %v7751, %v7761
      %v7764 = vadd.f32 %v7752, %v7761
      %v7765 = vadd.f32 %v7753, %v7761
      %v7766 = vadd.f32 %v7754, %v7761
      %v7767 = vadd.f32 %v7755, %v7761
      %v7773 = vrot.slane %v7764, 7
      %vm7774 = vcmask 1041409
      %v7775 = vsel %vm7774, %v7773, %v7763
      %v7776 = vrot.slane %v7765, 6
      %vm7777 = vcmask 1042434
      %v7778 = vsel %vm7777, %v7776, %v7775
      %v7779 = vrot.slane %v7766, 5
      %vm7780 = vcmask 1043459
      %v7781 = vsel %vm7780, %v7779, %v7778
      %v7782 = vrot.slane %v7767, 4
      %vm7783 = vcmask 1044484
      %v7784 = vsel %vm7783, %v7782, %v7781
      %7786 = vst [vmem:[%s332] sm:$0x1f] %v7784
      %v7787 = vld [vmem:[#allocation6 + $0x2] sm:$0xf]
      %v7788 = vld [vmem:[#allocation6 + $0x12] sm:$0xf]
      %v7789 = vld [vmem:[#allocation6 + $0x22] sm:$0xf]
      %v7790 = vld [vmem:[#allocation6 + $0x32] sm:$0xf]
      %v7791 = vld [vmem:[#allocation6 + $0x42] sm:$0xf]
      %vm7792 = vcmask 1043456
      %v7793 = vsel %vm7792, %v7787, -inf
      %v7794 = vrot.slane %v7793, 4
      %v7795 = vmax.f32 %v7793, %v7794
      %v7796 = vrot.slane %v7795, 2
      %v7797 = vmax.f32 %v7795, %v7796
      %v7798 = vrot.slane %v7797, 1
      %v7799 = vmax.f32 %v7797, %v7798
      %v7800 = vsel %vm7792, %v7788, -inf
      %v7801 = vrot.slane %v7800, 4
      %v7802 = vmax.f32 %v7800, %v7801
      %v7803 = vrot.slane %v7802, 2
      %v7804 = vmax.f32 %v7802, %v7803
      %v7805 = vrot.slane %v7804, 1
      %v7806 = vmax.f32 %v7804, %v7805
      %v7807 = vsel %vm7792, %v7789, -inf
      %v7808 = vrot.slane %v7807, 4
      %v7809 = vmax.f32 %v7807, %v7808
      %v7810 = vrot.slane %v7809, 2
      %v7811 = vmax.f32 %v7809, %v7810
      %v7812 = vrot.slane %v7811, 1
      %v7813 = vmax.f32 %v7811, %v7812
      %v7814 = vsel %vm7792, %v7790, -inf
      %v7815 = vrot.slane %v7814, 4
      %v7816 = vmax.f32 %v7814, %v7815
      %v7817 = vrot.slane %v7816, 2
      %v7818 = vmax.f32 %v7816, %v7817
      %v7819 = vrot.slane %v7818, 1
      %v7820 = vmax.f32 %v7818, %v7819
      %v7821 = vsel %vm7792, %v7791, -inf
      %v7822 = vrot.slane %v7821, 4
      %v7823 = vmax.f32 %v7821, %v7822
      %v7824 = vrot.slane %v7823, 2
      %v7825 = vmax.f32 %v7823, %v7824
      %v7826 = vrot.slane %v7825, 1
      %v7827 = vmax.f32 %v7825, %v7826
      %v7828 = vld [vmem:[%s7] sm:$0x1]
      %v7830 = vlaneseq
      %v7831 = vshrl.u32 %v7830, 7
      %v7832 = vsub.s32 0, %v7831
      %v7833 = vrot.slane %v7828, %v7832
      %v7835 = vmul.f32 %v7799, %v7833
      %v7836 = vmul.f32 %v7806, %v7833
      %v7837 = vmul.f32 %v7813, %v7833
      %v7838 = vmul.f32 %v7820, %v7833
      %v7839 = vmul.f32 %v7827, %v7833
      %v7840 = vld [vmem:[%s8] sm:$0x1]
      %v7842 = vlaneseq
      %v7843 = vshrl.u32 %v7842, 7
      %v7844 = vsub.s32 0, %v7843
      %v7845 = vrot.slane %v7840, %v7844
      %v7847 = vadd.f32 %v7835, %v7845
      %v7848 = vadd.f32 %v7836, %v7845
      %v7849 = vadd.f32 %v7837, %v7845
      %v7850 = vadd.f32 %v7838, %v7845
      %v7851 = vadd.f32 %v7839, %v7845
      %v7857 = vrot.slane %v7848, 7
      %v7858 = vsel %vm7774, %v7857, %v7847
      %v7859 = vrot.slane %v7849, 6
      %v7860 = vsel %vm7777, %v7859, %v7858
      %v7861 = vrot.slane %v7850, 5
      %v7862 = vsel %vm7780, %v7861, %v7860
      %v7863 = vrot.slane %v7851, 4
      %v7864 = vsel %vm7783, %v7863, %v7862
      %7866 = vst [vmem:[%s332 + $0x5] sm:$0x1f] %v7864
      %v7867 = vld [vmem:[#allocation6 + $0x5] sm:$0x7]
      %v7868 = vld [vmem:[#allocation6 + $0x15] sm:$0x7]
      %v7869 = vld [vmem:[#allocation6 + $0x25] sm:$0x7]
      %v7870 = vld [vmem:[#allocation6 + $0x35] sm:$0x7]
      %v7871 = vld [vmem:[#allocation6 + $0x45] sm:$0x7]
      %v7872 = vsel %vm7708, %v7867, -inf
      %v7873 = vrot.slane %v7872, 4
      %v7874 = vmax.f32 %v7872, %v7873
      %v7875 = vrot.slane %v7874, 2
      %v7876 = vmax.f32 %v7874, %v7875
      %v7877 = vrot.slane %v7876, 1
      %v7878 = vmax.f32 %v7876, %v7877
      %v7879 = vsel %vm7708, %v7868, -inf
      %v7880 = vrot.slane %v7879, 4
      %v7881 = vmax.f32 %v7879, %v7880
      %v7882 = vrot.slane %v7881, 2
      %v7883 = vmax.f32 %v7881, %v7882
      %v7884 = vrot.slane %v7883, 1
      %v7885 = vmax.f32 %v7883, %v7884
      %v7886 = vsel %vm7708, %v7869, -inf
      %v7887 = vrot.slane %v7886, 4
      %v7888 = vmax.f32 %v7886, %v7887
      %v7889 = vrot.slane %v7888, 2
      %v7890 = vmax.f32 %v7888, %v7889
      %v7891 = vrot.slane %v7890, 1
      %v7892 = vmax.f32 %v7890, %v7891
      %v7893 = vsel %vm7708, %v7870, -inf
      %v7894 = vrot.slane %v7893, 4
      %v7895 = vmax.f32 %v7893, %v7894
      %v7896 = vrot.slane %v7895, 2
      %v7897 = vmax.f32 %v7895, %v7896
      %v7898 = vrot.slane %v7897, 1
      %v7899 = vmax.f32 %v7897, %v7898
      %v7900 = vsel %vm7708, %v7871, -inf
      %v7901 = vrot.slane %v7900, 4
      %v7902 = vmax.f32 %v7900, %v7901
      %v7903 = vrot.slane %v7902, 2
      %v7904 = vmax.f32 %v7902, %v7903
      %v7905 = vrot.slane %v7904, 1
      %v7906 = vmax.f32 %v7904, %v7905
      %v7907 = vld [vmem:[%s7] sm:$0x1]
      %v7909 = vlaneseq
      %v7910 = vshrl.u32 %v7909, 7
      %v7911 = vsub.s32 0, %v7910
      %v7912 = vrot.slane %v7907, %v7911
      %v7914 = vmul.f32 %v7878, %v7912
      %v7915 = vmul.f32 %v7885, %v7912
      %v7916 = vmul.f32 %v7892, %v7912
      %v7917 = vmul.f32 %v7899, %v7912
      %v7918 = vmul.f32 %v7906, %v7912
      %v7919 = vld [vmem:[%s8] sm:$0x1]
      %v7921 = vlaneseq
      %v7922 = vshrl.u32 %v7921, 7
      %v7923 = vsub.s32 0, %v7922
      %v7924 = vrot.slane %v7919, %v7923
      %v7926 = vadd.f32 %v7914, %v7924
      %v7927 = vadd.f32 %v7915, %v7924
      %v7928 = vadd.f32 %v7916, %v7924
      %v7929 = vadd.f32 %v7917, %v7924
      %v7930 = vadd.f32 %v7918, %v7924
      %v7936 = vrot.slane %v7927, 7
      %v7937 = vsel %vm7774, %v7936, %v7926
      %v7938 = vrot.slane %v7928, 6
      %v7939 = vsel %vm7777, %v7938, %v7937
      %v7940 = vrot.slane %v7929, 5
      %v7941 = vsel %vm7780, %v7940, %v7939
      %v7942 = vrot.slane %v7930, 4
      %v7943 = vsel %vm7783, %v7942, %v7941
      %7945 = vst [vmem:[%s332 + $0xa] sm:$0x1f] %v7943
      %v7946 = vld [vmem:[#allocation6 + $0x7] sm:$0xf]
      %v7947 = vld [vmem:[#allocation6 + $0x17] sm:$0xf]
      %v7948 = vld [vmem:[#allocation6 + $0x27] sm:$0xf]
      %v7949 = vld [vmem:[#allocation6 + $0x37] sm:$0xf]
      %v7950 = vld [vmem:[#allocation6 + $0x47] sm:$0xf]
      %v7951 = vsel %vm7792, %v7946, -inf
      %v7952 = vrot.slane %v7951, 4
      %v7953 = vmax.f32 %v7951, %v7952
      %v7954 = vrot.slane %v7953, 2
      %v7955 = vmax.f32 %v7953, %v7954
      %v7956 = vrot.slane %v7955, 1
      %v7957 = vmax.f32 %v7955, %v7956
      %v7958 = vsel %vm7792, %v7947, -inf
      %v7959 = vrot.slane %v7958, 4
      %v7960 = vmax.f32 %v7958, %v7959
      %v7961 = vrot.slane %v7960, 2
      %v7962 = vmax.f32 %v7960, %v7961
      %v7963 = vrot.slane %v7962, 1
      %v7964 = vmax.f32 %v7962, %v7963
      %v7965 = vsel %vm7792, %v7948, -inf
      %v7966 = vrot.slane %v7965, 4
      %v7967 = vmax.f32 %v7965, %v7966
      %v7968 = vrot.slane %v7967, 2
      %v7969 = vmax.f32 %v7967, %v7968
      %v7970 = vrot.slane %v7969, 1
      %v7971 = vmax.f32 %v7969, %v7970
      %v7972 = vsel %vm7792, %v7949, -inf
      %v7973 = vrot.slane %v7972, 4
      %v7974 = vmax.f32 %v7972, %v7973
      %v7975 = vrot.slane %v7974, 2
      %v7976 = vmax.f32 %v7974, %v7975
      %v7977 = vrot.slane %v7976, 1
      %v7978 = vmax.f32 %v7976, %v7977
      %v7979 = vsel %vm7792, %v7950, -inf
      %v7980 = vrot.slane %v7979, 4
      %v7981 = vmax.f32 %v7979, %v7980
      %v7982 = vrot.slane %v7981, 2
      %v7983 = vmax.f32 %v7981, %v7982
      %v7984 = vrot.slane %v7983, 1
      %v7985 = vmax.f32 %v7983, %v7984
      %v7986 = vld [vmem:[%s7] sm:$0x1]
      %v7988 = vlaneseq
      %v7989 = vshrl.u32 %v7988, 7
      %v7990 = vsub.s32 0, %v7989
      %v7991 = vrot.slane %v7986, %v7990
      %v7993 = vmul.f32 %v7957, %v7991
      %v7994 = vmul.f32 %v7964, %v7991
      %v7995 = vmul.f32 %v7971, %v7991
      %v7996 = vmul.f32 %v7978, %v7991
      %v7997 = vmul.f32 %v7985, %v7991
      %v7998 = vld [vmem:[%s8] sm:$0x1]
      %v8000 = vlaneseq
      %v8001 = vshrl.u32 %v8000, 7
      %v8002 = vsub.s32 0, %v8001
      %v8003 = vrot.slane %v7998, %v8002
      %v8005 = vadd.f32 %v7993, %v8003
      %v8006 = vadd.f32 %v7994, %v8003
      %v8007 = vadd.f32 %v7995, %v8003
      %v8008 = vadd.f32 %v7996, %v8003
      %v8009 = vadd.f32 %v7997, %v8003
      %v8015 = vrot.slane %v8006, 7
      %v8016 = vsel %vm7774, %v8015, %v8005
      %v8017 = vrot.slane %v8007, 6
      %v8018 = vsel %vm7777, %v8017, %v8016
      %v8019 = vrot.slane %v8008, 5
      %v8020 = vsel %vm7780, %v8019, %v8018
      %v8021 = vrot.slane %v8009, 4
      %v8022 = vsel %vm7783, %v8021, %v8020
      %8024 = vst [vmem:[%s332 + $0xf] sm:$0x1f] %v8022
      %v8025 = vld [vmem:[#allocation6 + $0xa] sm:$0x7]
      %v8026 = vld [vmem:[#allocation6 + $0x1a] sm:$0x7]
      %v8027 = vld [vmem:[#allocation6 + $0x2a] sm:$0x7]
      %v8028 = vld [vmem:[#allocation6 + $0x3a] sm:$0x7]
      %v8029 = vld [vmem:[#allocation6 + $0x4a] sm:$0x7]
      %v8030 = vsel %vm7708, %v8025, -inf
      %v8031 = vrot.slane %v8030, 4
      %v8032 = vmax.f32 %v8030, %v8031
      %v8033 = vrot.slane %v8032, 2
      %v8034 = vmax.f32 %v8032, %v8033
      %v8035 = vrot.slane %v8034, 1
      %v8036 = vmax.f32 %v8034, %v8035
      %v8037 = vsel %vm7708, %v8026, -inf
      %v8038 = vrot.slane %v8037, 4
      %v8039 = vmax.f32 %v8037, %v8038
      %v8040 = vrot.slane %v8039, 2
      %v8041 = vmax.f32 %v8039, %v8040
      %v8042 = vrot.slane %v8041, 1
      %v8043 = vmax.f32 %v8041, %v8042
      %v8044 = vsel %vm7708, %v8027, -inf
      %v8045 = vrot.slane %v8044, 4
      %v8046 = vmax.f32 %v8044, %v8045
      %v8047 = vrot.slane %v8046, 2
      %v8048 = vmax.f32 %v8046, %v8047
      %v8049 = vrot.slane %v8048, 1
      %v8050 = vmax.f32 %v8048, %v8049
      %v8051 = vsel %vm7708, %v8028, -inf
      %v8052 = vrot.slane %v8051, 4
      %v8053 = vmax.f32 %v8051, %v8052
      %v8054 = vrot.slane %v8053, 2
      %v8055 = vmax.f32 %v8053, %v8054
      %v8056 = vrot.slane %v8055, 1
      %v8057 = vmax.f32 %v8055, %v8056
      %v8058 = vsel %vm7708, %v8029, -inf
      %v8059 = vrot.slane %v8058, 4
      %v8060 = vmax.f32 %v8058, %v8059
      %v8061 = vrot.slane %v8060, 2
      %v8062 = vmax.f32 %v8060, %v8061
      %v8063 = vrot.slane %v8062, 1
      %v8064 = vmax.f32 %v8062, %v8063
      %v8065 = vld [vmem:[%s7] sm:$0x1]
      %v8067 = vlaneseq
      %v8068 = vshrl.u32 %v8067, 7
      %v8069 = vsub.s32 0, %v8068
      %v8070 = vrot.slane %v8065, %v8069
      %v8072 = vmul.f32 %v8036, %v8070
      %v8073 = vmul.f32 %v8043, %v8070
      %v8074 = vmul.f32 %v8050, %v8070
      %v8075 = vmul.f32 %v8057, %v8070
      %v8076 = vmul.f32 %v8064, %v8070
      %v8077 = vld [vmem:[%s8] sm:$0x1]
      %v8079 = vlaneseq
      %v8080 = vshrl.u32 %v8079, 7
      %v8081 = vsub.s32 0, %v8080
      %v8082 = vrot.slane %v8077, %v8081
      %v8084 = vadd.f32 %v8072, %v8082
      %v8085 = vadd.f32 %v8073, %v8082
      %v8086 = vadd.f32 %v8074, %v8082
      %v8087 = vadd.f32 %v8075, %v8082
      %v8088 = vadd.f32 %v8076, %v8082
      %v8094 = vrot.slane %v8085, 7
      %v8095 = vsel %vm7774, %v8094, %v8084
      %v8096 = vrot.slane %v8086, 6
      %v8097 = vsel %vm7777, %v8096, %v8095
      %v8098 = vrot.slane %v8087, 5
      %v8099 = vsel %vm7780, %v8098, %v8097
      %v8100 = vrot.slane %v8088, 4
      %v8101 = vsel %vm7783, %v8100, %v8099
      %8103 = vst [vmem:[%s332 + $0x14] sm:$0x1f] %v8101
      %p8104 = scmp.lt.s32.totalorder %s20, 1
      %s8105 = scalar_select %p8104, %s20, 1
      %s8106 = smul.addr %s8105, 4
      %s8107 = smul.addr %s8106, 8
      %s8108 = scalar_lea.vmem %s9, %s8107
      // Predicated region
      $region57: #{conv_patch_encoder_forward.2} parent=55 // pred_check
        %p8109 = pneg %p232
      $region58: #{conv_patch_encoder_forward.2} parent=55 // pred_check_branch
        %8111 = sbr.rel (%p8109) target = $region60
      $region59: #{conv_patch_encoder_forward.2} parent=55 // pred_region
        _
      $region60: #{conv_patch_encoder_forward.2} parent=55 // pred_fallthru
        _
    $region56: #{conv_patch_encoder_forward.2} parent=5 // pred_fallthru
      _
    %p8112 = scmp.le.s32.totalorder 2, %s15
    // Predicated region
    $region61: #{conv_patch_encoder_forward.2} parent=5 // pred_check
      %p8113 = pneg %p8112
    $region62: #{conv_patch_encoder_forward.2} parent=5 // pred_check_branch
      %8115 = sbr.rel (%p8113) target = $region64
    $region63: #{conv_patch_encoder_forward.2} parent=5 // pred_region
      %s8116 = ssub.s32 %s15, 2
      // Predicated region
      $region65: #{conv_patch_encoder_forward.2} parent=63 // pred_check
        %p8117 = pneg %p238
      $region66: #{conv_patch_encoder_forward.2} parent=63 // pred_check_branch
        %8119 = sbr.rel (%p8117) target = $region68
      $region67: #{conv_patch_encoder_forward.2} parent=63 // pred_region
        %p8120 = scmp.lt.s32.totalorder %s21, 1
        %s8121 = scalar_select %p8120, %s21, 1
        %s8122 = smul.addr %s8121, 4
        %s8123 = smul.addr %s8122, 8
        %s8124 = scalar_lea.vmem %s9, %s8123
      $region68: #{conv_patch_encoder_forward.2} parent=63 // pred_fallthru
        _
    $region64: #{conv_patch_encoder_forward.2} parent=5 // pred_fallthru
      _
  $region6: #{conv_patch_encoder_forward.2} parent=0 // loop_footer
    %s19 = sadd.s32 1, %s15
  $region7: #{conv_patch_encoder_forward.2} parent=0 // loop_footer_branch
    %14 = sbr.rel target = $region3
  $region8: #{conv_patch_encoder_forward.2} parent=0 // loop_exit
    _

</llo_original>
